<compile_context>
chip_gen: v6e
topology: v6e:2x2x1
jax: 0.10.0
libtpu: 0.0.40
codegen_flags: <defaults>
</compile_context>

<pallas_src>
import math

import jax
import jax.numpy as jnp
from jax import lax
from jax.experimental import pallas as pl
from jax.experimental.pallas import tpu as pltpu

# ---------------- small, deterministic config ----------------
B = 2
T = 64                       # block_size >= T, T % N_LANDMARKS == 0
N_EMBD = 32
N_HEAD = 4
HS = N_EMBD // N_HEAD        # 8
N_LANDMARKS = 8
N_ITER_INV = 6


# ---------------- helpers usable inside kernels ----------------
def _softmax_last(x, approx=False):
    m = jnp.max(x, axis=-1, keepdims=True)
    e = jnp.exp(x - m)
    s = jnp.sum(e, axis=-1, keepdims=True)
    if approx:
        return e * pl.reciprocal(s, approx=True)   # EUP slot, otherwise idle
    return e / s


# ---------------- fused Pallas kernel ----------------
def _fused_nystrom_kernel(x_ref, wqkv_ref, bqkv_ref, wproj_ref, bproj_ref, o_ref):
    # per grid step (one batch element): x, o are (T, C)
    Tq, C = o_ref.shape
    nh = N_HEAD
    hs = C // nh
    m = N_LANDMARKS
    g = Tq // m
    scale = 1.0 / math.sqrt(hs)
    f32 = jnp.float32
    bf16 = jnp.bfloat16

    x = x_ref[...]                                            # (T, C) f32

    # ---- fused qkv projection; kept f32 (feeds the pseudo-inverse path) ----
    qkv = jnp.dot(x, wqkv_ref[...], preferred_element_type=f32) + bqkv_ref[...]
    q2d = qkv[:, 0 * C:1 * C]                                 # (T, C)
    k2d = qkv[:, 1 * C:2 * C]
    v2d = qkv[:, 2 * C:3 * C]

    # ---- landmark pooling: segment mean along T on the lane-dense slabs ----
    q_l2d = jnp.mean(q2d.reshape(m, g, C), axis=1)            # (m, C)
    k_l2d = jnp.mean(k2d.reshape(m, g, C), axis=1)            # (m, C)

    # ---- split heads to a leading batch axis (lane slices + leading concat) ----
    def heads(a):                                             # (R, C) -> (nh, R, hs)
        return jnp.concatenate(
            [a[:, h * hs:(h + 1) * hs][None, :, :] for h in range(nh)], axis=0)

    q, k, v = heads(q2d), heads(k2d), heads(v2d)              # (nh, T, hs)
    q_l, k_l = heads(q_l2d), heads(k_l2d)                     # (nh, m, hs)

    # ---- L = softmax(q @ k_l^T / sqrt(hs))            (nh, T, m) ----
    s1 = jnp.einsum('htd,hmd->htm', q.astype(bf16), k_l.astype(bf16),
                    preferred_element_type=f32) * scale
    L = _softmax_last(s1, approx=True)

    # ---- Kmat = softmax(q_l @ k_l^T / sqrt(hs)), Newton-Schulz pinv (all f32) ----
    s2 = jnp.einsum('hmd,hnd->hmn', q_l, k_l, preferred_element_type=f32) * scale
    Kmat = _softmax_last(s2, approx=False)                    # (nh, m, m)

    eye = (lax.broadcasted_iota(jnp.int32, (m, m), 0)
           == lax.broadcasted_iota(jnp.int32, (m, m), 1)).astype(f32)
    denom = jnp.max(jnp.sum(Kmat, axis=-2, keepdims=True), axis=-1, keepdims=True)
    kmat_t = jnp.concatenate([Kmat[h].T[None, :, :] for h in range(nh)], axis=0)
    V = kmat_t / denom
    for _ in range(N_ITER_INV):
        KV = jnp.matmul(Kmat, V)
        t1 = 7.0 * eye - KV
        t2 = 15.0 * eye - jnp.matmul(KV, t1)
        t3 = 13.0 * eye - jnp.matmul(KV, t2)
        V = jnp.matmul(0.25 * V, t3)
    P = V                                                     # (nh, m, m)

    # ---- N = softmax(mask(q_l @ k^T) / sqrt(hs))      (nh, m, T) ----
    n_prod = jnp.einsum('hmd,htd->hmt', q_l.astype(bf16), k.astype(bf16),
                        preferred_element_type=f32)
    row_mt = lax.broadcasted_iota(jnp.int32, (m, Tq), 0)
    col_mt = lax.broadcasted_iota(jnp.int32, (m, Tq), 1)
    n_masked = jnp.where(col_mt > row_mt, -1e30, n_prod) * scale
    N = _softmax_last(n_masked, approx=True)

    # ---- att = (L @ P) @ N ; y = att @ v (same association as PyTorch) ----
    LP = jnp.einsum('htm,hmn->htn', L, P, preferred_element_type=f32)
    att = jnp.einsum('htn,hns->hts', LP.astype(bf16), N.astype(bf16),
                     preferred_element_type=f32)              # (nh, T, T)
    y_h = jnp.einsum('hts,hsd->htd', att.astype(bf16), v.astype(bf16),
                     preferred_element_type=f32)              # (nh, T, hs)

    # ---- merge heads (lane concat -> lane-dense (T, C)) + output projection ----
    y2d = jnp.concatenate([y_h[h] for h in range(nh)], axis=-1)   # (T, C)
    o_ref[...] = (jnp.dot(y2d.astype(bf16), wproj_ref[...].astype(bf16),
                          preferred_element_type=f32) + bproj_ref[...])


# ---------------- wrapper ----------------
def prepare_kernel_params(params):
    """One-time repack of PyTorch-layout params into kernel (K, N) layout."""
    C = params["w_proj"].shape[0]
    return {
        "wqkv_t": jnp.asarray(params["w_attn"]).T,            # (C, 3C)
        "bqkv": jnp.asarray(params["b_attn"]).reshape(1, 3 * C),
        "wproj_t": jnp.asarray(params["w_proj"]).T,           # (C, C)
        "bproj": jnp.asarray(params["b_proj"]).reshape(1, C),
    }


def nystrom_attention_forward(x, kernel_params):
    Bx, Tx, Cx = x.shape
    spec_x = pl.BlockSpec((None, Tx, Cx), lambda b: (b, 0, 0))
    full2d = lambda shape: pl.BlockSpec(shape, lambda b: (0, 0))
    return pl.pallas_call(
        _fused_nystrom_kernel,
        out_shape=jax.ShapeDtypeStruct((Bx, Tx, Cx), jnp.float32),
        grid=(Bx,),
        in_specs=[
            spec_x,                       # x
            full2d((Cx, 3 * Cx)),         # wqkv (pre-transposed)
            full2d((1, 3 * Cx)),          # bqkv
            full2d((Cx, Cx)),             # wproj (pre-transposed)
            full2d((1, Cx)),              # bproj
        ],
        out_specs=spec_x,
        compiler_params=pltpu.CompilerParams(
            dimension_semantics=("parallel",)),
    )(x, kernel_params["wqkv_t"], kernel_params["bqkv"],
      kernel_params["wproj_t"], kernel_params["bproj"])


# ---------------- pure-JAX reference (mirrors the PyTorch code) ----------------
def reference_forward(x, params):
    Bx, Tx, C = x.shape
    nh, hs, m = N_HEAD, C // N_HEAD, N_LANDMARKS
    scale = 1.0 / math.sqrt(hs)

    qkv = x @ params["w_attn"].T + params["b_attn"]
    q, k, v = jnp.split(qkv, 3, axis=2)
    q = q.reshape(Bx, Tx, nh, hs).transpose(0, 2, 1, 3)
    k = k.reshape(Bx, Tx, nh, hs).transpose(0, 2, 1, 3)
    v = v.reshape(Bx, Tx, nh, hs).transpose(0, 2, 1, 3)

    q_l = q.reshape(Bx, nh, m, Tx // m, hs).mean(axis=-2)
    k_l = k.reshape(Bx, nh, m, Tx // m, hs).mean(axis=-2)

    L = jax.nn.softmax(q @ jnp.swapaxes(k_l, -1, -2) * scale, axis=-1)
    Kmat = jax.nn.softmax(q_l @ jnp.swapaxes(k_l, -1, -2) * scale, axis=-1)

    eye = jnp.eye(m, dtype=jnp.float32)
    denom = jnp.max(jnp.sum(Kmat, axis=-2), axis=-1)[..., None, None]
    V = (1.0 / denom) * jnp.swapaxes(Kmat, -1, -2)
    for _ in range(N_ITER_INV):
        KV = Kmat @ V
        V = (0.25 * V) @ (13.0 * eye - KV @ (15.0 * eye - KV @ (7.0 * eye - KV)))
    P = V

    n_prod = q_l @ jnp.swapaxes(k, -1, -2)
    mask = jnp.tril(jnp.ones((m, Tx), dtype=jnp.float32)) == 0
    N = jax.nn.softmax(jnp.where(mask, -jnp.inf, n_prod) * scale, axis=-1)

    att = L @ P @ N
    y = att @ v
    y = y.transpose(0, 2, 1, 3).reshape(Bx, Tx, C)
    y = y @ params["w_proj"].T + params["b_proj"]
    return y


if __name__ == "__main__":
    key = jax.random.PRNGKey(0)
    k1, k2, k3, k4, k5 = jax.random.split(key, 5)
    params = {
        "w_attn": 0.2 * jax.random.normal(k1, (3 * N_EMBD, N_EMBD), jnp.float32),
        "b_attn": 0.2 * jax.random.normal(k2, (3 * N_EMBD,), jnp.float32),
        "w_proj": 0.2 * jax.random.normal(k3, (N_EMBD, N_EMBD), jnp.float32),
        "b_proj": 0.2 * jax.random.normal(k4, (N_EMBD,), jnp.float32),
    }
    x = jax.random.normal(k5, (B, T, N_EMBD), jnp.float32)

    kparams = prepare_kernel_params(params)     # weights transposed once, outside the call
    y = jax.block_until_ready(nystrom_attention_forward(x, kparams))
    y_ref = jax.block_until_ready(reference_forward(x, params))

    assert y.shape == (B, T, N_EMBD)
    err = float(jnp.max(jnp.abs(y - y_ref)))
    ref_scale = float(jnp.max(jnp.abs(y_ref)))
    assert err <= 5e-2 * max(1.0, ref_scale), f"max abs err {err} (ref max {ref_scale})"
    print("KERNEL_OK")
</pallas_src>

<mosaic_0001>
module attributes {stable_mosaic.version = 11 : i64} {
  func.func @_fused_nystrom_kernel(%arg0: i32, %arg1: memref<1x64x32xf32, #tpu.memory_space<vmem>>, %arg2: memref<32x96xf32, #tpu.memory_space<vmem>>, %arg3: memref<1x96xf32, #tpu.memory_space<vmem>>, %arg4: memref<32x32xf32, #tpu.memory_space<vmem>>, %arg5: memref<1x32xf32, #tpu.memory_space<vmem>>, %arg6: memref<1x64x32xf32, #tpu.memory_space<vmem>>) attributes {dimension_semantics = [#tpu.dimension_semantics<parallel>], iteration_bounds = array<i64: 2>, scalar_prefetch = 0 : i64, scratch_operands = 0 : i64, tpu.core_type = #tpu.core_type<tc>, window_params = [{transform_indices = @transform_0, window_bounds = array<i64: 1, 64, 32>}, {pipeline_mode = #tpu.pipeline_mode<synchronous>, transform_indices = @transform_1, window_bounds = array<i64: 32, 96>}, {pipeline_mode = #tpu.pipeline_mode<synchronous>, transform_indices = @transform_2, window_bounds = array<i64: 1, 96>}, {pipeline_mode = #tpu.pipeline_mode<synchronous>, transform_indices = @transform_3, window_bounds = array<i64: 32, 32>}, {pipeline_mode = #tpu.pipeline_mode<synchronous>, transform_indices = @transform_4, window_bounds = array<i64: 1, 32>}, {transform_indices = @transform_5, window_bounds = array<i64: 1, 64, 32>}]} {
    %c0 = arith.constant 0 : index
    %c0_0 = arith.constant 0 : index
    %c0_1 = arith.constant 0 : index
    %0 = vector.load %arg1[%c0, %c0_0, %c0_1] : memref<1x64x32xf32, #tpu.memory_space<vmem>>, vector<1x64x32xf32>
    %1 = vector.shape_cast %0 : vector<1x64x32xf32> to vector<64x32xf32>
    %c0_2 = arith.constant 0 : index
    %c0_3 = arith.constant 0 : index
    %2 = vector.load %arg2[%c0_2, %c0_3] : memref<32x96xf32, #tpu.memory_space<vmem>>, vector<32x96xf32>
    %cst = arith.constant dense<0.000000e+00> : vector<64x96xf32>
    %3 = tpu.matmul %1, %2, %cst {dimension_numbers = #tpu.dot_dimension_numbers<[1], [0], [0], [1], [0, 0, 1, 1], [], []>} : vector<64x32xf32>, vector<32x96xf32>, vector<64x96xf32> -> vector<64x96xf32>
    %c0_4 = arith.constant 0 : index
    %c0_5 = arith.constant 0 : index
    %4 = vector.load %arg3[%c0_4, %c0_5] : memref<1x96xf32, #tpu.memory_space<vmem>>, vector<1x96xf32>
    %5 = vector.broadcast %4 : vector<1x96xf32> to vector<64x96xf32>
    %6 = arith.addf %3, %5 : vector<64x96xf32>
    %7 = vector.extract_strided_slice %6 {offsets = [0, 0], sizes = [64, 32], strides = [1, 1]} : vector<64x96xf32> to vector<64x32xf32>
    %8 = vector.extract_strided_slice %6 {offsets = [0, 32], sizes = [64, 32], strides = [1, 1]} : vector<64x96xf32> to vector<64x32xf32>
    %9 = vector.extract_strided_slice %6 {offsets = [0, 64], sizes = [64, 32], strides = [1, 1]} : vector<64x96xf32> to vector<64x32xf32>
    %10 = vector.shape_cast %7 : vector<64x32xf32> to vector<8x8x32xf32>
    %cst_6 = arith.constant dense<0.000000e+00> : vector<8x32xf32>
    %11 = vector.multi_reduction <add>, %10, %cst_6 [1] : vector<8x8x32xf32> to vector<8x32xf32>
    %cst_7 = arith.constant 8.000000e+00 : f32
    %12 = vector.broadcast %cst_7 : f32 to vector<8x32xf32>
    %13 = arith.divf %11, %12 : vector<8x32xf32>
    %14 = vector.shape_cast %8 : vector<64x32xf32> to vector<8x8x32xf32>
    %cst_8 = arith.constant dense<0.000000e+00> : vector<8x32xf32>
    %15 = vector.multi_reduction <add>, %14, %cst_8 [1] : vector<8x8x32xf32> to vector<8x32xf32>
    %cst_9 = arith.constant 8.000000e+00 : f32
    %16 = vector.broadcast %cst_9 : f32 to vector<8x32xf32>
    %17 = arith.divf %15, %16 : vector<8x32xf32>
    %18 = vector.extract_strided_slice %7 {offsets = [0, 0], sizes = [64, 8], strides = [1, 1]} : vector<64x32xf32> to vector<64x8xf32>
    %19 = vector.shape_cast %18 : vector<64x8xf32> to vector<1x64x8xf32>
    %20 = vector.extract_strided_slice %7 {offsets = [0, 8], sizes = [64, 8], strides = [1, 1]} : vector<64x32xf32> to vector<64x8xf32>
    %21 = vector.shape_cast %20 : vector<64x8xf32> to vector<1x64x8xf32>
    %22 = vector.extract_strided_slice %7 {offsets = [0, 16], sizes = [64, 8], strides = [1, 1]} : vector<64x32xf32> to vector<64x8xf32>
    %23 = vector.shape_cast %22 : vector<64x8xf32> to vector<1x64x8xf32>
    %24 = vector.extract_strided_slice %7 {offsets = [0, 24], sizes = [64, 8], strides = [1, 1]} : vector<64x32xf32> to vector<64x8xf32>
    %25 = vector.shape_cast %24 : vector<64x8xf32> to vector<1x64x8xf32>
    %26 = tpu.concatenate %19, %21, %23, %25 in 0 : vector<1x64x8xf32>, vector<1x64x8xf32>, vector<1x64x8xf32>, vector<1x64x8xf32> -> vector<4x64x8xf32>
    %27 = vector.extract_strided_slice %8 {offsets = [0, 0], sizes = [64, 8], strides = [1, 1]} : vector<64x32xf32> to vector<64x8xf32>
    %28 = vector.shape_cast %27 : vector<64x8xf32> to vector<1x64x8xf32>
    %29 = vector.extract_strided_slice %8 {offsets = [0, 8], sizes = [64, 8], strides = [1, 1]} : vector<64x32xf32> to vector<64x8xf32>
    %30 = vector.shape_cast %29 : vector<64x8xf32> to vector<1x64x8xf32>
    %31 = vector.extract_strided_slice %8 {offsets = [0, 16], sizes = [64, 8], strides = [1, 1]} : vector<64x32xf32> to vector<64x8xf32>
    %32 = vector.shape_cast %31 : vector<64x8xf32> to vector<1x64x8xf32>
    %33 = vector.extract_strided_slice %8 {offsets = [0, 24], sizes = [64, 8], strides = [1, 1]} : vector<64x32xf32> to vector<64x8xf32>
    %34 = vector.shape_cast %33 : vector<64x8xf32> to vector<1x64x8xf32>
    %35 = tpu.concatenate %28, %30, %32, %34 in 0 : vector<1x64x8xf32>, vector<1x64x8xf32>, vector<1x64x8xf32>, vector<1x64x8xf32> -> vector<4x64x8xf32>
    %36 = vector.extract_strided_slice %9 {offsets = [0, 0], sizes = [64, 8], strides = [1, 1]} : vector<64x32xf32> to vector<64x8xf32>
    %37 = vector.shape_cast %36 : vector<64x8xf32> to vector<1x64x8xf32>
    %38 = vector.extract_strided_slice %9 {offsets = [0, 8], sizes = [64, 8], strides = [1, 1]} : vector<64x32xf32> to vector<64x8xf32>
    %39 = vector.shape_cast %38 : vector<64x8xf32> to vector<1x64x8xf32>
    %40 = vector.extract_strided_slice %9 {offsets = [0, 16], sizes = [64, 8], strides = [1, 1]} : vector<64x32xf32> to vector<64x8xf32>
    %41 = vector.shape_cast %40 : vector<64x8xf32> to vector<1x64x8xf32>
    %42 = vector.extract_strided_slice %9 {offsets = [0, 24], sizes = [64, 8], strides = [1, 1]} : vector<64x32xf32> to vector<64x8xf32>
    %43 = vector.shape_cast %42 : vector<64x8xf32> to vector<1x64x8xf32>
    %44 = tpu.concatenate %37, %39, %41, %43 in 0 : vector<1x64x8xf32>, vector<1x64x8xf32>, vector<1x64x8xf32>, vector<1x64x8xf32> -> vector<4x64x8xf32>
    %45 = vector.extract_strided_slice %13 {offsets = [0, 0], sizes = [8, 8], strides = [1, 1]} : vector<8x32xf32> to vector<8x8xf32>
    %46 = vector.shape_cast %45 : vector<8x8xf32> to vector<1x8x8xf32>
    %47 = vector.extract_strided_slice %13 {offsets = [0, 8], sizes = [8, 8], strides = [1, 1]} : vector<8x32xf32> to vector<8x8xf32>
    %48 = vector.shape_cast %47 : vector<8x8xf32> to vector<1x8x8xf32>
    %49 = vector.extract_strided_slice %13 {offsets = [0, 16], sizes = [8, 8], strides = [1, 1]} : vector<8x32xf32> to vector<8x8xf32>
    %50 = vector.shape_cast %49 : vector<8x8xf32> to vector<1x8x8xf32>
    %51 = vector.extract_strided_slice %13 {offsets = [0, 24], sizes = [8, 8], strides = [1, 1]} : vector<8x32xf32> to vector<8x8xf32>
    %52 = vector.shape_cast %51 : vector<8x8xf32> to vector<1x8x8xf32>
    %53 = tpu.concatenate %46, %48, %50, %52 in 0 : vector<1x8x8xf32>, vector<1x8x8xf32>, vector<1x8x8xf32>, vector<1x8x8xf32> -> vector<4x8x8xf32>
    %54 = vector.extract_strided_slice %17 {offsets = [0, 0], sizes = [8, 8], strides = [1, 1]} : vector<8x32xf32> to vector<8x8xf32>
    %55 = vector.shape_cast %54 : vector<8x8xf32> to vector<1x8x8xf32>
    %56 = vector.extract_strided_slice %17 {offsets = [0, 8], sizes = [8, 8], strides = [1, 1]} : vector<8x32xf32> to vector<8x8xf32>
    %57 = vector.shape_cast %56 : vector<8x8xf32> to vector<1x8x8xf32>
    %58 = vector.extract_strided_slice %17 {offsets = [0, 16], sizes = [8, 8], strides = [1, 1]} : vector<8x32xf32> to vector<8x8xf32>
    %59 = vector.shape_cast %58 : vector<8x8xf32> to vector<1x8x8xf32>
    %60 = vector.extract_strided_slice %17 {offsets = [0, 24], sizes = [8, 8], strides = [1, 1]} : vector<8x32xf32> to vector<8x8xf32>
    %61 = vector.shape_cast %60 : vector<8x8xf32> to vector<1x8x8xf32>
    %62 = tpu.concatenate %55, %57, %59, %61 in 0 : vector<1x8x8xf32>, vector<1x8x8xf32>, vector<1x8x8xf32>, vector<1x8x8xf32> -> vector<4x8x8xf32>
    %63 = arith.truncf %26 : vector<4x64x8xf32> to vector<4x64x8xbf16>
    %64 = arith.truncf %62 : vector<4x8x8xf32> to vector<4x8x8xbf16>
    "tpu.trace_start"() <{level = 10 : i32, message = "htd,hmd->htm"}> : () -> ()
    %cst_10 = arith.constant dense<0.000000e+00> : vector<4x64x8xf32>
    %65 = tpu.matmul %63, %64, %cst_10 {dimension_numbers = #tpu.dot_dimension_numbers<[2], [2], [1], [1], [0, 0, 0, 1, 1, 1], [0], [0]>} : vector<4x64x8xbf16>, vector<4x8x8xbf16>, vector<4x64x8xf32> -> vector<4x64x8xf32>
    "tpu.trace_stop"() : () -> ()
    %cst_11 = arith.constant 0.353553385 : f32
    %66 = vector.broadcast %cst_11 : f32 to vector<4x64x8xf32>
    %67 = arith.mulf %65, %66 : vector<4x64x8xf32>
    %cst_12 = arith.constant dense<0xFF800000> : vector<4x64xf32>
    %68 = vector.multi_reduction <maximumf>, %67, %cst_12 [2] : vector<4x64x8xf32> to vector<4x64xf32>
    %69 = vector.shape_cast %68 : vector<4x64xf32> to vector<4x64x1xf32>
    %70 = vector.broadcast %69 : vector<4x64x1xf32> to vector<4x64x8xf32>
    %71 = arith.subf %67, %70 : vector<4x64x8xf32>
    %72 = math.exp %71 : vector<4x64x8xf32>
    %cst_13 = arith.constant dense<0.000000e+00> : vector<4x64xf32>
    %73 = vector.multi_reduction <add>, %72, %cst_13 [2] : vector<4x64x8xf32> to vector<4x64xf32>
    %74 = vector.shape_cast %73 : vector<4x64xf32> to vector<4x64x1xf32>
    %75 = tpu.reciprocal %74 {approx = true} : vector<4x64x1xf32> -> vector<4x64x1xf32>
    %76 = vector.broadcast %75 : vector<4x64x1xf32> to vector<4x64x8xf32>
    %77 = arith.mulf %72, %76 : vector<4x64x8xf32>
    "tpu.trace_start"() <{level = 10 : i32, message = "hmd,hnd->hmn"}> : () -> ()
    %cst_14 = arith.constant dense<0.000000e+00> : vector<4x8x8xf32>
    %78 = tpu.matmul %53, %62, %cst_14 {dimension_numbers = #tpu.dot_dimension_numbers<[2], [2], [1], [1], [0, 0, 0, 1, 1, 1], [0], [0]>} : vector<4x8x8xf32>, vector<4x8x8xf32>, vector<4x8x8xf32> -> vector<4x8x8xf32>
    "tpu.trace_stop"() : () -> ()
    %cst_15 = arith.constant 0.353553385 : f32
    %79 = vector.broadcast %cst_15 : f32 to vector<4x8x8xf32>
    %80 = arith.mulf %78, %79 : vector<4x8x8xf32>
    %cst_16 = arith.constant dense<0xFF800000> : vector<4x8xf32>
    %81 = vector.multi_reduction <maximumf>, %80, %cst_16 [2] : vector<4x8x8xf32> to vector<4x8xf32>
    %82 = vector.shape_cast %81 : vector<4x8xf32> to vector<4x8x1xf32>
    %83 = vector.broadcast %82 : vector<4x8x1xf32> to vector<4x8x8xf32>
    %84 = arith.subf %80, %83 : vector<4x8x8xf32>
    %85 = math.exp %84 : vector<4x8x8xf32>
    %cst_17 = arith.constant dense<0.000000e+00> : vector<4x8xf32>
    %86 = vector.multi_reduction <add>, %85, %cst_17 [2] : vector<4x8x8xf32> to vector<4x8xf32>
    %87 = vector.shape_cast %86 : vector<4x8xf32> to vector<4x8x1xf32>
    %88 = vector.broadcast %87 : vector<4x8x1xf32> to vector<4x8x8xf32>
    %89 = arith.divf %85, %88 : vector<4x8x8xf32>
    %90 = tpu.iota {dimensions = array<i32: 0>} : vector<8x8xi32>
    %91 = tpu.iota {dimensions = array<i32: 1>} : vector<8x8xi32>
    %92 = arith.cmpi eq, %90, %91 : vector<8x8xi32>
    %93 = arith.extui %92 : vector<8x8xi1> to vector<8x8xi32>
    %94 = arith.sitofp %93 : vector<8x8xi32> to vector<8x8xf32>
    %cst_18 = arith.constant dense<0.000000e+00> : vector<4x8xf32>
    %95 = vector.multi_reduction <add>, %89, %cst_18 [1] : vector<4x8x8xf32> to vector<4x8xf32>
    %96 = vector.shape_cast %95 : vector<4x8xf32> to vector<4x1x8xf32>
    %cst_19 = arith.constant dense<0xFF800000> : vector<4x1xf32>
    %97 = vector.multi_reduction <maximumf>, %96, %cst_19 [2] : vector<4x1x8xf32> to vector<4x1xf32>
    %98 = vector.shape_cast %97 : vector<4x1xf32> to vector<4x1x1xf32>
    %99 = vector.extract_strided_slice %89 {offsets = [0, 0, 0], sizes = [1, 8, 8], strides = [1, 1, 1]} : vector<4x8x8xf32> to vector<1x8x8xf32>
    %100 = vector.shape_cast %99 : vector<1x8x8xf32> to vector<8x8xf32>
    %101 = tpu.transpose %100, [1, 0] : vector<8x8xf32> -> vector<8x8xf32>
    %102 = vector.shape_cast %101 : vector<8x8xf32> to vector<1x8x8xf32>
    %103 = vector.extract_strided_slice %89 {offsets = [1, 0, 0], sizes = [1, 8, 8], strides = [1, 1, 1]} : vector<4x8x8xf32> to vector<1x8x8xf32>
    %104 = vector.shape_cast %103 : vector<1x8x8xf32> to vector<8x8xf32>
    %105 = tpu.transpose %104, [1, 0] : vector<8x8xf32> -> vector<8x8xf32>
    %106 = vector.shape_cast %105 : vector<8x8xf32> to vector<1x8x8xf32>
    %107 = vector.extract_strided_slice %89 {offsets = [2, 0, 0], sizes = [1, 8, 8], strides = [1, 1, 1]} : vector<4x8x8xf32> to vector<1x8x8xf32>
    %108 = vector.shape_cast %107 : vector<1x8x8xf32> to vector<8x8xf32>
    %109 = tpu.transpose %108, [1, 0] : vector<8x8xf32> -> vector<8x8xf32>
    %110 = vector.shape_cast %109 : vector<8x8xf32> to vector<1x8x8xf32>
    %111 = vector.extract_strided_slice %89 {offsets = [3, 0, 0], sizes = [1, 8, 8], strides = [1, 1, 1]} : vector<4x8x8xf32> to vector<1x8x8xf32>
    %112 = vector.shape_cast %111 : vector<1x8x8xf32> to vector<8x8xf32>
    %113 = tpu.transpose %112, [1, 0] : vector<8x8xf32> -> vector<8x8xf32>
    %114 = vector.shape_cast %113 : vector<8x8xf32> to vector<1x8x8xf32>
    %115 = tpu.concatenate %102, %106, %110, %114 in 0 : vector<1x8x8xf32>, vector<1x8x8xf32>, vector<1x8x8xf32>, vector<1x8x8xf32> -> vector<4x8x8xf32>
    %116 = vector.broadcast %98 : vector<4x1x1xf32> to vector<4x8x8xf32>
    %117 = arith.divf %115, %116 : vector<4x8x8xf32>
    %cst_20 = arith.constant dense<0.000000e+00> : vector<4x8x8xf32>
    %118 = tpu.matmul %89, %117, %cst_20 {dimension_numbers = #tpu.dot_dimension_numbers<[2], [1], [1], [2], [0, 0, 0, 1, 1, 2], [0], [0]>} : vector<4x8x8xf32>, vector<4x8x8xf32>, vector<4x8x8xf32> -> vector<4x8x8xf32>
    %cst_21 = arith.constant 7.000000e+00 : f32
    %119 = vector.broadcast %cst_21 : f32 to vector<8x8xf32>
    %120 = arith.mulf %119, %94 : vector<8x8xf32>
    %121 = vector.shape_cast %120 : vector<8x8xf32> to vector<1x8x8xf32>
    %122 = vector.broadcast %121 : vector<1x8x8xf32> to vector<4x8x8xf32>
    %123 = arith.subf %122, %118 : vector<4x8x8xf32>
    %cst_22 = arith.constant 1.500000e+01 : f32
    %124 = vector.broadcast %cst_22 : f32 to vector<8x8xf32>
    %125 = arith.mulf %124, %94 : vector<8x8xf32>
    %cst_23 = arith.constant dense<0.000000e+00> : vector<4x8x8xf32>
    %126 = tpu.matmul %118, %123, %cst_23 {dimension_numbers = #tpu.dot_dimension_numbers<[2], [1], [1], [2], [0, 0, 0, 1, 1, 2], [0], [0]>} : vector<4x8x8xf32>, vector<4x8x8xf32>, vector<4x8x8xf32> -> vector<4x8x8xf32>
    %127 = vector.shape_cast %125 : vector<8x8xf32> to vector<1x8x8xf32>
    %128 = vector.broadcast %127 : vector<1x8x8xf32> to vector<4x8x8xf32>
    %129 = arith.subf %128, %126 : vector<4x8x8xf32>
    %cst_24 = arith.constant 1.300000e+01 : f32
    %130 = vector.broadcast %cst_24 : f32 to vector<8x8xf32>
    %131 = arith.mulf %130, %94 : vector<8x8xf32>
    %cst_25 = arith.constant dense<0.000000e+00> : vector<4x8x8xf32>
    %132 = tpu.matmul %118, %129, %cst_25 {dimension_numbers = #tpu.dot_dimension_numbers<[2], [1], [1], [2], [0, 0, 0, 1, 1, 2], [0], [0]>} : vector<4x8x8xf32>, vector<4x8x8xf32>, vector<4x8x8xf32> -> vector<4x8x8xf32>
    %133 = vector.shape_cast %131 : vector<8x8xf32> to vector<1x8x8xf32>
    %134 = vector.broadcast %133 : vector<1x8x8xf32> to vector<4x8x8xf32>
    %135 = arith.subf %134, %132 : vector<4x8x8xf32>
    %cst_26 = arith.constant 2.500000e-01 : f32
    %136 = vector.broadcast %cst_26 : f32 to vector<4x8x8xf32>
    %137 = arith.mulf %136, %117 : vector<4x8x8xf32>
    %cst_27 = arith.constant dense<0.000000e+00> : vector<4x8x8xf32>
    %138 = tpu.matmul %137, %135, %cst_27 {dimension_numbers = #tpu.dot_dimension_numbers<[2], [1], [1], [2], [0, 0, 0, 1, 1, 2], [0], [0]>} : vector<4x8x8xf32>, vector<4x8x8xf32>, vector<4x8x8xf32> -> vector<4x8x8xf32>
    %cst_28 = arith.constant dense<0.000000e+00> : vector<4x8x8xf32>
    %139 = tpu.matmul %89, %138, %cst_28 {dimension_numbers = #tpu.dot_dimension_numbers<[2], [1], [1], [2], [0, 0, 0, 1, 1, 2], [0], [0]>} : vector<4x8x8xf32>, vector<4x8x8xf32>, vector<4x8x8xf32> -> vector<4x8x8xf32>
    %cst_29 = arith.constant 7.000000e+00 : f32
    %140 = vector.broadcast %cst_29 : f32 to vector<8x8xf32>
    %141 = arith.mulf %140, %94 : vector<8x8xf32>
    %142 = vector.shape_cast %141 : vector<8x8xf32> to vector<1x8x8xf32>
    %143 = vector.broadcast %142 : vector<1x8x8xf32> to vector<4x8x8xf32>
    %144 = arith.subf %143, %139 : vector<4x8x8xf32>
    %cst_30 = arith.constant 1.500000e+01 : f32
    %145 = vector.broadcast %cst_30 : f32 to vector<8x8xf32>
    %146 = arith.mulf %145, %94 : vector<8x8xf32>
    %cst_31 = arith.constant dense<0.000000e+00> : vector<4x8x8xf32>
    %147 = tpu.matmul %139, %144, %cst_31 {dimension_numbers = #tpu.dot_dimension_numbers<[2], [1], [1], [2], [0, 0, 0, 1, 1, 2], [0], [0]>} : vector<4x8x8xf32>, vector<4x8x8xf32>, vector<4x8x8xf32> -> vector<4x8x8xf32>
    %148 = vector.shape_cast %146 : vector<8x8xf32> to vector<1x8x8xf32>
    %149 = vector.broadcast %148 : vector<1x8x8xf32> to vector<4x8x8xf32>
    %150 = arith.subf %149, %147 : vector<4x8x8xf32>
    %cst_32 = arith.constant 1.300000e+01 : f32
    %151 = vector.broadcast %cst_32 : f32 to vector<8x8xf32>
    %152 = arith.mulf %151, %94 : vector<8x8xf32>
    %cst_33 = arith.constant dense<0.000000e+00> : vector<4x8x8xf32>
    %153 = tpu.matmul %139, %150, %cst_33 {dimension_numbers = #tpu.dot_dimension_numbers<[2], [1], [1], [2], [0, 0, 0, 1, 1, 2], [0], [0]>} : vector<4x8x8xf32>, vector<4x8x8xf32>, vector<4x8x8xf32> -> vector<4x8x8xf32>
    %154 = vector.shape_cast %152 : vector<8x8xf32> to vector<1x8x8xf32>
    %155 = vector.broadcast %154 : vector<1x8x8xf32> to vector<4x8x8xf32>
    %156 = arith.subf %155, %153 : vector<4x8x8xf32>
    %cst_34 = arith.constant 2.500000e-01 : f32
    %157 = vector.broadcast %cst_34 : f32 to vector<4x8x8xf32>
    %158 = arith.mulf %157, %138 : vector<4x8x8xf32>
    %cst_35 = arith.constant dense<0.000000e+00> : vector<4x8x8xf32>
    %159 = tpu.matmul %158, %156, %cst_35 {dimension_numbers = #tpu.dot_dimension_numbers<[2], [1], [1], [2], [0, 0, 0, 1, 1, 2], [0], [0]>} : vector<4x8x8xf32>, vector<4x8x8xf32>, vector<4x8x8xf32> -> vector<4x8x8xf32>
    %cst_36 = arith.constant dense<0.000000e+00> : vector<4x8x8xf32>
    %160 = tpu.matmul %89, %159, %cst_36 {dimension_numbers = #tpu.dot_dimension_numbers<[2], [1], [1], [2], [0, 0, 0, 1, 1, 2], [0], [0]>} : vector<4x8x8xf32>, vector<4x8x8xf32>, vector<4x8x8xf32> -> vector<4x8x8xf32>
    %cst_37 = arith.constant 7.000000e+00 : f32
    %161 = vector.broadcast %cst_37 : f32 to vector<8x8xf32>
    %162 = arith.mulf %161, %94 : vector<8x8xf32>
    %163 = vector.shape_cast %162 : vector<8x8xf32> to vector<1x8x8xf32>
    %164 = vector.broadcast %163 : vector<1x8x8xf32> to vector<4x8x8xf32>
    %165 = arith.subf %164, %160 : vector<4x8x8xf32>
    %cst_38 = arith.constant 1.500000e+01 : f32
    %166 = vector.broadcast %cst_38 : f32 to vector<8x8xf32>
    %167 = arith.mulf %166, %94 : vector<8x8xf32>
    %cst_39 = arith.constant dense<0.000000e+00> : vector<4x8x8xf32>
    %168 = tpu.matmul %160, %165, %cst_39 {dimension_numbers = #tpu.dot_dimension_numbers<[2], [1], [1], [2], [0, 0, 0, 1, 1, 2], [0], [0]>} : vector<4x8x8xf32>, vector<4x8x8xf32>, vector<4x8x8xf32> -> vector<4x8x8xf32>
    %169 = vector.shape_cast %167 : vector<8x8xf32> to vector<1x8x8xf32>
    %170 = vector.broadcast %169 : vector<1x8x8xf32> to vector<4x8x8xf32>
    %171 = arith.subf %170, %168 : vector<4x8x8xf32>
    %cst_40 = arith.constant 1.300000e+01 : f32
    %172 = vector.broadcast %cst_40 : f32 to vector<8x8xf32>
    %173 = arith.mulf %172, %94 : vector<8x8xf32>
    %cst_41 = arith.constant dense<0.000000e+00> : vector<4x8x8xf32>
    %174 = tpu.matmul %160, %171, %cst_41 {dimension_numbers = #tpu.dot_dimension_numbers<[2], [1], [1], [2], [0, 0, 0, 1, 1, 2], [0], [0]>} : vector<4x8x8xf32>, vector<4x8x8xf32>, vector<4x8x8xf32> -> vector<4x8x8xf32>
    %175 = vector.shape_cast %173 : vector<8x8xf32> to vector<1x8x8xf32>
    %176 = vector.broadcast %175 : vector<1x8x8xf32> to vector<4x8x8xf32>
    %177 = arith.subf %176, %174 : vector<4x8x8xf32>
    %cst_42 = arith.constant 2.500000e-01 : f32
    %178 = vector.broadcast %cst_42 : f32 to vector<4x8x8xf32>
    %179 = arith.mulf %178, %159 : vector<4x8x8xf32>
    %cst_43 = arith.constant dense<0.000000e+00> : vector<4x8x8xf32>
    %180 = tpu.matmul %179, %177, %cst_43 {dimension_numbers = #tpu.dot_dimension_numbers<[2], [1], [1], [2], [0, 0, 0, 1, 1, 2], [0], [0]>} : vector<4x8x8xf32>, vector<4x8x8xf32>, vector<4x8x8xf32> -> vector<4x8x8xf32>
    %cst_44 = arith.constant dense<0.000000e+00> : vector<4x8x8xf32>
    %181 = tpu.matmul %89, %180, %cst_44 {dimension_numbers = #tpu.dot_dimension_numbers<[2], [1], [1], [2], [0, 0, 0, 1, 1, 2], [0], [0]>} : vector<4x8x8xf32>, vector<4x8x8xf32>, vector<4x8x8xf32> -> vector<4x8x8xf32>
    %cst_45 = arith.constant 7.000000e+00 : f32
    %182 = vector.broadcast %cst_45 : f32 to vector<8x8xf32>
    %183 = arith.mulf %182, %94 : vector<8x8xf32>
    %184 = vector.shape_cast %183 : vector<8x8xf32> to vector<1x8x8xf32>
    %185 = vector.broadcast %184 : vector<1x8x8xf32> to vector<4x8x8xf32>
    %186 = arith.subf %185, %181 : vector<4x8x8xf32>
    %cst_46 = arith.constant 1.500000e+01 : f32
    %187 = vector.broadcast %cst_46 : f32 to vector<8x8xf32>
    %188 = arith.mulf %187, %94 : vector<8x8xf32>
    %cst_47 = arith.constant dense<0.000000e+00> : vector<4x8x8xf32>
    %189 = tpu.matmul %181, %186, %cst_47 {dimension_numbers = #tpu.dot_dimension_numbers<[2], [1], [1], [2], [0, 0, 0, 1, 1, 2], [0], [0]>} : vector<4x8x8xf32>, vector<4x8x8xf32>, vector<4x8x8xf32> -> vector<4x8x8xf32>
    %190 = vector.shape_cast %188 : vector<8x8xf32> to vector<1x8x8xf32>
    %191 = vector.broadcast %190 : vector<1x8x8xf32> to vector<4x8x8xf32>
    %192 = arith.subf %191, %189 : vector<4x8x8xf32>
    %cst_48 = arith.constant 1.300000e+01 : f32
    %193 = vector.broadcast %cst_48 : f32 to vector<8x8xf32>
    %194 = arith.mulf %193, %94 : vector<8x8xf32>
    %cst_49 = arith.constant dense<0.000000e+00> : vector<4x8x8xf32>
    %195 = tpu.matmul %181, %192, %cst_49 {dimension_numbers = #tpu.dot_dimension_numbers<[2], [1], [1], [2], [0, 0, 0, 1, 1, 2], [0], [0]>} : vector<4x8x8xf32>, vector<4x8x8xf32>, vector<4x8x8xf32> -> vector<4x8x8xf32>
    %196 = vector.shape_cast %194 : vector<8x8xf32> to vector<1x8x8xf32>
    %197 = vector.broadcast %196 : vector<1x8x8xf32> to vector<4x8x8xf32>
    %198 = arith.subf %197, %195 : vector<4x8x8xf32>
    %cst_50 = arith.constant 2.500000e-01 : f32
    %199 = vector.broadcast %cst_50 : f32 to vector<4x8x8xf32>
    %200 = arith.mulf %199, %180 : vector<4x8x8xf32>
    %cst_51 = arith.constant dense<0.000000e+00> : vector<4x8x8xf32>
    %201 = tpu.matmul %200, %198, %cst_51 {dimension_numbers = #tpu.dot_dimension_numbers<[2], [1], [1], [2], [0, 0, 0, 1, 1, 2], [0], [0]>} : vector<4x8x8xf32>, vector<4x8x8xf32>, vector<4x8x8xf32> -> vector<4x8x8xf32>
    %cst_52 = arith.constant dense<0.000000e+00> : vector<4x8x8xf32>
    %202 = tpu.matmul %89, %201, %cst_52 {dimension_numbers = #tpu.dot_dimension_numbers<[2], [1], [1], [2], [0, 0, 0, 1, 1, 2], [0], [0]>} : vector<4x8x8xf32>, vector<4x8x8xf32>, vector<4x8x8xf32> -> vector<4x8x8xf32>
    %cst_53 = arith.constant 7.000000e+00 : f32
    %203 = vector.broadcast %cst_53 : f32 to vector<8x8xf32>
    %204 = arith.mulf %203, %94 : vector<8x8xf32>
    %205 = vector.shape_cast %204 : vector<8x8xf32> to vector<1x8x8xf32>
    %206 = vector.broadcast %205 : vector<1x8x8xf32> to vector<4x8x8xf32>
    %207 = arith.subf %206, %202 : vector<4x8x8xf32>
    %cst_54 = arith.constant 1.500000e+01 : f32
    %208 = vector.broadcast %cst_54 : f32 to vector<8x8xf32>
    %209 = arith.mulf %208, %94 : vector<8x8xf32>
    %cst_55 = arith.constant dense<0.000000e+00> : vector<4x8x8xf32>
    %210 = tpu.matmul %202, %207, %cst_55 {dimension_numbers = #tpu.dot_dimension_numbers<[2], [1], [1], [2], [0, 0, 0, 1, 1, 2], [0], [0]>} : vector<4x8x8xf32>, vector<4x8x8xf32>, vector<4x8x8xf32> -> vector<4x8x8xf32>
    %211 = vector.shape_cast %209 : vector<8x8xf32> to vector<1x8x8xf32>
    %212 = vector.broadcast %211 : vector<1x8x8xf32> to vector<4x8x8xf32>
    %213 = arith.subf %212, %210 : vector<4x8x8xf32>
    %cst_56 = arith.constant 1.300000e+01 : f32
    %214 = vector.broadcast %cst_56 : f32 to vector<8x8xf32>
    %215 = arith.mulf %214, %94 : vector<8x8xf32>
    %cst_57 = arith.constant dense<0.000000e+00> : vector<4x8x8xf32>
    %216 = tpu.matmul %202, %213, %cst_57 {dimension_numbers = #tpu.dot_dimension_numbers<[2], [1], [1], [2], [0, 0, 0, 1, 1, 2], [0], [0]>} : vector<4x8x8xf32>, vector<4x8x8xf32>, vector<4x8x8xf32> -> vector<4x8x8xf32>
    %217 = vector.shape_cast %215 : vector<8x8xf32> to vector<1x8x8xf32>
    %218 = vector.broadcast %217 : vector<1x8x8xf32> to vector<4x8x8xf32>
    %219 = arith.subf %218, %216 : vector<4x8x8xf32>
    %cst_58 = arith.constant 2.500000e-01 : f32
    %220 = vector.broadcast %cst_58 : f32 to vector<4x8x8xf32>
    %221 = arith.mulf %220, %201 : vector<4x8x8xf32>
    %cst_59 = arith.constant dense<0.000000e+00> : vector<4x8x8xf32>
    %222 = tpu.matmul %221, %219, %cst_59 {dimension_numbers = #tpu.dot_dimension_numbers<[2], [1], [1], [2], [0, 0, 0, 1, 1, 2], [0], [0]>} : vector<4x8x8xf32>, vector<4x8x8xf32>, vector<4x8x8xf32> -> vector<4x8x8xf32>
    %cst_60 = arith.constant dense<0.000000e+00> : vector<4x8x8xf32>
    %223 = tpu.matmul %89, %222, %cst_60 {dimension_numbers = #tpu.dot_dimension_numbers<[2], [1], [1], [2], [0, 0, 0, 1, 1, 2], [0], [0]>} : vector<4x8x8xf32>, vector<4x8x8xf32>, vector<4x8x8xf32> -> vector<4x8x8xf32>
    %cst_61 = arith.constant 7.000000e+00 : f32
    %224 = vector.broadcast %cst_61 : f32 to vector<8x8xf32>
    %225 = arith.mulf %224, %94 : vector<8x8xf32>
    %226 = vector.shape_cast %225 : vector<8x8xf32> to vector<1x8x8xf32>
    %227 = vector.broadcast %226 : vector<1x8x8xf32> to vector<4x8x8xf32>
    %228 = arith.subf %227, %223 : vector<4x8x8xf32>
    %cst_62 = arith.constant 1.500000e+01 : f32
    %229 = vector.broadcast %cst_62 : f32 to vector<8x8xf32>
    %230 = arith.mulf %229, %94 : vector<8x8xf32>
    %cst_63 = arith.constant dense<0.000000e+00> : vector<4x8x8xf32>
    %231 = tpu.matmul %223, %228, %cst_63 {dimension_numbers = #tpu.dot_dimension_numbers<[2], [1], [1], [2], [0, 0, 0, 1, 1, 2], [0], [0]>} : vector<4x8x8xf32>, vector<4x8x8xf32>, vector<4x8x8xf32> -> vector<4x8x8xf32>
    %232 = vector.shape_cast %230 : vector<8x8xf32> to vector<1x8x8xf32>
    %233 = vector.broadcast %232 : vector<1x8x8xf32> to vector<4x8x8xf32>
    %234 = arith.subf %233, %231 : vector<4x8x8xf32>
    %cst_64 = arith.constant 1.300000e+01 : f32
    %235 = vector.broadcast %cst_64 : f32 to vector<8x8xf32>
    %236 = arith.mulf %235, %94 : vector<8x8xf32>
    %cst_65 = arith.constant dense<0.000000e+00> : vector<4x8x8xf32>
    %237 = tpu.matmul %223, %234, %cst_65 {dimension_numbers = #tpu.dot_dimension_numbers<[2], [1], [1], [2], [0, 0, 0, 1, 1, 2], [0], [0]>} : vector<4x8x8xf32>, vector<4x8x8xf32>, vector<4x8x8xf32> -> vector<4x8x8xf32>
    %238 = vector.shape_cast %236 : vector<8x8xf32> to vector<1x8x8xf32>
    %239 = vector.broadcast %238 : vector<1x8x8xf32> to vector<4x8x8xf32>
    %240 = arith.subf %239, %237 : vector<4x8x8xf32>
    %cst_66 = arith.constant 2.500000e-01 : f32
    %241 = vector.broadcast %cst_66 : f32 to vector<4x8x8xf32>
    %242 = arith.mulf %241, %222 : vector<4x8x8xf32>
    %cst_67 = arith.constant dense<0.000000e+00> : vector<4x8x8xf32>
    %243 = tpu.matmul %242, %240, %cst_67 {dimension_numbers = #tpu.dot_dimension_numbers<[2], [1], [1], [2], [0, 0, 0, 1, 1, 2], [0], [0]>} : vector<4x8x8xf32>, vector<4x8x8xf32>, vector<4x8x8xf32> -> vector<4x8x8xf32>
    %244 = arith.truncf %53 : vector<4x8x8xf32> to vector<4x8x8xbf16>
    %245 = arith.truncf %35 : vector<4x64x8xf32> to vector<4x64x8xbf16>
    "tpu.trace_start"() <{level = 10 : i32, message = "hmd,htd->hmt"}> : () -> ()
    %cst_68 = arith.constant dense<0.000000e+00> : vector<4x8x64xf32>
    %246 = tpu.matmul %244, %245, %cst_68 {dimension_numbers = #tpu.dot_dimension_numbers<[2], [2], [1], [1], [0, 0, 0, 1, 1, 1], [0], [0]>} : vector<4x8x8xbf16>, vector<4x64x8xbf16>, vector<4x8x64xf32> -> vector<4x8x64xf32>
    "tpu.trace_stop"() : () -> ()
    %247 = tpu.iota {dimensions = array<i32: 0>} : vector<8x64xi32>
    %248 = tpu.iota {dimensions = array<i32: 1>} : vector<8x64xi32>
    %249 = arith.cmpi sgt, %248, %247 : vector<8x64xi32>
    %cst_69 = arith.constant -1.000000e+30 : f32
    %250 = vector.shape_cast %249 : vector<8x64xi1> to vector<1x8x64xi1>
    %251 = vector.broadcast %250 : vector<1x8x64xi1> to vector<4x8x64xi1>
    %252 = vector.broadcast %cst_69 : f32 to vector<4x8x64xf32>
    %253 = arith.select %251, %252, %246 : vector<4x8x64xi1>, vector<4x8x64xf32>
    %cst_70 = arith.constant 0.353553385 : f32
    %254 = vector.broadcast %cst_70 : f32 to vector<4x8x64xf32>
    %255 = arith.mulf %253, %254 : vector<4x8x64xf32>
    %cst_71 = arith.constant dense<0xFF800000> : vector<4x8xf32>
    %256 = vector.multi_reduction <maximumf>, %255, %cst_71 [2] : vector<4x8x64xf32> to vector<4x8xf32>
    %257 = vector.shape_cast %256 : vector<4x8xf32> to vector<4x8x1xf32>
    %258 = vector.broadcast %257 : vector<4x8x1xf32> to vector<4x8x64xf32>
    %259 = arith.subf %255, %258 : vector<4x8x64xf32>
    %260 = math.exp %259 : vector<4x8x64xf32>
    %cst_72 = arith.constant dense<0.000000e+00> : vector<4x8xf32>
    %261 = vector.multi_reduction <add>, %260, %cst_72 [2] : vector<4x8x64xf32> to vector<4x8xf32>
    %262 = vector.shape_cast %261 : vector<4x8xf32> to vector<4x8x1xf32>
    %263 = tpu.reciprocal %262 {approx = true} : vector<4x8x1xf32> -> vector<4x8x1xf32>
    %264 = vector.broadcast %263 : vector<4x8x1xf32> to vector<4x8x64xf32>
    %265 = arith.mulf %260, %264 : vector<4x8x64xf32>
    "tpu.trace_start"() <{level = 10 : i32, message = "htm,hmn->htn"}> : () -> ()
    %cst_73 = arith.constant dense<0.000000e+00> : vector<4x64x8xf32>
    %266 = tpu.matmul %77, %243, %cst_73 {dimension_numbers = #tpu.dot_dimension_numbers<[2], [1], [1], [2], [0, 0, 0, 1, 1, 2], [0], [0]>} : vector<4x64x8xf32>, vector<4x8x8xf32>, vector<4x64x8xf32> -> vector<4x64x8xf32>
    "tpu.trace_stop"() : () -> ()
    %267 = arith.truncf %266 : vector<4x64x8xf32> to vector<4x64x8xbf16>
    %268 = arith.truncf %265 : vector<4x8x64xf32> to vector<4x8x64xbf16>
    "tpu.trace_start"() <{level = 10 : i32, message = "htn,hns->hts"}> : () -> ()
    %cst_74 = arith.constant dense<0.000000e+00> : vector<4x64x64xf32>
    %269 = tpu.matmul %267, %268, %cst_74 {dimension_numbers = #tpu.dot_dimension_numbers<[2], [1], [1], [2], [0, 0, 0, 1, 1, 2], [0], [0]>} : vector<4x64x8xbf16>, vector<4x8x64xbf16>, vector<4x64x64xf32> -> vector<4x64x64xf32>
    "tpu.trace_stop"() : () -> ()
    %270 = arith.truncf %269 : vector<4x64x64xf32> to vector<4x64x64xbf16>
    %271 = arith.truncf %44 : vector<4x64x8xf32> to vector<4x64x8xbf16>
    "tpu.trace_start"() <{level = 10 : i32, message = "hts,hsd->htd"}> : () -> ()
    %cst_75 = arith.constant dense<0.000000e+00> : vector<4x64x8xf32>
    %272 = tpu.matmul %270, %271, %cst_75 {dimension_numbers = #tpu.dot_dimension_numbers<[2], [1], [1], [2], [0, 0, 0, 1, 1, 2], [0], [0]>} : vector<4x64x64xbf16>, vector<4x64x8xbf16>, vector<4x64x8xf32> -> vector<4x64x8xf32>
    "tpu.trace_stop"() : () -> ()
    %273 = vector.extract_strided_slice %272 {offsets = [0, 0, 0], sizes = [1, 64, 8], strides = [1, 1, 1]} : vector<4x64x8xf32> to vector<1x64x8xf32>
    %274 = vector.shape_cast %273 : vector<1x64x8xf32> to vector<64x8xf32>
    %275 = vector.extract_strided_slice %272 {offsets = [1, 0, 0], sizes = [1, 64, 8], strides = [1, 1, 1]} : vector<4x64x8xf32> to vector<1x64x8xf32>
    %276 = vector.shape_cast %275 : vector<1x64x8xf32> to vector<64x8xf32>
    %277 = vector.extract_strided_slice %272 {offsets = [2, 0, 0], sizes = [1, 64, 8], strides = [1, 1, 1]} : vector<4x64x8xf32> to vector<1x64x8xf32>
    %278 = vector.shape_cast %277 : vector<1x64x8xf32> to vector<64x8xf32>
    %279 = vector.extract_strided_slice %272 {offsets = [3, 0, 0], sizes = [1, 64, 8], strides = [1, 1, 1]} : vector<4x64x8xf32> to vector<1x64x8xf32>
    %280 = vector.shape_cast %279 : vector<1x64x8xf32> to vector<64x8xf32>
    %281 = tpu.concatenate %274, %276, %278, %280 in 1 : vector<64x8xf32>, vector<64x8xf32>, vector<64x8xf32>, vector<64x8xf32> -> vector<64x32xf32>
    %282 = arith.truncf %281 : vector<64x32xf32> to vector<64x32xbf16>
    %c0_76 = arith.constant 0 : index
    %c0_77 = arith.constant 0 : index
    %283 = vector.load %arg4[%c0_76, %c0_77] : memref<32x32xf32, #tpu.memory_space<vmem>>, vector<32x32xf32>
    %284 = arith.truncf %283 : vector<32x32xf32> to vector<32x32xbf16>
    %cst_78 = arith.constant dense<0.000000e+00> : vector<64x32xf32>
    %285 = tpu.matmul %282, %284, %cst_78 {dimension_numbers = #tpu.dot_dimension_numbers<[1], [0], [0], [1], [0, 0, 1, 1], [], []>} : vector<64x32xbf16>, vector<32x32xbf16>, vector<64x32xf32> -> vector<64x32xf32>
    %c0_79 = arith.constant 0 : index
    %c0_80 = arith.constant 0 : index
    %286 = vector.load %arg5[%c0_79, %c0_80] : memref<1x32xf32, #tpu.memory_space<vmem>>, vector<1x32xf32>
    %287 = vector.broadcast %286 : vector<1x32xf32> to vector<64x32xf32>
    %288 = arith.addf %285, %287 : vector<64x32xf32>
    %c0_81 = arith.constant 0 : index
    %c0_82 = arith.constant 0 : index
    %c0_83 = arith.constant 0 : index
    %289 = vector.load %arg6[%c0_81, %c0_82, %c0_83] : memref<1x64x32xf32, #tpu.memory_space<vmem>>, vector<1x64x32xf32>
    %290 = vector.shape_cast %289 : vector<1x64x32xf32> to vector<64x32xf32>
    %291 = vector.shape_cast %288 : vector<64x32xf32> to vector<1x64x32xf32>
    tpu.vector_store %arg6[%c0_81, %c0_82, %c0_83], %291 {strides = array<i32>} : memref<1x64x32xf32, #tpu.memory_space<vmem>>, vector<1x64x32xf32>,
    return
  }
  func.func @transform_0(%arg0: i32) -> (i32, i32, i32) {
    %c0_i32 = arith.constant 0 : i32
    %c0_i32_0 = arith.constant 0 : i32
    %c0_i32_1 = arith.constant 0 : i32
    return %arg0, %c0_i32, %c0_i32_0 : i32, i32, i32
  }
  func.func @transform_1(%arg0: i32) -> (i32, i32) {
    %c0_i32 = arith.constant 0 : i32
    %c0_i32_0 = arith.constant 0 : i32
    %c0_i32_1 = arith.constant 0 : i32
    return %c0_i32, %c0_i32_0 : i32, i32
  }
  func.func @transform_2(%arg0: i32) -> (i32, i32) {
    %c0_i32 = arith.constant 0 : i32
    %c0_i32_0 = arith.constant 0 : i32
    %c0_i32_1 = arith.constant 0 : i32
    return %c0_i32, %c0_i32_0 : i32, i32
  }
  func.func @transform_3(%arg0: i32) -> (i32, i32) {
    %c0_i32 = arith.constant 0 : i32
    %c0_i32_0 = arith.constant 0 : i32
    %c0_i32_1 = arith.constant 0 : i32
    return %c0_i32, %c0_i32_0 : i32, i32
  }
  func.func @transform_4(%arg0: i32) -> (i32, i32) {
    %c0_i32 = arith.constant 0 : i32
    %c0_i32_0 = arith.constant 0 : i32
    %c0_i32_1 = arith.constant 0 : i32
    return %c0_i32, %c0_i32_0 : i32, i32
  }
  func.func @transform_5(%arg0: i32) -> (i32, i32, i32) {
    %c0_i32 = arith.constant 0 : i32
    %c0_i32_0 = arith.constant 0 : i32
    %c0_i32_1 = arith.constant 0 : i32
    return %arg0, %c0_i32, %c0_i32_0 : i32, i32, i32
  }
}

</mosaic_0001>

<llo_original>
// kernel: tpu_custom_call.1
$region0: #{tpu_custom_call.1}
  #allocation0 [shape = 'u32[]', space=smem, size = 0x4, offset = 0x4, fixed_abs, tag = 'smem constant byte address 0x4 - core index']
  #allocation1 [shape = 'u32[144,128]{1,0:T(1,128)}', space=vmem, size = 0x12000, scoped, tag = 'internal scratch']
  %s0 = inlined_call_operand.vmem [shape: f32[2,64,32], index: 0, kind: input, shape index: {}]
  %s1 = inlined_call_operand.vmem [shape: f32[32,96], index: 1, kind: input, shape index: {}]
  %s2 = inlined_call_operand.vmem [shape: f32[1,96], index: 2, kind: input, shape index: {}]
  %s3 = inlined_call_operand.vmem [shape: f32[32,32], index: 3, kind: input, shape index: {}]
  %s4 = inlined_call_operand.vmem [shape: f32[1,32], index: 4, kind: input, shape index: {}]
  %s5 = inlined_call_operand.vmem [shape: f32[2,64,32], index: 5, kind: output, shape index: {}]
  %s6 = sld [smem:[#allocation0]]
  $region53: #{tpu_custom_call.1} parent=0
    _
  %s8 = ssub.s32 1, %s6
  %s9 = scalar_select 0, %s8, %s6
  loop: start=0, step=1, limit=4
  $region2: #{tpu_custom_call.1} parent=0 // loop_pre_header
    _
  $region3: #{tpu_custom_call.1} parent=0 // loop_header
    %s11 = sphi 0, %s15
    %p12 = scmp.ge.s32.totalorder %s11, 4
    %s21 = sphi 0, %s23
    %s24 = sphi 0, %s21
    %s25 = sphi 0, %s24
    %s41 = sphi 0, %s25
    %s45 = sphi 0, %s45
    %s47 = sphi 0, %s45
    %s48 = sphi 0, %s47
    %s62 = sphi 0, %s48
    %s66 = sphi 0, %s66
    %s68 = sphi 0, %s66
    %s69 = sphi 0, %s68
    %s83 = sphi 0, %s69
    %s87 = sphi 0, %s87
    %s89 = sphi 0, %s87
    %s90 = sphi 0, %s89
    %s104 = sphi 0, %s90
    %s108 = sphi 0, %s108
    %s110 = sphi 0, %s108
    %s111 = sphi 0, %s110
    %s125 = sphi 0, %s111
    %s131 = sphi 0, %s133
    %s134 = sphi 0, %s131
    %s135 = sphi 0, %s134
    %s151 = sphi 0, %s135
  $region4: #{tpu_custom_call.1} parent=0 // loop_header_branch
    %14 = sbr.rel (%p12) target = $region8
  $region5: #{tpu_custom_call.1} parent=0 // loop_body
    %s16 = ssub.s32 %s11, 1
    %s17 = ssub.s32 %s11, 2
    %s18 = sadd.s32 %s11, 1
    %s19 = ssub.s32 %s11, %s18
    %p20 = scmp.eq.s32.totalorder %s19, 0
    %s22 = sadd.s32 %s21, 1
    %s23 = scalar_select %p20, %s21, %s22
    %p26 = pneg %p20
    %p27 = scmp.eq.s32.totalorder %s11, 1
    %p28 = por %p26, %p27
    %p29 = scmp.ne.s32.totalorder %s21, %s24
    %p30 = scmp.eq.s32.totalorder %s11, 0
    %p31 = por %p29, %p30
    %p32 = scmp.ne.s32.totalorder %s21, %s24
    %p33 = scmp.eq.s32.totalorder %s16, 1
    %p34 = por %p32, %p33
    %p35 = scmp.ne.s32.totalorder %s24, %s25
    %p36 = scmp.eq.s32.totalorder %s16, 0
    %p37 = por %p35, %p36
    %p38 = scmp.ne.s32.totalorder %s24, %s25
    %p39 = scmp.eq.s32.totalorder %s17, 1
    %p40 = por %p38, %p39
    %p42 = scmp.ne.s32.totalorder %s25, %s41
    %p43 = scmp.eq.s32.totalorder %s17, 0
    %p44 = por %p42, %p43
    %s46 = sadd.s32 %s45, 1
    %p49 = scmp.eq.s32.totalorder %s11, 1
    %p50 = scmp.ne.s32.totalorder %s45, %s47
    %p51 = scmp.eq.s32.totalorder %s11, 0
    %p52 = por %p50, %p51
    %p53 = scmp.ne.s32.totalorder %s45, %s47
    %p54 = scmp.eq.s32.totalorder %s16, 1
    %p55 = por %p53, %p54
    %p56 = scmp.ne.s32.totalorder %s47, %s48
    %p57 = scmp.eq.s32.totalorder %s16, 0
    %p58 = por %p56, %p57
    %p59 = scmp.ne.s32.totalorder %s47, %s48
    %p60 = scmp.eq.s32.totalorder %s17, 1
    %p61 = por %p59, %p60
    %p63 = scmp.ne.s32.totalorder %s48, %s62
    %p64 = scmp.eq.s32.totalorder %s17, 0
    %p65 = por %p63, %p64
    %s67 = sadd.s32 %s66, 1
    %p70 = scmp.eq.s32.totalorder %s11, 1
    %p71 = scmp.ne.s32.totalorder %s66, %s68
    %p72 = scmp.eq.s32.totalorder %s11, 0
    %p73 = por %p71, %p72
    %p74 = scmp.ne.s32.totalorder %s66, %s68
    %p75 = scmp.eq.s32.totalorder %s16, 1
    %p76 = por %p74, %p75
    %p77 = scmp.ne.s32.totalorder %s68, %s69
    %p78 = scmp.eq.s32.totalorder %s16, 0
    %p79 = por %p77, %p78
    %p80 = scmp.ne.s32.totalorder %s68, %s69
    %p81 = scmp.eq.s32.totalorder %s17, 1
    %p82 = por %p80, %p81
    %p84 = scmp.ne.s32.totalorder %s69, %s83
    %p85 = scmp.eq.s32.totalorder %s17, 0
    %p86 = por %p84, %p85
    %s88 = sadd.s32 %s87, 1
    %p91 = scmp.eq.s32.totalorder %s11, 1
    %p92 = scmp.ne.s32.totalorder %s87, %s89
    %p93 = scmp.eq.s32.totalorder %s11, 0
    %p94 = por %p92, %p93
    %p95 = scmp.ne.s32.totalorder %s87, %s89
    %p96 = scmp.eq.s32.totalorder %s16, 1
    %p97 = por %p95, %p96
    %p98 = scmp.ne.s32.totalorder %s89, %s90
    %p99 = scmp.eq.s32.totalorder %s16, 0
    %p100 = por %p98, %p99
    %p101 = scmp.ne.s32.totalorder %s89, %s90
    %p102 = scmp.eq.s32.totalorder %s17, 1
    %p103 = por %p101, %p102
    %p105 = scmp.ne.s32.totalorder %s90, %s104
    %p106 = scmp.eq.s32.totalorder %s17, 0
    %p107 = por %p105, %p106
    %s109 = sadd.s32 %s108, 1
    %p112 = scmp.eq.s32.totalorder %s11, 1
    %p113 = scmp.ne.s32.totalorder %s108, %s110
    %p114 = scmp.eq.s32.totalorder %s11, 0
    %p115 = por %p113, %p114
    %p116 = scmp.ne.s32.totalorder %s108, %s110
    %p117 = scmp.eq.s32.totalorder %s16, 1
    %p118 = por %p116, %p117
    %p119 = scmp.ne.s32.totalorder %s110, %s111
    %p120 = scmp.eq.s32.totalorder %s16, 0
    %p121 = por %p119, %p120
    %p122 = scmp.ne.s32.totalorder %s110, %s111
    %p123 = scmp.eq.s32.totalorder %s17, 1
    %p124 = por %p122, %p123
    %p126 = scmp.ne.s32.totalorder %s111, %s125
    %p127 = scmp.eq.s32.totalorder %s17, 0
    %p128 = por %p126, %p127
    %s129 = ssub.s32 %s11, %s18
    %p130 = scmp.eq.s32.totalorder %s129, 0
    %s132 = sadd.s32 %s131, 1
    %s133 = scalar_select %p130, %s131, %s132
    %p136 = pneg %p130
    %p137 = scmp.eq.s32.totalorder %s11, 1
    %p138 = por %p136, %p137
    %p139 = scmp.ne.s32.totalorder %s131, %s134
    %p140 = scmp.eq.s32.totalorder %s11, 0
    %p141 = por %p139, %p140
    %p142 = scmp.ne.s32.totalorder %s131, %s134
    %p143 = scmp.eq.s32.totalorder %s16, 1
    %p144 = por %p142, %p143
    %p145 = scmp.ne.s32.totalorder %s134, %s135
    %p146 = scmp.eq.s32.totalorder %s16, 0
    %p147 = por %p145, %p146
    %p148 = scmp.ne.s32.totalorder %s134, %s135
    %p149 = scmp.eq.s32.totalorder %s17, 1
    %p150 = por %p148, %p149
    %p152 = scmp.ne.s32.totalorder %s135, %s151
    %p153 = scmp.eq.s32.totalorder %s17, 0
    %p154 = por %p152, %p153
    %p155 = scmp.le.s32.totalorder 1, %s11
    %p156 = scmp.lt.s32.totalorder %s11, 3
    %p157 = pnand %p155, %p156
    %p158 = pneg %p157
    // Predicated region
    $region9: #{tpu_custom_call.1} parent=5 // pred_check
      _
    $region10: #{tpu_custom_call.1} parent=5 // pred_check_branch
      %160 = sbr.rel (%p157) target = $region12
    $region11: #{tpu_custom_call.1} parent=5 // pred_region
      %s161 = ssub.s32 %s11, 1
      // Predicated region
      $region13: #{tpu_custom_call.1} parent=11 // pred_check
        %p162 = pneg %p58
      $region14: #{tpu_custom_call.1} parent=11 // pred_check_branch
        %164 = sbr.rel (%p162) target = $region16
      $region15: #{tpu_custom_call.1} parent=11 // pred_region
        _
      $region16: #{tpu_custom_call.1} parent=11 // pred_fallthru
        _
      // Predicated region
      $region17: #{tpu_custom_call.1} parent=11 // pred_check
        %p165 = pneg %p79
      $region18: #{tpu_custom_call.1} parent=11 // pred_check_branch
        %167 = sbr.rel (%p165) target = $region20
      $region19: #{tpu_custom_call.1} parent=11 // pred_region
        _
      $region20: #{tpu_custom_call.1} parent=11 // pred_fallthru
        _
      // Predicated region
      $region21: #{tpu_custom_call.1} parent=11 // pred_check
        %p168 = pneg %p100
      $region22: #{tpu_custom_call.1} parent=11 // pred_check_branch
        %170 = sbr.rel (%p168) target = $region24
      $region23: #{tpu_custom_call.1} parent=11 // pred_region
        _
      $region24: #{tpu_custom_call.1} parent=11 // pred_fallthru
        _
      // Predicated region
      $region25: #{tpu_custom_call.1} parent=11 // pred_check
        %p171 = pneg %p121
      $region26: #{tpu_custom_call.1} parent=11 // pred_check_branch
        %173 = sbr.rel (%p171) target = $region28
      $region27: #{tpu_custom_call.1} parent=11 // pred_region
        _
      $region28: #{tpu_custom_call.1} parent=11 // pred_fallthru
        _
    $region12: #{tpu_custom_call.1} parent=5 // pred_fallthru
      _
    %p174 = scmp.lt.s32.totalorder %s11, 2
    // Predicated region
    $region29: #{tpu_custom_call.1} parent=5 // pred_check
      %p175 = pneg %p174
    $region30: #{tpu_custom_call.1} parent=5 // pred_check_branch
      %177 = sbr.rel (%p175) target = $region32
    $region31: #{tpu_custom_call.1} parent=5 // pred_region
      // Predicated region
      $region33: #{tpu_custom_call.1} parent=31 // pred_check
        %p178 = pneg %p31
      $region34: #{tpu_custom_call.1} parent=31 // pred_check_branch
        %180 = sbr.rel (%p178) target = $region36
      $region35: #{tpu_custom_call.1} parent=31 // pred_region
        %p181 = scmp.lt.s32.totalorder %s11, 1
        %s182 = scalar_select %p181, %s11, 1
        %s183 = smul.addr %s182, 8
        %s184 = smul.addr %s183, 8
        %s185 = scalar_lea.vmem %s0, %s184
      $region36: #{tpu_custom_call.1} parent=31 // pred_fallthru
        _
    $region32: #{tpu_custom_call.1} parent=5 // pred_fallthru
      _
    %p186 = scmp.le.s32.totalorder 1, %s11
    %p187 = scmp.lt.s32.totalorder %s11, 3
    %p188 = pnand %p186, %p187
    %p189 = pneg %p188
    // Predicated region
    $region37: #{tpu_custom_call.1} parent=5 // pred_check
      _
    $region38: #{tpu_custom_call.1} parent=5 // pred_check_branch
      %191 = sbr.rel (%p188) target = $region40
    $region39: #{tpu_custom_call.1} parent=5 // pred_region
      %s192 = ssub.s32 %s11, 1
      %p193 = scmp.lt.s32.totalorder %s16, 1
      %s194 = scalar_select %p193, %s16, 1
      %s195 = smul.addr %s194, 8
      %s196 = smul.addr %s195, 8
      %s197 = scalar_lea.vmem %s0, %s196
      %p198 = pneg %p37
      %p199 = pneg %p34
      %p200 = pneg %p58
      %p201 = pneg %p55
      %p202 = pneg %p79
      %p203 = pneg %p76
      %p204 = pneg %p100
      %p205 = pneg %p97
      %p206 = pneg %p121
      %p207 = pneg %p118
      %p208 = pneg %p147
      %p209 = pneg %p144
      %p210 = scmp.lt.s32.totalorder %s16, 1
      %s211 = scalar_select %p210, %s16, 1
      %s212 = smul.addr %s211, 8
      %s213 = smul.addr %s212, 8
      %s214 = scalar_lea.vmem %s5, %s213
      %p215 = scmp.lt.s32.totalorder %s16, 1
      %s216 = scalar_select %p215, %s16, 1
      %s217 = smul.addr %s216, 8
      %s218 = smul.addr %s217, 8
      %s219 = scalar_lea.vmem %s0, %s218
      %p220 = scmp.lt.s32.totalorder %s16, 1
      %s221 = scalar_select %p220, %s16, 1
      %s222 = smul.addr %s221, 8
      %s223 = smul.addr %s222, 8
      %s224 = scalar_lea.vmem %s5, %s223
      %v226 = vld [vmem:[%s219] sm:$0xff]
      %v227 = vld [vmem:[%s219 + $0x8] sm:$0xff]
      %v228 = vld [vmem:[%s219 + $0x10] sm:$0xff]
      %v229 = vld [vmem:[%s219 + $0x18] sm:$0xff]
      %v230 = vld [vmem:[%s219 + $0x20] sm:$0xff]
      %v231 = vld [vmem:[%s219 + $0x28] sm:$0xff]
      %v232 = vld [vmem:[%s219 + $0x30] sm:$0xff]
      %v233 = vld [vmem:[%s219 + $0x38] sm:$0xff]
      %v234 = vld [vmem:[%s1] sm:$0xff]
      %v235 = vld [vmem:[%s1 + $0x8] sm:$0xff]
      %v236 = vld [vmem:[%s1 + $0x10] sm:$0xff]
      %v237 = vld [vmem:[%s1 + $0x18] sm:$0xff]
      %v238 = vld [vmem:[%s2] sm:$0x1]
      %v240 = vlaneseq
      %v241 = vshrl.u32 %v240, 7
      %v242 = vsub.s32 0, %v241
      %v243 = vrot.slane %v238, %v242
      %vm245 = vcmask 261120
      %v247 = vsel %vm245, %v226, 0
      %v250 = vsel %vm245, %v227, 0
      %v253 = vsel %vm245, %v228, 0
      %v256 = vsel %vm245, %v229, 0
      %v259 = vsel %vm245, %v230, 0
      %v262 = vsel %vm245, %v231, 0
      %v265 = vsel %vm245, %v232, 0
      %v268 = vsel %vm245, %v233, 0
      %270 = vmatprep.subr.mxu0 0.0
      %271 = vmatpush1.msra.mxu0 0.0
      %272 = vmatprep.subr.mxu0 0.0
      %273 = vmatpush1.msra.mxu0 0.0
      %274 = vmatprep.subr.mxu0 0.0
      %275 = vmatpush1.msra.mxu0 0.0
      %276 = vmatprep.subr.mxu0 0.0
      %277 = vmatpush1.msra.mxu0 0.0
      %278 = vmatprep.subr.mxu0 0.0
      %279 = vmatpush1.msra.mxu0 0.0
      %280 = vmatprep.subr.mxu0 0.0
      %281 = vmatpush1.msra.mxu0 0.0
      %282 = vmatprep.subr.mxu0 0.0
      %283 = vmatpush1.msra.mxu0 0.0
      %284 = vmatprep.subr.mxu0 0.0
      %285 = vmatpush1.msra.mxu0 0.0
      %286 = vmatprep.subr.mxu0 0.0
      %287 = vmatpush1.msra.mxu0 0.0
      %288 = vmatprep.subr.mxu0 0.0
      %289 = vmatpush1.msra.mxu0 0.0
      %290 = vmatprep.subr.mxu0 0.0
      %291 = vmatpush1.msra.mxu0 0.0
      %292 = vmatprep.subr.mxu0 0.0
      %293 = vmatpush1.msra.mxu0 0.0
      %294 = vmatprep.subr.mxu0 0.0
      %295 = vmatpush1.msra.mxu0 %v237
      %296 = vmatprep.subr.mxu0 0.0
      %297 = vmatpush1.msra.mxu0 %v236
      %298 = vmatprep.subr.mxu0 0.0
      %299 = vmatpush1.msra.mxu0 %v235
      %300 = vmatprep.subr.mxu0 0.0
      %301 = vmatpush1.msra.mxu0 %v234
      %302 = vmatprep.subr.mxu0 0.0
      %303 = vmatpush2.msra.mxu0 0.0
      %304 = vmatprep.subr.mxu0 0.0
      %305 = vmatpush2.msra.mxu0 0.0
      %306 = vmatprep.subr.mxu0 0.0
      %307 = vmatpush2.msra.mxu0 0.0
      %308 = vmatprep.subr.mxu0 0.0
      %309 = vmatpush2.msra.mxu0 0.0
      %310 = vmatprep.subr.mxu0 0.0
      %311 = vmatpush2.msra.mxu0 0.0
      %312 = vmatprep.subr.mxu0 0.0
      %313 = vmatpush2.msra.mxu0 0.0
      %314 = vmatprep.subr.mxu0 0.0
      %315 = vmatpush2.msra.mxu0 0.0
      %316 = vmatprep.subr.mxu0 0.0
      %317 = vmatpush2.msra.mxu0 0.0
      %318 = vmatprep.subr.mxu0 0.0
      %319 = vmatpush2.msra.mxu0 0.0
      %320 = vmatprep.subr.mxu0 0.0
      %321 = vmatpush2.msra.mxu0 0.0
      %322 = vmatprep.subr.mxu0 0.0
      %323 = vmatpush2.msra.mxu0 0.0
      %324 = vmatprep.subr.mxu0 0.0
      %325 = vmatpush2.msra.mxu0 0.0
      %326 = vmatprep.subr.mxu0 0.0
      %327 = vmatpush2.msra.mxu0 0.0
      %328 = vmatprep.subr.mxu0 0.0
      %329 = vmatpush2.msra.mxu0 0.0
      %330 = vmatprep.subr.mxu0 0.0
      %331 = vmatpush2.msra.mxu0 0.0
      %332 = vmatprep.subr.mxu0 0.0
      %333 = vmatpush2.msra.mxu0 0.0
      %334 = vmatprep.mubr.f32.mxu0 0.0
      %335 = vmatmul.mubr.f32.gmra.mxu0 %v247
      %v336 = vpop.f32.mrf.mxu0
      %v337 = vadd.f32 %v243, %v336
      %v338 = vpop.f32.mrf.mxu0
      %339 = vmatprep.mubr.f32.mxu0 0.0
      %340 = vmatmul.mubr.f32.gmra.mxu0 %v250
      %v341 = vpop.f32.mrf.mxu0
      %v342 = vadd.f32 %v243, %v341
      %v343 = vpop.f32.mrf.mxu0
      %344 = vmatprep.mubr.f32.mxu0 0.0
      %345 = vmatmul.mubr.f32.gmra.mxu0 %v253
      %v346 = vpop.f32.mrf.mxu0
      %v347 = vadd.f32 %v243, %v346
      %v348 = vpop.f32.mrf.mxu0
      %349 = vmatprep.mubr.f32.mxu0 0.0
      %350 = vmatmul.mubr.f32.gmra.mxu0 %v256
      %v351 = vpop.f32.mrf.mxu0
      %v352 = vadd.f32 %v243, %v351
      %v353 = vpop.f32.mrf.mxu0
      %354 = vmatprep.mubr.f32.mxu0 0.0
      %355 = vmatmul.mubr.f32.gmra.mxu0 %v259
      %v356 = vpop.f32.mrf.mxu0
      %v357 = vadd.f32 %v243, %v356
      %v358 = vpop.f32.mrf.mxu0
      %359 = vmatprep.mubr.f32.mxu0 0.0
      %360 = vmatmul.mubr.f32.gmra.mxu0 %v262
      %v361 = vpop.f32.mrf.mxu0
      %v362 = vadd.f32 %v243, %v361
      %v363 = vpop.f32.mrf.mxu0
      %364 = vmatprep.mubr.f32.mxu0 0.0
      %365 = vmatmul.mubr.f32.gmra.mxu0 %v265
      %v366 = vpop.f32.mrf.mxu0
      %v367 = vadd.f32 %v243, %v366
      %v368 = vpop.f32.mrf.mxu0
      %369 = vmatprep.mubr.f32.mxu0 0.0
      %370 = vmatmul.mubr.f32.gmra.mxu0 %v268
      %v371 = vpop.f32.mrf.mxu0
      %v372 = vadd.f32 %v243, %v371
      %v373 = vpop.f32.mrf.mxu0
      %374 = vdwg.mxu0
      %v375 = vsel %vm245, %v337, 0.0
      %v376 = vrot.slane %v375, 4
      %v377 = vadd.f32 %v375, %v376
      %v378 = vrot.slane %v377, 2
      %v379 = vadd.f32 %v377, %v378
      %v380 = vrot.slane %v379, 1
      %v381 = vadd.f32 %v379, %v380
      %v382 = vsel %vm245, %v342, 0.0
      %v383 = vrot.slane %v382, 4
      %v384 = vadd.f32 %v382, %v383
      %v385 = vrot.slane %v384, 2
      %v386 = vadd.f32 %v384, %v385
      %v387 = vrot.slane %v386, 1
      %v388 = vadd.f32 %v386, %v387
      %v389 = vsel %vm245, %v347, 0.0
      %v390 = vrot.slane %v389, 4
      %v391 = vadd.f32 %v389, %v390
      %v392 = vrot.slane %v391, 2
      %v393 = vadd.f32 %v391, %v392
      %v394 = vrot.slane %v393, 1
      %v395 = vadd.f32 %v393, %v394
      %v396 = vsel %vm245, %v352, 0.0
      %v397 = vrot.slane %v396, 4
      %v398 = vadd.f32 %v396, %v397
      %v399 = vrot.slane %v398, 2
      %v400 = vadd.f32 %v398, %v399
      %v401 = vrot.slane %v400, 1
      %v402 = vadd.f32 %v400, %v401
      %v403 = vsel %vm245, %v357, 0.0
      %v404 = vrot.slane %v403, 4
      %v405 = vadd.f32 %v403, %v404
      %v406 = vrot.slane %v405, 2
      %v407 = vadd.f32 %v405, %v406
      %v408 = vrot.slane %v407, 1
      %v409 = vadd.f32 %v407, %v408
      %v410 = vsel %vm245, %v362, 0.0
      %v411 = vrot.slane %v410, 4
      %v412 = vadd.f32 %v410, %v411
      %v413 = vrot.slane %v412, 2
      %v414 = vadd.f32 %v412, %v413
      %v415 = vrot.slane %v414, 1
      %v416 = vadd.f32 %v414, %v415
      %v417 = vsel %vm245, %v367, 0.0
      %v418 = vrot.slane %v417, 4
      %v419 = vadd.f32 %v417, %v418
      %v420 = vrot.slane %v419, 2
      %v421 = vadd.f32 %v419, %v420
      %v422 = vrot.slane %v421, 1
      %v423 = vadd.f32 %v421, %v422
      %v424 = vsel %vm245, %v372, 0.0
      %v425 = vrot.slane %v424, 4
      %v426 = vadd.f32 %v424, %v425
      %v427 = vrot.slane %v426, 2
      %v428 = vadd.f32 %v426, %v427
      %v429 = vrot.slane %v428, 1
      %v430 = vadd.f32 %v428, %v429
      %v431 = vrcp.pop 8.0
      %v432 = vmul.f32 %v381, %v431
      %v433 = vmul.f32 %v388, %v431
      %v434 = vmul.f32 %v395, %v431
      %v435 = vmul.f32 %v402, %v431
      %v436 = vmul.f32 %v409, %v431
      %v437 = vmul.f32 %v416, %v431
      %v438 = vmul.f32 %v423, %v431
      %v439 = vmul.f32 %v430, %v431
      %vm440 = vcmask 523520
      %v441 = vsel %vm440, %v337, 0.0
      %v442 = vrot.slane %v441, 4
      %v443 = vadd.f32 %v441, %v442
      %v444 = vrot.slane %v443, 2
      %v445 = vadd.f32 %v443, %v444
      %v446 = vrot.slane %v445, 1
      %v447 = vadd.f32 %v445, %v446
      %v448 = vsel %vm440, %v342, 0.0
      %v449 = vrot.slane %v448, 4
      %v450 = vadd.f32 %v448, %v449
      %v451 = vrot.slane %v450, 2
      %v452 = vadd.f32 %v450, %v451
      %v453 = vrot.slane %v452, 1
      %v454 = vadd.f32 %v452, %v453
      %v455 = vsel %vm440, %v347, 0.0
      %v456 = vrot.slane %v455, 4
      %v457 = vadd.f32 %v455, %v456
      %v458 = vrot.slane %v457, 2
      %v459 = vadd.f32 %v457, %v458
      %v460 = vrot.slane %v459, 1
      %v461 = vadd.f32 %v459, %v460
      %v462 = vsel %vm440, %v352, 0.0
      %v463 = vrot.slane %v462, 4
      %v464 = vadd.f32 %v462, %v463
      %v465 = vrot.slane %v464, 2
      %v466 = vadd.f32 %v464, %v465
      %v467 = vrot.slane %v466, 1
      %v468 = vadd.f32 %v466, %v467
      %v469 = vsel %vm440, %v357, 0.0
      %v470 = vrot.slane %v469, 4
      %v471 = vadd.f32 %v469, %v470
      %v472 = vrot.slane %v471, 2
      %v473 = vadd.f32 %v471, %v472
      %v474 = vrot.slane %v473, 1
      %v475 = vadd.f32 %v473, %v474
      %v476 = vsel %vm440, %v362, 0.0
      %v477 = vrot.slane %v476, 4
      %v478 = vadd.f32 %v476, %v477
      %v479 = vrot.slane %v478, 2
      %v480 = vadd.f32 %v478, %v479
      %v481 = vrot.slane %v480, 1
      %v482 = vadd.f32 %v480, %v481
      %v483 = vsel %vm440, %v367, 0.0
      %v484 = vrot.slane %v483, 4
      %v485 = vadd.f32 %v483, %v484
      %v486 = vrot.slane %v485, 2
      %v487 = vadd.f32 %v485, %v486
      %v488 = vrot.slane %v487, 1
      %v489 = vadd.f32 %v487, %v488
      %v490 = vsel %vm440, %v372, 0.0
      %v491 = vrot.slane %v490, 4
      %v492 = vadd.f32 %v490, %v491
      %v493 = vrot.slane %v492, 2
      %v494 = vadd.f32 %v492, %v493
      %v495 = vrot.slane %v494, 1
      %v496 = vadd.f32 %v494, %v495
      %v497 = vmul.f32 %v447, %v431
      %v498 = vmul.f32 %v454, %v431
      %v499 = vmul.f32 %v461, %v431
      %v500 = vmul.f32 %v468, %v431
      %v501 = vmul.f32 %v475, %v431
      %v502 = vmul.f32 %v482, %v431
      %v503 = vmul.f32 %v489, %v431
      %v504 = vmul.f32 %v496, %v431
      %513 = vrot.lane.b32.xlu0 %v337, 120
      %v514 = vpop.permute.xlu0 %513
      %515 = vrot.lane.b32.xlu0 %v342, 120
      %v516 = vpop.permute.xlu0 %515
      %517 = vrot.lane.b32.xlu0 %v347, 120
      %v518 = vpop.permute.xlu0 %517
      %519 = vrot.lane.b32.xlu0 %v352, 120
      %v520 = vpop.permute.xlu0 %519
      %521 = vrot.lane.b32.xlu0 %v357, 120
      %v522 = vpop.permute.xlu0 %521
      %523 = vrot.lane.b32.xlu0 %v362, 120
      %v524 = vpop.permute.xlu0 %523
      %525 = vrot.lane.b32.xlu0 %v367, 120
      %v526 = vpop.permute.xlu0 %525
      %527 = vrot.lane.b32.xlu0 %v372, 120
      %v528 = vpop.permute.xlu0 %527
      %537 = vrot.lane.b32.xlu0 %v337, 112
      %v538 = vpop.permute.xlu0 %537
      %539 = vrot.lane.b32.xlu0 %v342, 112
      %v540 = vpop.permute.xlu0 %539
      %541 = vrot.lane.b32.xlu0 %v347, 112
      %v542 = vpop.permute.xlu0 %541
      %543 = vrot.lane.b32.xlu0 %v352, 112
      %v544 = vpop.permute.xlu0 %543
      %545 = vrot.lane.b32.xlu0 %v357, 112
      %v546 = vpop.permute.xlu0 %545
      %547 = vrot.lane.b32.xlu0 %v362, 112
      %v548 = vpop.permute.xlu0 %547
      %549 = vrot.lane.b32.xlu0 %v367, 112
      %v550 = vpop.permute.xlu0 %549
      %551 = vrot.lane.b32.xlu0 %v372, 112
      %v552 = vpop.permute.xlu0 %551
      %561 = vrot.lane.b32.xlu0 %v337, 104
      %v562 = vpop.permute.xlu0 %561
      %563 = vrot.lane.b32.xlu0 %v342, 104
      %v564 = vpop.permute.xlu0 %563
      %565 = vrot.lane.b32.xlu0 %v347, 104
      %v566 = vpop.permute.xlu0 %565
      %567 = vrot.lane.b32.xlu0 %v352, 104
      %v568 = vpop.permute.xlu0 %567
      %569 = vrot.lane.b32.xlu0 %v357, 104
      %v570 = vpop.permute.xlu0 %569
      %571 = vrot.lane.b32.xlu0 %v362, 104
      %v572 = vpop.permute.xlu0 %571
      %573 = vrot.lane.b32.xlu0 %v367, 104
      %v574 = vpop.permute.xlu0 %573
      %575 = vrot.lane.b32.xlu0 %v372, 104
      %v576 = vpop.permute.xlu0 %575
      %593 = vrot.lane.b32.xlu0 %v432, 120
      %v594 = vpop.permute.xlu0 %593
      %595 = vrot.lane.b32.xlu0 %v433, 120
      %v596 = vpop.permute.xlu0 %595
      %597 = vrot.lane.b32.xlu0 %v434, 120
      %v598 = vpop.permute.xlu0 %597
      %599 = vrot.lane.b32.xlu0 %v435, 120
      %v600 = vpop.permute.xlu0 %599
      %601 = vrot.lane.b32.xlu0 %v436, 120
      %v602 = vpop.permute.xlu0 %601
      %603 = vrot.lane.b32.xlu0 %v437, 120
      %v604 = vpop.permute.xlu0 %603
      %605 = vrot.lane.b32.xlu0 %v438, 120
      %v606 = vpop.permute.xlu0 %605
      %607 = vrot.lane.b32.xlu0 %v439, 120
      %v608 = vpop.permute.xlu0 %607
      %617 = vrot.lane.b32.xlu0 %v432, 112
      %v618 = vpop.permute.xlu0 %617
      %619 = vrot.lane.b32.xlu0 %v433, 112
      %v620 = vpop.permute.xlu0 %619
      %621 = vrot.lane.b32.xlu0 %v434, 112
      %v622 = vpop.permute.xlu0 %621
      %623 = vrot.lane.b32.xlu0 %v435, 112
      %v624 = vpop.permute.xlu0 %623
      %625 = vrot.lane.b32.xlu0 %v436, 112
      %v626 = vpop.permute.xlu0 %625
      %627 = vrot.lane.b32.xlu0 %v437, 112
      %v628 = vpop.permute.xlu0 %627
      %629 = vrot.lane.b32.xlu0 %v438, 112
      %v630 = vpop.permute.xlu0 %629
      %631 = vrot.lane.b32.xlu0 %v439, 112
      %v632 = vpop.permute.xlu0 %631
      %641 = vrot.lane.b32.xlu0 %v432, 104
      %v642 = vpop.permute.xlu0 %641
      %643 = vrot.lane.b32.xlu0 %v433, 104
      %v644 = vpop.permute.xlu0 %643
      %645 = vrot.lane.b32.xlu0 %v434, 104
      %v646 = vpop.permute.xlu0 %645
      %647 = vrot.lane.b32.xlu0 %v435, 104
      %v648 = vpop.permute.xlu0 %647
      %649 = vrot.lane.b32.xlu0 %v436, 104
      %v650 = vpop.permute.xlu0 %649
      %651 = vrot.lane.b32.xlu0 %v437, 104
      %v652 = vpop.permute.xlu0 %651
      %653 = vrot.lane.b32.xlu0 %v438, 104
      %v654 = vpop.permute.xlu0 %653
      %655 = vrot.lane.b32.xlu0 %v439, 104
      %v656 = vpop.permute.xlu0 %655
      %673 = vrot.lane.b32.xlu0 %v497, 120
      %v674 = vpop.permute.xlu0 %673
      %675 = vrot.lane.b32.xlu0 %v498, 120
      %v676 = vpop.permute.xlu0 %675
      %677 = vrot.lane.b32.xlu0 %v499, 120
      %v678 = vpop.permute.xlu0 %677
      %679 = vrot.lane.b32.xlu0 %v500, 120
      %v680 = vpop.permute.xlu0 %679
      %681 = vrot.lane.b32.xlu0 %v501, 120
      %v682 = vpop.permute.xlu0 %681
      %683 = vrot.lane.b32.xlu0 %v502, 120
      %v684 = vpop.permute.xlu0 %683
      %685 = vrot.lane.b32.xlu0 %v503, 120
      %v686 = vpop.permute.xlu0 %685
      %687 = vrot.lane.b32.xlu0 %v504, 120
      %v688 = vpop.permute.xlu0 %687
      %697 = vrot.lane.b32.xlu0 %v497, 112
      %v698 = vpop.permute.xlu0 %697
      %699 = vrot.lane.b32.xlu0 %v498, 112
      %v700 = vpop.permute.xlu0 %699
      %701 = vrot.lane.b32.xlu0 %v499, 112
      %v702 = vpop.permute.xlu0 %701
      %703 = vrot.lane.b32.xlu0 %v500, 112
      %v704 = vpop.permute.xlu0 %703
      %705 = vrot.lane.b32.xlu0 %v501, 112
      %v706 = vpop.permute.xlu0 %705
      %707 = vrot.lane.b32.xlu0 %v502, 112
      %v708 = vpop.permute.xlu0 %707
      %709 = vrot.lane.b32.xlu0 %v503, 112
      %v710 = vpop.permute.xlu0 %709
      %711 = vrot.lane.b32.xlu0 %v504, 112
      %v712 = vpop.permute.xlu0 %711
      %721 = vrot.lane.b32.xlu0 %v497, 104
      %v722 = vpop.permute.xlu0 %721
      %723 = vrot.lane.b32.xlu0 %v498, 104
      %v724 = vpop.permute.xlu0 %723
      %725 = vrot.lane.b32.xlu0 %v499, 104
      %v726 = vpop.permute.xlu0 %725
      %727 = vrot.lane.b32.xlu0 %v500, 104
      %v728 = vpop.permute.xlu0 %727
      %729 = vrot.lane.b32.xlu0 %v501, 104
      %v730 = vpop.permute.xlu0 %729
      %731 = vrot.lane.b32.xlu0 %v502, 104
      %v732 = vpop.permute.xlu0 %731
      %733 = vrot.lane.b32.xlu0 %v503, 104
      %v734 = vpop.permute.xlu0 %733
      %735 = vrot.lane.b32.xlu0 %v504, 104
      %v736 = vpop.permute.xlu0 %735
      %v745 = vpack.c.bf16 %v342, %v337
      %v746 = vpack.c.bf16 %v352, %v347
      %v747 = vpack.c.bf16 %v362, %v357
      %v748 = vpack.c.bf16 %v372, %v367
      %v749 = vpack.c.bf16 %v516, %v514
      %v750 = vpack.c.bf16 %v520, %v518
      %v751 = vpack.c.bf16 %v524, %v522
      %v752 = vpack.c.bf16 %v528, %v526
      %v753 = vpack.c.bf16 %v540, %v538
      %v754 = vpack.c.bf16 %v544, %v542
      %v755 = vpack.c.bf16 %v548, %v546
      %v756 = vpack.c.bf16 %v552, %v550
      %v757 = vpack.c.bf16 %v564, %v562
      %v758 = vpack.c.bf16 %v568, %v566
      %v759 = vpack.c.bf16 %v572, %v570
      %v760 = vpack.c.bf16 %v576, %v574
      %v761 = vpack.c.bf16 %v497, %v497
      %v762 = vpack.c.bf16 %v498, %v498
      %v763 = vpack.c.bf16 %v499, %v499
      %v764 = vpack.c.bf16 %v500, %v500
      %v765 = vpack.c.bf16 %v501, %v501
      %v766 = vpack.c.bf16 %v502, %v502
      %v767 = vpack.c.bf16 %v503, %v503
      %v768 = vpack.c.bf16 %v504, %v504
      %v769 = vpack.c.bf16 %v674, %v674
      %v770 = vpack.c.bf16 %v676, %v676
      %v771 = vpack.c.bf16 %v678, %v678
      %v772 = vpack.c.bf16 %v680, %v680
      %v773 = vpack.c.bf16 %v682, %v682
      %v774 = vpack.c.bf16 %v684, %v684
      %v775 = vpack.c.bf16 %v686, %v686
      %v776 = vpack.c.bf16 %v688, %v688
      %v777 = vpack.c.bf16 %v698, %v698
      %v778 = vpack.c.bf16 %v700, %v700
      %v779 = vpack.c.bf16 %v702, %v702
      %v780 = vpack.c.bf16 %v704, %v704
      %v781 = vpack.c.bf16 %v706, %v706
      %v782 = vpack.c.bf16 %v708, %v708
      %v783 = vpack.c.bf16 %v710, %v710
      %v784 = vpack.c.bf16 %v712, %v712
      %v785 = vpack.c.bf16 %v722, %v722
      %v786 = vpack.c.bf16 %v724, %v724
      %v787 = vpack.c.bf16 %v726, %v726
      %v788 = vpack.c.bf16 %v728, %v728
      %v789 = vpack.c.bf16 %v730, %v730
      %v790 = vpack.c.bf16 %v732, %v732
      %v791 = vpack.c.bf16 %v734, %v734
      %v792 = vpack.c.bf16 %v736, %v736
      %v801 = vunpack.c.l.b16 %v761
      %v802 = vunpack.c.l.b16 %v762
      %v803 = vunpack.c.l.b16 %v763
      %v804 = vunpack.c.l.b16 %v764
      %v805 = vunpack.c.l.b16 %v765
      %v806 = vunpack.c.l.b16 %v766
      %v807 = vunpack.c.l.b16 %v767
      %v808 = vunpack.c.l.b16 %v768
      %v809 = vrot.slane %v802, 7
      %vm810 = vcmask 1041409
      %v811 = vsel %vm810, %v809, %v801
      %v812 = vrot.slane %v803, 6
      %vm813 = vcmask 1042434
      %v814 = vsel %vm813, %v812, %v811
      %v815 = vrot.slane %v804, 5
      %vm816 = vcmask 1043459
      %v817 = vsel %vm816, %v815, %v814
      %v818 = vrot.slane %v805, 4
      %vm819 = vcmask 1044484
      %v820 = vsel %vm819, %v818, %v817
      %v821 = vrot.slane %v806, 3
      %vm822 = vcmask 1045509
      %v823 = vsel %vm822, %v821, %v820
      %v824 = vrot.slane %v807, 2
      %vm825 = vcmask 1046534
      %v826 = vsel %vm825, %v824, %v823
      %v827 = vrot.slane %v808, 1
      %vm828 = vcmask 1047559
      %v829 = vsel %vm828, %v827, %v826
      %v830 = vpack.c.b16 %v829, %v829
      %831 = vrot.lane.b32.xlu0 %v830, 96
      %v832 = vpop.permute.xlu0 %831
      %vm833 = vcmask 64512
      %v835 = vsel %vm833, %v745, 0
      %v838 = vsel %vm833, %v746, 0
      %v841 = vsel %vm833, %v747, 0
      %v844 = vsel %vm833, %v748, 0
      %v847 = vsel %vm833, %v832, 0
      %849 = vmatprep.subr.bf16.mxu0 0
      %850 = vmatpush1.bf16.xpose.msra.mxu0 0
      %851 = vmatprep.subr.bf16.mxu0 0
      %852 = vmatpush1.bf16.xpose.msra.mxu0 0
      %853 = vmatprep.subr.bf16.mxu0 0
      %854 = vmatpush1.bf16.xpose.msra.mxu0 0
      %855 = vmatprep.subr.bf16.mxu0 0
      %856 = vmatpush1.bf16.xpose.msra.mxu0 0
      %857 = vmatprep.subr.bf16.mxu0 0
      %858 = vmatpush1.bf16.xpose.msra.mxu0 0
      %859 = vmatprep.subr.bf16.mxu0 0
      %860 = vmatpush1.bf16.xpose.msra.mxu0 0
      %861 = vmatprep.subr.bf16.mxu0 0
      %862 = vmatpush1.bf16.xpose.msra.mxu0 0
      %863 = vmatprep.subr.bf16.mxu0 0
      %864 = vmatpush1.bf16.xpose.msra.mxu0 %v847
      %865 = vmatprep.subr.bf16.mxu0 0
      %866 = vmatpush2.bf16.xpose.msra.mxu0 0
      %867 = vmatprep.subr.bf16.mxu0 0
      %868 = vmatpush2.bf16.xpose.msra.mxu0 0
      %869 = vmatprep.subr.bf16.mxu0 0
      %870 = vmatpush2.bf16.xpose.msra.mxu0 0
      %871 = vmatprep.subr.bf16.mxu0 0
      %872 = vmatpush2.bf16.xpose.msra.mxu0 0
      %873 = vmatprep.subr.bf16.mxu0 0
      %874 = vmatpush2.bf16.xpose.msra.mxu0 0
      %875 = vmatprep.subr.bf16.mxu0 0
      %876 = vmatpush2.bf16.xpose.msra.mxu0 0
      %877 = vmatprep.subr.bf16.mxu0 0
      %878 = vmatpush2.bf16.xpose.msra.mxu0 0
      %879 = vmatprep.subr.bf16.mxu0 0
      %880 = vmatpush2.bf16.xpose.msra.mxu0 0
      %881 = vmatprep.mubr.bf16.mxu0 0
      %882 = vmatmul.mubr.bf16.gmra.mxu0 %v835
      %v883 = vpop.f32.mrf.mxu0
      %v884 = vadd.f32 0.0, %v883
      %v885 = vpop.f32.mrf.mxu0
      %v886 = vpop.f32.mrf.mxu0
      %v887 = vadd.f32 0.0, %v886
      %v888 = vpop.f32.mrf.mxu0
      %889 = vmatprep.mubr.bf16.mxu0 0
      %890 = vmatmul.mubr.bf16.gmra.mxu0 %v838
      %v891 = vpop.f32.mrf.mxu0
      %v892 = vadd.f32 0.0, %v891
      %v893 = vpop.f32.mrf.mxu0
      %v894 = vpop.f32.mrf.mxu0
      %v895 = vadd.f32 0.0, %v894
      %v896 = vpop.f32.mrf.mxu0
      %897 = vmatprep.mubr.bf16.mxu0 0
      %898 = vmatmul.mubr.bf16.gmra.mxu0 %v841
      %v899 = vpop.f32.mrf.mxu0
      %v900 = vadd.f32 0.0, %v899
      %v901 = vpop.f32.mrf.mxu0
      %v902 = vpop.f32.mrf.mxu0
      %v903 = vadd.f32 0.0, %v902
      %v904 = vpop.f32.mrf.mxu0
      %905 = vmatprep.mubr.bf16.mxu0 0
      %906 = vmatmul.mubr.bf16.gmra.mxu0 %v844
      %v907 = vpop.f32.mrf.mxu0
      %v908 = vadd.f32 0.0, %v907
      %v909 = vpop.f32.mrf.mxu0
      %v910 = vpop.f32.mrf.mxu0
      %v911 = vadd.f32 0.0, %v910
      %v912 = vpop.f32.mrf.mxu0
      %913 = vdwg.mxu0
      %v922 = vunpack.c.l.b16 %v769
      %v923 = vunpack.c.l.b16 %v770
      %v924 = vunpack.c.l.b16 %v771
      %v925 = vunpack.c.l.b16 %v772
      %v926 = vunpack.c.l.b16 %v773
      %v927 = vunpack.c.l.b16 %v774
      %v928 = vunpack.c.l.b16 %v775
      %v929 = vunpack.c.l.b16 %v776
      %v930 = vrot.slane %v923, 7
      %v931 = vsel %vm810, %v930, %v922
      %v932 = vrot.slane %v924, 6
      %v933 = vsel %vm813, %v932, %v931
      %v934 = vrot.slane %v925, 5
      %v935 = vsel %vm816, %v934, %v933
      %v936 = vrot.slane %v926, 4
      %v937 = vsel %vm819, %v936, %v935
      %v938 = vrot.slane %v927, 3
      %v939 = vsel %vm822, %v938, %v937
      %v940 = vrot.slane %v928, 2
      %v941 = vsel %vm825, %v940, %v939
      %v942 = vrot.slane %v929, 1
      %v943 = vsel %vm828, %v942, %v941
      %v944 = vpack.c.b16 %v943, %v943
      %945 = vrot.lane.b32.xlu0 %v944, 96
      %v946 = vpop.permute.xlu0 %945
      %v948 = vsel %vm833, %v749, 0
      %v951 = vsel %vm833, %v750, 0
      %v954 = vsel %vm833, %v751, 0
      %v957 = vsel %vm833, %v752, 0
      %v960 = vsel %vm833, %v946, 0
      %962 = vmatprep.subr.bf16.mxu0 0
      %963 = vmatpush1.bf16.xpose.msra.mxu0 0
      %964 = vmatprep.subr.bf16.mxu0 0
      %965 = vmatpush1.bf16.xpose.msra.mxu0 0
      %966 = vmatprep.subr.bf16.mxu0 0
      %967 = vmatpush1.bf16.xpose.msra.mxu0 0
      %968 = vmatprep.subr.bf16.mxu0 0
      %969 = vmatpush1.bf16.xpose.msra.mxu0 0
      %970 = vmatprep.subr.bf16.mxu0 0
      %971 = vmatpush1.bf16.xpose.msra.mxu0 0
      %972 = vmatprep.subr.bf16.mxu0 0
      %973 = vmatpush1.bf16.xpose.msra.mxu0 0
      %974 = vmatprep.subr.bf16.mxu0 0
      %975 = vmatpush1.bf16.xpose.msra.mxu0 0
      %976 = vmatprep.subr.bf16.mxu0 0
      %977 = vmatpush1.bf16.xpose.msra.mxu0 %v960
      %978 = vmatprep.subr.bf16.mxu0 0
      %979 = vmatpush2.bf16.xpose.msra.mxu0 0
      %980 = vmatprep.subr.bf16.mxu0 0
      %981 = vmatpush2.bf16.xpose.msra.mxu0 0
      %982 = vmatprep.subr.bf16.mxu0 0
      %983 = vmatpush2.bf16.xpose.msra.mxu0 0
      %984 = vmatprep.subr.bf16.mxu0 0
      %985 = vmatpush2.bf16.xpose.msra.mxu0 0
      %986 = vmatprep.subr.bf16.mxu0 0
      %987 = vmatpush2.bf16.xpose.msra.mxu0 0
      %988 = vmatprep.subr.bf16.mxu0 0
      %989 = vmatpush2.bf16.xpose.msra.mxu0 0
      %990 = vmatprep.subr.bf16.mxu0 0
      %991 = vmatpush2.bf16.xpose.msra.mxu0 0
      %992 = vmatprep.subr.bf16.mxu0 0
      %993 = vmatpush2.bf16.xpose.msra.mxu0 0
      %994 = vmatprep.mubr.bf16.mxu0 0
      %995 = vmatmul.mubr.bf16.gmra.mxu0 %v948
      %v996 = vpop.f32.mrf.mxu0
      %v997 = vadd.f32 0.0, %v996
      %v998 = vpop.f32.mrf.mxu0
      %v999 = vpop.f32.mrf.mxu0
      %v1000 = vadd.f32 0.0, %v999
      %v1001 = vpop.f32.mrf.mxu0
      %1002 = vmatprep.mubr.bf16.mxu0 0
      %1003 = vmatmul.mubr.bf16.gmra.mxu0 %v951
      %v1004 = vpop.f32.mrf.mxu0
      %v1005 = vadd.f32 0.0, %v1004
      %v1006 = vpop.f32.mrf.mxu0
      %v1007 = vpop.f32.mrf.mxu0
      %v1008 = vadd.f32 0.0, %v1007
      %v1009 = vpop.f32.mrf.mxu0
      %1010 = vmatprep.mubr.bf16.mxu0 0
      %1011 = vmatmul.mubr.bf16.gmra.mxu0 %v954
      %v1012 = vpop.f32.mrf.mxu0
      %v1013 = vadd.f32 0.0, %v1012
      %v1014 = vpop.f32.mrf.mxu0
      %v1015 = vpop.f32.mrf.mxu0
      %v1016 = vadd.f32 0.0, %v1015
      %v1017 = vpop.f32.mrf.mxu0
      %1018 = vmatprep.mubr.bf16.mxu0 0
      %1019 = vmatmul.mubr.bf16.gmra.mxu0 %v957
      %v1020 = vpop.f32.mrf.mxu0
      %v1021 = vadd.f32 0.0, %v1020
      %v1022 = vpop.f32.mrf.mxu0
      %v1023 = vpop.f32.mrf.mxu0
      %v1024 = vadd.f32 0.0, %v1023
      %v1025 = vpop.f32.mrf.mxu0
      %1026 = vdwg.mxu0
      %v1035 = vunpack.c.l.b16 %v777
      %v1036 = vunpack.c.l.b16 %v778
      %v1037 = vunpack.c.l.b16 %v779
      %v1038 = vunpack.c.l.b16 %v780
      %v1039 = vunpack.c.l.b16 %v781
      %v1040 = vunpack.c.l.b16 %v782
      %v1041 = vunpack.c.l.b16 %v783
      %v1042 = vunpack.c.l.b16 %v784
      %v1043 = vrot.slane %v1036, 7
      %v1044 = vsel %vm810, %v1043, %v1035
      %v1045 = vrot.slane %v1037, 6
      %v1046 = vsel %vm813, %v1045, %v1044
      %v1047 = vrot.slane %v1038, 5
      %v1048 = vsel %vm816, %v1047, %v1046
      %v1049 = vrot.slane %v1039, 4
      %v1050 = vsel %vm819, %v1049, %v1048
      %v1051 = vrot.slane %v1040, 3
      %v1052 = vsel %vm822, %v1051, %v1050
      %v1053 = vrot.slane %v1041, 2
      %v1054 = vsel %vm825, %v1053, %v1052
      %v1055 = vrot.slane %v1042, 1
      %v1056 = vsel %vm828, %v1055, %v1054
      %v1057 = vpack.c.b16 %v1056, %v1056
      %1058 = vrot.lane.b32.xlu0 %v1057, 96
      %v1059 = vpop.permute.xlu0 %1058
      %v1061 = vsel %vm833, %v753, 0
      %v1064 = vsel %vm833, %v754, 0
      %v1067 = vsel %vm833, %v755, 0
      %v1070 = vsel %vm833, %v756, 0
      %v1073 = vsel %vm833, %v1059, 0
      %1075 = vmatprep.subr.bf16.mxu0 0
      %1076 = vmatpush1.bf16.xpose.msra.mxu0 0
      %1077 = vmatprep.subr.bf16.mxu0 0
      %1078 = vmatpush1.bf16.xpose.msra.mxu0 0
      %1079 = vmatprep.subr.bf16.mxu0 0
      %1080 = vmatpush1.bf16.xpose.msra.mxu0 0
      %1081 = vmatprep.subr.bf16.mxu0 0
      %1082 = vmatpush1.bf16.xpose.msra.mxu0 0
      %1083 = vmatprep.subr.bf16.mxu0 0
      %1084 = vmatpush1.bf16.xpose.msra.mxu0 0
      %1085 = vmatprep.subr.bf16.mxu0 0
      %1086 = vmatpush1.bf16.xpose.msra.mxu0 0
      %1087 = vmatprep.subr.bf16.mxu0 0
      %1088 = vmatpush1.bf16.xpose.msra.mxu0 0
      %1089 = vmatprep.subr.bf16.mxu0 0
      %1090 = vmatpush1.bf16.xpose.msra.mxu0 %v1073
      %1091 = vmatprep.subr.bf16.mxu0 0
      %1092 = vmatpush2.bf16.xpose.msra.mxu0 0
      %1093 = vmatprep.subr.bf16.mxu0 0
      %1094 = vmatpush2.bf16.xpose.msra.mxu0 0
      %1095 = vmatprep.subr.bf16.mxu0 0
      %1096 = vmatpush2.bf16.xpose.msra.mxu0 0
      %1097 = vmatprep.subr.bf16.mxu0 0
      %1098 = vmatpush2.bf16.xpose.msra.mxu0 0
      %1099 = vmatprep.subr.bf16.mxu0 0
      %1100 = vmatpush2.bf16.xpose.msra.mxu0 0
      %1101 = vmatprep.subr.bf16.mxu0 0
      %1102 = vmatpush2.bf16.xpose.msra.mxu0 0
      %1103 = vmatprep.subr.bf16.mxu0 0
      %1104 = vmatpush2.bf16.xpose.msra.mxu0 0
      %1105 = vmatprep.subr.bf16.mxu0 0
      %1106 = vmatpush2.bf16.xpose.msra.mxu0 0
      %1107 = vmatprep.mubr.bf16.mxu0 0
      %1108 = vmatmul.mubr.bf16.gmra.mxu0 %v1061
      %v1109 = vpop.f32.mrf.mxu0
      %v1110 = vadd.f32 0.0, %v1109
      %v1111 = vpop.f32.mrf.mxu0
      %v1112 = vpop.f32.mrf.mxu0
      %v1113 = vadd.f32 0.0, %v1112
      %v1114 = vpop.f32.mrf.mxu0
      %1115 = vmatprep.mubr.bf16.mxu0 0
      %1116 = vmatmul.mubr.bf16.gmra.mxu0 %v1064
      %v1117 = vpop.f32.mrf.mxu0
      %v1118 = vadd.f32 0.0, %v1117
      %v1119 = vpop.f32.mrf.mxu0
      %v1120 = vpop.f32.mrf.mxu0
      %v1121 = vadd.f32 0.0, %v1120
      %v1122 = vpop.f32.mrf.mxu0
      %1123 = vmatprep.mubr.bf16.mxu0 0
      %1124 = vmatmul.mubr.bf16.gmra.mxu0 %v1067
      %v1125 = vpop.f32.mrf.mxu0
      %v1126 = vadd.f32 0.0, %v1125
      %v1127 = vpop.f32.mrf.mxu0
      %v1128 = vpop.f32.mrf.mxu0
      %v1129 = vadd.f32 0.0, %v1128
      %v1130 = vpop.f32.mrf.mxu0
      %1131 = vmatprep.mubr.bf16.mxu0 0
      %1132 = vmatmul.mubr.bf16.gmra.mxu0 %v1070
      %v1133 = vpop.f32.mrf.mxu0
      %v1134 = vadd.f32 0.0, %v1133
      %v1135 = vpop.f32.mrf.mxu0
      %v1136 = vpop.f32.mrf.mxu0
      %v1137 = vadd.f32 0.0, %v1136
      %v1138 = vpop.f32.mrf.mxu0
      %1139 = vdwg.mxu0
      %v1148 = vunpack.c.l.b16 %v785
      %v1149 = vunpack.c.l.b16 %v786
      %v1150 = vunpack.c.l.b16 %v787
      %v1151 = vunpack.c.l.b16 %v788
      %v1152 = vunpack.c.l.b16 %v789
      %v1153 = vunpack.c.l.b16 %v790
      %v1154 = vunpack.c.l.b16 %v791
      %v1155 = vunpack.c.l.b16 %v792
      %v1156 = vrot.slane %v1149, 7
      %v1157 = vsel %vm810, %v1156, %v1148
      %v1158 = vrot.slane %v1150, 6
      %v1159 = vsel %vm813, %v1158, %v1157
      %v1160 = vrot.slane %v1151, 5
      %v1161 = vsel %vm816, %v1160, %v1159
      %v1162 = vrot.slane %v1152, 4
      %v1163 = vsel %vm819, %v1162, %v1161
      %v1164 = vrot.slane %v1153, 3
      %v1165 = vsel %vm822, %v1164, %v1163
      %v1166 = vrot.slane %v1154, 2
      %v1167 = vsel %vm825, %v1166, %v1165
      %v1168 = vrot.slane %v1155, 1
      %v1169 = vsel %vm828, %v1168, %v1167
      %v1170 = vpack.c.b16 %v1169, %v1169
      %1171 = vrot.lane.b32.xlu0 %v1170, 96
      %v1172 = vpop.permute.xlu0 %1171
      %v1174 = vsel %vm833, %v757, 0
      %v1177 = vsel %vm833, %v758, 0
      %v1180 = vsel %vm833, %v759, 0
      %v1183 = vsel %vm833, %v760, 0
      %v1186 = vsel %vm833, %v1172, 0
      %1188 = vmatprep.subr.bf16.mxu0 0
      %1189 = vmatpush1.bf16.xpose.msra.mxu0 0
      %1190 = vmatprep.subr.bf16.mxu0 0
      %1191 = vmatpush1.bf16.xpose.msra.mxu0 0
      %1192 = vmatprep.subr.bf16.mxu0 0
      %1193 = vmatpush1.bf16.xpose.msra.mxu0 0
      %1194 = vmatprep.subr.bf16.mxu0 0
      %1195 = vmatpush1.bf16.xpose.msra.mxu0 0
      %1196 = vmatprep.subr.bf16.mxu0 0
      %1197 = vmatpush1.bf16.xpose.msra.mxu0 0
      %1198 = vmatprep.subr.bf16.mxu0 0
      %1199 = vmatpush1.bf16.xpose.msra.mxu0 0
      %1200 = vmatprep.subr.bf16.mxu0 0
      %1201 = vmatpush1.bf16.xpose.msra.mxu0 0
      %1202 = vmatprep.subr.bf16.mxu0 0
      %1203 = vmatpush1.bf16.xpose.msra.mxu0 %v1186
      %1204 = vmatprep.subr.bf16.mxu0 0
      %1205 = vmatpush2.bf16.xpose.msra.mxu0 0
      %1206 = vmatprep.subr.bf16.mxu0 0
      %1207 = vmatpush2.bf16.xpose.msra.mxu0 0
      %1208 = vmatprep.subr.bf16.mxu0 0
      %1209 = vmatpush2.bf16.xpose.msra.mxu0 0
      %1210 = vmatprep.subr.bf16.mxu0 0
      %1211 = vmatpush2.bf16.xpose.msra.mxu0 0
      %1212 = vmatprep.subr.bf16.mxu0 0
      %1213 = vmatpush2.bf16.xpose.msra.mxu0 0
      %1214 = vmatprep.subr.bf16.mxu0 0
      %1215 = vmatpush2.bf16.xpose.msra.mxu0 0
      %1216 = vmatprep.subr.bf16.mxu0 0
      %1217 = vmatpush2.bf16.xpose.msra.mxu0 0
      %1218 = vmatprep.subr.bf16.mxu0 0
      %1219 = vmatpush2.bf16.xpose.msra.mxu0 0
      %1220 = vmatprep.mubr.bf16.mxu0 0
      %1221 = vmatmul.mubr.bf16.gmra.mxu0 %v1174
      %v1222 = vpop.f32.mrf.mxu0
      %v1223 = vadd.f32 0.0, %v1222
      %v1224 = vpop.f32.mrf.mxu0
      %v1225 = vpop.f32.mrf.mxu0
      %v1226 = vadd.f32 0.0, %v1225
      %v1227 = vpop.f32.mrf.mxu0
      %1228 = vmatprep.mubr.bf16.mxu0 0
      %1229 = vmatmul.mubr.bf16.gmra.mxu0 %v1177
      %v1230 = vpop.f32.mrf.mxu0
      %v1231 = vadd.f32 0.0, %v1230
      %v1232 = vpop.f32.mrf.mxu0
      %v1233 = vpop.f32.mrf.mxu0
      %v1234 = vadd.f32 0.0, %v1233
      %v1235 = vpop.f32.mrf.mxu0
      %1236 = vmatprep.mubr.bf16.mxu0 0
      %1237 = vmatmul.mubr.bf16.gmra.mxu0 %v1180
      %v1238 = vpop.f32.mrf.mxu0
      %v1239 = vadd.f32 0.0, %v1238
      %v1240 = vpop.f32.mrf.mxu0
      %v1241 = vpop.f32.mrf.mxu0
      %v1242 = vadd.f32 0.0, %v1241
      %v1243 = vpop.f32.mrf.mxu0
      %1244 = vmatprep.mubr.bf16.mxu0 0
      %1245 = vmatmul.mubr.bf16.gmra.mxu0 %v1183
      %v1246 = vpop.f32.mrf.mxu0
      %v1247 = vadd.f32 0.0, %v1246
      %v1248 = vpop.f32.mrf.mxu0
      %v1249 = vpop.f32.mrf.mxu0
      %v1250 = vadd.f32 0.0, %v1249
      %v1251 = vpop.f32.mrf.mxu0
      %1252 = vdwg.mxu0
      %v1253 = vmul.f32 %v884, 0.35355338
      %v1254 = vmul.f32 %v887, 0.35355338
      %v1255 = vmul.f32 %v892, 0.35355338
      %v1256 = vmul.f32 %v895, 0.35355338
      %v1257 = vmul.f32 %v900, 0.35355338
      %v1258 = vmul.f32 %v903, 0.35355338
      %v1259 = vmul.f32 %v908, 0.35355338
      %v1260 = vmul.f32 %v911, 0.35355338
      %v1261 = vmul.f32 %v997, 0.35355338
      %v1262 = vmul.f32 %v1000, 0.35355338
      %v1263 = vmul.f32 %v1005, 0.35355338
      %v1264 = vmul.f32 %v1008, 0.35355338
      %v1265 = vmul.f32 %v1013, 0.35355338
      %v1266 = vmul.f32 %v1016, 0.35355338
      %v1267 = vmul.f32 %v1021, 0.35355338
      %v1268 = vmul.f32 %v1024, 0.35355338
      %v1269 = vmul.f32 %v1110, 0.35355338
      %v1270 = vmul.f32 %v1113, 0.35355338
      %v1271 = vmul.f32 %v1118, 0.35355338
      %v1272 = vmul.f32 %v1121, 0.35355338
      %v1273 = vmul.f32 %v1126, 0.35355338
      %v1274 = vmul.f32 %v1129, 0.35355338
      %v1275 = vmul.f32 %v1134, 0.35355338
      %v1276 = vmul.f32 %v1137, 0.35355338
      %v1277 = vmul.f32 %v1223, 0.35355338
      %v1278 = vmul.f32 %v1226, 0.35355338
      %v1279 = vmul.f32 %v1231, 0.35355338
      %v1280 = vmul.f32 %v1234, 0.35355338
      %v1281 = vmul.f32 %v1239, 0.35355338
      %v1282 = vmul.f32 %v1242, 0.35355338
      %v1283 = vmul.f32 %v1247, 0.35355338
      %v1284 = vmul.f32 %v1250, 0.35355338
      %v1285 = vsel %vm833, %v1253, -inf
      %1286 = vmax.xlane.f32.xlu0 %v1285
      %v1287 = vpop.xlane.xlu0 %1286
      %v1288 = vsel %vm833, %v1254, -inf
      %1289 = vmax.xlane.f32.xlu0 %v1288
      %v1290 = vpop.xlane.xlu0 %1289
      %v1291 = vsel %vm833, %v1255, -inf
      %1292 = vmax.xlane.f32.xlu0 %v1291
      %v1293 = vpop.xlane.xlu0 %1292
      %v1294 = vsel %vm833, %v1256, -inf
      %1295 = vmax.xlane.f32.xlu0 %v1294
      %v1296 = vpop.xlane.xlu0 %1295
      %v1297 = vsel %vm833, %v1257, -inf
      %1298 = vmax.xlane.f32.xlu0 %v1297
      %v1299 = vpop.xlane.xlu0 %1298
      %v1300 = vsel %vm833, %v1258, -inf
      %1301 = vmax.xlane.f32.xlu0 %v1300
      %v1302 = vpop.xlane.xlu0 %1301
      %v1303 = vsel %vm833, %v1259, -inf
      %1304 = vmax.xlane.f32.xlu0 %v1303
      %v1305 = vpop.xlane.xlu0 %1304
      %v1306 = vsel %vm833, %v1260, -inf
      %1307 = vmax.xlane.f32.xlu0 %v1306
      %v1308 = vpop.xlane.xlu0 %1307
      %v1309 = vsel %vm833, %v1261, -inf
      %1310 = vmax.xlane.f32.xlu0 %v1309
      %v1311 = vpop.xlane.xlu0 %1310
      %v1312 = vsel %vm833, %v1262, -inf
      %1313 = vmax.xlane.f32.xlu0 %v1312
      %v1314 = vpop.xlane.xlu0 %1313
      %v1315 = vsel %vm833, %v1263, -inf
      %1316 = vmax.xlane.f32.xlu0 %v1315
      %v1317 = vpop.xlane.xlu0 %1316
      %v1318 = vsel %vm833, %v1264, -inf
      %1319 = vmax.xlane.f32.xlu0 %v1318
      %v1320 = vpop.xlane.xlu0 %1319
      %v1321 = vsel %vm833, %v1265, -inf
      %1322 = vmax.xlane.f32.xlu0 %v1321
      %v1323 = vpop.xlane.xlu0 %1322
      %v1324 = vsel %vm833, %v1266, -inf
      %1325 = vmax.xlane.f32.xlu0 %v1324
      %v1326 = vpop.xlane.xlu0 %1325
      %v1327 = vsel %vm833, %v1267, -inf
      %1328 = vmax.xlane.f32.xlu0 %v1327
      %v1329 = vpop.xlane.xlu0 %1328
      %v1330 = vsel %vm833, %v1268, -inf
      %1331 = vmax.xlane.f32.xlu0 %v1330
      %v1332 = vpop.xlane.xlu0 %1331
      %v1333 = vsel %vm833, %v1269, -inf
      %1334 = vmax.xlane.f32.xlu0 %v1333
      %v1335 = vpop.xlane.xlu0 %1334
      %v1336 = vsel %vm833, %v1270, -inf
      %1337 = vmax.xlane.f32.xlu0 %v1336
      %v1338 = vpop.xlane.xlu0 %1337
      %v1339 = vsel %vm833, %v1271, -inf
      %1340 = vmax.xlane.f32.xlu0 %v1339
      %v1341 = vpop.xlane.xlu0 %1340
      %v1342 = vsel %vm833, %v1272, -inf
      %1343 = vmax.xlane.f32.xlu0 %v1342
      %v1344 = vpop.xlane.xlu0 %1343
      %v1345 = vsel %vm833, %v1273, -inf
      %1346 = vmax.xlane.f32.xlu0 %v1345
      %v1347 = vpop.xlane.xlu0 %1346
      %v1348 = vsel %vm833, %v1274, -inf
      %1349 = vmax.xlane.f32.xlu0 %v1348
      %v1350 = vpop.xlane.xlu0 %1349
      %v1351 = vsel %vm833, %v1275, -inf
      %1352 = vmax.xlane.f32.xlu0 %v1351
      %v1353 = vpop.xlane.xlu0 %1352
      %v1354 = vsel %vm833, %v1276, -inf
      %1355 = vmax.xlane.f32.xlu0 %v1354
      %v1356 = vpop.xlane.xlu0 %1355
      %v1357 = vsel %vm833, %v1277, -inf
      %1358 = vmax.xlane.f32.xlu0 %v1357
      %v1359 = vpop.xlane.xlu0 %1358
      %v1360 = vsel %vm833, %v1278, -inf
      %1361 = vmax.xlane.f32.xlu0 %v1360
      %v1362 = vpop.xlane.xlu0 %1361
      %v1363 = vsel %vm833, %v1279, -inf
      %1364 = vmax.xlane.f32.xlu0 %v1363
      %v1365 = vpop.xlane.xlu0 %1364
      %v1366 = vsel %vm833, %v1280, -inf
      %1367 = vmax.xlane.f32.xlu0 %v1366
      %v1368 = vpop.xlane.xlu0 %1367
      %v1369 = vsel %vm833, %v1281, -inf
      %1370 = vmax.xlane.f32.xlu0 %v1369
      %v1371 = vpop.xlane.xlu0 %1370
      %v1372 = vsel %vm833, %v1282, -inf
      %1373 = vmax.xlane.f32.xlu0 %v1372
      %v1374 = vpop.xlane.xlu0 %1373
      %v1375 = vsel %vm833, %v1283, -inf
      %1376 = vmax.xlane.f32.xlu0 %v1375
      %v1377 = vpop.xlane.xlu0 %1376
      %v1378 = vsel %vm833, %v1284, -inf
      %1379 = vmax.xlane.f32.xlu0 %v1378
      %v1380 = vpop.xlane.xlu0 %1379
      %v1381 = vsub.f32 %v1253, %v1287
      %v1382 = vsub.f32 %v1254, %v1290
      %v1383 = vsub.f32 %v1255, %v1293
      %v1384 = vsub.f32 %v1256, %v1296
      %v1385 = vsub.f32 %v1257, %v1299
      %v1386 = vsub.f32 %v1258, %v1302
      %v1387 = vsub.f32 %v1259, %v1305
      %v1388 = vsub.f32 %v1260, %v1308
      %v1389 = vsub.f32 %v1261, %v1311
      %v1390 = vsub.f32 %v1262, %v1314
      %v1391 = vsub.f32 %v1263, %v1317
      %v1392 = vsub.f32 %v1264, %v1320
      %v1393 = vsub.f32 %v1265, %v1323
      %v1394 = vsub.f32 %v1266, %v1326
      %v1395 = vsub.f32 %v1267, %v1329
      %v1396 = vsub.f32 %v1268, %v1332
      %v1397 = vsub.f32 %v1269, %v1335
      %v1398 = vsub.f32 %v1270, %v1338
      %v1399 = vsub.f32 %v1271, %v1341
      %v1400 = vsub.f32 %v1272, %v1344
      %v1401 = vsub.f32 %v1273, %v1347
      %v1402 = vsub.f32 %v1274, %v1350
      %v1403 = vsub.f32 %v1275, %v1353
      %v1404 = vsub.f32 %v1276, %v1356
      %v1405 = vsub.f32 %v1277, %v1359
      %v1406 = vsub.f32 %v1278, %v1362
      %v1407 = vsub.f32 %v1279, %v1365
      %v1408 = vsub.f32 %v1280, %v1368
      %v1409 = vsub.f32 %v1281, %v1371
      %v1410 = vsub.f32 %v1282, %v1374
      %v1411 = vsub.f32 %v1283, %v1377
      %v1412 = vsub.f32 %v1284, %v1380
      %v1413 = vmul.f32 %v1381, 1.442695
      %v1414 = vpow.pop %v1413
      %v1415 = vmul.f32 %v1382, 1.442695
      %v1416 = vpow.pop %v1415
      %v1417 = vmul.f32 %v1383, 1.442695
      %v1418 = vpow.pop %v1417
      %v1419 = vmul.f32 %v1384, 1.442695
      %v1420 = vpow.pop %v1419
      %v1421 = vmul.f32 %v1385, 1.442695
      %v1422 = vpow.pop %v1421
      %v1423 = vmul.f32 %v1386, 1.442695
      %v1424 = vpow.pop %v1423
      %v1425 = vmul.f32 %v1387, 1.442695
      %v1426 = vpow.pop %v1425
      %v1427 = vmul.f32 %v1388, 1.442695
      %v1428 = vpow.pop %v1427
      %v1429 = vmul.f32 %v1389, 1.442695
      %v1430 = vpow.pop %v1429
      %v1431 = vmul.f32 %v1390, 1.442695
      %v1432 = vpow.pop %v1431
      %v1433 = vmul.f32 %v1391, 1.442695
      %v1434 = vpow.pop %v1433
      %v1435 = vmul.f32 %v1392, 1.442695
      %v1436 = vpow.pop %v1435
      %v1437 = vmul.f32 %v1393, 1.442695
      %v1438 = vpow.pop %v1437
      %v1439 = vmul.f32 %v1394, 1.442695
      %v1440 = vpow.pop %v1439
      %v1441 = vmul.f32 %v1395, 1.442695
      %v1442 = vpow.pop %v1441
      %v1443 = vmul.f32 %v1396, 1.442695
      %v1444 = vpow.pop %v1443
      %v1445 = vmul.f32 %v1397, 1.442695
      %v1446 = vpow.pop %v1445
      %v1447 = vmul.f32 %v1398, 1.442695
      %v1448 = vpow.pop %v1447
      %v1449 = vmul.f32 %v1399, 1.442695
      %v1450 = vpow.pop %v1449
      %v1451 = vmul.f32 %v1400, 1.442695
      %v1452 = vpow.pop %v1451
      %v1453 = vmul.f32 %v1401, 1.442695
      %v1454 = vpow.pop %v1453
      %v1455 = vmul.f32 %v1402, 1.442695
      %v1456 = vpow.pop %v1455
      %v1457 = vmul.f32 %v1403, 1.442695
      %v1458 = vpow.pop %v1457
      %v1459 = vmul.f32 %v1404, 1.442695
      %v1460 = vpow.pop %v1459
      %v1461 = vmul.f32 %v1405, 1.442695
      %v1462 = vpow.pop %v1461
      %v1463 = vmul.f32 %v1406, 1.442695
      %v1464 = vpow.pop %v1463
      %v1465 = vmul.f32 %v1407, 1.442695
      %v1466 = vpow.pop %v1465
      %v1467 = vmul.f32 %v1408, 1.442695
      %v1468 = vpow.pop %v1467
      %v1469 = vmul.f32 %v1409, 1.442695
      %v1470 = vpow.pop %v1469
      %v1471 = vmul.f32 %v1410, 1.442695
      %v1472 = vpow.pop %v1471
      %v1473 = vmul.f32 %v1411, 1.442695
      %v1474 = vpow.pop %v1473
      %v1475 = vmul.f32 %v1412, 1.442695
      %v1476 = vpow.pop %v1475
      %v1477 = vsel %vm833, %v1414, 0.0
      %1478 = vadd.xlane.f32.xlu0 %v1477
      %v1479 = vpop.xlane.xlu0 %1478
      %v1480 = vsel %vm833, %v1416, 0.0
      %1481 = vadd.xlane.f32.xlu0 %v1480
      %v1482 = vpop.xlane.xlu0 %1481
      %v1483 = vsel %vm833, %v1418, 0.0
      %1484 = vadd.xlane.f32.xlu0 %v1483
      %v1485 = vpop.xlane.xlu0 %1484
      %v1486 = vsel %vm833, %v1420, 0.0
      %1487 = vadd.xlane.f32.xlu0 %v1486
      %v1488 = vpop.xlane.xlu0 %1487
      %v1489 = vsel %vm833, %v1422, 0.0
      %1490 = vadd.xlane.f32.xlu0 %v1489
      %v1491 = vpop.xlane.xlu0 %1490
      %v1492 = vsel %vm833, %v1424, 0.0
      %1493 = vadd.xlane.f32.xlu0 %v1492
      %v1494 = vpop.xlane.xlu0 %1493
      %v1495 = vsel %vm833, %v1426, 0.0
      %1496 = vadd.xlane.f32.xlu0 %v1495
      %v1497 = vpop.xlane.xlu0 %1496
      %v1498 = vsel %vm833, %v1428, 0.0
      %1499 = vadd.xlane.f32.xlu0 %v1498
      %v1500 = vpop.xlane.xlu0 %1499
      %v1501 = vsel %vm833, %v1430, 0.0
      %1502 = vadd.xlane.f32.xlu0 %v1501
      %v1503 = vpop.xlane.xlu0 %1502
      %v1504 = vsel %vm833, %v1432, 0.0
      %1505 = vadd.xlane.f32.xlu0 %v1504
      %v1506 = vpop.xlane.xlu0 %1505
      %v1507 = vsel %vm833, %v1434, 0.0
      %1508 = vadd.xlane.f32.xlu0 %v1507
      %v1509 = vpop.xlane.xlu0 %1508
      %v1510 = vsel %vm833, %v1436, 0.0
      %1511 = vadd.xlane.f32.xlu0 %v1510
      %v1512 = vpop.xlane.xlu0 %1511
      %v1513 = vsel %vm833, %v1438, 0.0
      %1514 = vadd.xlane.f32.xlu0 %v1513
      %v1515 = vpop.xlane.xlu0 %1514
      %v1516 = vsel %vm833, %v1440, 0.0
      %1517 = vadd.xlane.f32.xlu0 %v1516
      %v1518 = vpop.xlane.xlu0 %1517
      %v1519 = vsel %vm833, %v1442, 0.0
      %1520 = vadd.xlane.f32.xlu0 %v1519
      %v1521 = vpop.xlane.xlu0 %1520
      %v1522 = vsel %vm833, %v1444, 0.0
      %1523 = vadd.xlane.f32.xlu0 %v1522
      %v1524 = vpop.xlane.xlu0 %1523
      %v1525 = vsel %vm833, %v1446, 0.0
      %1526 = vadd.xlane.f32.xlu0 %v1525
      %v1527 = vpop.xlane.xlu0 %1526
      %v1528 = vsel %vm833, %v1448, 0.0
      %1529 = vadd.xlane.f32.xlu0 %v1528
      %v1530 = vpop.xlane.xlu0 %1529
      %v1531 = vsel %vm833, %v1450, 0.0
      %1532 = vadd.xlane.f32.xlu0 %v1531
      %v1533 = vpop.xlane.xlu0 %1532
      %v1534 = vsel %vm833, %v1452, 0.0
      %1535 = vadd.xlane.f32.xlu0 %v1534
      %v1536 = vpop.xlane.xlu0 %1535
      %v1537 = vsel %vm833, %v1454, 0.0
      %1538 = vadd.xlane.f32.xlu0 %v1537
      %v1539 = vpop.xlane.xlu0 %1538
      %v1540 = vsel %vm833, %v1456, 0.0
      %1541 = vadd.xlane.f32.xlu0 %v1540
      %v1542 = vpop.xlane.xlu0 %1541
      %v1543 = vsel %vm833, %v1458, 0.0
      %1544 = vadd.xlane.f32.xlu0 %v1543
      %v1545 = vpop.xlane.xlu0 %1544
      %v1546 = vsel %vm833, %v1460, 0.0
      %1547 = vadd.xlane.f32.xlu0 %v1546
      %v1548 = vpop.xlane.xlu0 %1547
      %v1549 = vsel %vm833, %v1462, 0.0
      %1550 = vadd.xlane.f32.xlu0 %v1549
      %v1551 = vpop.xlane.xlu0 %1550
      %v1552 = vsel %vm833, %v1464, 0.0
      %1553 = vadd.xlane.f32.xlu0 %v1552
      %v1554 = vpop.xlane.xlu0 %1553
      %v1555 = vsel %vm833, %v1466, 0.0
      %1556 = vadd.xlane.f32.xlu0 %v1555
      %v1557 = vpop.xlane.xlu0 %1556
      %v1558 = vsel %vm833, %v1468, 0.0
      %1559 = vadd.xlane.f32.xlu0 %v1558
      %v1560 = vpop.xlane.xlu0 %1559
      %v1561 = vsel %vm833, %v1470, 0.0
      %1562 = vadd.xlane.f32.xlu0 %v1561
      %v1563 = vpop.xlane.xlu0 %1562
      %v1564 = vsel %vm833, %v1472, 0.0
      %1565 = vadd.xlane.f32.xlu0 %v1564
      %v1566 = vpop.xlane.xlu0 %1565
      %v1567 = vsel %vm833, %v1474, 0.0
      %1568 = vadd.xlane.f32.xlu0 %v1567
      %v1569 = vpop.xlane.xlu0 %1568
      %v1570 = vsel %vm833, %v1476, 0.0
      %1571 = vadd.xlane.f32.xlu0 %v1570
      %v1572 = vpop.xlane.xlu0 %1571
      %v1573 = vrcp.pop %v1479
      %v1574 = vrcp.pop %v1482
      %v1575 = vrcp.pop %v1485
      %v1576 = vrcp.pop %v1488
      %v1577 = vrcp.pop %v1491
      %v1578 = vrcp.pop %v1494
      %v1579 = vrcp.pop %v1497
      %v1580 = vrcp.pop %v1500
      %v1581 = vrcp.pop %v1503
      %v1582 = vrcp.pop %v1506
      %v1583 = vrcp.pop %v1509
      %v1584 = vrcp.pop %v1512
      %v1585 = vrcp.pop %v1515
      %v1586 = vrcp.pop %v1518
      %v1587 = vrcp.pop %v1521
      %v1588 = vrcp.pop %v1524
      %v1589 = vrcp.pop %v1527
      %v1590 = vrcp.pop %v1530
      %v1591 = vrcp.pop %v1533
      %v1592 = vrcp.pop %v1536
      %v1593 = vrcp.pop %v1539
      %v1594 = vrcp.pop %v1542
      %v1595 = vrcp.pop %v1545
      %v1596 = vrcp.pop %v1548
      %v1597 = vrcp.pop %v1551
      %v1598 = vrcp.pop %v1554
      %v1599 = vrcp.pop %v1557
      %v1600 = vrcp.pop %v1560
      %v1601 = vrcp.pop %v1563
      %v1602 = vrcp.pop %v1566
      %v1603 = vrcp.pop %v1569
      %v1604 = vrcp.pop %v1572
      %v1605 = vmul.f32 %v1414, %v1573
      %v1606 = vmul.f32 %v1416, %v1574
      %v1607 = vmul.f32 %v1418, %v1575
      %v1608 = vmul.f32 %v1420, %v1576
      %v1609 = vmul.f32 %v1422, %v1577
      %v1610 = vmul.f32 %v1424, %v1578
      %v1611 = vmul.f32 %v1426, %v1579
      %v1612 = vmul.f32 %v1428, %v1580
      %v1613 = vmul.f32 %v1430, %v1581
      %v1614 = vmul.f32 %v1432, %v1582
      %v1615 = vmul.f32 %v1434, %v1583
      %v1616 = vmul.f32 %v1436, %v1584
      %v1617 = vmul.f32 %v1438, %v1585
      %v1618 = vmul.f32 %v1440, %v1586
      %v1619 = vmul.f32 %v1442, %v1587
      %v1620 = vmul.f32 %v1444, %v1588
      %v1621 = vmul.f32 %v1446, %v1589
      %v1622 = vmul.f32 %v1448, %v1590
      %v1623 = vmul.f32 %v1450, %v1591
      %v1624 = vmul.f32 %v1452, %v1592
      %v1625 = vmul.f32 %v1454, %v1593
      %v1626 = vmul.f32 %v1456, %v1594
      %v1627 = vmul.f32 %v1458, %v1595
      %v1628 = vmul.f32 %v1460, %v1596
      %v1629 = vmul.f32 %v1462, %v1597
      %v1630 = vmul.f32 %v1464, %v1598
      %v1631 = vmul.f32 %v1466, %v1599
      %v1632 = vmul.f32 %v1468, %v1600
      %v1633 = vmul.f32 %v1470, %v1601
      %v1634 = vmul.f32 %v1472, %v1602
      %v1635 = vmul.f32 %v1474, %v1603
      %v1636 = vmul.f32 %v1476, %v1604
      %v1637 = vrot.slane %v433, 7
      %v1638 = vsel %vm810, %v1637, %v432
      %v1639 = vrot.slane %v434, 6
      %v1640 = vsel %vm813, %v1639, %v1638
      %v1641 = vrot.slane %v435, 5
      %v1642 = vsel %vm816, %v1641, %v1640
      %v1643 = vrot.slane %v436, 4
      %v1644 = vsel %vm819, %v1643, %v1642
      %v1645 = vrot.slane %v437, 3
      %v1646 = vsel %vm822, %v1645, %v1644
      %v1647 = vrot.slane %v438, 2
      %v1648 = vsel %vm825, %v1647, %v1646
      %v1649 = vrot.slane %v439, 1
      %v1650 = vsel %vm828, %v1649, %v1648
      %v1651 = vrot.slane %v498, 7
      %v1652 = vsel %vm810, %v1651, %v497
      %v1653 = vrot.slane %v499, 6
      %v1654 = vsel %vm813, %v1653, %v1652
      %v1655 = vrot.slane %v500, 5
      %v1656 = vsel %vm816, %v1655, %v1654
      %v1657 = vrot.slane %v501, 4
      %v1658 = vsel %vm819, %v1657, %v1656
      %v1659 = vrot.slane %v502, 3
      %v1660 = vsel %vm822, %v1659, %v1658
      %v1661 = vrot.slane %v503, 2
      %v1662 = vsel %vm825, %v1661, %v1660
      %v1663 = vrot.slane %v504, 1
      %v1664 = vsel %vm828, %v1663, %v1662
      %1665 = vrot.lane.b32.xlu0 %v1664, 96
      %v1666 = vpop.permute.xlu0 %1665
      %v1667 = vsel %vm833, %v1650, 0
      %v1669 = vsel %vm833, %v1666, 0
      %1671 = vmatprep.subr.mxu0 0.0
      %1672 = vmatpush1.xpose.msra.mxu0 0.0
      %1673 = vmatprep.subr.mxu0 0.0
      %1674 = vmatpush1.xpose.msra.mxu0 0.0
      %1675 = vmatprep.subr.mxu0 0.0
      %1676 = vmatpush1.xpose.msra.mxu0 0.0
      %1677 = vmatprep.subr.mxu0 0.0
      %1678 = vmatpush1.xpose.msra.mxu0 0.0
      %1679 = vmatprep.subr.mxu0 0.0
      %1680 = vmatpush1.xpose.msra.mxu0 0.0
      %1681 = vmatprep.subr.mxu0 0.0
      %1682 = vmatpush1.xpose.msra.mxu0 0.0
      %1683 = vmatprep.subr.mxu0 0.0
      %1684 = vmatpush1.xpose.msra.mxu0 0.0
      %1685 = vmatprep.subr.mxu0 0.0
      %1686 = vmatpush1.xpose.msra.mxu0 0.0
      %1687 = vmatprep.subr.mxu0 0.0
      %1688 = vmatpush1.xpose.msra.mxu0 0.0
      %1689 = vmatprep.subr.mxu0 0.0
      %1690 = vmatpush1.xpose.msra.mxu0 0.0
      %1691 = vmatprep.subr.mxu0 0.0
      %1692 = vmatpush1.xpose.msra.mxu0 0.0
      %1693 = vmatprep.subr.mxu0 0.0
      %1694 = vmatpush1.xpose.msra.mxu0 0.0
      %1695 = vmatprep.subr.mxu0 0.0
      %1696 = vmatpush1.xpose.msra.mxu0 0.0
      %1697 = vmatprep.subr.mxu0 0.0
      %1698 = vmatpush1.xpose.msra.mxu0 0.0
      %1699 = vmatprep.subr.mxu0 0.0
      %1700 = vmatpush1.xpose.msra.mxu0 0.0
      %1701 = vmatprep.subr.mxu0 0.0
      %1702 = vmatpush1.xpose.msra.mxu0 %v1669
      %1703 = vmatprep.subr.mxu0 0.0
      %1704 = vmatpush2.xpose.msra.mxu0 0.0
      %1705 = vmatprep.subr.mxu0 0.0
      %1706 = vmatpush2.xpose.msra.mxu0 0.0
      %1707 = vmatprep.subr.mxu0 0.0
      %1708 = vmatpush2.xpose.msra.mxu0 0.0
      %1709 = vmatprep.subr.mxu0 0.0
      %1710 = vmatpush2.xpose.msra.mxu0 0.0
      %1711 = vmatprep.subr.mxu0 0.0
      %1712 = vmatpush2.xpose.msra.mxu0 0.0
      %1713 = vmatprep.subr.mxu0 0.0
      %1714 = vmatpush2.xpose.msra.mxu0 0.0
      %1715 = vmatprep.subr.mxu0 0.0
      %1716 = vmatpush2.xpose.msra.mxu0 0.0
      %1717 = vmatprep.subr.mxu0 0.0
      %1718 = vmatpush2.xpose.msra.mxu0 0.0
      %1719 = vmatprep.subr.mxu0 0.0
      %1720 = vmatpush2.xpose.msra.mxu0 0.0
      %1721 = vmatprep.subr.mxu0 0.0
      %1722 = vmatpush2.xpose.msra.mxu0 0.0
      %1723 = vmatprep.subr.mxu0 0.0
      %1724 = vmatpush2.xpose.msra.mxu0 0.0
      %1725 = vmatprep.subr.mxu0 0.0
      %1726 = vmatpush2.xpose.msra.mxu0 0.0
      %1727 = vmatprep.subr.mxu0 0.0
      %1728 = vmatpush2.xpose.msra.mxu0 0.0
      %1729 = vmatprep.subr.mxu0 0.0
      %1730 = vmatpush2.xpose.msra.mxu0 0.0
      %1731 = vmatprep.subr.mxu0 0.0
      %1732 = vmatpush2.xpose.msra.mxu0 0.0
      %1733 = vmatprep.subr.mxu0 0.0
      %1734 = vmatpush2.xpose.msra.mxu0 0.0
      %1735 = vmatprep.mubr.f32.mxu0 0.0
      %1736 = vmatmul.mubr.f32.gmra.mxu0 %v1667
      %v1737 = vpop.f32.mrf.mxu0
      %v1738 = vadd.f32 0.0, %v1737
      %v1739 = vpop.f32.mrf.mxu0
      %1740 = vdwg.mxu0
      %v1741 = vrot.slane %v596, 7
      %v1742 = vsel %vm810, %v1741, %v594
      %v1743 = vrot.slane %v598, 6
      %v1744 = vsel %vm813, %v1743, %v1742
      %v1745 = vrot.slane %v600, 5
      %v1746 = vsel %vm816, %v1745, %v1744
      %v1747 = vrot.slane %v602, 4
      %v1748 = vsel %vm819, %v1747, %v1746
      %v1749 = vrot.slane %v604, 3
      %v1750 = vsel %vm822, %v1749, %v1748
      %v1751 = vrot.slane %v606, 2
      %v1752 = vsel %vm825, %v1751, %v1750
      %v1753 = vrot.slane %v608, 1
      %v1754 = vsel %vm828, %v1753, %v1752
      %v1755 = vrot.slane %v676, 7
      %v1756 = vsel %vm810, %v1755, %v674
      %v1757 = vrot.slane %v678, 6
      %v1758 = vsel %vm813, %v1757, %v1756
      %v1759 = vrot.slane %v680, 5
      %v1760 = vsel %vm816, %v1759, %v1758
      %v1761 = vrot.slane %v682, 4
      %v1762 = vsel %vm819, %v1761, %v1760
      %v1763 = vrot.slane %v684, 3
      %v1764 = vsel %vm822, %v1763, %v1762
      %v1765 = vrot.slane %v686, 2
      %v1766 = vsel %vm825, %v1765, %v1764
      %v1767 = vrot.slane %v688, 1
      %v1768 = vsel %vm828, %v1767, %v1766
      %1769 = vrot.lane.b32.xlu0 %v1768, 96
      %v1770 = vpop.permute.xlu0 %1769
      %v1771 = vsel %vm833, %v1754, 0
      %v1773 = vsel %vm833, %v1770, 0
      %1775 = vmatprep.subr.mxu0 0.0
      %1776 = vmatpush1.xpose.msra.mxu0 0.0
      %1777 = vmatprep.subr.mxu0 0.0
      %1778 = vmatpush1.xpose.msra.mxu0 0.0
      %1779 = vmatprep.subr.mxu0 0.0
      %1780 = vmatpush1.xpose.msra.mxu0 0.0
      %1781 = vmatprep.subr.mxu0 0.0
      %1782 = vmatpush1.xpose.msra.mxu0 0.0
      %1783 = vmatprep.subr.mxu0 0.0
      %1784 = vmatpush1.xpose.msra.mxu0 0.0
      %1785 = vmatprep.subr.mxu0 0.0
      %1786 = vmatpush1.xpose.msra.mxu0 0.0
      %1787 = vmatprep.subr.mxu0 0.0
      %1788 = vmatpush1.xpose.msra.mxu0 0.0
      %1789 = vmatprep.subr.mxu0 0.0
      %1790 = vmatpush1.xpose.msra.mxu0 0.0
      %1791 = vmatprep.subr.mxu0 0.0
      %1792 = vmatpush1.xpose.msra.mxu0 0.0
      %1793 = vmatprep.subr.mxu0 0.0
      %1794 = vmatpush1.xpose.msra.mxu0 0.0
      %1795 = vmatprep.subr.mxu0 0.0
      %1796 = vmatpush1.xpose.msra.mxu0 0.0
      %1797 = vmatprep.subr.mxu0 0.0
      %1798 = vmatpush1.xpose.msra.mxu0 0.0
      %1799 = vmatprep.subr.mxu0 0.0
      %1800 = vmatpush1.xpose.msra.mxu0 0.0
      %1801 = vmatprep.subr.mxu0 0.0
      %1802 = vmatpush1.xpose.msra.mxu0 0.0
      %1803 = vmatprep.subr.mxu0 0.0
      %1804 = vmatpush1.xpose.msra.mxu0 0.0
      %1805 = vmatprep.subr.mxu0 0.0
      %1806 = vmatpush1.xpose.msra.mxu0 %v1773
      %1807 = vmatprep.subr.mxu0 0.0
      %1808 = vmatpush2.xpose.msra.mxu0 0.0
      %1809 = vmatprep.subr.mxu0 0.0
      %1810 = vmatpush2.xpose.msra.mxu0 0.0
      %1811 = vmatprep.subr.mxu0 0.0
      %1812 = vmatpush2.xpose.msra.mxu0 0.0
      %1813 = vmatprep.subr.mxu0 0.0
      %1814 = vmatpush2.xpose.msra.mxu0 0.0
      %1815 = vmatprep.subr.mxu0 0.0
      %1816 = vmatpush2.xpose.msra.mxu0 0.0
      %1817 = vmatprep.subr.mxu0 0.0
      %1818 = vmatpush2.xpose.msra.mxu0 0.0
      %1819 = vmatprep.subr.mxu0 0.0
      %1820 = vmatpush2.xpose.msra.mxu0 0.0
      %1821 = vmatprep.subr.mxu0 0.0
      %1822 = vmatpush2.xpose.msra.mxu0 0.0
      %1823 = vmatprep.subr.mxu0 0.0
      %1824 = vmatpush2.xpose.msra.mxu0 0.0
      %1825 = vmatprep.subr.mxu0 0.0
      %1826 = vmatpush2.xpose.msra.mxu0 0.0
      %1827 = vmatprep.subr.mxu0 0.0
      %1828 = vmatpush2.xpose.msra.mxu0 0.0
      %1829 = vmatprep.subr.mxu0 0.0
      %1830 = vmatpush2.xpose.msra.mxu0 0.0
      %1831 = vmatprep.subr.mxu0 0.0
      %1832 = vmatpush2.xpose.msra.mxu0 0.0
      %1833 = vmatprep.subr.mxu0 0.0
      %1834 = vmatpush2.xpose.msra.mxu0 0.0
      %1835 = vmatprep.subr.mxu0 0.0
      %1836 = vmatpush2.xpose.msra.mxu0 0.0
      %1837 = vmatprep.subr.mxu0 0.0
      %1838 = vmatpush2.xpose.msra.mxu0 0.0
      %1839 = vmatprep.mubr.f32.mxu0 0.0
      %1840 = vmatmul.mubr.f32.gmra.mxu0 %v1771
      %v1841 = vpop.f32.mrf.mxu0
      %v1842 = vadd.f32 0.0, %v1841
      %v1843 = vpop.f32.mrf.mxu0
      %1844 = vdwg.mxu0
      %v1845 = vrot.slane %v620, 7
      %v1846 = vsel %vm810, %v1845, %v618
      %v1847 = vrot.slane %v622, 6
      %v1848 = vsel %vm813, %v1847, %v1846
      %v1849 = vrot.slane %v624, 5
      %v1850 = vsel %vm816, %v1849, %v1848
      %v1851 = vrot.slane %v626, 4
      %v1852 = vsel %vm819, %v1851, %v1850
      %v1853 = vrot.slane %v628, 3
      %v1854 = vsel %vm822, %v1853, %v1852
      %v1855 = vrot.slane %v630, 2
      %v1856 = vsel %vm825, %v1855, %v1854
      %v1857 = vrot.slane %v632, 1
      %v1858 = vsel %vm828, %v1857, %v1856
      %v1859 = vrot.slane %v700, 7
      %v1860 = vsel %vm810, %v1859, %v698
      %v1861 = vrot.slane %v702, 6
      %v1862 = vsel %vm813, %v1861, %v1860
      %v1863 = vrot.slane %v704, 5
      %v1864 = vsel %vm816, %v1863, %v1862
      %v1865 = vrot.slane %v706, 4
      %v1866 = vsel %vm819, %v1865, %v1864
      %v1867 = vrot.slane %v708, 3
      %v1868 = vsel %vm822, %v1867, %v1866
      %v1869 = vrot.slane %v710, 2
      %v1870 = vsel %vm825, %v1869, %v1868
      %v1871 = vrot.slane %v712, 1
      %v1872 = vsel %vm828, %v1871, %v1870
      %1873 = vrot.lane.b32.xlu0 %v1872, 96
      %v1874 = vpop.permute.xlu0 %1873
      %v1875 = vsel %vm833, %v1858, 0
      %v1877 = vsel %vm833, %v1874, 0
      %1879 = vmatprep.subr.mxu0 0.0
      %1880 = vmatpush1.xpose.msra.mxu0 0.0
      %1881 = vmatprep.subr.mxu0 0.0
      %1882 = vmatpush1.xpose.msra.mxu0 0.0
      %1883 = vmatprep.subr.mxu0 0.0
      %1884 = vmatpush1.xpose.msra.mxu0 0.0
      %1885 = vmatprep.subr.mxu0 0.0
      %1886 = vmatpush1.xpose.msra.mxu0 0.0
      %1887 = vmatprep.subr.mxu0 0.0
      %1888 = vmatpush1.xpose.msra.mxu0 0.0
      %1889 = vmatprep.subr.mxu0 0.0
      %1890 = vmatpush1.xpose.msra.mxu0 0.0
      %1891 = vmatprep.subr.mxu0 0.0
      %1892 = vmatpush1.xpose.msra.mxu0 0.0
      %1893 = vmatprep.subr.mxu0 0.0
      %1894 = vmatpush1.xpose.msra.mxu0 0.0
      %1895 = vmatprep.subr.mxu0 0.0
      %1896 = vmatpush1.xpose.msra.mxu0 0.0
      %1897 = vmatprep.subr.mxu0 0.0
      %1898 = vmatpush1.xpose.msra.mxu0 0.0
      %1899 = vmatprep.subr.mxu0 0.0
      %1900 = vmatpush1.xpose.msra.mxu0 0.0
      %1901 = vmatprep.subr.mxu0 0.0
      %1902 = vmatpush1.xpose.msra.mxu0 0.0
      %1903 = vmatprep.subr.mxu0 0.0
      %1904 = vmatpush1.xpose.msra.mxu0 0.0
      %1905 = vmatprep.subr.mxu0 0.0
      %1906 = vmatpush1.xpose.msra.mxu0 0.0
      %1907 = vmatprep.subr.mxu0 0.0
      %1908 = vmatpush1.xpose.msra.mxu0 0.0
      %1909 = vmatprep.subr.mxu0 0.0
      %1910 = vmatpush1.xpose.msra.mxu0 %v1877
      %1911 = vmatprep.subr.mxu0 0.0
      %1912 = vmatpush2.xpose.msra.mxu0 0.0
      %1913 = vmatprep.subr.mxu0 0.0
      %1914 = vmatpush2.xpose.msra.mxu0 0.0
      %1915 = vmatprep.subr.mxu0 0.0
      %1916 = vmatpush2.xpose.msra.mxu0 0.0
      %1917 = vmatprep.subr.mxu0 0.0
      %1918 = vmatpush2.xpose.msra.mxu0 0.0
      %1919 = vmatprep.subr.mxu0 0.0
      %1920 = vmatpush2.xpose.msra.mxu0 0.0
      %1921 = vmatprep.subr.mxu0 0.0
      %1922 = vmatpush2.xpose.msra.mxu0 0.0
      %1923 = vmatprep.subr.mxu0 0.0
      %1924 = vmatpush2.xpose.msra.mxu0 0.0
      %1925 = vmatprep.subr.mxu0 0.0
      %1926 = vmatpush2.xpose.msra.mxu0 0.0
      %1927 = vmatprep.subr.mxu0 0.0
      %1928 = vmatpush2.xpose.msra.mxu0 0.0
      %1929 = vmatprep.subr.mxu0 0.0
      %1930 = vmatpush2.xpose.msra.mxu0 0.0
      %1931 = vmatprep.subr.mxu0 0.0
      %1932 = vmatpush2.xpose.msra.mxu0 0.0
      %1933 = vmatprep.subr.mxu0 0.0
      %1934 = vmatpush2.xpose.msra.mxu0 0.0
      %1935 = vmatprep.subr.mxu0 0.0
      %1936 = vmatpush2.xpose.msra.mxu0 0.0
      %1937 = vmatprep.subr.mxu0 0.0
      %1938 = vmatpush2.xpose.msra.mxu0 0.0
      %1939 = vmatprep.subr.mxu0 0.0
      %1940 = vmatpush2.xpose.msra.mxu0 0.0
      %1941 = vmatprep.subr.mxu0 0.0
      %1942 = vmatpush2.xpose.msra.mxu0 0.0
      %1943 = vmatprep.mubr.f32.mxu0 0.0
      %1944 = vmatmul.mubr.f32.gmra.mxu0 %v1875
      %v1945 = vpop.f32.mrf.mxu0
      %v1946 = vadd.f32 0.0, %v1945
      %v1947 = vpop.f32.mrf.mxu0
      %1948 = vdwg.mxu0
      %v1949 = vrot.slane %v644, 7
      %v1950 = vsel %vm810, %v1949, %v642
      %v1951 = vrot.slane %v646, 6
      %v1952 = vsel %vm813, %v1951, %v1950
      %v1953 = vrot.slane %v648, 5
      %v1954 = vsel %vm816, %v1953, %v1952
      %v1955 = vrot.slane %v650, 4
      %v1956 = vsel %vm819, %v1955, %v1954
      %v1957 = vrot.slane %v652, 3
      %v1958 = vsel %vm822, %v1957, %v1956
      %v1959 = vrot.slane %v654, 2
      %v1960 = vsel %vm825, %v1959, %v1958
      %v1961 = vrot.slane %v656, 1
      %v1962 = vsel %vm828, %v1961, %v1960
      %v1963 = vrot.slane %v724, 7
      %v1964 = vsel %vm810, %v1963, %v722
      %v1965 = vrot.slane %v726, 6
      %v1966 = vsel %vm813, %v1965, %v1964
      %v1967 = vrot.slane %v728, 5
      %v1968 = vsel %vm816, %v1967, %v1966
      %v1969 = vrot.slane %v730, 4
      %v1970 = vsel %vm819, %v1969, %v1968
      %v1971 = vrot.slane %v732, 3
      %v1972 = vsel %vm822, %v1971, %v1970
      %v1973 = vrot.slane %v734, 2
      %v1974 = vsel %vm825, %v1973, %v1972
      %v1975 = vrot.slane %v736, 1
      %v1976 = vsel %vm828, %v1975, %v1974
      %1977 = vrot.lane.b32.xlu0 %v1976, 96
      %v1978 = vpop.permute.xlu0 %1977
      %v1979 = vsel %vm833, %v1962, 0
      %v1981 = vsel %vm833, %v1978, 0
      %1983 = vmatprep.subr.mxu0 0.0
      %1984 = vmatpush1.xpose.msra.mxu0 0.0
      %1985 = vmatprep.subr.mxu0 0.0
      %1986 = vmatpush1.xpose.msra.mxu0 0.0
      %1987 = vmatprep.subr.mxu0 0.0
      %1988 = vmatpush1.xpose.msra.mxu0 0.0
      %1989 = vmatprep.subr.mxu0 0.0
      %1990 = vmatpush1.xpose.msra.mxu0 0.0
      %1991 = vmatprep.subr.mxu0 0.0
      %1992 = vmatpush1.xpose.msra.mxu0 0.0
      %1993 = vmatprep.subr.mxu0 0.0
      %1994 = vmatpush1.xpose.msra.mxu0 0.0
      %1995 = vmatprep.subr.mxu0 0.0
      %1996 = vmatpush1.xpose.msra.mxu0 0.0
      %1997 = vmatprep.subr.mxu0 0.0
      %1998 = vmatpush1.xpose.msra.mxu0 0.0
      %1999 = vmatprep.subr.mxu0 0.0
      %2000 = vmatpush1.xpose.msra.mxu0 0.0
      %2001 = vmatprep.subr.mxu0 0.0
      %2002 = vmatpush1.xpose.msra.mxu0 0.0
      %2003 = vmatprep.subr.mxu0 0.0
      %2004 = vmatpush1.xpose.msra.mxu0 0.0
      %2005 = vmatprep.subr.mxu0 0.0
      %2006 = vmatpush1.xpose.msra.mxu0 0.0
      %2007 = vmatprep.subr.mxu0 0.0
      %2008 = vmatpush1.xpose.msra.mxu0 0.0
      %2009 = vmatprep.subr.mxu0 0.0
      %2010 = vmatpush1.xpose.msra.mxu0 0.0
      %2011 = vmatprep.subr.mxu0 0.0
      %2012 = vmatpush1.xpose.msra.mxu0 0.0
      %2013 = vmatprep.subr.mxu0 0.0
      %2014 = vmatpush1.xpose.msra.mxu0 %v1981
      %2015 = vmatprep.subr.mxu0 0.0
      %2016 = vmatpush2.xpose.msra.mxu0 0.0
      %2017 = vmatprep.subr.mxu0 0.0
      %2018 = vmatpush2.xpose.msra.mxu0 0.0
      %2019 = vmatprep.subr.mxu0 0.0
      %2020 = vmatpush2.xpose.msra.mxu0 0.0
      %2021 = vmatprep.subr.mxu0 0.0
      %2022 = vmatpush2.xpose.msra.mxu0 0.0
      %2023 = vmatprep.subr.mxu0 0.0
      %2024 = vmatpush2.xpose.msra.mxu0 0.0
      %2025 = vmatprep.subr.mxu0 0.0
      %2026 = vmatpush2.xpose.msra.mxu0 0.0
      %2027 = vmatprep.subr.mxu0 0.0
      %2028 = vmatpush2.xpose.msra.mxu0 0.0
      %2029 = vmatprep.subr.mxu0 0.0
      %2030 = vmatpush2.xpose.msra.mxu0 0.0
      %2031 = vmatprep.subr.mxu0 0.0
      %2032 = vmatpush2.xpose.msra.mxu0 0.0
      %2033 = vmatprep.subr.mxu0 0.0
      %2034 = vmatpush2.xpose.msra.mxu0 0.0
      %2035 = vmatprep.subr.mxu0 0.0
      %2036 = vmatpush2.xpose.msra.mxu0 0.0
      %2037 = vmatprep.subr.mxu0 0.0
      %2038 = vmatpush2.xpose.msra.mxu0 0.0
      %2039 = vmatprep.subr.mxu0 0.0
      %2040 = vmatpush2.xpose.msra.mxu0 0.0
      %2041 = vmatprep.subr.mxu0 0.0
      %2042 = vmatpush2.xpose.msra.mxu0 0.0
      %2043 = vmatprep.subr.mxu0 0.0
      %2044 = vmatpush2.xpose.msra.mxu0 0.0
      %2045 = vmatprep.subr.mxu0 0.0
      %2046 = vmatpush2.xpose.msra.mxu0 0.0
      %2047 = vmatprep.mubr.f32.mxu0 0.0
      %2048 = vmatmul.mubr.f32.gmra.mxu0 %v1979
      %v2049 = vpop.f32.mrf.mxu0
      %v2050 = vadd.f32 0.0, %v2049
      %v2051 = vpop.f32.mrf.mxu0
      %2052 = vdwg.mxu0
      %v2053 = vmul.f32 %v1738, 0.35355338
      %v2054 = vmul.f32 %v1842, 0.35355338
      %v2055 = vmul.f32 %v1946, 0.35355338
      %v2056 = vmul.f32 %v2050, 0.35355338
      %v2057 = vsel %vm833, %v2053, -inf
      %2058 = vmax.xlane.f32.xlu0 %v2057
      %v2059 = vpop.xlane.xlu0 %2058
      %v2060 = vsel %vm833, %v2054, -inf
      %2061 = vmax.xlane.f32.xlu0 %v2060
      %v2062 = vpop.xlane.xlu0 %2061
      %v2063 = vsel %vm833, %v2055, -inf
      %2064 = vmax.xlane.f32.xlu0 %v2063
      %v2065 = vpop.xlane.xlu0 %2064
      %v2066 = vsel %vm833, %v2056, -inf
      %2067 = vmax.xlane.f32.xlu0 %v2066
      %v2068 = vpop.xlane.xlu0 %2067
      %v2069 = vsub.f32 %v2053, %v2059
      %v2070 = vsub.f32 %v2054, %v2062
      %v2071 = vsub.f32 %v2055, %v2065
      %v2072 = vsub.f32 %v2056, %v2068
      %v2073 = vmul.f32 %v2069, 1.442695
      %v2074 = vpow.pop %v2073
      %v2075 = vmul.f32 %v2070, 1.442695
      %v2076 = vpow.pop %v2075
      %v2077 = vmul.f32 %v2071, 1.442695
      %v2078 = vpow.pop %v2077
      %v2079 = vmul.f32 %v2072, 1.442695
      %v2080 = vpow.pop %v2079
      %v2081 = vsel %vm833, %v2074, 0.0
      %2082 = vadd.xlane.f32.xlu0 %v2081
      %v2083 = vpop.xlane.xlu0 %2082
      %v2084 = vsel %vm833, %v2076, 0.0
      %2085 = vadd.xlane.f32.xlu0 %v2084
      %v2086 = vpop.xlane.xlu0 %2085
      %v2087 = vsel %vm833, %v2078, 0.0
      %2088 = vadd.xlane.f32.xlu0 %v2087
      %v2089 = vpop.xlane.xlu0 %2088
      %v2090 = vsel %vm833, %v2080, 0.0
      %2091 = vadd.xlane.f32.xlu0 %v2090
      %v2092 = vpop.xlane.xlu0 %2091
      %v2093 = vrcp.pop %v2083
      %v2094 = vmul.f32 %v2074, %v2093
      %v2095 = vrcp.pop %v2086
      %v2096 = vmul.f32 %v2076, %v2095
      %v2097 = vrcp.pop %v2089
      %v2098 = vmul.f32 %v2078, %v2097
      %v2099 = vrcp.pop %v2092
      %v2100 = vmul.f32 %v2080, %v2099
      %v2101 = vlaneseq
      %v2102 = vshrl.u32 %v2101, 7
      %v2103 = vlaneseq
      %v2104 = vand.u32 %v2103, 127
      %vm2105 = vcmp.eq.s32.totalorder %v2102, %v2104
      %v2106 = vsel %vm2105, 1, 0
      %v2107 = vcvt.s32.f32 %v2106
      %v2108 = vsel %vm833, %v2094, 0.0
      %v2109 = vrot.slane %v2108, 4
      %v2110 = vadd.f32 %v2108, %v2109
      %v2111 = vrot.slane %v2110, 2
      %v2112 = vadd.f32 %v2110, %v2111
      %v2113 = vrot.slane %v2112, 1
      %v2114 = vadd.f32 %v2112, %v2113
      %v2115 = vsel %vm833, %v2096, 0.0
      %v2116 = vrot.slane %v2115, 4
      %v2117 = vadd.f32 %v2115, %v2116
      %v2118 = vrot.slane %v2117, 2
      %v2119 = vadd.f32 %v2117, %v2118
      %v2120 = vrot.slane %v2119, 1
      %v2121 = vadd.f32 %v2119, %v2120
      %v2122 = vsel %vm833, %v2098, 0.0
      %v2123 = vrot.slane %v2122, 4
      %v2124 = vadd.f32 %v2122, %v2123
      %v2125 = vrot.slane %v2124, 2
      %v2126 = vadd.f32 %v2124, %v2125
      %v2127 = vrot.slane %v2126, 1
      %v2128 = vadd.f32 %v2126, %v2127
      %v2129 = vsel %vm833, %v2100, 0.0
      %v2130 = vrot.slane %v2129, 4
      %v2131 = vadd.f32 %v2129, %v2130
      %v2132 = vrot.slane %v2131, 2
      %v2133 = vadd.f32 %v2131, %v2132
      %v2134 = vrot.slane %v2133, 1
      %v2135 = vadd.f32 %v2133, %v2134
      %v2136 = vsel %vm833, %v2114, -inf
      %2137 = vmax.xlane.f32.xlu0 %v2136
      %v2138 = vpop.xlane.xlu0 %2137
      %v2139 = vsel %vm833, %v2121, -inf
      %2140 = vmax.xlane.f32.xlu0 %v2139
      %v2141 = vpop.xlane.xlu0 %2140
      %v2142 = vsel %vm833, %v2128, -inf
      %2143 = vmax.xlane.f32.xlu0 %v2142
      %v2144 = vpop.xlane.xlu0 %2143
      %v2145 = vsel %vm833, %v2135, -inf
      %2146 = vmax.xlane.f32.xlu0 %v2145
      %v2147 = vpop.xlane.xlu0 %2146
      %2148 = vxpose.xlu0.b32.start [1/16] %v2094, 128
      %2149 = vxpose.xlu0.b32.cont [2/16] 0.0, 128
      %2150 = vxpose.xlu0.b32.cont [3/16] 0.0, 128
      %2151 = vxpose.xlu0.b32.cont [4/16] 0.0, 128
      %2152 = vxpose.xlu0.b32.cont [5/16] 0.0, 128
      %2153 = vxpose.xlu0.b32.cont [6/16] 0.0, 128
      %2154 = vxpose.xlu0.b32.cont [7/16] 0.0, 128
      %2155 = vxpose.xlu0.b32.cont [8/16] 0.0, 128
      %2156 = vxpose.xlu0.b32.cont [9/16] 0.0, 128
      %2157 = vxpose.xlu0.b32.cont [10/16] 0.0, 128
      %2158 = vxpose.xlu0.b32.cont [11/16] 0.0, 128
      %2159 = vxpose.xlu0.b32.cont [12/16] 0.0, 128
      %2160 = vxpose.xlu0.b32.cont [13/16] 0.0, 128
      %2161 = vxpose.xlu0.b32.cont [14/16] 0.0, 128
      %2162 = vxpose.xlu0.b32.cont [15/16] 0.0, 128
      %2163 = vxpose.xlu0.b32.end [16/16] 0.0, 128
      %v2164 = vpop.trf.xlu0
      %v2165 = vpop.trf.xlu0
      %v2166 = vpop.trf.xlu0
      %v2167 = vpop.trf.xlu0
      %v2168 = vpop.trf.xlu0
      %v2169 = vpop.trf.xlu0
      %v2170 = vpop.trf.xlu0
      %v2171 = vpop.trf.xlu0
      %v2172 = vpop.trf.xlu0
      %v2173 = vpop.trf.xlu0
      %v2174 = vpop.trf.xlu0
      %v2175 = vpop.trf.xlu0
      %v2176 = vpop.trf.xlu0
      %v2177 = vpop.trf.xlu0
      %v2178 = vpop.trf.xlu0
      %v2179 = vpop.trf.xlu0
      %2180 = vxpose.xlu0.b32.start [1/16] %v2096, 128
      %2181 = vxpose.xlu0.b32.cont [2/16] 0.0, 128
      %2182 = vxpose.xlu0.b32.cont [3/16] 0.0, 128
      %2183 = vxpose.xlu0.b32.cont [4/16] 0.0, 128
      %2184 = vxpose.xlu0.b32.cont [5/16] 0.0, 128
      %2185 = vxpose.xlu0.b32.cont [6/16] 0.0, 128
      %2186 = vxpose.xlu0.b32.cont [7/16] 0.0, 128
      %2187 = vxpose.xlu0.b32.cont [8/16] 0.0, 128
      %2188 = vxpose.xlu0.b32.cont [9/16] 0.0, 128
      %2189 = vxpose.xlu0.b32.cont [10/16] 0.0, 128
      %2190 = vxpose.xlu0.b32.cont [11/16] 0.0, 128
      %2191 = vxpose.xlu0.b32.cont [12/16] 0.0, 128
      %2192 = vxpose.xlu0.b32.cont [13/16] 0.0, 128
      %2193 = vxpose.xlu0.b32.cont [14/16] 0.0, 128
      %2194 = vxpose.xlu0.b32.cont [15/16] 0.0, 128
      %2195 = vxpose.xlu0.b32.end [16/16] 0.0, 128
      %v2196 = vpop.trf.xlu0
      %v2197 = vpop.trf.xlu0
      %v2198 = vpop.trf.xlu0
      %v2199 = vpop.trf.xlu0
      %v2200 = vpop.trf.xlu0
      %v2201 = vpop.trf.xlu0
      %v2202 = vpop.trf.xlu0
      %v2203 = vpop.trf.xlu0
      %v2204 = vpop.trf.xlu0
      %v2205 = vpop.trf.xlu0
      %v2206 = vpop.trf.xlu0
      %v2207 = vpop.trf.xlu0
      %v2208 = vpop.trf.xlu0
      %v2209 = vpop.trf.xlu0
      %v2210 = vpop.trf.xlu0
      %v2211 = vpop.trf.xlu0
      %2212 = vxpose.xlu0.b32.start [1/16] %v2098, 128
      %2213 = vxpose.xlu0.b32.cont [2/16] 0.0, 128
      %2214 = vxpose.xlu0.b32.cont [3/16] 0.0, 128
      %2215 = vxpose.xlu0.b32.cont [4/16] 0.0, 128
      %2216 = vxpose.xlu0.b32.cont [5/16] 0.0, 128
      %2217 = vxpose.xlu0.b32.cont [6/16] 0.0, 128
      %2218 = vxpose.xlu0.b32.cont [7/16] 0.0, 128
      %2219 = vxpose.xlu0.b32.cont [8/16] 0.0, 128
      %2220 = vxpose.xlu0.b32.cont [9/16] 0.0, 128
      %2221 = vxpose.xlu0.b32.cont [10/16] 0.0, 128
      %2222 = vxpose.xlu0.b32.cont [11/16] 0.0, 128
      %2223 = vxpose.xlu0.b32.cont [12/16] 0.0, 128
      %2224 = vxpose.xlu0.b32.cont [13/16] 0.0, 128
      %2225 = vxpose.xlu0.b32.cont [14/16] 0.0, 128
      %2226 = vxpose.xlu0.b32.cont [15/16] 0.0, 128
      %2227 = vxpose.xlu0.b32.end [16/16] 0.0, 128
      %v2228 = vpop.trf.xlu0
      %v2229 = vpop.trf.xlu0
      %v2230 = vpop.trf.xlu0
      %v2231 = vpop.trf.xlu0
      %v2232 = vpop.trf.xlu0
      %v2233 = vpop.trf.xlu0
      %v2234 = vpop.trf.xlu0
      %v2235 = vpop.trf.xlu0
      %v2236 = vpop.trf.xlu0
      %v2237 = vpop.trf.xlu0
      %v2238 = vpop.trf.xlu0
      %v2239 = vpop.trf.xlu0
      %v2240 = vpop.trf.xlu0
      %v2241 = vpop.trf.xlu0
      %v2242 = vpop.trf.xlu0
      %v2243 = vpop.trf.xlu0
      %2244 = vxpose.xlu0.b32.start [1/16] %v2100, 128
      %2245 = vxpose.xlu0.b32.cont [2/16] 0.0, 128
      %2246 = vxpose.xlu0.b32.cont [3/16] 0.0, 128
      %2247 = vxpose.xlu0.b32.cont [4/16] 0.0, 128
      %2248 = vxpose.xlu0.b32.cont [5/16] 0.0, 128
      %2249 = vxpose.xlu0.b32.cont [6/16] 0.0, 128
      %2250 = vxpose.xlu0.b32.cont [7/16] 0.0, 128
      %2251 = vxpose.xlu0.b32.cont [8/16] 0.0, 128
      %2252 = vxpose.xlu0.b32.cont [9/16] 0.0, 128
      %2253 = vxpose.xlu0.b32.cont [10/16] 0.0, 128
      %2254 = vxpose.xlu0.b32.cont [11/16] 0.0, 128
      %2255 = vxpose.xlu0.b32.cont [12/16] 0.0, 128
      %2256 = vxpose.xlu0.b32.cont [13/16] 0.0, 128
      %2257 = vxpose.xlu0.b32.cont [14/16] 0.0, 128
      %2258 = vxpose.xlu0.b32.cont [15/16] 0.0, 128
      %2259 = vxpose.xlu0.b32.end [16/16] 0.0, 128
      %v2260 = vpop.trf.xlu0
      %v2261 = vpop.trf.xlu0
      %v2262 = vpop.trf.xlu0
      %v2263 = vpop.trf.xlu0
      %v2264 = vpop.trf.xlu0
      %v2265 = vpop.trf.xlu0
      %v2266 = vpop.trf.xlu0
      %v2267 = vpop.trf.xlu0
      %v2268 = vpop.trf.xlu0
      %v2269 = vpop.trf.xlu0
      %v2270 = vpop.trf.xlu0
      %v2271 = vpop.trf.xlu0
      %v2272 = vpop.trf.xlu0
      %v2273 = vpop.trf.xlu0
      %v2274 = vpop.trf.xlu0
      %v2275 = vpop.trf.xlu0
      %v2276 = vrcp.pop %v2138
      %v2277 = vmul.f32 %v2164, %v2276
      %v2278 = vrcp.pop %v2141
      %v2279 = vmul.f32 %v2196, %v2278
      %v2280 = vrcp.pop %v2144
      %v2281 = vmul.f32 %v2228, %v2280
      %v2282 = vrcp.pop %v2147
      %v2283 = vmul.f32 %v2260, %v2282
      %v2285 = vsel %vm833, %v2094, 0
      %2287 = vmatprep.subr.mxu0 0.0
      %2288 = vmatpush1.msra.mxu0 0.0
      %2289 = vmatprep.subr.mxu0 0.0
      %2290 = vmatpush1.msra.mxu0 0.0
      %2291 = vmatprep.subr.mxu0 0.0
      %2292 = vmatpush1.msra.mxu0 0.0
      %2293 = vmatprep.subr.mxu0 0.0
      %2294 = vmatpush1.msra.mxu0 0.0
      %2295 = vmatprep.subr.mxu0 0.0
      %2296 = vmatpush1.msra.mxu0 0.0
      %2297 = vmatprep.subr.mxu0 0.0
      %2298 = vmatpush1.msra.mxu0 0.0
      %2299 = vmatprep.subr.mxu0 0.0
      %2300 = vmatpush1.msra.mxu0 0.0
      %2301 = vmatprep.subr.mxu0 0.0
      %2302 = vmatpush1.msra.mxu0 0.0
      %2303 = vmatprep.subr.mxu0 0.0
      %2304 = vmatpush1.msra.mxu0 0.0
      %2305 = vmatprep.subr.mxu0 0.0
      %2306 = vmatpush1.msra.mxu0 0.0
      %2307 = vmatprep.subr.mxu0 0.0
      %2308 = vmatpush1.msra.mxu0 0.0
      %2309 = vmatprep.subr.mxu0 0.0
      %2310 = vmatpush1.msra.mxu0 0.0
      %2311 = vmatprep.subr.mxu0 0.0
      %2312 = vmatpush1.msra.mxu0 0.0
      %2313 = vmatprep.subr.mxu0 0.0
      %2314 = vmatpush1.msra.mxu0 0.0
      %2315 = vmatprep.subr.mxu0 0.0
      %2316 = vmatpush1.msra.mxu0 0.0
      %2317 = vmatprep.subr.mxu0 0.0
      %2318 = vmatpush1.msra.mxu0 %v2277
      %2319 = vmatprep.subr.mxu0 0.0
      %2320 = vmatpush2.msra.mxu0 0.0
      %2321 = vmatprep.subr.mxu0 0.0
      %2322 = vmatpush2.msra.mxu0 0.0
      %2323 = vmatprep.subr.mxu0 0.0
      %2324 = vmatpush2.msra.mxu0 0.0
      %2325 = vmatprep.subr.mxu0 0.0
      %2326 = vmatpush2.msra.mxu0 0.0
      %2327 = vmatprep.subr.mxu0 0.0
      %2328 = vmatpush2.msra.mxu0 0.0
      %2329 = vmatprep.subr.mxu0 0.0
      %2330 = vmatpush2.msra.mxu0 0.0
      %2331 = vmatprep.subr.mxu0 0.0
      %2332 = vmatpush2.msra.mxu0 0.0
      %2333 = vmatprep.subr.mxu0 0.0
      %2334 = vmatpush2.msra.mxu0 0.0
      %2335 = vmatprep.subr.mxu0 0.0
      %2336 = vmatpush2.msra.mxu0 0.0
      %2337 = vmatprep.subr.mxu0 0.0
      %2338 = vmatpush2.msra.mxu0 0.0
      %2339 = vmatprep.subr.mxu0 0.0
      %2340 = vmatpush2.msra.mxu0 0.0
      %2341 = vmatprep.subr.mxu0 0.0
      %2342 = vmatpush2.msra.mxu0 0.0
      %2343 = vmatprep.subr.mxu0 0.0
      %2344 = vmatpush2.msra.mxu0 0.0
      %2345 = vmatprep.subr.mxu0 0.0
      %2346 = vmatpush2.msra.mxu0 0.0
      %2347 = vmatprep.subr.mxu0 0.0
      %2348 = vmatpush2.msra.mxu0 0.0
      %2349 = vmatprep.subr.mxu0 0.0
      %2350 = vmatpush2.msra.mxu0 0.0
      %2351 = vmatprep.mubr.f32.mxu0 0.0
      %2352 = vmatmul.mubr.f32.gmra.mxu0 %v2285
      %v2353 = vpop.f32.mrf.mxu0
      %v2354 = vadd.f32 0.0, %v2353
      %v2355 = vpop.f32.mrf.mxu0
      %2356 = vdwg.mxu0
      %v2358 = vsel %vm833, %v2096, 0
      %2360 = vmatprep.subr.mxu0 0.0
      %2361 = vmatpush1.msra.mxu0 0.0
      %2362 = vmatprep.subr.mxu0 0.0
      %2363 = vmatpush1.msra.mxu0 0.0
      %2364 = vmatprep.subr.mxu0 0.0
      %2365 = vmatpush1.msra.mxu0 0.0
      %2366 = vmatprep.subr.mxu0 0.0
      %2367 = vmatpush1.msra.mxu0 0.0
      %2368 = vmatprep.subr.mxu0 0.0
      %2369 = vmatpush1.msra.mxu0 0.0
      %2370 = vmatprep.subr.mxu0 0.0
      %2371 = vmatpush1.msra.mxu0 0.0
      %2372 = vmatprep.subr.mxu0 0.0
      %2373 = vmatpush1.msra.mxu0 0.0
      %2374 = vmatprep.subr.mxu0 0.0
      %2375 = vmatpush1.msra.mxu0 0.0
      %2376 = vmatprep.subr.mxu0 0.0
      %2377 = vmatpush1.msra.mxu0 0.0
      %2378 = vmatprep.subr.mxu0 0.0
      %2379 = vmatpush1.msra.mxu0 0.0
      %2380 = vmatprep.subr.mxu0 0.0
      %2381 = vmatpush1.msra.mxu0 0.0
      %2382 = vmatprep.subr.mxu0 0.0
      %2383 = vmatpush1.msra.mxu0 0.0
      %2384 = vmatprep.subr.mxu0 0.0
      %2385 = vmatpush1.msra.mxu0 0.0
      %2386 = vmatprep.subr.mxu0 0.0
      %2387 = vmatpush1.msra.mxu0 0.0
      %2388 = vmatprep.subr.mxu0 0.0
      %2389 = vmatpush1.msra.mxu0 0.0
      %2390 = vmatprep.subr.mxu0 0.0
      %2391 = vmatpush1.msra.mxu0 %v2279
      %2392 = vmatprep.subr.mxu0 0.0
      %2393 = vmatpush2.msra.mxu0 0.0
      %2394 = vmatprep.subr.mxu0 0.0
      %2395 = vmatpush2.msra.mxu0 0.0
      %2396 = vmatprep.subr.mxu0 0.0
      %2397 = vmatpush2.msra.mxu0 0.0
      %2398 = vmatprep.subr.mxu0 0.0
      %2399 = vmatpush2.msra.mxu0 0.0
      %2400 = vmatprep.subr.mxu0 0.0
      %2401 = vmatpush2.msra.mxu0 0.0
      %2402 = vmatprep.subr.mxu0 0.0
      %2403 = vmatpush2.msra.mxu0 0.0
      %2404 = vmatprep.subr.mxu0 0.0
      %2405 = vmatpush2.msra.mxu0 0.0
      %2406 = vmatprep.subr.mxu0 0.0
      %2407 = vmatpush2.msra.mxu0 0.0
      %2408 = vmatprep.subr.mxu0 0.0
      %2409 = vmatpush2.msra.mxu0 0.0
      %2410 = vmatprep.subr.mxu0 0.0
      %2411 = vmatpush2.msra.mxu0 0.0
      %2412 = vmatprep.subr.mxu0 0.0
      %2413 = vmatpush2.msra.mxu0 0.0
      %2414 = vmatprep.subr.mxu0 0.0
      %2415 = vmatpush2.msra.mxu0 0.0
      %2416 = vmatprep.subr.mxu0 0.0
      %2417 = vmatpush2.msra.mxu0 0.0
      %2418 = vmatprep.subr.mxu0 0.0
      %2419 = vmatpush2.msra.mxu0 0.0
      %2420 = vmatprep.subr.mxu0 0.0
      %2421 = vmatpush2.msra.mxu0 0.0
      %2422 = vmatprep.subr.mxu0 0.0
      %2423 = vmatpush2.msra.mxu0 0.0
      %2424 = vmatprep.mubr.f32.mxu0 0.0
      %2425 = vmatmul.mubr.f32.gmra.mxu0 %v2358
      %v2426 = vpop.f32.mrf.mxu0
      %v2427 = vadd.f32 0.0, %v2426
      %v2428 = vpop.f32.mrf.mxu0
      %2429 = vdwg.mxu0
      %v2431 = vsel %vm833, %v2098, 0
      %2433 = vmatprep.subr.mxu0 0.0
      %2434 = vmatpush1.msra.mxu0 0.0
      %2435 = vmatprep.subr.mxu0 0.0
      %2436 = vmatpush1.msra.mxu0 0.0
      %2437 = vmatprep.subr.mxu0 0.0
      %2438 = vmatpush1.msra.mxu0 0.0
      %2439 = vmatprep.subr.mxu0 0.0
      %2440 = vmatpush1.msra.mxu0 0.0
      %2441 = vmatprep.subr.mxu0 0.0
      %2442 = vmatpush1.msra.mxu0 0.0
      %2443 = vmatprep.subr.mxu0 0.0
      %2444 = vmatpush1.msra.mxu0 0.0
      %2445 = vmatprep.subr.mxu0 0.0
      %2446 = vmatpush1.msra.mxu0 0.0
      %2447 = vmatprep.subr.mxu0 0.0
      %2448 = vmatpush1.msra.mxu0 0.0
      %2449 = vmatprep.subr.mxu0 0.0
      %2450 = vmatpush1.msra.mxu0 0.0
      %2451 = vmatprep.subr.mxu0 0.0
      %2452 = vmatpush1.msra.mxu0 0.0
      %2453 = vmatprep.subr.mxu0 0.0
      %2454 = vmatpush1.msra.mxu0 0.0
      %2455 = vmatprep.subr.mxu0 0.0
      %2456 = vmatpush1.msra.mxu0 0.0
      %2457 = vmatprep.subr.mxu0 0.0
      %2458 = vmatpush1.msra.mxu0 0.0
      %2459 = vmatprep.subr.mxu0 0.0
      %2460 = vmatpush1.msra.mxu0 0.0
      %2461 = vmatprep.subr.mxu0 0.0
      %2462 = vmatpush1.msra.mxu0 0.0
      %2463 = vmatprep.subr.mxu0 0.0
      %2464 = vmatpush1.msra.mxu0 %v2281
      %2465 = vmatprep.subr.mxu0 0.0
      %2466 = vmatpush2.msra.mxu0 0.0
      %2467 = vmatprep.subr.mxu0 0.0
      %2468 = vmatpush2.msra.mxu0 0.0
      %2469 = vmatprep.subr.mxu0 0.0
      %2470 = vmatpush2.msra.mxu0 0.0
      %2471 = vmatprep.subr.mxu0 0.0
      %2472 = vmatpush2.msra.mxu0 0.0
      %2473 = vmatprep.subr.mxu0 0.0
      %2474 = vmatpush2.msra.mxu0 0.0
      %2475 = vmatprep.subr.mxu0 0.0
      %2476 = vmatpush2.msra.mxu0 0.0
      %2477 = vmatprep.subr.mxu0 0.0
      %2478 = vmatpush2.msra.mxu0 0.0
      %2479 = vmatprep.subr.mxu0 0.0
      %2480 = vmatpush2.msra.mxu0 0.0
      %2481 = vmatprep.subr.mxu0 0.0
      %2482 = vmatpush2.msra.mxu0 0.0
      %2483 = vmatprep.subr.mxu0 0.0
      %2484 = vmatpush2.msra.mxu0 0.0
      %2485 = vmatprep.subr.mxu0 0.0
      %2486 = vmatpush2.msra.mxu0 0.0
      %2487 = vmatprep.subr.mxu0 0.0
      %2488 = vmatpush2.msra.mxu0 0.0
      %2489 = vmatprep.subr.mxu0 0.0
      %2490 = vmatpush2.msra.mxu0 0.0
      %2491 = vmatprep.subr.mxu0 0.0
      %2492 = vmatpush2.msra.mxu0 0.0
      %2493 = vmatprep.subr.mxu0 0.0
      %2494 = vmatpush2.msra.mxu0 0.0
      %2495 = vmatprep.subr.mxu0 0.0
      %2496 = vmatpush2.msra.mxu0 0.0
      %2497 = vmatprep.mubr.f32.mxu0 0.0
      %2498 = vmatmul.mubr.f32.gmra.mxu0 %v2431
      %v2499 = vpop.f32.mrf.mxu0
      %v2500 = vadd.f32 0.0, %v2499
      %v2501 = vpop.f32.mrf.mxu0
      %2502 = vdwg.mxu0
      %v2504 = vsel %vm833, %v2100, 0
      %2506 = vmatprep.subr.mxu0 0.0
      %2507 = vmatpush1.msra.mxu0 0.0
      %2508 = vmatprep.subr.mxu0 0.0
      %2509 = vmatpush1.msra.mxu0 0.0
      %2510 = vmatprep.subr.mxu0 0.0
      %2511 = vmatpush1.msra.mxu0 0.0
      %2512 = vmatprep.subr.mxu0 0.0
      %2513 = vmatpush1.msra.mxu0 0.0
      %2514 = vmatprep.subr.mxu0 0.0
      %2515 = vmatpush1.msra.mxu0 0.0
      %2516 = vmatprep.subr.mxu0 0.0
      %2517 = vmatpush1.msra.mxu0 0.0
      %2518 = vmatprep.subr.mxu0 0.0
      %2519 = vmatpush1.msra.mxu0 0.0
      %2520 = vmatprep.subr.mxu0 0.0
      %2521 = vmatpush1.msra.mxu0 0.0
      %2522 = vmatprep.subr.mxu0 0.0
      %2523 = vmatpush1.msra.mxu0 0.0
      %2524 = vmatprep.subr.mxu0 0.0
      %2525 = vmatpush1.msra.mxu0 0.0
      %2526 = vmatprep.subr.mxu0 0.0
      %2527 = vmatpush1.msra.mxu0 0.0
      %2528 = vmatprep.subr.mxu0 0.0
      %2529 = vmatpush1.msra.mxu0 0.0
      %2530 = vmatprep.subr.mxu0 0.0
      %2531 = vmatpush1.msra.mxu0 0.0
      %2532 = vmatprep.subr.mxu0 0.0
      %2533 = vmatpush1.msra.mxu0 0.0
      %2534 = vmatprep.subr.mxu0 0.0
      %2535 = vmatpush1.msra.mxu0 0.0
      %2536 = vmatprep.subr.mxu0 0.0
      %2537 = vmatpush1.msra.mxu0 %v2283
      %2538 = vmatprep.subr.mxu0 0.0
      %2539 = vmatpush2.msra.mxu0 0.0
      %2540 = vmatprep.subr.mxu0 0.0
      %2541 = vmatpush2.msra.mxu0 0.0
      %2542 = vmatprep.subr.mxu0 0.0
      %2543 = vmatpush2.msra.mxu0 0.0
      %2544 = vmatprep.subr.mxu0 0.0
      %2545 = vmatpush2.msra.mxu0 0.0
      %2546 = vmatprep.subr.mxu0 0.0
      %2547 = vmatpush2.msra.mxu0 0.0
      %2548 = vmatprep.subr.mxu0 0.0
      %2549 = vmatpush2.msra.mxu0 0.0
      %2550 = vmatprep.subr.mxu0 0.0
      %2551 = vmatpush2.msra.mxu0 0.0
      %2552 = vmatprep.subr.mxu0 0.0
      %2553 = vmatpush2.msra.mxu0 0.0
      %2554 = vmatprep.subr.mxu0 0.0
      %2555 = vmatpush2.msra.mxu0 0.0
      %2556 = vmatprep.subr.mxu0 0.0
      %2557 = vmatpush2.msra.mxu0 0.0
      %2558 = vmatprep.subr.mxu0 0.0
      %2559 = vmatpush2.msra.mxu0 0.0
      %2560 = vmatprep.subr.mxu0 0.0
      %2561 = vmatpush2.msra.mxu0 0.0
      %2562 = vmatprep.subr.mxu0 0.0
      %2563 = vmatpush2.msra.mxu0 0.0
      %2564 = vmatprep.subr.mxu0 0.0
      %2565 = vmatpush2.msra.mxu0 0.0
      %2566 = vmatprep.subr.mxu0 0.0
      %2567 = vmatpush2.msra.mxu0 0.0
      %2568 = vmatprep.subr.mxu0 0.0
      %2569 = vmatpush2.msra.mxu0 0.0
      %2570 = vmatprep.mubr.f32.mxu0 0.0
      %2571 = vmatmul.mubr.f32.gmra.mxu0 %v2504
      %v2572 = vpop.f32.mrf.mxu0
      %v2573 = vadd.f32 0.0, %v2572
      %v2574 = vpop.f32.mrf.mxu0
      %2575 = vdwg.mxu0
      %v2576 = vmul.f32 %v2107, 7.0
      %v2577 = vsub.f32 %v2576, %v2354
      %v2578 = vsub.f32 %v2576, %v2427
      %v2579 = vsub.f32 %v2576, %v2500
      %v2580 = vsub.f32 %v2576, %v2573
      %v2581 = vmul.f32 %v2107, 15.0
      %v2583 = vsel %vm833, %v2354, 0
      %2585 = vmatprep.subr.mxu0 0.0
      %2586 = vmatpush1.msra.mxu0 0.0
      %2587 = vmatprep.subr.mxu0 0.0
      %2588 = vmatpush1.msra.mxu0 0.0
      %2589 = vmatprep.subr.mxu0 0.0
      %2590 = vmatpush1.msra.mxu0 0.0
      %2591 = vmatprep.subr.mxu0 0.0
      %2592 = vmatpush1.msra.mxu0 0.0
      %2593 = vmatprep.subr.mxu0 0.0
      %2594 = vmatpush1.msra.mxu0 0.0
      %2595 = vmatprep.subr.mxu0 0.0
      %2596 = vmatpush1.msra.mxu0 0.0
      %2597 = vmatprep.subr.mxu0 0.0
      %2598 = vmatpush1.msra.mxu0 0.0
      %2599 = vmatprep.subr.mxu0 0.0
      %2600 = vmatpush1.msra.mxu0 0.0
      %2601 = vmatprep.subr.mxu0 0.0
      %2602 = vmatpush1.msra.mxu0 0.0
      %2603 = vmatprep.subr.mxu0 0.0
      %2604 = vmatpush1.msra.mxu0 0.0
      %2605 = vmatprep.subr.mxu0 0.0
      %2606 = vmatpush1.msra.mxu0 0.0
      %2607 = vmatprep.subr.mxu0 0.0
      %2608 = vmatpush1.msra.mxu0 0.0
      %2609 = vmatprep.subr.mxu0 0.0
      %2610 = vmatpush1.msra.mxu0 0.0
      %2611 = vmatprep.subr.mxu0 0.0
      %2612 = vmatpush1.msra.mxu0 0.0
      %2613 = vmatprep.subr.mxu0 0.0
      %2614 = vmatpush1.msra.mxu0 0.0
      %2615 = vmatprep.subr.mxu0 0.0
      %2616 = vmatpush1.msra.mxu0 %v2577
      %2617 = vmatprep.subr.mxu0 0.0
      %2618 = vmatpush2.msra.mxu0 0.0
      %2619 = vmatprep.subr.mxu0 0.0
      %2620 = vmatpush2.msra.mxu0 0.0
      %2621 = vmatprep.subr.mxu0 0.0
      %2622 = vmatpush2.msra.mxu0 0.0
      %2623 = vmatprep.subr.mxu0 0.0
      %2624 = vmatpush2.msra.mxu0 0.0
      %2625 = vmatprep.subr.mxu0 0.0
      %2626 = vmatpush2.msra.mxu0 0.0
      %2627 = vmatprep.subr.mxu0 0.0
      %2628 = vmatpush2.msra.mxu0 0.0
      %2629 = vmatprep.subr.mxu0 0.0
      %2630 = vmatpush2.msra.mxu0 0.0
      %2631 = vmatprep.subr.mxu0 0.0
      %2632 = vmatpush2.msra.mxu0 0.0
      %2633 = vmatprep.subr.mxu0 0.0
      %2634 = vmatpush2.msra.mxu0 0.0
      %2635 = vmatprep.subr.mxu0 0.0
      %2636 = vmatpush2.msra.mxu0 0.0
      %2637 = vmatprep.subr.mxu0 0.0
      %2638 = vmatpush2.msra.mxu0 0.0
      %2639 = vmatprep.subr.mxu0 0.0
      %2640 = vmatpush2.msra.mxu0 0.0
      %2641 = vmatprep.subr.mxu0 0.0
      %2642 = vmatpush2.msra.mxu0 0.0
      %2643 = vmatprep.subr.mxu0 0.0
      %2644 = vmatpush2.msra.mxu0 0.0
      %2645 = vmatprep.subr.mxu0 0.0
      %2646 = vmatpush2.msra.mxu0 0.0
      %2647 = vmatprep.subr.mxu0 0.0
      %2648 = vmatpush2.msra.mxu0 0.0
      %2649 = vmatprep.mubr.f32.mxu0 0.0
      %2650 = vmatmul.mubr.f32.gmra.mxu0 %v2583
      %v2651 = vpop.f32.mrf.mxu0
      %v2652 = vadd.f32 0.0, %v2651
      %v2653 = vpop.f32.mrf.mxu0
      %2654 = vdwg.mxu0
      %v2656 = vsel %vm833, %v2427, 0
      %2658 = vmatprep.subr.mxu0 0.0
      %2659 = vmatpush1.msra.mxu0 0.0
      %2660 = vmatprep.subr.mxu0 0.0
      %2661 = vmatpush1.msra.mxu0 0.0
      %2662 = vmatprep.subr.mxu0 0.0
      %2663 = vmatpush1.msra.mxu0 0.0
      %2664 = vmatprep.subr.mxu0 0.0
      %2665 = vmatpush1.msra.mxu0 0.0
      %2666 = vmatprep.subr.mxu0 0.0
      %2667 = vmatpush1.msra.mxu0 0.0
      %2668 = vmatprep.subr.mxu0 0.0
      %2669 = vmatpush1.msra.mxu0 0.0
      %2670 = vmatprep.subr.mxu0 0.0
      %2671 = vmatpush1.msra.mxu0 0.0
      %2672 = vmatprep.subr.mxu0 0.0
      %2673 = vmatpush1.msra.mxu0 0.0
      %2674 = vmatprep.subr.mxu0 0.0
      %2675 = vmatpush1.msra.mxu0 0.0
      %2676 = vmatprep.subr.mxu0 0.0
      %2677 = vmatpush1.msra.mxu0 0.0
      %2678 = vmatprep.subr.mxu0 0.0
      %2679 = vmatpush1.msra.mxu0 0.0
      %2680 = vmatprep.subr.mxu0 0.0
      %2681 = vmatpush1.msra.mxu0 0.0
      %2682 = vmatprep.subr.mxu0 0.0
      %2683 = vmatpush1.msra.mxu0 0.0
      %2684 = vmatprep.subr.mxu0 0.0
      %2685 = vmatpush1.msra.mxu0 0.0
      %2686 = vmatprep.subr.mxu0 0.0
      %2687 = vmatpush1.msra.mxu0 0.0
      %2688 = vmatprep.subr.mxu0 0.0
      %2689 = vmatpush1.msra.mxu0 %v2578
      %2690 = vmatprep.subr.mxu0 0.0
      %2691 = vmatpush2.msra.mxu0 0.0
      %2692 = vmatprep.subr.mxu0 0.0
      %2693 = vmatpush2.msra.mxu0 0.0
      %2694 = vmatprep.subr.mxu0 0.0
      %2695 = vmatpush2.msra.mxu0 0.0
      %2696 = vmatprep.subr.mxu0 0.0
      %2697 = vmatpush2.msra.mxu0 0.0
      %2698 = vmatprep.subr.mxu0 0.0
      %2699 = vmatpush2.msra.mxu0 0.0
      %2700 = vmatprep.subr.mxu0 0.0
      %2701 = vmatpush2.msra.mxu0 0.0
      %2702 = vmatprep.subr.mxu0 0.0
      %2703 = vmatpush2.msra.mxu0 0.0
      %2704 = vmatprep.subr.mxu0 0.0
      %2705 = vmatpush2.msra.mxu0 0.0
      %2706 = vmatprep.subr.mxu0 0.0
      %2707 = vmatpush2.msra.mxu0 0.0
      %2708 = vmatprep.subr.mxu0 0.0
      %2709 = vmatpush2.msra.mxu0 0.0
      %2710 = vmatprep.subr.mxu0 0.0
      %2711 = vmatpush2.msra.mxu0 0.0
      %2712 = vmatprep.subr.mxu0 0.0
      %2713 = vmatpush2.msra.mxu0 0.0
      %2714 = vmatprep.subr.mxu0 0.0
      %2715 = vmatpush2.msra.mxu0 0.0
      %2716 = vmatprep.subr.mxu0 0.0
      %2717 = vmatpush2.msra.mxu0 0.0
      %2718 = vmatprep.subr.mxu0 0.0
      %2719 = vmatpush2.msra.mxu0 0.0
      %2720 = vmatprep.subr.mxu0 0.0
      %2721 = vmatpush2.msra.mxu0 0.0
      %2722 = vmatprep.mubr.f32.mxu0 0.0
      %2723 = vmatmul.mubr.f32.gmra.mxu0 %v2656
      %v2724 = vpop.f32.mrf.mxu0
      %v2725 = vadd.f32 0.0, %v2724
      %v2726 = vpop.f32.mrf.mxu0
      %2727 = vdwg.mxu0
      %v2729 = vsel %vm833, %v2500, 0
      %2731 = vmatprep.subr.mxu0 0.0
      %2732 = vmatpush1.msra.mxu0 0.0
      %2733 = vmatprep.subr.mxu0 0.0
      %2734 = vmatpush1.msra.mxu0 0.0
      %2735 = vmatprep.subr.mxu0 0.0
      %2736 = vmatpush1.msra.mxu0 0.0
      %2737 = vmatprep.subr.mxu0 0.0
      %2738 = vmatpush1.msra.mxu0 0.0
      %2739 = vmatprep.subr.mxu0 0.0
      %2740 = vmatpush1.msra.mxu0 0.0
      %2741 = vmatprep.subr.mxu0 0.0
      %2742 = vmatpush1.msra.mxu0 0.0
      %2743 = vmatprep.subr.mxu0 0.0
      %2744 = vmatpush1.msra.mxu0 0.0
      %2745 = vmatprep.subr.mxu0 0.0
      %2746 = vmatpush1.msra.mxu0 0.0
      %2747 = vmatprep.subr.mxu0 0.0
      %2748 = vmatpush1.msra.mxu0 0.0
      %2749 = vmatprep.subr.mxu0 0.0
      %2750 = vmatpush1.msra.mxu0 0.0
      %2751 = vmatprep.subr.mxu0 0.0
      %2752 = vmatpush1.msra.mxu0 0.0
      %2753 = vmatprep.subr.mxu0 0.0
      %2754 = vmatpush1.msra.mxu0 0.0
      %2755 = vmatprep.subr.mxu0 0.0
      %2756 = vmatpush1.msra.mxu0 0.0
      %2757 = vmatprep.subr.mxu0 0.0
      %2758 = vmatpush1.msra.mxu0 0.0
      %2759 = vmatprep.subr.mxu0 0.0
      %2760 = vmatpush1.msra.mxu0 0.0
      %2761 = vmatprep.subr.mxu0 0.0
      %2762 = vmatpush1.msra.mxu0 %v2579
      %2763 = vmatprep.subr.mxu0 0.0
      %2764 = vmatpush2.msra.mxu0 0.0
      %2765 = vmatprep.subr.mxu0 0.0
      %2766 = vmatpush2.msra.mxu0 0.0
      %2767 = vmatprep.subr.mxu0 0.0
      %2768 = vmatpush2.msra.mxu0 0.0
      %2769 = vmatprep.subr.mxu0 0.0
      %2770 = vmatpush2.msra.mxu0 0.0
      %2771 = vmatprep.subr.mxu0 0.0
      %2772 = vmatpush2.msra.mxu0 0.0
      %2773 = vmatprep.subr.mxu0 0.0
      %2774 = vmatpush2.msra.mxu0 0.0
      %2775 = vmatprep.subr.mxu0 0.0
      %2776 = vmatpush2.msra.mxu0 0.0
      %2777 = vmatprep.subr.mxu0 0.0
      %2778 = vmatpush2.msra.mxu0 0.0
      %2779 = vmatprep.subr.mxu0 0.0
      %2780 = vmatpush2.msra.mxu0 0.0
      %2781 = vmatprep.subr.mxu0 0.0
      %2782 = vmatpush2.msra.mxu0 0.0
      %2783 = vmatprep.subr.mxu0 0.0
      %2784 = vmatpush2.msra.mxu0 0.0
      %2785 = vmatprep.subr.mxu0 0.0
      %2786 = vmatpush2.msra.mxu0 0.0
      %2787 = vmatprep.subr.mxu0 0.0
      %2788 = vmatpush2.msra.mxu0 0.0
      %2789 = vmatprep.subr.mxu0 0.0
      %2790 = vmatpush2.msra.mxu0 0.0
      %2791 = vmatprep.subr.mxu0 0.0
      %2792 = vmatpush2.msra.mxu0 0.0
      %2793 = vmatprep.subr.mxu0 0.0
      %2794 = vmatpush2.msra.mxu0 0.0
      %2795 = vmatprep.mubr.f32.mxu0 0.0
      %2796 = vmatmul.mubr.f32.gmra.mxu0 %v2729
      %v2797 = vpop.f32.mrf.mxu0
      %v2798 = vadd.f32 0.0, %v2797
      %v2799 = vpop.f32.mrf.mxu0
      %2800 = vdwg.mxu0
      %v2802 = vsel %vm833, %v2573, 0
      %2804 = vmatprep.subr.mxu0 0.0
      %2805 = vmatpush1.msra.mxu0 0.0
      %2806 = vmatprep.subr.mxu0 0.0
      %2807 = vmatpush1.msra.mxu0 0.0
      %2808 = vmatprep.subr.mxu0 0.0
      %2809 = vmatpush1.msra.mxu0 0.0
      %2810 = vmatprep.subr.mxu0 0.0
      %2811 = vmatpush1.msra.mxu0 0.0
      %2812 = vmatprep.subr.mxu0 0.0
      %2813 = vmatpush1.msra.mxu0 0.0
      %2814 = vmatprep.subr.mxu0 0.0
      %2815 = vmatpush1.msra.mxu0 0.0
      %2816 = vmatprep.subr.mxu0 0.0
      %2817 = vmatpush1.msra.mxu0 0.0
      %2818 = vmatprep.subr.mxu0 0.0
      %2819 = vmatpush1.msra.mxu0 0.0
      %2820 = vmatprep.subr.mxu0 0.0
      %2821 = vmatpush1.msra.mxu0 0.0
      %2822 = vmatprep.subr.mxu0 0.0
      %2823 = vmatpush1.msra.mxu0 0.0
      %2824 = vmatprep.subr.mxu0 0.0
      %2825 = vmatpush1.msra.mxu0 0.0
      %2826 = vmatprep.subr.mxu0 0.0
      %2827 = vmatpush1.msra.mxu0 0.0
      %2828 = vmatprep.subr.mxu0 0.0
      %2829 = vmatpush1.msra.mxu0 0.0
      %2830 = vmatprep.subr.mxu0 0.0
      %2831 = vmatpush1.msra.mxu0 0.0
      %2832 = vmatprep.subr.mxu0 0.0
      %2833 = vmatpush1.msra.mxu0 0.0
      %2834 = vmatprep.subr.mxu0 0.0
      %2835 = vmatpush1.msra.mxu0 %v2580
      %2836 = vmatprep.subr.mxu0 0.0
      %2837 = vmatpush2.msra.mxu0 0.0
      %2838 = vmatprep.subr.mxu0 0.0
      %2839 = vmatpush2.msra.mxu0 0.0
      %2840 = vmatprep.subr.mxu0 0.0
      %2841 = vmatpush2.msra.mxu0 0.0
      %2842 = vmatprep.subr.mxu0 0.0
      %2843 = vmatpush2.msra.mxu0 0.0
      %2844 = vmatprep.subr.mxu0 0.0
      %2845 = vmatpush2.msra.mxu0 0.0
      %2846 = vmatprep.subr.mxu0 0.0
      %2847 = vmatpush2.msra.mxu0 0.0
      %2848 = vmatprep.subr.mxu0 0.0
      %2849 = vmatpush2.msra.mxu0 0.0
      %2850 = vmatprep.subr.mxu0 0.0
      %2851 = vmatpush2.msra.mxu0 0.0
      %2852 = vmatprep.subr.mxu0 0.0
      %2853 = vmatpush2.msra.mxu0 0.0
      %2854 = vmatprep.subr.mxu0 0.0
      %2855 = vmatpush2.msra.mxu0 0.0
      %2856 = vmatprep.subr.mxu0 0.0
      %2857 = vmatpush2.msra.mxu0 0.0
      %2858 = vmatprep.subr.mxu0 0.0
      %2859 = vmatpush2.msra.mxu0 0.0
      %2860 = vmatprep.subr.mxu0 0.0
      %2861 = vmatpush2.msra.mxu0 0.0
      %2862 = vmatprep.subr.mxu0 0.0
      %2863 = vmatpush2.msra.mxu0 0.0
      %2864 = vmatprep.subr.mxu0 0.0
      %2865 = vmatpush2.msra.mxu0 0.0
      %2866 = vmatprep.subr.mxu0 0.0
      %2867 = vmatpush2.msra.mxu0 0.0
      %2868 = vmatprep.mubr.f32.mxu0 0.0
      %2869 = vmatmul.mubr.f32.gmra.mxu0 %v2802
      %v2870 = vpop.f32.mrf.mxu0
      %v2871 = vadd.f32 0.0, %v2870
      %v2872 = vpop.f32.mrf.mxu0
      %2873 = vdwg.mxu0
      %v2874 = vsub.f32 %v2581, %v2652
      %v2875 = vsub.f32 %v2581, %v2725
      %v2876 = vsub.f32 %v2581, %v2798
      %v2877 = vsub.f32 %v2581, %v2871
      %v2878 = vmul.f32 %v2107, 13.0
      %2879 = vmatprep.subr.mxu0 0.0
      %2880 = vmatpush1.msra.mxu0 0.0
      %2881 = vmatprep.subr.mxu0 0.0
      %2882 = vmatpush1.msra.mxu0 0.0
      %2883 = vmatprep.subr.mxu0 0.0
      %2884 = vmatpush1.msra.mxu0 0.0
      %2885 = vmatprep.subr.mxu0 0.0
      %2886 = vmatpush1.msra.mxu0 0.0
      %2887 = vmatprep.subr.mxu0 0.0
      %2888 = vmatpush1.msra.mxu0 0.0
      %2889 = vmatprep.subr.mxu0 0.0
      %2890 = vmatpush1.msra.mxu0 0.0
      %2891 = vmatprep.subr.mxu0 0.0
      %2892 = vmatpush1.msra.mxu0 0.0
      %2893 = vmatprep.subr.mxu0 0.0
      %2894 = vmatpush1.msra.mxu0 0.0
      %2895 = vmatprep.subr.mxu0 0.0
      %2896 = vmatpush1.msra.mxu0 0.0
      %2897 = vmatprep.subr.mxu0 0.0
      %2898 = vmatpush1.msra.mxu0 0.0
      %2899 = vmatprep.subr.mxu0 0.0
      %2900 = vmatpush1.msra.mxu0 0.0
      %2901 = vmatprep.subr.mxu0 0.0
      %2902 = vmatpush1.msra.mxu0 0.0
      %2903 = vmatprep.subr.mxu0 0.0
      %2904 = vmatpush1.msra.mxu0 0.0
      %2905 = vmatprep.subr.mxu0 0.0
      %2906 = vmatpush1.msra.mxu0 0.0
      %2907 = vmatprep.subr.mxu0 0.0
      %2908 = vmatpush1.msra.mxu0 0.0
      %2909 = vmatprep.subr.mxu0 0.0
      %2910 = vmatpush1.msra.mxu0 %v2874
      %2911 = vmatprep.subr.mxu0 0.0
      %2912 = vmatpush2.msra.mxu0 0.0
      %2913 = vmatprep.subr.mxu0 0.0
      %2914 = vmatpush2.msra.mxu0 0.0
      %2915 = vmatprep.subr.mxu0 0.0
      %2916 = vmatpush2.msra.mxu0 0.0
      %2917 = vmatprep.subr.mxu0 0.0
      %2918 = vmatpush2.msra.mxu0 0.0
      %2919 = vmatprep.subr.mxu0 0.0
      %2920 = vmatpush2.msra.mxu0 0.0
      %2921 = vmatprep.subr.mxu0 0.0
      %2922 = vmatpush2.msra.mxu0 0.0
      %2923 = vmatprep.subr.mxu0 0.0
      %2924 = vmatpush2.msra.mxu0 0.0
      %2925 = vmatprep.subr.mxu0 0.0
      %2926 = vmatpush2.msra.mxu0 0.0
      %2927 = vmatprep.subr.mxu0 0.0
      %2928 = vmatpush2.msra.mxu0 0.0
      %2929 = vmatprep.subr.mxu0 0.0
      %2930 = vmatpush2.msra.mxu0 0.0
      %2931 = vmatprep.subr.mxu0 0.0
      %2932 = vmatpush2.msra.mxu0 0.0
      %2933 = vmatprep.subr.mxu0 0.0
      %2934 = vmatpush2.msra.mxu0 0.0
      %2935 = vmatprep.subr.mxu0 0.0
      %2936 = vmatpush2.msra.mxu0 0.0
      %2937 = vmatprep.subr.mxu0 0.0
      %2938 = vmatpush2.msra.mxu0 0.0
      %2939 = vmatprep.subr.mxu0 0.0
      %2940 = vmatpush2.msra.mxu0 0.0
      %2941 = vmatprep.subr.mxu0 0.0
      %2942 = vmatpush2.msra.mxu0 0.0
      %2943 = vmatprep.mubr.f32.mxu0 0.0
      %2944 = vmatmul.mubr.f32.gmra.mxu0 %v2583
      %v2945 = vpop.f32.mrf.mxu0
      %v2946 = vadd.f32 0.0, %v2945
      %v2947 = vpop.f32.mrf.mxu0
      %2948 = vdwg.mxu0
      %2949 = vmatprep.subr.mxu0 0.0
      %2950 = vmatpush1.msra.mxu0 0.0
      %2951 = vmatprep.subr.mxu0 0.0
      %2952 = vmatpush1.msra.mxu0 0.0
      %2953 = vmatprep.subr.mxu0 0.0
      %2954 = vmatpush1.msra.mxu0 0.0
      %2955 = vmatprep.subr.mxu0 0.0
      %2956 = vmatpush1.msra.mxu0 0.0
      %2957 = vmatprep.subr.mxu0 0.0
      %2958 = vmatpush1.msra.mxu0 0.0
      %2959 = vmatprep.subr.mxu0 0.0
      %2960 = vmatpush1.msra.mxu0 0.0
      %2961 = vmatprep.subr.mxu0 0.0
      %2962 = vmatpush1.msra.mxu0 0.0
      %2963 = vmatprep.subr.mxu0 0.0
      %2964 = vmatpush1.msra.mxu0 0.0
      %2965 = vmatprep.subr.mxu0 0.0
      %2966 = vmatpush1.msra.mxu0 0.0
      %2967 = vmatprep.subr.mxu0 0.0
      %2968 = vmatpush1.msra.mxu0 0.0
      %2969 = vmatprep.subr.mxu0 0.0
      %2970 = vmatpush1.msra.mxu0 0.0
      %2971 = vmatprep.subr.mxu0 0.0
      %2972 = vmatpush1.msra.mxu0 0.0
      %2973 = vmatprep.subr.mxu0 0.0
      %2974 = vmatpush1.msra.mxu0 0.0
      %2975 = vmatprep.subr.mxu0 0.0
      %2976 = vmatpush1.msra.mxu0 0.0
      %2977 = vmatprep.subr.mxu0 0.0
      %2978 = vmatpush1.msra.mxu0 0.0
      %2979 = vmatprep.subr.mxu0 0.0
      %2980 = vmatpush1.msra.mxu0 %v2875
      %2981 = vmatprep.subr.mxu0 0.0
      %2982 = vmatpush2.msra.mxu0 0.0
      %2983 = vmatprep.subr.mxu0 0.0
      %2984 = vmatpush2.msra.mxu0 0.0
      %2985 = vmatprep.subr.mxu0 0.0
      %2986 = vmatpush2.msra.mxu0 0.0
      %2987 = vmatprep.subr.mxu0 0.0
      %2988 = vmatpush2.msra.mxu0 0.0
      %2989 = vmatprep.subr.mxu0 0.0
      %2990 = vmatpush2.msra.mxu0 0.0
      %2991 = vmatprep.subr.mxu0 0.0
      %2992 = vmatpush2.msra.mxu0 0.0
      %2993 = vmatprep.subr.mxu0 0.0
      %2994 = vmatpush2.msra.mxu0 0.0
      %2995 = vmatprep.subr.mxu0 0.0
      %2996 = vmatpush2.msra.mxu0 0.0
      %2997 = vmatprep.subr.mxu0 0.0
      %2998 = vmatpush2.msra.mxu0 0.0
      %2999 = vmatprep.subr.mxu0 0.0
      %3000 = vmatpush2.msra.mxu0 0.0
      %3001 = vmatprep.subr.mxu0 0.0
      %3002 = vmatpush2.msra.mxu0 0.0
      %3003 = vmatprep.subr.mxu0 0.0
      %3004 = vmatpush2.msra.mxu0 0.0
      %3005 = vmatprep.subr.mxu0 0.0
      %3006 = vmatpush2.msra.mxu0 0.0
      %3007 = vmatprep.subr.mxu0 0.0
      %3008 = vmatpush2.msra.mxu0 0.0
      %3009 = vmatprep.subr.mxu0 0.0
      %3010 = vmatpush2.msra.mxu0 0.0
      %3011 = vmatprep.subr.mxu0 0.0
      %3012 = vmatpush2.msra.mxu0 0.0
      %3013 = vmatprep.mubr.f32.mxu0 0.0
      %3014 = vmatmul.mubr.f32.gmra.mxu0 %v2656
      %v3015 = vpop.f32.mrf.mxu0
      %v3016 = vadd.f32 0.0, %v3015
      %v3017 = vpop.f32.mrf.mxu0
      %3018 = vdwg.mxu0
      %3019 = vmatprep.subr.mxu0 0.0
      %3020 = vmatpush1.msra.mxu0 0.0
      %3021 = vmatprep.subr.mxu0 0.0
      %3022 = vmatpush1.msra.mxu0 0.0
      %3023 = vmatprep.subr.mxu0 0.0
      %3024 = vmatpush1.msra.mxu0 0.0
      %3025 = vmatprep.subr.mxu0 0.0
      %3026 = vmatpush1.msra.mxu0 0.0
      %3027 = vmatprep.subr.mxu0 0.0
      %3028 = vmatpush1.msra.mxu0 0.0
      %3029 = vmatprep.subr.mxu0 0.0
      %3030 = vmatpush1.msra.mxu0 0.0
      %3031 = vmatprep.subr.mxu0 0.0
      %3032 = vmatpush1.msra.mxu0 0.0
      %3033 = vmatprep.subr.mxu0 0.0
      %3034 = vmatpush1.msra.mxu0 0.0
      %3035 = vmatprep.subr.mxu0 0.0
      %3036 = vmatpush1.msra.mxu0 0.0
      %3037 = vmatprep.subr.mxu0 0.0
      %3038 = vmatpush1.msra.mxu0 0.0
      %3039 = vmatprep.subr.mxu0 0.0
      %3040 = vmatpush1.msra.mxu0 0.0
      %3041 = vmatprep.subr.mxu0 0.0
      %3042 = vmatpush1.msra.mxu0 0.0
      %3043 = vmatprep.subr.mxu0 0.0
      %3044 = vmatpush1.msra.mxu0 0.0
      %3045 = vmatprep.subr.mxu0 0.0
      %3046 = vmatpush1.msra.mxu0 0.0
      %3047 = vmatprep.subr.mxu0 0.0
      %3048 = vmatpush1.msra.mxu0 0.0
      %3049 = vmatprep.subr.mxu0 0.0
      %3050 = vmatpush1.msra.mxu0 %v2876
      %3051 = vmatprep.subr.mxu0 0.0
      %3052 = vmatpush2.msra.mxu0 0.0
      %3053 = vmatprep.subr.mxu0 0.0
      %3054 = vmatpush2.msra.mxu0 0.0
      %3055 = vmatprep.subr.mxu0 0.0
      %3056 = vmatpush2.msra.mxu0 0.0
      %3057 = vmatprep.subr.mxu0 0.0
      %3058 = vmatpush2.msra.mxu0 0.0
      %3059 = vmatprep.subr.mxu0 0.0
      %3060 = vmatpush2.msra.mxu0 0.0
      %3061 = vmatprep.subr.mxu0 0.0
      %3062 = vmatpush2.msra.mxu0 0.0
      %3063 = vmatprep.subr.mxu0 0.0
      %3064 = vmatpush2.msra.mxu0 0.0
      %3065 = vmatprep.subr.mxu0 0.0
      %3066 = vmatpush2.msra.mxu0 0.0
      %3067 = vmatprep.subr.mxu0 0.0
      %3068 = vmatpush2.msra.mxu0 0.0
      %3069 = vmatprep.subr.mxu0 0.0
      %3070 = vmatpush2.msra.mxu0 0.0
      %3071 = vmatprep.subr.mxu0 0.0
      %3072 = vmatpush2.msra.mxu0 0.0
      %3073 = vmatprep.subr.mxu0 0.0
      %3074 = vmatpush2.msra.mxu0 0.0
      %3075 = vmatprep.subr.mxu0 0.0
      %3076 = vmatpush2.msra.mxu0 0.0
      %3077 = vmatprep.subr.mxu0 0.0
      %3078 = vmatpush2.msra.mxu0 0.0
      %3079 = vmatprep.subr.mxu0 0.0
      %3080 = vmatpush2.msra.mxu0 0.0
      %3081 = vmatprep.subr.mxu0 0.0
      %3082 = vmatpush2.msra.mxu0 0.0
      %3083 = vmatprep.mubr.f32.mxu0 0.0
      %3084 = vmatmul.mubr.f32.gmra.mxu0 %v2729
      %v3085 = vpop.f32.mrf.mxu0
      %v3086 = vadd.f32 0.0, %v3085
      %v3087 = vpop.f32.mrf.mxu0
      %3088 = vdwg.mxu0
      %3089 = vmatprep.subr.mxu0 0.0
      %3090 = vmatpush1.msra.mxu0 0.0
      %3091 = vmatprep.subr.mxu0 0.0
      %3092 = vmatpush1.msra.mxu0 0.0
      %3093 = vmatprep.subr.mxu0 0.0
      %3094 = vmatpush1.msra.mxu0 0.0
      %3095 = vmatprep.subr.mxu0 0.0
      %3096 = vmatpush1.msra.mxu0 0.0
      %3097 = vmatprep.subr.mxu0 0.0
      %3098 = vmatpush1.msra.mxu0 0.0
      %3099 = vmatprep.subr.mxu0 0.0
      %3100 = vmatpush1.msra.mxu0 0.0
      %3101 = vmatprep.subr.mxu0 0.0
      %3102 = vmatpush1.msra.mxu0 0.0
      %3103 = vmatprep.subr.mxu0 0.0
      %3104 = vmatpush1.msra.mxu0 0.0
      %3105 = vmatprep.subr.mxu0 0.0
      %3106 = vmatpush1.msra.mxu0 0.0
      %3107 = vmatprep.subr.mxu0 0.0
      %3108 = vmatpush1.msra.mxu0 0.0
      %3109 = vmatprep.subr.mxu0 0.0
      %3110 = vmatpush1.msra.mxu0 0.0
      %3111 = vmatprep.subr.mxu0 0.0
      %3112 = vmatpush1.msra.mxu0 0.0
      %3113 = vmatprep.subr.mxu0 0.0
      %3114 = vmatpush1.msra.mxu0 0.0
      %3115 = vmatprep.subr.mxu0 0.0
      %3116 = vmatpush1.msra.mxu0 0.0
      %3117 = vmatprep.subr.mxu0 0.0
      %3118 = vmatpush1.msra.mxu0 0.0
      %3119 = vmatprep.subr.mxu0 0.0
      %3120 = vmatpush1.msra.mxu0 %v2877
      %3121 = vmatprep.subr.mxu0 0.0
      %3122 = vmatpush2.msra.mxu0 0.0
      %3123 = vmatprep.subr.mxu0 0.0
      %3124 = vmatpush2.msra.mxu0 0.0
      %3125 = vmatprep.subr.mxu0 0.0
      %3126 = vmatpush2.msra.mxu0 0.0
      %3127 = vmatprep.subr.mxu0 0.0
      %3128 = vmatpush2.msra.mxu0 0.0
      %3129 = vmatprep.subr.mxu0 0.0
      %3130 = vmatpush2.msra.mxu0 0.0
      %3131 = vmatprep.subr.mxu0 0.0
      %3132 = vmatpush2.msra.mxu0 0.0
      %3133 = vmatprep.subr.mxu0 0.0
      %3134 = vmatpush2.msra.mxu0 0.0
      %3135 = vmatprep.subr.mxu0 0.0
      %3136 = vmatpush2.msra.mxu0 0.0
      %3137 = vmatprep.subr.mxu0 0.0
      %3138 = vmatpush2.msra.mxu0 0.0
      %3139 = vmatprep.subr.mxu0 0.0
      %3140 = vmatpush2.msra.mxu0 0.0
      %3141 = vmatprep.subr.mxu0 0.0
      %3142 = vmatpush2.msra.mxu0 0.0
      %3143 = vmatprep.subr.mxu0 0.0
      %3144 = vmatpush2.msra.mxu0 0.0
      %3145 = vmatprep.subr.mxu0 0.0
      %3146 = vmatpush2.msra.mxu0 0.0
      %3147 = vmatprep.subr.mxu0 0.0
      %3148 = vmatpush2.msra.mxu0 0.0
      %3149 = vmatprep.subr.mxu0 0.0
      %3150 = vmatpush2.msra.mxu0 0.0
      %3151 = vmatprep.subr.mxu0 0.0
      %3152 = vmatpush2.msra.mxu0 0.0
      %3153 = vmatprep.mubr.f32.mxu0 0.0
      %3154 = vmatmul.mubr.f32.gmra.mxu0 %v2802
      %v3155 = vpop.f32.mrf.mxu0
      %v3156 = vadd.f32 0.0, %v3155
      %v3157 = vpop.f32.mrf.mxu0
      %3158 = vdwg.mxu0
      %v3159 = vsub.f32 %v2878, %v2946
      %v3160 = vsub.f32 %v2878, %v3016
      %v3161 = vsub.f32 %v2878, %v3086
      %v3162 = vsub.f32 %v2878, %v3156
      %v3163 = vmul.f32 %v2277, 0.25
      %v3164 = vmul.f32 %v2279, 0.25
      %v3165 = vmul.f32 %v2281, 0.25
      %v3166 = vmul.f32 %v2283, 0.25
      %v3168 = vsel %vm833, %v3163, 0
      %3170 = vmatprep.subr.mxu0 0.0
      %3171 = vmatpush1.msra.mxu0 0.0
      %3172 = vmatprep.subr.mxu0 0.0
      %3173 = vmatpush1.msra.mxu0 0.0
      %3174 = vmatprep.subr.mxu0 0.0
      %3175 = vmatpush1.msra.mxu0 0.0
      %3176 = vmatprep.subr.mxu0 0.0
      %3177 = vmatpush1.msra.mxu0 0.0
      %3178 = vmatprep.subr.mxu0 0.0
      %3179 = vmatpush1.msra.mxu0 0.0
      %3180 = vmatprep.subr.mxu0 0.0
      %3181 = vmatpush1.msra.mxu0 0.0
      %3182 = vmatprep.subr.mxu0 0.0
      %3183 = vmatpush1.msra.mxu0 0.0
      %3184 = vmatprep.subr.mxu0 0.0
      %3185 = vmatpush1.msra.mxu0 0.0
      %3186 = vmatprep.subr.mxu0 0.0
      %3187 = vmatpush1.msra.mxu0 0.0
      %3188 = vmatprep.subr.mxu0 0.0
      %3189 = vmatpush1.msra.mxu0 0.0
      %3190 = vmatprep.subr.mxu0 0.0
      %3191 = vmatpush1.msra.mxu0 0.0
      %3192 = vmatprep.subr.mxu0 0.0
      %3193 = vmatpush1.msra.mxu0 0.0
      %3194 = vmatprep.subr.mxu0 0.0
      %3195 = vmatpush1.msra.mxu0 0.0
      %3196 = vmatprep.subr.mxu0 0.0
      %3197 = vmatpush1.msra.mxu0 0.0
      %3198 = vmatprep.subr.mxu0 0.0
      %3199 = vmatpush1.msra.mxu0 0.0
      %3200 = vmatprep.subr.mxu0 0.0
      %3201 = vmatpush1.msra.mxu0 %v3159
      %3202 = vmatprep.subr.mxu0 0.0
      %3203 = vmatpush2.msra.mxu0 0.0
      %3204 = vmatprep.subr.mxu0 0.0
      %3205 = vmatpush2.msra.mxu0 0.0
      %3206 = vmatprep.subr.mxu0 0.0
      %3207 = vmatpush2.msra.mxu0 0.0
      %3208 = vmatprep.subr.mxu0 0.0
      %3209 = vmatpush2.msra.mxu0 0.0
      %3210 = vmatprep.subr.mxu0 0.0
      %3211 = vmatpush2.msra.mxu0 0.0
      %3212 = vmatprep.subr.mxu0 0.0
      %3213 = vmatpush2.msra.mxu0 0.0
      %3214 = vmatprep.subr.mxu0 0.0
      %3215 = vmatpush2.msra.mxu0 0.0
      %3216 = vmatprep.subr.mxu0 0.0
      %3217 = vmatpush2.msra.mxu0 0.0
      %3218 = vmatprep.subr.mxu0 0.0
      %3219 = vmatpush2.msra.mxu0 0.0
      %3220 = vmatprep.subr.mxu0 0.0
      %3221 = vmatpush2.msra.mxu0 0.0
      %3222 = vmatprep.subr.mxu0 0.0
      %3223 = vmatpush2.msra.mxu0 0.0
      %3224 = vmatprep.subr.mxu0 0.0
      %3225 = vmatpush2.msra.mxu0 0.0
      %3226 = vmatprep.subr.mxu0 0.0
      %3227 = vmatpush2.msra.mxu0 0.0
      %3228 = vmatprep.subr.mxu0 0.0
      %3229 = vmatpush2.msra.mxu0 0.0
      %3230 = vmatprep.subr.mxu0 0.0
      %3231 = vmatpush2.msra.mxu0 0.0
      %3232 = vmatprep.subr.mxu0 0.0
      %3233 = vmatpush2.msra.mxu0 0.0
      %3234 = vmatprep.mubr.f32.mxu0 0.0
      %3235 = vmatmul.mubr.f32.gmra.mxu0 %v3168
      %v3236 = vpop.f32.mrf.mxu0
      %v3237 = vadd.f32 0.0, %v3236
      %v3238 = vpop.f32.mrf.mxu0
      %3239 = vdwg.mxu0
      %v3241 = vsel %vm833, %v3164, 0
      %3243 = vmatprep.subr.mxu0 0.0
      %3244 = vmatpush1.msra.mxu0 0.0
      %3245 = vmatprep.subr.mxu0 0.0
      %3246 = vmatpush1.msra.mxu0 0.0
      %3247 = vmatprep.subr.mxu0 0.0
      %3248 = vmatpush1.msra.mxu0 0.0
      %3249 = vmatprep.subr.mxu0 0.0
      %3250 = vmatpush1.msra.mxu0 0.0
      %3251 = vmatprep.subr.mxu0 0.0
      %3252 = vmatpush1.msra.mxu0 0.0
      %3253 = vmatprep.subr.mxu0 0.0
      %3254 = vmatpush1.msra.mxu0 0.0
      %3255 = vmatprep.subr.mxu0 0.0
      %3256 = vmatpush1.msra.mxu0 0.0
      %3257 = vmatprep.subr.mxu0 0.0
      %3258 = vmatpush1.msra.mxu0 0.0
      %3259 = vmatprep.subr.mxu0 0.0
      %3260 = vmatpush1.msra.mxu0 0.0
      %3261 = vmatprep.subr.mxu0 0.0
      %3262 = vmatpush1.msra.mxu0 0.0
      %3263 = vmatprep.subr.mxu0 0.0
      %3264 = vmatpush1.msra.mxu0 0.0
      %3265 = vmatprep.subr.mxu0 0.0
      %3266 = vmatpush1.msra.mxu0 0.0
      %3267 = vmatprep.subr.mxu0 0.0
      %3268 = vmatpush1.msra.mxu0 0.0
      %3269 = vmatprep.subr.mxu0 0.0
      %3270 = vmatpush1.msra.mxu0 0.0
      %3271 = vmatprep.subr.mxu0 0.0
      %3272 = vmatpush1.msra.mxu0 0.0
      %3273 = vmatprep.subr.mxu0 0.0
      %3274 = vmatpush1.msra.mxu0 %v3160
      %3275 = vmatprep.subr.mxu0 0.0
      %3276 = vmatpush2.msra.mxu0 0.0
      %3277 = vmatprep.subr.mxu0 0.0
      %3278 = vmatpush2.msra.mxu0 0.0
      %3279 = vmatprep.subr.mxu0 0.0
      %3280 = vmatpush2.msra.mxu0 0.0
      %3281 = vmatprep.subr.mxu0 0.0
      %3282 = vmatpush2.msra.mxu0 0.0
      %3283 = vmatprep.subr.mxu0 0.0
      %3284 = vmatpush2.msra.mxu0 0.0
      %3285 = vmatprep.subr.mxu0 0.0
      %3286 = vmatpush2.msra.mxu0 0.0
      %3287 = vmatprep.subr.mxu0 0.0
      %3288 = vmatpush2.msra.mxu0 0.0
      %3289 = vmatprep.subr.mxu0 0.0
      %3290 = vmatpush2.msra.mxu0 0.0
      %3291 = vmatprep.subr.mxu0 0.0
      %3292 = vmatpush2.msra.mxu0 0.0
      %3293 = vmatprep.subr.mxu0 0.0
      %3294 = vmatpush2.msra.mxu0 0.0
      %3295 = vmatprep.subr.mxu0 0.0
      %3296 = vmatpush2.msra.mxu0 0.0
      %3297 = vmatprep.subr.mxu0 0.0
      %3298 = vmatpush2.msra.mxu0 0.0
      %3299 = vmatprep.subr.mxu0 0.0
      %3300 = vmatpush2.msra.mxu0 0.0
      %3301 = vmatprep.subr.mxu0 0.0
      %3302 = vmatpush2.msra.mxu0 0.0
      %3303 = vmatprep.subr.mxu0 0.0
      %3304 = vmatpush2.msra.mxu0 0.0
      %3305 = vmatprep.subr.mxu0 0.0
      %3306 = vmatpush2.msra.mxu0 0.0
      %3307 = vmatprep.mubr.f32.mxu0 0.0
      %3308 = vmatmul.mubr.f32.gmra.mxu0 %v3241
      %v3309 = vpop.f32.mrf.mxu0
      %v3310 = vadd.f32 0.0, %v3309
      %v3311 = vpop.f32.mrf.mxu0
      %3312 = vdwg.mxu0
      %v3314 = vsel %vm833, %v3165, 0
      %3316 = vmatprep.subr.mxu0 0.0
      %3317 = vmatpush1.msra.mxu0 0.0
      %3318 = vmatprep.subr.mxu0 0.0
      %3319 = vmatpush1.msra.mxu0 0.0
      %3320 = vmatprep.subr.mxu0 0.0
      %3321 = vmatpush1.msra.mxu0 0.0
      %3322 = vmatprep.subr.mxu0 0.0
      %3323 = vmatpush1.msra.mxu0 0.0
      %3324 = vmatprep.subr.mxu0 0.0
      %3325 = vmatpush1.msra.mxu0 0.0
      %3326 = vmatprep.subr.mxu0 0.0
      %3327 = vmatpush1.msra.mxu0 0.0
      %3328 = vmatprep.subr.mxu0 0.0
      %3329 = vmatpush1.msra.mxu0 0.0
      %3330 = vmatprep.subr.mxu0 0.0
      %3331 = vmatpush1.msra.mxu0 0.0
      %3332 = vmatprep.subr.mxu0 0.0
      %3333 = vmatpush1.msra.mxu0 0.0
      %3334 = vmatprep.subr.mxu0 0.0
      %3335 = vmatpush1.msra.mxu0 0.0
      %3336 = vmatprep.subr.mxu0 0.0
      %3337 = vmatpush1.msra.mxu0 0.0
      %3338 = vmatprep.subr.mxu0 0.0
      %3339 = vmatpush1.msra.mxu0 0.0
      %3340 = vmatprep.subr.mxu0 0.0
      %3341 = vmatpush1.msra.mxu0 0.0
      %3342 = vmatprep.subr.mxu0 0.0
      %3343 = vmatpush1.msra.mxu0 0.0
      %3344 = vmatprep.subr.mxu0 0.0
      %3345 = vmatpush1.msra.mxu0 0.0
      %3346 = vmatprep.subr.mxu0 0.0
      %3347 = vmatpush1.msra.mxu0 %v3161
      %3348 = vmatprep.subr.mxu0 0.0
      %3349 = vmatpush2.msra.mxu0 0.0
      %3350 = vmatprep.subr.mxu0 0.0
      %3351 = vmatpush2.msra.mxu0 0.0
      %3352 = vmatprep.subr.mxu0 0.0
      %3353 = vmatpush2.msra.mxu0 0.0
      %3354 = vmatprep.subr.mxu0 0.0
      %3355 = vmatpush2.msra.mxu0 0.0
      %3356 = vmatprep.subr.mxu0 0.0
      %3357 = vmatpush2.msra.mxu0 0.0
      %3358 = vmatprep.subr.mxu0 0.0
      %3359 = vmatpush2.msra.mxu0 0.0
      %3360 = vmatprep.subr.mxu0 0.0
      %3361 = vmatpush2.msra.mxu0 0.0
      %3362 = vmatprep.subr.mxu0 0.0
      %3363 = vmatpush2.msra.mxu0 0.0
      %3364 = vmatprep.subr.mxu0 0.0
      %3365 = vmatpush2.msra.mxu0 0.0
      %3366 = vmatprep.subr.mxu0 0.0
      %3367 = vmatpush2.msra.mxu0 0.0
      %3368 = vmatprep.subr.mxu0 0.0
      %3369 = vmatpush2.msra.mxu0 0.0
      %3370 = vmatprep.subr.mxu0 0.0
      %3371 = vmatpush2.msra.mxu0 0.0
      %3372 = vmatprep.subr.mxu0 0.0
      %3373 = vmatpush2.msra.mxu0 0.0
      %3374 = vmatprep.subr.mxu0 0.0
      %3375 = vmatpush2.msra.mxu0 0.0
      %3376 = vmatprep.subr.mxu0 0.0
      %3377 = vmatpush2.msra.mxu0 0.0
      %3378 = vmatprep.subr.mxu0 0.0
      %3379 = vmatpush2.msra.mxu0 0.0
      %3380 = vmatprep.mubr.f32.mxu0 0.0
      %3381 = vmatmul.mubr.f32.gmra.mxu0 %v3314
      %v3382 = vpop.f32.mrf.mxu0
      %v3383 = vadd.f32 0.0, %v3382
      %v3384 = vpop.f32.mrf.mxu0
      %3385 = vdwg.mxu0
      %v3387 = vsel %vm833, %v3166, 0
      %3389 = vmatprep.subr.mxu0 0.0
      %3390 = vmatpush1.msra.mxu0 0.0
      %3391 = vmatprep.subr.mxu0 0.0
      %3392 = vmatpush1.msra.mxu0 0.0
      %3393 = vmatprep.subr.mxu0 0.0
      %3394 = vmatpush1.msra.mxu0 0.0
      %3395 = vmatprep.subr.mxu0 0.0
      %3396 = vmatpush1.msra.mxu0 0.0
      %3397 = vmatprep.subr.mxu0 0.0
      %3398 = vmatpush1.msra.mxu0 0.0
      %3399 = vmatprep.subr.mxu0 0.0
      %3400 = vmatpush1.msra.mxu0 0.0
      %3401 = vmatprep.subr.mxu0 0.0
      %3402 = vmatpush1.msra.mxu0 0.0
      %3403 = vmatprep.subr.mxu0 0.0
      %3404 = vmatpush1.msra.mxu0 0.0
      %3405 = vmatprep.subr.mxu0 0.0
      %3406 = vmatpush1.msra.mxu0 0.0
      %3407 = vmatprep.subr.mxu0 0.0
      %3408 = vmatpush1.msra.mxu0 0.0
      %3409 = vmatprep.subr.mxu0 0.0
      %3410 = vmatpush1.msra.mxu0 0.0
      %3411 = vmatprep.subr.mxu0 0.0
      %3412 = vmatpush1.msra.mxu0 0.0
      %3413 = vmatprep.subr.mxu0 0.0
      %3414 = vmatpush1.msra.mxu0 0.0
      %3415 = vmatprep.subr.mxu0 0.0
      %3416 = vmatpush1.msra.mxu0 0.0
      %3417 = vmatprep.subr.mxu0 0.0
      %3418 = vmatpush1.msra.mxu0 0.0
      %3419 = vmatprep.subr.mxu0 0.0
      %3420 = vmatpush1.msra.mxu0 %v3162
      %3421 = vmatprep.subr.mxu0 0.0
      %3422 = vmatpush2.msra.mxu0 0.0
      %3423 = vmatprep.subr.mxu0 0.0
      %3424 = vmatpush2.msra.mxu0 0.0
      %3425 = vmatprep.subr.mxu0 0.0
      %3426 = vmatpush2.msra.mxu0 0.0
      %3427 = vmatprep.subr.mxu0 0.0
      %3428 = vmatpush2.msra.mxu0 0.0
      %3429 = vmatprep.subr.mxu0 0.0
      %3430 = vmatpush2.msra.mxu0 0.0
      %3431 = vmatprep.subr.mxu0 0.0
      %3432 = vmatpush2.msra.mxu0 0.0
      %3433 = vmatprep.subr.mxu0 0.0
      %3434 = vmatpush2.msra.mxu0 0.0
      %3435 = vmatprep.subr.mxu0 0.0
      %3436 = vmatpush2.msra.mxu0 0.0
      %3437 = vmatprep.subr.mxu0 0.0
      %3438 = vmatpush2.msra.mxu0 0.0
      %3439 = vmatprep.subr.mxu0 0.0
      %3440 = vmatpush2.msra.mxu0 0.0
      %3441 = vmatprep.subr.mxu0 0.0
      %3442 = vmatpush2.msra.mxu0 0.0
      %3443 = vmatprep.subr.mxu0 0.0
      %3444 = vmatpush2.msra.mxu0 0.0
      %3445 = vmatprep.subr.mxu0 0.0
      %3446 = vmatpush2.msra.mxu0 0.0
      %3447 = vmatprep.subr.mxu0 0.0
      %3448 = vmatpush2.msra.mxu0 0.0
      %3449 = vmatprep.subr.mxu0 0.0
      %3450 = vmatpush2.msra.mxu0 0.0
      %3451 = vmatprep.subr.mxu0 0.0
      %3452 = vmatpush2.msra.mxu0 0.0
      %3453 = vmatprep.mubr.f32.mxu0 0.0
      %3454 = vmatmul.mubr.f32.gmra.mxu0 %v3387
      %v3455 = vpop.f32.mrf.mxu0
      %v3456 = vadd.f32 0.0, %v3455
      %v3457 = vpop.f32.mrf.mxu0
      %3458 = vdwg.mxu0
      %3459 = vmatprep.subr.mxu0 0.0
      %3460 = vmatpush1.msra.mxu0 0.0
      %3461 = vmatprep.subr.mxu0 0.0
      %3462 = vmatpush1.msra.mxu0 0.0
      %3463 = vmatprep.subr.mxu0 0.0
      %3464 = vmatpush1.msra.mxu0 0.0
      %3465 = vmatprep.subr.mxu0 0.0
      %3466 = vmatpush1.msra.mxu0 0.0
      %3467 = vmatprep.subr.mxu0 0.0
      %3468 = vmatpush1.msra.mxu0 0.0
      %3469 = vmatprep.subr.mxu0 0.0
      %3470 = vmatpush1.msra.mxu0 0.0
      %3471 = vmatprep.subr.mxu0 0.0
      %3472 = vmatpush1.msra.mxu0 0.0
      %3473 = vmatprep.subr.mxu0 0.0
      %3474 = vmatpush1.msra.mxu0 0.0
      %3475 = vmatprep.subr.mxu0 0.0
      %3476 = vmatpush1.msra.mxu0 0.0
      %3477 = vmatprep.subr.mxu0 0.0
      %3478 = vmatpush1.msra.mxu0 0.0
      %3479 = vmatprep.subr.mxu0 0.0
      %3480 = vmatpush1.msra.mxu0 0.0
      %3481 = vmatprep.subr.mxu0 0.0
      %3482 = vmatpush1.msra.mxu0 0.0
      %3483 = vmatprep.subr.mxu0 0.0
      %3484 = vmatpush1.msra.mxu0 0.0
      %3485 = vmatprep.subr.mxu0 0.0
      %3486 = vmatpush1.msra.mxu0 0.0
      %3487 = vmatprep.subr.mxu0 0.0
      %3488 = vmatpush1.msra.mxu0 0.0
      %3489 = vmatprep.subr.mxu0 0.0
      %3490 = vmatpush1.msra.mxu0 %v3237
      %3491 = vmatprep.subr.mxu0 0.0
      %3492 = vmatpush2.msra.mxu0 0.0
      %3493 = vmatprep.subr.mxu0 0.0
      %3494 = vmatpush2.msra.mxu0 0.0
      %3495 = vmatprep.subr.mxu0 0.0
      %3496 = vmatpush2.msra.mxu0 0.0
      %3497 = vmatprep.subr.mxu0 0.0
      %3498 = vmatpush2.msra.mxu0 0.0
      %3499 = vmatprep.subr.mxu0 0.0
      %3500 = vmatpush2.msra.mxu0 0.0
      %3501 = vmatprep.subr.mxu0 0.0
      %3502 = vmatpush2.msra.mxu0 0.0
      %3503 = vmatprep.subr.mxu0 0.0
      %3504 = vmatpush2.msra.mxu0 0.0
      %3505 = vmatprep.subr.mxu0 0.0
      %3506 = vmatpush2.msra.mxu0 0.0
      %3507 = vmatprep.subr.mxu0 0.0
      %3508 = vmatpush2.msra.mxu0 0.0
      %3509 = vmatprep.subr.mxu0 0.0
      %3510 = vmatpush2.msra.mxu0 0.0
      %3511 = vmatprep.subr.mxu0 0.0
      %3512 = vmatpush2.msra.mxu0 0.0
      %3513 = vmatprep.subr.mxu0 0.0
      %3514 = vmatpush2.msra.mxu0 0.0
      %3515 = vmatprep.subr.mxu0 0.0
      %3516 = vmatpush2.msra.mxu0 0.0
      %3517 = vmatprep.subr.mxu0 0.0
      %3518 = vmatpush2.msra.mxu0 0.0
      %3519 = vmatprep.subr.mxu0 0.0
      %3520 = vmatpush2.msra.mxu0 0.0
      %3521 = vmatprep.subr.mxu0 0.0
      %3522 = vmatpush2.msra.mxu0 0.0
      %3523 = vmatprep.mubr.f32.mxu0 0.0
      %3524 = vmatmul.mubr.f32.gmra.mxu0 %v2285
      %v3525 = vpop.f32.mrf.mxu0
      %v3526 = vadd.f32 0.0, %v3525
      %v3527 = vpop.f32.mrf.mxu0
      %3528 = vdwg.mxu0
      %3529 = vmatprep.subr.mxu0 0.0
      %3530 = vmatpush1.msra.mxu0 0.0
      %3531 = vmatprep.subr.mxu0 0.0
      %3532 = vmatpush1.msra.mxu0 0.0
      %3533 = vmatprep.subr.mxu0 0.0
      %3534 = vmatpush1.msra.mxu0 0.0
      %3535 = vmatprep.subr.mxu0 0.0
      %3536 = vmatpush1.msra.mxu0 0.0
      %3537 = vmatprep.subr.mxu0 0.0
      %3538 = vmatpush1.msra.mxu0 0.0
      %3539 = vmatprep.subr.mxu0 0.0
      %3540 = vmatpush1.msra.mxu0 0.0
      %3541 = vmatprep.subr.mxu0 0.0
      %3542 = vmatpush1.msra.mxu0 0.0
      %3543 = vmatprep.subr.mxu0 0.0
      %3544 = vmatpush1.msra.mxu0 0.0
      %3545 = vmatprep.subr.mxu0 0.0
      %3546 = vmatpush1.msra.mxu0 0.0
      %3547 = vmatprep.subr.mxu0 0.0
      %3548 = vmatpush1.msra.mxu0 0.0
      %3549 = vmatprep.subr.mxu0 0.0
      %3550 = vmatpush1.msra.mxu0 0.0
      %3551 = vmatprep.subr.mxu0 0.0
      %3552 = vmatpush1.msra.mxu0 0.0
      %3553 = vmatprep.subr.mxu0 0.0
      %3554 = vmatpush1.msra.mxu0 0.0
      %3555 = vmatprep.subr.mxu0 0.0
      %3556 = vmatpush1.msra.mxu0 0.0
      %3557 = vmatprep.subr.mxu0 0.0
      %3558 = vmatpush1.msra.mxu0 0.0
      %3559 = vmatprep.subr.mxu0 0.0
      %3560 = vmatpush1.msra.mxu0 %v3310
      %3561 = vmatprep.subr.mxu0 0.0
      %3562 = vmatpush2.msra.mxu0 0.0
      %3563 = vmatprep.subr.mxu0 0.0
      %3564 = vmatpush2.msra.mxu0 0.0
      %3565 = vmatprep.subr.mxu0 0.0
      %3566 = vmatpush2.msra.mxu0 0.0
      %3567 = vmatprep.subr.mxu0 0.0
      %3568 = vmatpush2.msra.mxu0 0.0
      %3569 = vmatprep.subr.mxu0 0.0
      %3570 = vmatpush2.msra.mxu0 0.0
      %3571 = vmatprep.subr.mxu0 0.0
      %3572 = vmatpush2.msra.mxu0 0.0
      %3573 = vmatprep.subr.mxu0 0.0
      %3574 = vmatpush2.msra.mxu0 0.0
      %3575 = vmatprep.subr.mxu0 0.0
      %3576 = vmatpush2.msra.mxu0 0.0
      %3577 = vmatprep.subr.mxu0 0.0
      %3578 = vmatpush2.msra.mxu0 0.0
      %3579 = vmatprep.subr.mxu0 0.0
      %3580 = vmatpush2.msra.mxu0 0.0
      %3581 = vmatprep.subr.mxu0 0.0
      %3582 = vmatpush2.msra.mxu0 0.0
      %3583 = vmatprep.subr.mxu0 0.0
      %3584 = vmatpush2.msra.mxu0 0.0
      %3585 = vmatprep.subr.mxu0 0.0
      %3586 = vmatpush2.msra.mxu0 0.0
      %3587 = vmatprep.subr.mxu0 0.0
      %3588 = vmatpush2.msra.mxu0 0.0
      %3589 = vmatprep.subr.mxu0 0.0
      %3590 = vmatpush2.msra.mxu0 0.0
      %3591 = vmatprep.subr.mxu0 0.0
      %3592 = vmatpush2.msra.mxu0 0.0
      %3593 = vmatprep.mubr.f32.mxu0 0.0
      %3594 = vmatmul.mubr.f32.gmra.mxu0 %v2358
      %v3595 = vpop.f32.mrf.mxu0
      %v3596 = vadd.f32 0.0, %v3595
      %v3597 = vpop.f32.mrf.mxu0
      %3598 = vdwg.mxu0
      %3599 = vmatprep.subr.mxu0 0.0
      %3600 = vmatpush1.msra.mxu0 0.0
      %3601 = vmatprep.subr.mxu0 0.0
      %3602 = vmatpush1.msra.mxu0 0.0
      %3603 = vmatprep.subr.mxu0 0.0
      %3604 = vmatpush1.msra.mxu0 0.0
      %3605 = vmatprep.subr.mxu0 0.0
      %3606 = vmatpush1.msra.mxu0 0.0
      %3607 = vmatprep.subr.mxu0 0.0
      %3608 = vmatpush1.msra.mxu0 0.0
      %3609 = vmatprep.subr.mxu0 0.0
      %3610 = vmatpush1.msra.mxu0 0.0
      %3611 = vmatprep.subr.mxu0 0.0
      %3612 = vmatpush1.msra.mxu0 0.0
      %3613 = vmatprep.subr.mxu0 0.0
      %3614 = vmatpush1.msra.mxu0 0.0
      %3615 = vmatprep.subr.mxu0 0.0
      %3616 = vmatpush1.msra.mxu0 0.0
      %3617 = vmatprep.subr.mxu0 0.0
      %3618 = vmatpush1.msra.mxu0 0.0
      %3619 = vmatprep.subr.mxu0 0.0
      %3620 = vmatpush1.msra.mxu0 0.0
      %3621 = vmatprep.subr.mxu0 0.0
      %3622 = vmatpush1.msra.mxu0 0.0
      %3623 = vmatprep.subr.mxu0 0.0
      %3624 = vmatpush1.msra.mxu0 0.0
      %3625 = vmatprep.subr.mxu0 0.0
      %3626 = vmatpush1.msra.mxu0 0.0
      %3627 = vmatprep.subr.mxu0 0.0
      %3628 = vmatpush1.msra.mxu0 0.0
      %3629 = vmatprep.subr.mxu0 0.0
      %3630 = vmatpush1.msra.mxu0 %v3383
      %3631 = vmatprep.subr.mxu0 0.0
      %3632 = vmatpush2.msra.mxu0 0.0
      %3633 = vmatprep.subr.mxu0 0.0
      %3634 = vmatpush2.msra.mxu0 0.0
      %3635 = vmatprep.subr.mxu0 0.0
      %3636 = vmatpush2.msra.mxu0 0.0
      %3637 = vmatprep.subr.mxu0 0.0
      %3638 = vmatpush2.msra.mxu0 0.0
      %3639 = vmatprep.subr.mxu0 0.0
      %3640 = vmatpush2.msra.mxu0 0.0
      %3641 = vmatprep.subr.mxu0 0.0
      %3642 = vmatpush2.msra.mxu0 0.0
      %3643 = vmatprep.subr.mxu0 0.0
      %3644 = vmatpush2.msra.mxu0 0.0
      %3645 = vmatprep.subr.mxu0 0.0
      %3646 = vmatpush2.msra.mxu0 0.0
      %3647 = vmatprep.subr.mxu0 0.0
      %3648 = vmatpush2.msra.mxu0 0.0
      %3649 = vmatprep.subr.mxu0 0.0
      %3650 = vmatpush2.msra.mxu0 0.0
      %3651 = vmatprep.subr.mxu0 0.0
      %3652 = vmatpush2.msra.mxu0 0.0
      %3653 = vmatprep.subr.mxu0 0.0
      %3654 = vmatpush2.msra.mxu0 0.0
      %3655 = vmatprep.subr.mxu0 0.0
      %3656 = vmatpush2.msra.mxu0 0.0
      %3657 = vmatprep.subr.mxu0 0.0
      %3658 = vmatpush2.msra.mxu0 0.0
      %3659 = vmatprep.subr.mxu0 0.0
      %3660 = vmatpush2.msra.mxu0 0.0
      %3661 = vmatprep.subr.mxu0 0.0
      %3662 = vmatpush2.msra.mxu0 0.0
      %3663 = vmatprep.mubr.f32.mxu0 0.0
      %3664 = vmatmul.mubr.f32.gmra.mxu0 %v2431
      %v3665 = vpop.f32.mrf.mxu0
      %v3666 = vadd.f32 0.0, %v3665
      %v3667 = vpop.f32.mrf.mxu0
      %3668 = vdwg.mxu0
      %3669 = vmatprep.subr.mxu0 0.0
      %3670 = vmatpush1.msra.mxu0 0.0
      %3671 = vmatprep.subr.mxu0 0.0
      %3672 = vmatpush1.msra.mxu0 0.0
      %3673 = vmatprep.subr.mxu0 0.0
      %3674 = vmatpush1.msra.mxu0 0.0
      %3675 = vmatprep.subr.mxu0 0.0
      %3676 = vmatpush1.msra.mxu0 0.0
      %3677 = vmatprep.subr.mxu0 0.0
      %3678 = vmatpush1.msra.mxu0 0.0
      %3679 = vmatprep.subr.mxu0 0.0
      %3680 = vmatpush1.msra.mxu0 0.0
      %3681 = vmatprep.subr.mxu0 0.0
      %3682 = vmatpush1.msra.mxu0 0.0
      %3683 = vmatprep.subr.mxu0 0.0
      %3684 = vmatpush1.msra.mxu0 0.0
      %3685 = vmatprep.subr.mxu0 0.0
      %3686 = vmatpush1.msra.mxu0 0.0
      %3687 = vmatprep.subr.mxu0 0.0
      %3688 = vmatpush1.msra.mxu0 0.0
      %3689 = vmatprep.subr.mxu0 0.0
      %3690 = vmatpush1.msra.mxu0 0.0
      %3691 = vmatprep.subr.mxu0 0.0
      %3692 = vmatpush1.msra.mxu0 0.0
      %3693 = vmatprep.subr.mxu0 0.0
      %3694 = vmatpush1.msra.mxu0 0.0
      %3695 = vmatprep.subr.mxu0 0.0
      %3696 = vmatpush1.msra.mxu0 0.0
      %3697 = vmatprep.subr.mxu0 0.0
      %3698 = vmatpush1.msra.mxu0 0.0
      %3699 = vmatprep.subr.mxu0 0.0
      %3700 = vmatpush1.msra.mxu0 %v3456
      %3701 = vmatprep.subr.mxu0 0.0
      %3702 = vmatpush2.msra.mxu0 0.0
      %3703 = vmatprep.subr.mxu0 0.0
      %3704 = vmatpush2.msra.mxu0 0.0
      %3705 = vmatprep.subr.mxu0 0.0
      %3706 = vmatpush2.msra.mxu0 0.0
      %3707 = vmatprep.subr.mxu0 0.0
      %3708 = vmatpush2.msra.mxu0 0.0
      %3709 = vmatprep.subr.mxu0 0.0
      %3710 = vmatpush2.msra.mxu0 0.0
      %3711 = vmatprep.subr.mxu0 0.0
      %3712 = vmatpush2.msra.mxu0 0.0
      %3713 = vmatprep.subr.mxu0 0.0
      %3714 = vmatpush2.msra.mxu0 0.0
      %3715 = vmatprep.subr.mxu0 0.0
      %3716 = vmatpush2.msra.mxu0 0.0
      %3717 = vmatprep.subr.mxu0 0.0
      %3718 = vmatpush2.msra.mxu0 0.0
      %3719 = vmatprep.subr.mxu0 0.0
      %3720 = vmatpush2.msra.mxu0 0.0
      %3721 = vmatprep.subr.mxu0 0.0
      %3722 = vmatpush2.msra.mxu0 0.0
      %3723 = vmatprep.subr.mxu0 0.0
      %3724 = vmatpush2.msra.mxu0 0.0
      %3725 = vmatprep.subr.mxu0 0.0
      %3726 = vmatpush2.msra.mxu0 0.0
      %3727 = vmatprep.subr.mxu0 0.0
      %3728 = vmatpush2.msra.mxu0 0.0
      %3729 = vmatprep.subr.mxu0 0.0
      %3730 = vmatpush2.msra.mxu0 0.0
      %3731 = vmatprep.subr.mxu0 0.0
      %3732 = vmatpush2.msra.mxu0 0.0
      %3733 = vmatprep.mubr.f32.mxu0 0.0
      %3734 = vmatmul.mubr.f32.gmra.mxu0 %v2504
      %v3735 = vpop.f32.mrf.mxu0
      %v3736 = vadd.f32 0.0, %v3735
      %v3737 = vpop.f32.mrf.mxu0
      %3738 = vdwg.mxu0
      %v3739 = vsub.f32 %v2576, %v3526
      %v3740 = vsub.f32 %v2576, %v3596
      %v3741 = vsub.f32 %v2576, %v3666
      %v3742 = vsub.f32 %v2576, %v3736
      %v3744 = vsel %vm833, %v3526, 0
      %3746 = vmatprep.subr.mxu0 0.0
      %3747 = vmatpush1.msra.mxu0 0.0
      %3748 = vmatprep.subr.mxu0 0.0
      %3749 = vmatpush1.msra.mxu0 0.0
      %3750 = vmatprep.subr.mxu0 0.0
      %3751 = vmatpush1.msra.mxu0 0.0
      %3752 = vmatprep.subr.mxu0 0.0
      %3753 = vmatpush1.msra.mxu0 0.0
      %3754 = vmatprep.subr.mxu0 0.0
      %3755 = vmatpush1.msra.mxu0 0.0
      %3756 = vmatprep.subr.mxu0 0.0
      %3757 = vmatpush1.msra.mxu0 0.0
      %3758 = vmatprep.subr.mxu0 0.0
      %3759 = vmatpush1.msra.mxu0 0.0
      %3760 = vmatprep.subr.mxu0 0.0
      %3761 = vmatpush1.msra.mxu0 0.0
      %3762 = vmatprep.subr.mxu0 0.0
      %3763 = vmatpush1.msra.mxu0 0.0
      %3764 = vmatprep.subr.mxu0 0.0
      %3765 = vmatpush1.msra.mxu0 0.0
      %3766 = vmatprep.subr.mxu0 0.0
      %3767 = vmatpush1.msra.mxu0 0.0
      %3768 = vmatprep.subr.mxu0 0.0
      %3769 = vmatpush1.msra.mxu0 0.0
      %3770 = vmatprep.subr.mxu0 0.0
      %3771 = vmatpush1.msra.mxu0 0.0
      %3772 = vmatprep.subr.mxu0 0.0
      %3773 = vmatpush1.msra.mxu0 0.0
      %3774 = vmatprep.subr.mxu0 0.0
      %3775 = vmatpush1.msra.mxu0 0.0
      %3776 = vmatprep.subr.mxu0 0.0
      %3777 = vmatpush1.msra.mxu0 %v3739
      %3778 = vmatprep.subr.mxu0 0.0
      %3779 = vmatpush2.msra.mxu0 0.0
      %3780 = vmatprep.subr.mxu0 0.0
      %3781 = vmatpush2.msra.mxu0 0.0
      %3782 = vmatprep.subr.mxu0 0.0
      %3783 = vmatpush2.msra.mxu0 0.0
      %3784 = vmatprep.subr.mxu0 0.0
      %3785 = vmatpush2.msra.mxu0 0.0
      %3786 = vmatprep.subr.mxu0 0.0
      %3787 = vmatpush2.msra.mxu0 0.0
      %3788 = vmatprep.subr.mxu0 0.0
      %3789 = vmatpush2.msra.mxu0 0.0
      %3790 = vmatprep.subr.mxu0 0.0
      %3791 = vmatpush2.msra.mxu0 0.0
      %3792 = vmatprep.subr.mxu0 0.0
      %3793 = vmatpush2.msra.mxu0 0.0
      %3794 = vmatprep.subr.mxu0 0.0
      %3795 = vmatpush2.msra.mxu0 0.0
      %3796 = vmatprep.subr.mxu0 0.0
      %3797 = vmatpush2.msra.mxu0 0.0
      %3798 = vmatprep.subr.mxu0 0.0
      %3799 = vmatpush2.msra.mxu0 0.0
      %3800 = vmatprep.subr.mxu0 0.0
      %3801 = vmatpush2.msra.mxu0 0.0
      %3802 = vmatprep.subr.mxu0 0.0
      %3803 = vmatpush2.msra.mxu0 0.0
      %3804 = vmatprep.subr.mxu0 0.0
      %3805 = vmatpush2.msra.mxu0 0.0
      %3806 = vmatprep.subr.mxu0 0.0
      %3807 = vmatpush2.msra.mxu0 0.0
      %3808 = vmatprep.subr.mxu0 0.0
      %3809 = vmatpush2.msra.mxu0 0.0
      %3810 = vmatprep.mubr.f32.mxu0 0.0
      %3811 = vmatmul.mubr.f32.gmra.mxu0 %v3744
      %v3812 = vpop.f32.mrf.mxu0
      %v3813 = vadd.f32 0.0, %v3812
      %v3814 = vpop.f32.mrf.mxu0
      %3815 = vdwg.mxu0
      %v3817 = vsel %vm833, %v3596, 0
      %3819 = vmatprep.subr.mxu0 0.0
      %3820 = vmatpush1.msra.mxu0 0.0
      %3821 = vmatprep.subr.mxu0 0.0
      %3822 = vmatpush1.msra.mxu0 0.0
      %3823 = vmatprep.subr.mxu0 0.0
      %3824 = vmatpush1.msra.mxu0 0.0
      %3825 = vmatprep.subr.mxu0 0.0
      %3826 = vmatpush1.msra.mxu0 0.0
      %3827 = vmatprep.subr.mxu0 0.0
      %3828 = vmatpush1.msra.mxu0 0.0
      %3829 = vmatprep.subr.mxu0 0.0
      %3830 = vmatpush1.msra.mxu0 0.0
      %3831 = vmatprep.subr.mxu0 0.0
      %3832 = vmatpush1.msra.mxu0 0.0
      %3833 = vmatprep.subr.mxu0 0.0
      %3834 = vmatpush1.msra.mxu0 0.0
      %3835 = vmatprep.subr.mxu0 0.0
      %3836 = vmatpush1.msra.mxu0 0.0
      %3837 = vmatprep.subr.mxu0 0.0
      %3838 = vmatpush1.msra.mxu0 0.0
      %3839 = vmatprep.subr.mxu0 0.0
      %3840 = vmatpush1.msra.mxu0 0.0
      %3841 = vmatprep.subr.mxu0 0.0
      %3842 = vmatpush1.msra.mxu0 0.0
      %3843 = vmatprep.subr.mxu0 0.0
      %3844 = vmatpush1.msra.mxu0 0.0
      %3845 = vmatprep.subr.mxu0 0.0
      %3846 = vmatpush1.msra.mxu0 0.0
      %3847 = vmatprep.subr.mxu0 0.0
      %3848 = vmatpush1.msra.mxu0 0.0
      %3849 = vmatprep.subr.mxu0 0.0
      %3850 = vmatpush1.msra.mxu0 %v3740
      %3851 = vmatprep.subr.mxu0 0.0
      %3852 = vmatpush2.msra.mxu0 0.0
      %3853 = vmatprep.subr.mxu0 0.0
      %3854 = vmatpush2.msra.mxu0 0.0
      %3855 = vmatprep.subr.mxu0 0.0
      %3856 = vmatpush2.msra.mxu0 0.0
      %3857 = vmatprep.subr.mxu0 0.0
      %3858 = vmatpush2.msra.mxu0 0.0
      %3859 = vmatprep.subr.mxu0 0.0
      %3860 = vmatpush2.msra.mxu0 0.0
      %3861 = vmatprep.subr.mxu0 0.0
      %3862 = vmatpush2.msra.mxu0 0.0
      %3863 = vmatprep.subr.mxu0 0.0
      %3864 = vmatpush2.msra.mxu0 0.0
      %3865 = vmatprep.subr.mxu0 0.0
      %3866 = vmatpush2.msra.mxu0 0.0
      %3867 = vmatprep.subr.mxu0 0.0
      %3868 = vmatpush2.msra.mxu0 0.0
      %3869 = vmatprep.subr.mxu0 0.0
      %3870 = vmatpush2.msra.mxu0 0.0
      %3871 = vmatprep.subr.mxu0 0.0
      %3872 = vmatpush2.msra.mxu0 0.0
      %3873 = vmatprep.subr.mxu0 0.0
      %3874 = vmatpush2.msra.mxu0 0.0
      %3875 = vmatprep.subr.mxu0 0.0
      %3876 = vmatpush2.msra.mxu0 0.0
      %3877 = vmatprep.subr.mxu0 0.0
      %3878 = vmatpush2.msra.mxu0 0.0
      %3879 = vmatprep.subr.mxu0 0.0
      %3880 = vmatpush2.msra.mxu0 0.0
      %3881 = vmatprep.subr.mxu0 0.0
      %3882 = vmatpush2.msra.mxu0 0.0
      %3883 = vmatprep.mubr.f32.mxu0 0.0
      %3884 = vmatmul.mubr.f32.gmra.mxu0 %v3817
      %v3885 = vpop.f32.mrf.mxu0
      %v3886 = vadd.f32 0.0, %v3885
      %v3887 = vpop.f32.mrf.mxu0
      %3888 = vdwg.mxu0
      %v3890 = vsel %vm833, %v3666, 0
      %3892 = vmatprep.subr.mxu0 0.0
      %3893 = vmatpush1.msra.mxu0 0.0
      %3894 = vmatprep.subr.mxu0 0.0
      %3895 = vmatpush1.msra.mxu0 0.0
      %3896 = vmatprep.subr.mxu0 0.0
      %3897 = vmatpush1.msra.mxu0 0.0
      %3898 = vmatprep.subr.mxu0 0.0
      %3899 = vmatpush1.msra.mxu0 0.0
      %3900 = vmatprep.subr.mxu0 0.0
      %3901 = vmatpush1.msra.mxu0 0.0
      %3902 = vmatprep.subr.mxu0 0.0
      %3903 = vmatpush1.msra.mxu0 0.0
      %3904 = vmatprep.subr.mxu0 0.0
      %3905 = vmatpush1.msra.mxu0 0.0
      %3906 = vmatprep.subr.mxu0 0.0
      %3907 = vmatpush1.msra.mxu0 0.0
      %3908 = vmatprep.subr.mxu0 0.0
      %3909 = vmatpush1.msra.mxu0 0.0
      %3910 = vmatprep.subr.mxu0 0.0
      %3911 = vmatpush1.msra.mxu0 0.0
      %3912 = vmatprep.subr.mxu0 0.0
      %3913 = vmatpush1.msra.mxu0 0.0
      %3914 = vmatprep.subr.mxu0 0.0
      %3915 = vmatpush1.msra.mxu0 0.0
      %3916 = vmatprep.subr.mxu0 0.0
      %3917 = vmatpush1.msra.mxu0 0.0
      %3918 = vmatprep.subr.mxu0 0.0
      %3919 = vmatpush1.msra.mxu0 0.0
      %3920 = vmatprep.subr.mxu0 0.0
      %3921 = vmatpush1.msra.mxu0 0.0
      %3922 = vmatprep.subr.mxu0 0.0
      %3923 = vmatpush1.msra.mxu0 %v3741
      %3924 = vmatprep.subr.mxu0 0.0
      %3925 = vmatpush2.msra.mxu0 0.0
      %3926 = vmatprep.subr.mxu0 0.0
      %3927 = vmatpush2.msra.mxu0 0.0
      %3928 = vmatprep.subr.mxu0 0.0
      %3929 = vmatpush2.msra.mxu0 0.0
      %3930 = vmatprep.subr.mxu0 0.0
      %3931 = vmatpush2.msra.mxu0 0.0
      %3932 = vmatprep.subr.mxu0 0.0
      %3933 = vmatpush2.msra.mxu0 0.0
      %3934 = vmatprep.subr.mxu0 0.0
      %3935 = vmatpush2.msra.mxu0 0.0
      %3936 = vmatprep.subr.mxu0 0.0
      %3937 = vmatpush2.msra.mxu0 0.0
      %3938 = vmatprep.subr.mxu0 0.0
      %3939 = vmatpush2.msra.mxu0 0.0
      %3940 = vmatprep.subr.mxu0 0.0
      %3941 = vmatpush2.msra.mxu0 0.0
      %3942 = vmatprep.subr.mxu0 0.0
      %3943 = vmatpush2.msra.mxu0 0.0
      %3944 = vmatprep.subr.mxu0 0.0
      %3945 = vmatpush2.msra.mxu0 0.0
      %3946 = vmatprep.subr.mxu0 0.0
      %3947 = vmatpush2.msra.mxu0 0.0
      %3948 = vmatprep.subr.mxu0 0.0
      %3949 = vmatpush2.msra.mxu0 0.0
      %3950 = vmatprep.subr.mxu0 0.0
      %3951 = vmatpush2.msra.mxu0 0.0
      %3952 = vmatprep.subr.mxu0 0.0
      %3953 = vmatpush2.msra.mxu0 0.0
      %3954 = vmatprep.subr.mxu0 0.0
      %3955 = vmatpush2.msra.mxu0 0.0
      %3956 = vmatprep.mubr.f32.mxu0 0.0
      %3957 = vmatmul.mubr.f32.gmra.mxu0 %v3890
      %v3958 = vpop.f32.mrf.mxu0
      %v3959 = vadd.f32 0.0, %v3958
      %v3960 = vpop.f32.mrf.mxu0
      %3961 = vdwg.mxu0
      %v3963 = vsel %vm833, %v3736, 0
      %3965 = vmatprep.subr.mxu0 0.0
      %3966 = vmatpush1.msra.mxu0 0.0
      %3967 = vmatprep.subr.mxu0 0.0
      %3968 = vmatpush1.msra.mxu0 0.0
      %3969 = vmatprep.subr.mxu0 0.0
      %3970 = vmatpush1.msra.mxu0 0.0
      %3971 = vmatprep.subr.mxu0 0.0
      %3972 = vmatpush1.msra.mxu0 0.0
      %3973 = vmatprep.subr.mxu0 0.0
      %3974 = vmatpush1.msra.mxu0 0.0
      %3975 = vmatprep.subr.mxu0 0.0
      %3976 = vmatpush1.msra.mxu0 0.0
      %3977 = vmatprep.subr.mxu0 0.0
      %3978 = vmatpush1.msra.mxu0 0.0
      %3979 = vmatprep.subr.mxu0 0.0
      %3980 = vmatpush1.msra.mxu0 0.0
      %3981 = vmatprep.subr.mxu0 0.0
      %3982 = vmatpush1.msra.mxu0 0.0
      %3983 = vmatprep.subr.mxu0 0.0
      %3984 = vmatpush1.msra.mxu0 0.0
      %3985 = vmatprep.subr.mxu0 0.0
      %3986 = vmatpush1.msra.mxu0 0.0
      %3987 = vmatprep.subr.mxu0 0.0
      %3988 = vmatpush1.msra.mxu0 0.0
      %3989 = vmatprep.subr.mxu0 0.0
      %3990 = vmatpush1.msra.mxu0 0.0
      %3991 = vmatprep.subr.mxu0 0.0
      %3992 = vmatpush1.msra.mxu0 0.0
      %3993 = vmatprep.subr.mxu0 0.0
      %3994 = vmatpush1.msra.mxu0 0.0
      %3995 = vmatprep.subr.mxu0 0.0
      %3996 = vmatpush1.msra.mxu0 %v3742
      %3997 = vmatprep.subr.mxu0 0.0
      %3998 = vmatpush2.msra.mxu0 0.0
      %3999 = vmatprep.subr.mxu0 0.0
      %4000 = vmatpush2.msra.mxu0 0.0
      %4001 = vmatprep.subr.mxu0 0.0
      %4002 = vmatpush2.msra.mxu0 0.0
      %4003 = vmatprep.subr.mxu0 0.0
      %4004 = vmatpush2.msra.mxu0 0.0
      %4005 = vmatprep.subr.mxu0 0.0
      %4006 = vmatpush2.msra.mxu0 0.0
      %4007 = vmatprep.subr.mxu0 0.0
      %4008 = vmatpush2.msra.mxu0 0.0
      %4009 = vmatprep.subr.mxu0 0.0
      %4010 = vmatpush2.msra.mxu0 0.0
      %4011 = vmatprep.subr.mxu0 0.0
      %4012 = vmatpush2.msra.mxu0 0.0
      %4013 = vmatprep.subr.mxu0 0.0
      %4014 = vmatpush2.msra.mxu0 0.0
      %4015 = vmatprep.subr.mxu0 0.0
      %4016 = vmatpush2.msra.mxu0 0.0
      %4017 = vmatprep.subr.mxu0 0.0
      %4018 = vmatpush2.msra.mxu0 0.0
      %4019 = vmatprep.subr.mxu0 0.0
      %4020 = vmatpush2.msra.mxu0 0.0
      %4021 = vmatprep.subr.mxu0 0.0
      %4022 = vmatpush2.msra.mxu0 0.0
      %4023 = vmatprep.subr.mxu0 0.0
      %4024 = vmatpush2.msra.mxu0 0.0
      %4025 = vmatprep.subr.mxu0 0.0
      %4026 = vmatpush2.msra.mxu0 0.0
      %4027 = vmatprep.subr.mxu0 0.0
      %4028 = vmatpush2.msra.mxu0 0.0
      %4029 = vmatprep.mubr.f32.mxu0 0.0
      %4030 = vmatmul.mubr.f32.gmra.mxu0 %v3963
      %v4031 = vpop.f32.mrf.mxu0
      %v4032 = vadd.f32 0.0, %v4031
      %v4033 = vpop.f32.mrf.mxu0
      %4034 = vdwg.mxu0
      %v4035 = vsub.f32 %v2581, %v3813
      %v4036 = vsub.f32 %v2581, %v3886
      %v4037 = vsub.f32 %v2581, %v3959
      %v4038 = vsub.f32 %v2581, %v4032
      %4039 = vmatprep.subr.mxu0 0.0
      %4040 = vmatpush1.msra.mxu0 0.0
      %4041 = vmatprep.subr.mxu0 0.0
      %4042 = vmatpush1.msra.mxu0 0.0
      %4043 = vmatprep.subr.mxu0 0.0
      %4044 = vmatpush1.msra.mxu0 0.0
      %4045 = vmatprep.subr.mxu0 0.0
      %4046 = vmatpush1.msra.mxu0 0.0
      %4047 = vmatprep.subr.mxu0 0.0
      %4048 = vmatpush1.msra.mxu0 0.0
      %4049 = vmatprep.subr.mxu0 0.0
      %4050 = vmatpush1.msra.mxu0 0.0
      %4051 = vmatprep.subr.mxu0 0.0
      %4052 = vmatpush1.msra.mxu0 0.0
      %4053 = vmatprep.subr.mxu0 0.0
      %4054 = vmatpush1.msra.mxu0 0.0
      %4055 = vmatprep.subr.mxu0 0.0
      %4056 = vmatpush1.msra.mxu0 0.0
      %4057 = vmatprep.subr.mxu0 0.0
      %4058 = vmatpush1.msra.mxu0 0.0
      %4059 = vmatprep.subr.mxu0 0.0
      %4060 = vmatpush1.msra.mxu0 0.0
      %4061 = vmatprep.subr.mxu0 0.0
      %4062 = vmatpush1.msra.mxu0 0.0
      %4063 = vmatprep.subr.mxu0 0.0
      %4064 = vmatpush1.msra.mxu0 0.0
      %4065 = vmatprep.subr.mxu0 0.0
      %4066 = vmatpush1.msra.mxu0 0.0
      %4067 = vmatprep.subr.mxu0 0.0
      %4068 = vmatpush1.msra.mxu0 0.0
      %4069 = vmatprep.subr.mxu0 0.0
      %4070 = vmatpush1.msra.mxu0 %v4035
      %4071 = vmatprep.subr.mxu0 0.0
      %4072 = vmatpush2.msra.mxu0 0.0
      %4073 = vmatprep.subr.mxu0 0.0
      %4074 = vmatpush2.msra.mxu0 0.0
      %4075 = vmatprep.subr.mxu0 0.0
      %4076 = vmatpush2.msra.mxu0 0.0
      %4077 = vmatprep.subr.mxu0 0.0
      %4078 = vmatpush2.msra.mxu0 0.0
      %4079 = vmatprep.subr.mxu0 0.0
      %4080 = vmatpush2.msra.mxu0 0.0
      %4081 = vmatprep.subr.mxu0 0.0
      %4082 = vmatpush2.msra.mxu0 0.0
      %4083 = vmatprep.subr.mxu0 0.0
      %4084 = vmatpush2.msra.mxu0 0.0
      %4085 = vmatprep.subr.mxu0 0.0
      %4086 = vmatpush2.msra.mxu0 0.0
      %4087 = vmatprep.subr.mxu0 0.0
      %4088 = vmatpush2.msra.mxu0 0.0
      %4089 = vmatprep.subr.mxu0 0.0
      %4090 = vmatpush2.msra.mxu0 0.0
      %4091 = vmatprep.subr.mxu0 0.0
      %4092 = vmatpush2.msra.mxu0 0.0
      %4093 = vmatprep.subr.mxu0 0.0
      %4094 = vmatpush2.msra.mxu0 0.0
      %4095 = vmatprep.subr.mxu0 0.0
      %4096 = vmatpush2.msra.mxu0 0.0
      %4097 = vmatprep.subr.mxu0 0.0
      %4098 = vmatpush2.msra.mxu0 0.0
      %4099 = vmatprep.subr.mxu0 0.0
      %4100 = vmatpush2.msra.mxu0 0.0
      %4101 = vmatprep.subr.mxu0 0.0
      %4102 = vmatpush2.msra.mxu0 0.0
      %4103 = vmatprep.mubr.f32.mxu0 0.0
      %4104 = vmatmul.mubr.f32.gmra.mxu0 %v3744
      %v4105 = vpop.f32.mrf.mxu0
      %v4106 = vadd.f32 0.0, %v4105
      %v4107 = vpop.f32.mrf.mxu0
      %4108 = vdwg.mxu0
      %4109 = vmatprep.subr.mxu0 0.0
      %4110 = vmatpush1.msra.mxu0 0.0
      %4111 = vmatprep.subr.mxu0 0.0
      %4112 = vmatpush1.msra.mxu0 0.0
      %4113 = vmatprep.subr.mxu0 0.0
      %4114 = vmatpush1.msra.mxu0 0.0
      %4115 = vmatprep.subr.mxu0 0.0
      %4116 = vmatpush1.msra.mxu0 0.0
      %4117 = vmatprep.subr.mxu0 0.0
      %4118 = vmatpush1.msra.mxu0 0.0
      %4119 = vmatprep.subr.mxu0 0.0
      %4120 = vmatpush1.msra.mxu0 0.0
      %4121 = vmatprep.subr.mxu0 0.0
      %4122 = vmatpush1.msra.mxu0 0.0
      %4123 = vmatprep.subr.mxu0 0.0
      %4124 = vmatpush1.msra.mxu0 0.0
      %4125 = vmatprep.subr.mxu0 0.0
      %4126 = vmatpush1.msra.mxu0 0.0
      %4127 = vmatprep.subr.mxu0 0.0
      %4128 = vmatpush1.msra.mxu0 0.0
      %4129 = vmatprep.subr.mxu0 0.0
      %4130 = vmatpush1.msra.mxu0 0.0
      %4131 = vmatprep.subr.mxu0 0.0
      %4132 = vmatpush1.msra.mxu0 0.0
      %4133 = vmatprep.subr.mxu0 0.0
      %4134 = vmatpush1.msra.mxu0 0.0
      %4135 = vmatprep.subr.mxu0 0.0
      %4136 = vmatpush1.msra.mxu0 0.0
      %4137 = vmatprep.subr.mxu0 0.0
      %4138 = vmatpush1.msra.mxu0 0.0
      %4139 = vmatprep.subr.mxu0 0.0
      %4140 = vmatpush1.msra.mxu0 %v4036
      %4141 = vmatprep.subr.mxu0 0.0
      %4142 = vmatpush2.msra.mxu0 0.0
      %4143 = vmatprep.subr.mxu0 0.0
      %4144 = vmatpush2.msra.mxu0 0.0
      %4145 = vmatprep.subr.mxu0 0.0
      %4146 = vmatpush2.msra.mxu0 0.0
      %4147 = vmatprep.subr.mxu0 0.0
      %4148 = vmatpush2.msra.mxu0 0.0
      %4149 = vmatprep.subr.mxu0 0.0
      %4150 = vmatpush2.msra.mxu0 0.0
      %4151 = vmatprep.subr.mxu0 0.0
      %4152 = vmatpush2.msra.mxu0 0.0
      %4153 = vmatprep.subr.mxu0 0.0
      %4154 = vmatpush2.msra.mxu0 0.0
      %4155 = vmatprep.subr.mxu0 0.0
      %4156 = vmatpush2.msra.mxu0 0.0
      %4157 = vmatprep.subr.mxu0 0.0
      %4158 = vmatpush2.msra.mxu0 0.0
      %4159 = vmatprep.subr.mxu0 0.0
      %4160 = vmatpush2.msra.mxu0 0.0
      %4161 = vmatprep.subr.mxu0 0.0
      %4162 = vmatpush2.msra.mxu0 0.0
      %4163 = vmatprep.subr.mxu0 0.0
      %4164 = vmatpush2.msra.mxu0 0.0
      %4165 = vmatprep.subr.mxu0 0.0
      %4166 = vmatpush2.msra.mxu0 0.0
      %4167 = vmatprep.subr.mxu0 0.0
      %4168 = vmatpush2.msra.mxu0 0.0
      %4169 = vmatprep.subr.mxu0 0.0
      %4170 = vmatpush2.msra.mxu0 0.0
      %4171 = vmatprep.subr.mxu0 0.0
      %4172 = vmatpush2.msra.mxu0 0.0
      %4173 = vmatprep.mubr.f32.mxu0 0.0
      %4174 = vmatmul.mubr.f32.gmra.mxu0 %v3817
      %v4175 = vpop.f32.mrf.mxu0
      %v4176 = vadd.f32 0.0, %v4175
      %v4177 = vpop.f32.mrf.mxu0
      %4178 = vdwg.mxu0
      %4179 = vmatprep.subr.mxu0 0.0
      %4180 = vmatpush1.msra.mxu0 0.0
      %4181 = vmatprep.subr.mxu0 0.0
      %4182 = vmatpush1.msra.mxu0 0.0
      %4183 = vmatprep.subr.mxu0 0.0
      %4184 = vmatpush1.msra.mxu0 0.0
      %4185 = vmatprep.subr.mxu0 0.0
      %4186 = vmatpush1.msra.mxu0 0.0
      %4187 = vmatprep.subr.mxu0 0.0
      %4188 = vmatpush1.msra.mxu0 0.0
      %4189 = vmatprep.subr.mxu0 0.0
      %4190 = vmatpush1.msra.mxu0 0.0
      %4191 = vmatprep.subr.mxu0 0.0
      %4192 = vmatpush1.msra.mxu0 0.0
      %4193 = vmatprep.subr.mxu0 0.0
      %4194 = vmatpush1.msra.mxu0 0.0
      %4195 = vmatprep.subr.mxu0 0.0
      %4196 = vmatpush1.msra.mxu0 0.0
      %4197 = vmatprep.subr.mxu0 0.0
      %4198 = vmatpush1.msra.mxu0 0.0
      %4199 = vmatprep.subr.mxu0 0.0
      %4200 = vmatpush1.msra.mxu0 0.0
      %4201 = vmatprep.subr.mxu0 0.0
      %4202 = vmatpush1.msra.mxu0 0.0
      %4203 = vmatprep.subr.mxu0 0.0
      %4204 = vmatpush1.msra.mxu0 0.0
      %4205 = vmatprep.subr.mxu0 0.0
      %4206 = vmatpush1.msra.mxu0 0.0
      %4207 = vmatprep.subr.mxu0 0.0
      %4208 = vmatpush1.msra.mxu0 0.0
      %4209 = vmatprep.subr.mxu0 0.0
      %4210 = vmatpush1.msra.mxu0 %v4037
      %4211 = vmatprep.subr.mxu0 0.0
      %4212 = vmatpush2.msra.mxu0 0.0
      %4213 = vmatprep.subr.mxu0 0.0
      %4214 = vmatpush2.msra.mxu0 0.0
      %4215 = vmatprep.subr.mxu0 0.0
      %4216 = vmatpush2.msra.mxu0 0.0
      %4217 = vmatprep.subr.mxu0 0.0
      %4218 = vmatpush2.msra.mxu0 0.0
      %4219 = vmatprep.subr.mxu0 0.0
      %4220 = vmatpush2.msra.mxu0 0.0
      %4221 = vmatprep.subr.mxu0 0.0
      %4222 = vmatpush2.msra.mxu0 0.0
      %4223 = vmatprep.subr.mxu0 0.0
      %4224 = vmatpush2.msra.mxu0 0.0
      %4225 = vmatprep.subr.mxu0 0.0
      %4226 = vmatpush2.msra.mxu0 0.0
      %4227 = vmatprep.subr.mxu0 0.0
      %4228 = vmatpush2.msra.mxu0 0.0
      %4229 = vmatprep.subr.mxu0 0.0
      %4230 = vmatpush2.msra.mxu0 0.0
      %4231 = vmatprep.subr.mxu0 0.0
      %4232 = vmatpush2.msra.mxu0 0.0
      %4233 = vmatprep.subr.mxu0 0.0
      %4234 = vmatpush2.msra.mxu0 0.0
      %4235 = vmatprep.subr.mxu0 0.0
      %4236 = vmatpush2.msra.mxu0 0.0
      %4237 = vmatprep.subr.mxu0 0.0
      %4238 = vmatpush2.msra.mxu0 0.0
      %4239 = vmatprep.subr.mxu0 0.0
      %4240 = vmatpush2.msra.mxu0 0.0
      %4241 = vmatprep.subr.mxu0 0.0
      %4242 = vmatpush2.msra.mxu0 0.0
      %4243 = vmatprep.mubr.f32.mxu0 0.0
      %4244 = vmatmul.mubr.f32.gmra.mxu0 %v3890
      %v4245 = vpop.f32.mrf.mxu0
      %v4246 = vadd.f32 0.0, %v4245
      %v4247 = vpop.f32.mrf.mxu0
      %4248 = vdwg.mxu0
      %4249 = vmatprep.subr.mxu0 0.0
      %4250 = vmatpush1.msra.mxu0 0.0
      %4251 = vmatprep.subr.mxu0 0.0
      %4252 = vmatpush1.msra.mxu0 0.0
      %4253 = vmatprep.subr.mxu0 0.0
      %4254 = vmatpush1.msra.mxu0 0.0
      %4255 = vmatprep.subr.mxu0 0.0
      %4256 = vmatpush1.msra.mxu0 0.0
      %4257 = vmatprep.subr.mxu0 0.0
      %4258 = vmatpush1.msra.mxu0 0.0
      %4259 = vmatprep.subr.mxu0 0.0
      %4260 = vmatpush1.msra.mxu0 0.0
      %4261 = vmatprep.subr.mxu0 0.0
      %4262 = vmatpush1.msra.mxu0 0.0
      %4263 = vmatprep.subr.mxu0 0.0
      %4264 = vmatpush1.msra.mxu0 0.0
      %4265 = vmatprep.subr.mxu0 0.0
      %4266 = vmatpush1.msra.mxu0 0.0
      %4267 = vmatprep.subr.mxu0 0.0
      %4268 = vmatpush1.msra.mxu0 0.0
      %4269 = vmatprep.subr.mxu0 0.0
      %4270 = vmatpush1.msra.mxu0 0.0
      %4271 = vmatprep.subr.mxu0 0.0
      %4272 = vmatpush1.msra.mxu0 0.0
      %4273 = vmatprep.subr.mxu0 0.0
      %4274 = vmatpush1.msra.mxu0 0.0
      %4275 = vmatprep.subr.mxu0 0.0
      %4276 = vmatpush1.msra.mxu0 0.0
      %4277 = vmatprep.subr.mxu0 0.0
      %4278 = vmatpush1.msra.mxu0 0.0
      %4279 = vmatprep.subr.mxu0 0.0
      %4280 = vmatpush1.msra.mxu0 %v4038
      %4281 = vmatprep.subr.mxu0 0.0
      %4282 = vmatpush2.msra.mxu0 0.0
      %4283 = vmatprep.subr.mxu0 0.0
      %4284 = vmatpush2.msra.mxu0 0.0
      %4285 = vmatprep.subr.mxu0 0.0
      %4286 = vmatpush2.msra.mxu0 0.0
      %4287 = vmatprep.subr.mxu0 0.0
      %4288 = vmatpush2.msra.mxu0 0.0
      %4289 = vmatprep.subr.mxu0 0.0
      %4290 = vmatpush2.msra.mxu0 0.0
      %4291 = vmatprep.subr.mxu0 0.0
      %4292 = vmatpush2.msra.mxu0 0.0
      %4293 = vmatprep.subr.mxu0 0.0
      %4294 = vmatpush2.msra.mxu0 0.0
      %4295 = vmatprep.subr.mxu0 0.0
      %4296 = vmatpush2.msra.mxu0 0.0
      %4297 = vmatprep.subr.mxu0 0.0
      %4298 = vmatpush2.msra.mxu0 0.0
      %4299 = vmatprep.subr.mxu0 0.0
      %4300 = vmatpush2.msra.mxu0 0.0
      %4301 = vmatprep.subr.mxu0 0.0
      %4302 = vmatpush2.msra.mxu0 0.0
      %4303 = vmatprep.subr.mxu0 0.0
      %4304 = vmatpush2.msra.mxu0 0.0
      %4305 = vmatprep.subr.mxu0 0.0
      %4306 = vmatpush2.msra.mxu0 0.0
      %4307 = vmatprep.subr.mxu0 0.0
      %4308 = vmatpush2.msra.mxu0 0.0
      %4309 = vmatprep.subr.mxu0 0.0
      %4310 = vmatpush2.msra.mxu0 0.0
      %4311 = vmatprep.subr.mxu0 0.0
      %4312 = vmatpush2.msra.mxu0 0.0
      %4313 = vmatprep.mubr.f32.mxu0 0.0
      %4314 = vmatmul.mubr.f32.gmra.mxu0 %v3963
      %v4315 = vpop.f32.mrf.mxu0
      %v4316 = vadd.f32 0.0, %v4315
      %v4317 = vpop.f32.mrf.mxu0
      %4318 = vdwg.mxu0
      %v4319 = vsub.f32 %v2878, %v4106
      %v4320 = vsub.f32 %v2878, %v4176
      %v4321 = vsub.f32 %v2878, %v4246
      %v4322 = vsub.f32 %v2878, %v4316
      %v4323 = vmul.f32 %v3237, 0.25
      %v4324 = vmul.f32 %v3310, 0.25
      %v4325 = vmul.f32 %v3383, 0.25
      %v4326 = vmul.f32 %v3456, 0.25
      %v4328 = vsel %vm833, %v4323, 0
      %4330 = vmatprep.subr.mxu0 0.0
      %4331 = vmatpush1.msra.mxu0 0.0
      %4332 = vmatprep.subr.mxu0 0.0
      %4333 = vmatpush1.msra.mxu0 0.0
      %4334 = vmatprep.subr.mxu0 0.0
      %4335 = vmatpush1.msra.mxu0 0.0
      %4336 = vmatprep.subr.mxu0 0.0
      %4337 = vmatpush1.msra.mxu0 0.0
      %4338 = vmatprep.subr.mxu0 0.0
      %4339 = vmatpush1.msra.mxu0 0.0
      %4340 = vmatprep.subr.mxu0 0.0
      %4341 = vmatpush1.msra.mxu0 0.0
      %4342 = vmatprep.subr.mxu0 0.0
      %4343 = vmatpush1.msra.mxu0 0.0
      %4344 = vmatprep.subr.mxu0 0.0
      %4345 = vmatpush1.msra.mxu0 0.0
      %4346 = vmatprep.subr.mxu0 0.0
      %4347 = vmatpush1.msra.mxu0 0.0
      %4348 = vmatprep.subr.mxu0 0.0
      %4349 = vmatpush1.msra.mxu0 0.0
      %4350 = vmatprep.subr.mxu0 0.0
      %4351 = vmatpush1.msra.mxu0 0.0
      %4352 = vmatprep.subr.mxu0 0.0
      %4353 = vmatpush1.msra.mxu0 0.0
      %4354 = vmatprep.subr.mxu0 0.0
      %4355 = vmatpush1.msra.mxu0 0.0
      %4356 = vmatprep.subr.mxu0 0.0
      %4357 = vmatpush1.msra.mxu0 0.0
      %4358 = vmatprep.subr.mxu0 0.0
      %4359 = vmatpush1.msra.mxu0 0.0
      %4360 = vmatprep.subr.mxu0 0.0
      %4361 = vmatpush1.msra.mxu0 %v4319
      %4362 = vmatprep.subr.mxu0 0.0
      %4363 = vmatpush2.msra.mxu0 0.0
      %4364 = vmatprep.subr.mxu0 0.0
      %4365 = vmatpush2.msra.mxu0 0.0
      %4366 = vmatprep.subr.mxu0 0.0
      %4367 = vmatpush2.msra.mxu0 0.0
      %4368 = vmatprep.subr.mxu0 0.0
      %4369 = vmatpush2.msra.mxu0 0.0
      %4370 = vmatprep.subr.mxu0 0.0
      %4371 = vmatpush2.msra.mxu0 0.0
      %4372 = vmatprep.subr.mxu0 0.0
      %4373 = vmatpush2.msra.mxu0 0.0
      %4374 = vmatprep.subr.mxu0 0.0
      %4375 = vmatpush2.msra.mxu0 0.0
      %4376 = vmatprep.subr.mxu0 0.0
      %4377 = vmatpush2.msra.mxu0 0.0
      %4378 = vmatprep.subr.mxu0 0.0
      %4379 = vmatpush2.msra.mxu0 0.0
      %4380 = vmatprep.subr.mxu0 0.0
      %4381 = vmatpush2.msra.mxu0 0.0
      %4382 = vmatprep.subr.mxu0 0.0
      %4383 = vmatpush2.msra.mxu0 0.0
      %4384 = vmatprep.subr.mxu0 0.0
      %4385 = vmatpush2.msra.mxu0 0.0
      %4386 = vmatprep.subr.mxu0 0.0
      %4387 = vmatpush2.msra.mxu0 0.0
      %4388 = vmatprep.subr.mxu0 0.0
      %4389 = vmatpush2.msra.mxu0 0.0
      %4390 = vmatprep.subr.mxu0 0.0
      %4391 = vmatpush2.msra.mxu0 0.0
      %4392 = vmatprep.subr.mxu0 0.0
      %4393 = vmatpush2.msra.mxu0 0.0
      %4394 = vmatprep.mubr.f32.mxu0 0.0
      %4395 = vmatmul.mubr.f32.gmra.mxu0 %v4328
      %v4396 = vpop.f32.mrf.mxu0
      %v4397 = vadd.f32 0.0, %v4396
      %v4398 = vpop.f32.mrf.mxu0
      %4399 = vdwg.mxu0
      %v4401 = vsel %vm833, %v4324, 0
      %4403 = vmatprep.subr.mxu0 0.0
      %4404 = vmatpush1.msra.mxu0 0.0
      %4405 = vmatprep.subr.mxu0 0.0
      %4406 = vmatpush1.msra.mxu0 0.0
      %4407 = vmatprep.subr.mxu0 0.0
      %4408 = vmatpush1.msra.mxu0 0.0
      %4409 = vmatprep.subr.mxu0 0.0
      %4410 = vmatpush1.msra.mxu0 0.0
      %4411 = vmatprep.subr.mxu0 0.0
      %4412 = vmatpush1.msra.mxu0 0.0
      %4413 = vmatprep.subr.mxu0 0.0
      %4414 = vmatpush1.msra.mxu0 0.0
      %4415 = vmatprep.subr.mxu0 0.0
      %4416 = vmatpush1.msra.mxu0 0.0
      %4417 = vmatprep.subr.mxu0 0.0
      %4418 = vmatpush1.msra.mxu0 0.0
      %4419 = vmatprep.subr.mxu0 0.0
      %4420 = vmatpush1.msra.mxu0 0.0
      %4421 = vmatprep.subr.mxu0 0.0
      %4422 = vmatpush1.msra.mxu0 0.0
      %4423 = vmatprep.subr.mxu0 0.0
      %4424 = vmatpush1.msra.mxu0 0.0
      %4425 = vmatprep.subr.mxu0 0.0
      %4426 = vmatpush1.msra.mxu0 0.0
      %4427 = vmatprep.subr.mxu0 0.0
      %4428 = vmatpush1.msra.mxu0 0.0
      %4429 = vmatprep.subr.mxu0 0.0
      %4430 = vmatpush1.msra.mxu0 0.0
      %4431 = vmatprep.subr.mxu0 0.0
      %4432 = vmatpush1.msra.mxu0 0.0
      %4433 = vmatprep.subr.mxu0 0.0
      %4434 = vmatpush1.msra.mxu0 %v4320
      %4435 = vmatprep.subr.mxu0 0.0
      %4436 = vmatpush2.msra.mxu0 0.0
      %4437 = vmatprep.subr.mxu0 0.0
      %4438 = vmatpush2.msra.mxu0 0.0
      %4439 = vmatprep.subr.mxu0 0.0
      %4440 = vmatpush2.msra.mxu0 0.0
      %4441 = vmatprep.subr.mxu0 0.0
      %4442 = vmatpush2.msra.mxu0 0.0
      %4443 = vmatprep.subr.mxu0 0.0
      %4444 = vmatpush2.msra.mxu0 0.0
      %4445 = vmatprep.subr.mxu0 0.0
      %4446 = vmatpush2.msra.mxu0 0.0
      %4447 = vmatprep.subr.mxu0 0.0
      %4448 = vmatpush2.msra.mxu0 0.0
      %4449 = vmatprep.subr.mxu0 0.0
      %4450 = vmatpush2.msra.mxu0 0.0
      %4451 = vmatprep.subr.mxu0 0.0
      %4452 = vmatpush2.msra.mxu0 0.0
      %4453 = vmatprep.subr.mxu0 0.0
      %4454 = vmatpush2.msra.mxu0 0.0
      %4455 = vmatprep.subr.mxu0 0.0
      %4456 = vmatpush2.msra.mxu0 0.0
      %4457 = vmatprep.subr.mxu0 0.0
      %4458 = vmatpush2.msra.mxu0 0.0
      %4459 = vmatprep.subr.mxu0 0.0
      %4460 = vmatpush2.msra.mxu0 0.0
      %4461 = vmatprep.subr.mxu0 0.0
      %4462 = vmatpush2.msra.mxu0 0.0
      %4463 = vmatprep.subr.mxu0 0.0
      %4464 = vmatpush2.msra.mxu0 0.0
      %4465 = vmatprep.subr.mxu0 0.0
      %4466 = vmatpush2.msra.mxu0 0.0
      %4467 = vmatprep.mubr.f32.mxu0 0.0
      %4468 = vmatmul.mubr.f32.gmra.mxu0 %v4401
      %v4469 = vpop.f32.mrf.mxu0
      %v4470 = vadd.f32 0.0, %v4469
      %v4471 = vpop.f32.mrf.mxu0
      %4472 = vdwg.mxu0
      %v4474 = vsel %vm833, %v4325, 0
      %4476 = vmatprep.subr.mxu0 0.0
      %4477 = vmatpush1.msra.mxu0 0.0
      %4478 = vmatprep.subr.mxu0 0.0
      %4479 = vmatpush1.msra.mxu0 0.0
      %4480 = vmatprep.subr.mxu0 0.0
      %4481 = vmatpush1.msra.mxu0 0.0
      %4482 = vmatprep.subr.mxu0 0.0
      %4483 = vmatpush1.msra.mxu0 0.0
      %4484 = vmatprep.subr.mxu0 0.0
      %4485 = vmatpush1.msra.mxu0 0.0
      %4486 = vmatprep.subr.mxu0 0.0
      %4487 = vmatpush1.msra.mxu0 0.0
      %4488 = vmatprep.subr.mxu0 0.0
      %4489 = vmatpush1.msra.mxu0 0.0
      %4490 = vmatprep.subr.mxu0 0.0
      %4491 = vmatpush1.msra.mxu0 0.0
      %4492 = vmatprep.subr.mxu0 0.0
      %4493 = vmatpush1.msra.mxu0 0.0
      %4494 = vmatprep.subr.mxu0 0.0
      %4495 = vmatpush1.msra.mxu0 0.0
      %4496 = vmatprep.subr.mxu0 0.0
      %4497 = vmatpush1.msra.mxu0 0.0
      %4498 = vmatprep.subr.mxu0 0.0
      %4499 = vmatpush1.msra.mxu0 0.0
      %4500 = vmatprep.subr.mxu0 0.0
      %4501 = vmatpush1.msra.mxu0 0.0
      %4502 = vmatprep.subr.mxu0 0.0
      %4503 = vmatpush1.msra.mxu0 0.0
      %4504 = vmatprep.subr.mxu0 0.0
      %4505 = vmatpush1.msra.mxu0 0.0
      %4506 = vmatprep.subr.mxu0 0.0
      %4507 = vmatpush1.msra.mxu0 %v4321
      %4508 = vmatprep.subr.mxu0 0.0
      %4509 = vmatpush2.msra.mxu0 0.0
      %4510 = vmatprep.subr.mxu0 0.0
      %4511 = vmatpush2.msra.mxu0 0.0
      %4512 = vmatprep.subr.mxu0 0.0
      %4513 = vmatpush2.msra.mxu0 0.0
      %4514 = vmatprep.subr.mxu0 0.0
      %4515 = vmatpush2.msra.mxu0 0.0
      %4516 = vmatprep.subr.mxu0 0.0
      %4517 = vmatpush2.msra.mxu0 0.0
      %4518 = vmatprep.subr.mxu0 0.0
      %4519 = vmatpush2.msra.mxu0 0.0
      %4520 = vmatprep.subr.mxu0 0.0
      %4521 = vmatpush2.msra.mxu0 0.0
      %4522 = vmatprep.subr.mxu0 0.0
      %4523 = vmatpush2.msra.mxu0 0.0
      %4524 = vmatprep.subr.mxu0 0.0
      %4525 = vmatpush2.msra.mxu0 0.0
      %4526 = vmatprep.subr.mxu0 0.0
      %4527 = vmatpush2.msra.mxu0 0.0
      %4528 = vmatprep.subr.mxu0 0.0
      %4529 = vmatpush2.msra.mxu0 0.0
      %4530 = vmatprep.subr.mxu0 0.0
      %4531 = vmatpush2.msra.mxu0 0.0
      %4532 = vmatprep.subr.mxu0 0.0
      %4533 = vmatpush2.msra.mxu0 0.0
      %4534 = vmatprep.subr.mxu0 0.0
      %4535 = vmatpush2.msra.mxu0 0.0
      %4536 = vmatprep.subr.mxu0 0.0
      %4537 = vmatpush2.msra.mxu0 0.0
      %4538 = vmatprep.subr.mxu0 0.0
      %4539 = vmatpush2.msra.mxu0 0.0
      %4540 = vmatprep.mubr.f32.mxu0 0.0
      %4541 = vmatmul.mubr.f32.gmra.mxu0 %v4474
      %v4542 = vpop.f32.mrf.mxu0
      %v4543 = vadd.f32 0.0, %v4542
      %v4544 = vpop.f32.mrf.mxu0
      %4545 = vdwg.mxu0
      %v4547 = vsel %vm833, %v4326, 0
      %4549 = vmatprep.subr.mxu0 0.0
      %4550 = vmatpush1.msra.mxu0 0.0
      %4551 = vmatprep.subr.mxu0 0.0
      %4552 = vmatpush1.msra.mxu0 0.0
      %4553 = vmatprep.subr.mxu0 0.0
      %4554 = vmatpush1.msra.mxu0 0.0
      %4555 = vmatprep.subr.mxu0 0.0
      %4556 = vmatpush1.msra.mxu0 0.0
      %4557 = vmatprep.subr.mxu0 0.0
      %4558 = vmatpush1.msra.mxu0 0.0
      %4559 = vmatprep.subr.mxu0 0.0
      %4560 = vmatpush1.msra.mxu0 0.0
      %4561 = vmatprep.subr.mxu0 0.0
      %4562 = vmatpush1.msra.mxu0 0.0
      %4563 = vmatprep.subr.mxu0 0.0
      %4564 = vmatpush1.msra.mxu0 0.0
      %4565 = vmatprep.subr.mxu0 0.0
      %4566 = vmatpush1.msra.mxu0 0.0
      %4567 = vmatprep.subr.mxu0 0.0
      %4568 = vmatpush1.msra.mxu0 0.0
      %4569 = vmatprep.subr.mxu0 0.0
      %4570 = vmatpush1.msra.mxu0 0.0
      %4571 = vmatprep.subr.mxu0 0.0
      %4572 = vmatpush1.msra.mxu0 0.0
      %4573 = vmatprep.subr.mxu0 0.0
      %4574 = vmatpush1.msra.mxu0 0.0
      %4575 = vmatprep.subr.mxu0 0.0
      %4576 = vmatpush1.msra.mxu0 0.0
      %4577 = vmatprep.subr.mxu0 0.0
      %4578 = vmatpush1.msra.mxu0 0.0
      %4579 = vmatprep.subr.mxu0 0.0
      %4580 = vmatpush1.msra.mxu0 %v4322
      %4581 = vmatprep.subr.mxu0 0.0
      %4582 = vmatpush2.msra.mxu0 0.0
      %4583 = vmatprep.subr.mxu0 0.0
      %4584 = vmatpush2.msra.mxu0 0.0
      %4585 = vmatprep.subr.mxu0 0.0
      %4586 = vmatpush2.msra.mxu0 0.0
      %4587 = vmatprep.subr.mxu0 0.0
      %4588 = vmatpush2.msra.mxu0 0.0
      %4589 = vmatprep.subr.mxu0 0.0
      %4590 = vmatpush2.msra.mxu0 0.0
      %4591 = vmatprep.subr.mxu0 0.0
      %4592 = vmatpush2.msra.mxu0 0.0
      %4593 = vmatprep.subr.mxu0 0.0
      %4594 = vmatpush2.msra.mxu0 0.0
      %4595 = vmatprep.subr.mxu0 0.0
      %4596 = vmatpush2.msra.mxu0 0.0
      %4597 = vmatprep.subr.mxu0 0.0
      %4598 = vmatpush2.msra.mxu0 0.0
      %4599 = vmatprep.subr.mxu0 0.0
      %4600 = vmatpush2.msra.mxu0 0.0
      %4601 = vmatprep.subr.mxu0 0.0
      %4602 = vmatpush2.msra.mxu0 0.0
      %4603 = vmatprep.subr.mxu0 0.0
      %4604 = vmatpush2.msra.mxu0 0.0
      %4605 = vmatprep.subr.mxu0 0.0
      %4606 = vmatpush2.msra.mxu0 0.0
      %4607 = vmatprep.subr.mxu0 0.0
      %4608 = vmatpush2.msra.mxu0 0.0
      %4609 = vmatprep.subr.mxu0 0.0
      %4610 = vmatpush2.msra.mxu0 0.0
      %4611 = vmatprep.subr.mxu0 0.0
      %4612 = vmatpush2.msra.mxu0 0.0
      %4613 = vmatprep.mubr.f32.mxu0 0.0
      %4614 = vmatmul.mubr.f32.gmra.mxu0 %v4547
      %v4615 = vpop.f32.mrf.mxu0
      %v4616 = vadd.f32 0.0, %v4615
      %v4617 = vpop.f32.mrf.mxu0
      %4618 = vdwg.mxu0
      %4619 = vmatprep.subr.mxu0 0.0
      %4620 = vmatpush1.msra.mxu0 0.0
      %4621 = vmatprep.subr.mxu0 0.0
      %4622 = vmatpush1.msra.mxu0 0.0
      %4623 = vmatprep.subr.mxu0 0.0
      %4624 = vmatpush1.msra.mxu0 0.0
      %4625 = vmatprep.subr.mxu0 0.0
      %4626 = vmatpush1.msra.mxu0 0.0
      %4627 = vmatprep.subr.mxu0 0.0
      %4628 = vmatpush1.msra.mxu0 0.0
      %4629 = vmatprep.subr.mxu0 0.0
      %4630 = vmatpush1.msra.mxu0 0.0
      %4631 = vmatprep.subr.mxu0 0.0
      %4632 = vmatpush1.msra.mxu0 0.0
      %4633 = vmatprep.subr.mxu0 0.0
      %4634 = vmatpush1.msra.mxu0 0.0
      %4635 = vmatprep.subr.mxu0 0.0
      %4636 = vmatpush1.msra.mxu0 0.0
      %4637 = vmatprep.subr.mxu0 0.0
      %4638 = vmatpush1.msra.mxu0 0.0
      %4639 = vmatprep.subr.mxu0 0.0
      %4640 = vmatpush1.msra.mxu0 0.0
      %4641 = vmatprep.subr.mxu0 0.0
      %4642 = vmatpush1.msra.mxu0 0.0
      %4643 = vmatprep.subr.mxu0 0.0
      %4644 = vmatpush1.msra.mxu0 0.0
      %4645 = vmatprep.subr.mxu0 0.0
      %4646 = vmatpush1.msra.mxu0 0.0
      %4647 = vmatprep.subr.mxu0 0.0
      %4648 = vmatpush1.msra.mxu0 0.0
      %4649 = vmatprep.subr.mxu0 0.0
      %4650 = vmatpush1.msra.mxu0 %v4397
      %4651 = vmatprep.subr.mxu0 0.0
      %4652 = vmatpush2.msra.mxu0 0.0
      %4653 = vmatprep.subr.mxu0 0.0
      %4654 = vmatpush2.msra.mxu0 0.0
      %4655 = vmatprep.subr.mxu0 0.0
      %4656 = vmatpush2.msra.mxu0 0.0
      %4657 = vmatprep.subr.mxu0 0.0
      %4658 = vmatpush2.msra.mxu0 0.0
      %4659 = vmatprep.subr.mxu0 0.0
      %4660 = vmatpush2.msra.mxu0 0.0
      %4661 = vmatprep.subr.mxu0 0.0
      %4662 = vmatpush2.msra.mxu0 0.0
      %4663 = vmatprep.subr.mxu0 0.0
      %4664 = vmatpush2.msra.mxu0 0.0
      %4665 = vmatprep.subr.mxu0 0.0
      %4666 = vmatpush2.msra.mxu0 0.0
      %4667 = vmatprep.subr.mxu0 0.0
      %4668 = vmatpush2.msra.mxu0 0.0
      %4669 = vmatprep.subr.mxu0 0.0
      %4670 = vmatpush2.msra.mxu0 0.0
      %4671 = vmatprep.subr.mxu0 0.0
      %4672 = vmatpush2.msra.mxu0 0.0
      %4673 = vmatprep.subr.mxu0 0.0
      %4674 = vmatpush2.msra.mxu0 0.0
      %4675 = vmatprep.subr.mxu0 0.0
      %4676 = vmatpush2.msra.mxu0 0.0
      %4677 = vmatprep.subr.mxu0 0.0
      %4678 = vmatpush2.msra.mxu0 0.0
      %4679 = vmatprep.subr.mxu0 0.0
      %4680 = vmatpush2.msra.mxu0 0.0
      %4681 = vmatprep.subr.mxu0 0.0
      %4682 = vmatpush2.msra.mxu0 0.0
      %4683 = vmatprep.mubr.f32.mxu0 0.0
      %4684 = vmatmul.mubr.f32.gmra.mxu0 %v2285
      %v4685 = vpop.f32.mrf.mxu0
      %v4686 = vadd.f32 0.0, %v4685
      %v4687 = vpop.f32.mrf.mxu0
      %4688 = vdwg.mxu0
      %4689 = vmatprep.subr.mxu0 0.0
      %4690 = vmatpush1.msra.mxu0 0.0
      %4691 = vmatprep.subr.mxu0 0.0
      %4692 = vmatpush1.msra.mxu0 0.0
      %4693 = vmatprep.subr.mxu0 0.0
      %4694 = vmatpush1.msra.mxu0 0.0
      %4695 = vmatprep.subr.mxu0 0.0
      %4696 = vmatpush1.msra.mxu0 0.0
      %4697 = vmatprep.subr.mxu0 0.0
      %4698 = vmatpush1.msra.mxu0 0.0
      %4699 = vmatprep.subr.mxu0 0.0
      %4700 = vmatpush1.msra.mxu0 0.0
      %4701 = vmatprep.subr.mxu0 0.0
      %4702 = vmatpush1.msra.mxu0 0.0
      %4703 = vmatprep.subr.mxu0 0.0
      %4704 = vmatpush1.msra.mxu0 0.0
      %4705 = vmatprep.subr.mxu0 0.0
      %4706 = vmatpush1.msra.mxu0 0.0
      %4707 = vmatprep.subr.mxu0 0.0
      %4708 = vmatpush1.msra.mxu0 0.0
      %4709 = vmatprep.subr.mxu0 0.0
      %4710 = vmatpush1.msra.mxu0 0.0
      %4711 = vmatprep.subr.mxu0 0.0
      %4712 = vmatpush1.msra.mxu0 0.0
      %4713 = vmatprep.subr.mxu0 0.0
      %4714 = vmatpush1.msra.mxu0 0.0
      %4715 = vmatprep.subr.mxu0 0.0
      %4716 = vmatpush1.msra.mxu0 0.0
      %4717 = vmatprep.subr.mxu0 0.0
      %4718 = vmatpush1.msra.mxu0 0.0
      %4719 = vmatprep.subr.mxu0 0.0
      %4720 = vmatpush1.msra.mxu0 %v4470
      %4721 = vmatprep.subr.mxu0 0.0
      %4722 = vmatpush2.msra.mxu0 0.0
      %4723 = vmatprep.subr.mxu0 0.0
      %4724 = vmatpush2.msra.mxu0 0.0
      %4725 = vmatprep.subr.mxu0 0.0
      %4726 = vmatpush2.msra.mxu0 0.0
      %4727 = vmatprep.subr.mxu0 0.0
      %4728 = vmatpush2.msra.mxu0 0.0
      %4729 = vmatprep.subr.mxu0 0.0
      %4730 = vmatpush2.msra.mxu0 0.0
      %4731 = vmatprep.subr.mxu0 0.0
      %4732 = vmatpush2.msra.mxu0 0.0
      %4733 = vmatprep.subr.mxu0 0.0
      %4734 = vmatpush2.msra.mxu0 0.0
      %4735 = vmatprep.subr.mxu0 0.0
      %4736 = vmatpush2.msra.mxu0 0.0
      %4737 = vmatprep.subr.mxu0 0.0
      %4738 = vmatpush2.msra.mxu0 0.0
      %4739 = vmatprep.subr.mxu0 0.0
      %4740 = vmatpush2.msra.mxu0 0.0
      %4741 = vmatprep.subr.mxu0 0.0
      %4742 = vmatpush2.msra.mxu0 0.0
      %4743 = vmatprep.subr.mxu0 0.0
      %4744 = vmatpush2.msra.mxu0 0.0
      %4745 = vmatprep.subr.mxu0 0.0
      %4746 = vmatpush2.msra.mxu0 0.0
      %4747 = vmatprep.subr.mxu0 0.0
      %4748 = vmatpush2.msra.mxu0 0.0
      %4749 = vmatprep.subr.mxu0 0.0
      %4750 = vmatpush2.msra.mxu0 0.0
      %4751 = vmatprep.subr.mxu0 0.0
      %4752 = vmatpush2.msra.mxu0 0.0
      %4753 = vmatprep.mubr.f32.mxu0 0.0
      %4754 = vmatmul.mubr.f32.gmra.mxu0 %v2358
      %v4755 = vpop.f32.mrf.mxu0
      %v4756 = vadd.f32 0.0, %v4755
      %v4757 = vpop.f32.mrf.mxu0
      %4758 = vdwg.mxu0
      %4759 = vmatprep.subr.mxu0 0.0
      %4760 = vmatpush1.msra.mxu0 0.0
      %4761 = vmatprep.subr.mxu0 0.0
      %4762 = vmatpush1.msra.mxu0 0.0
      %4763 = vmatprep.subr.mxu0 0.0
      %4764 = vmatpush1.msra.mxu0 0.0
      %4765 = vmatprep.subr.mxu0 0.0
      %4766 = vmatpush1.msra.mxu0 0.0
      %4767 = vmatprep.subr.mxu0 0.0
      %4768 = vmatpush1.msra.mxu0 0.0
      %4769 = vmatprep.subr.mxu0 0.0
      %4770 = vmatpush1.msra.mxu0 0.0
      %4771 = vmatprep.subr.mxu0 0.0
      %4772 = vmatpush1.msra.mxu0 0.0
      %4773 = vmatprep.subr.mxu0 0.0
      %4774 = vmatpush1.msra.mxu0 0.0
      %4775 = vmatprep.subr.mxu0 0.0
      %4776 = vmatpush1.msra.mxu0 0.0
      %4777 = vmatprep.subr.mxu0 0.0
      %4778 = vmatpush1.msra.mxu0 0.0
      %4779 = vmatprep.subr.mxu0 0.0
      %4780 = vmatpush1.msra.mxu0 0.0
      %4781 = vmatprep.subr.mxu0 0.0
      %4782 = vmatpush1.msra.mxu0 0.0
      %4783 = vmatprep.subr.mxu0 0.0
      %4784 = vmatpush1.msra.mxu0 0.0
      %4785 = vmatprep.subr.mxu0 0.0
      %4786 = vmatpush1.msra.mxu0 0.0
      %4787 = vmatprep.subr.mxu0 0.0
      %4788 = vmatpush1.msra.mxu0 0.0
      %4789 = vmatprep.subr.mxu0 0.0
      %4790 = vmatpush1.msra.mxu0 %v4543
      %4791 = vmatprep.subr.mxu0 0.0
      %4792 = vmatpush2.msra.mxu0 0.0
      %4793 = vmatprep.subr.mxu0 0.0
      %4794 = vmatpush2.msra.mxu0 0.0
      %4795 = vmatprep.subr.mxu0 0.0
      %4796 = vmatpush2.msra.mxu0 0.0
      %4797 = vmatprep.subr.mxu0 0.0
      %4798 = vmatpush2.msra.mxu0 0.0
      %4799 = vmatprep.subr.mxu0 0.0
      %4800 = vmatpush2.msra.mxu0 0.0
      %4801 = vmatprep.subr.mxu0 0.0
      %4802 = vmatpush2.msra.mxu0 0.0
      %4803 = vmatprep.subr.mxu0 0.0
      %4804 = vmatpush2.msra.mxu0 0.0
      %4805 = vmatprep.subr.mxu0 0.0
      %4806 = vmatpush2.msra.mxu0 0.0
      %4807 = vmatprep.subr.mxu0 0.0
      %4808 = vmatpush2.msra.mxu0 0.0
      %4809 = vmatprep.subr.mxu0 0.0
      %4810 = vmatpush2.msra.mxu0 0.0
      %4811 = vmatprep.subr.mxu0 0.0
      %4812 = vmatpush2.msra.mxu0 0.0
      %4813 = vmatprep.subr.mxu0 0.0
      %4814 = vmatpush2.msra.mxu0 0.0
      %4815 = vmatprep.subr.mxu0 0.0
      %4816 = vmatpush2.msra.mxu0 0.0
      %4817 = vmatprep.subr.mxu0 0.0
      %4818 = vmatpush2.msra.mxu0 0.0
      %4819 = vmatprep.subr.mxu0 0.0
      %4820 = vmatpush2.msra.mxu0 0.0
      %4821 = vmatprep.subr.mxu0 0.0
      %4822 = vmatpush2.msra.mxu0 0.0
      %4823 = vmatprep.mubr.f32.mxu0 0.0
      %4824 = vmatmul.mubr.f32.gmra.mxu0 %v2431
      %v4825 = vpop.f32.mrf.mxu0
      %v4826 = vadd.f32 0.0, %v4825
      %v4827 = vpop.f32.mrf.mxu0
      %4828 = vdwg.mxu0
      %4829 = vmatprep.subr.mxu0 0.0
      %4830 = vmatpush1.msra.mxu0 0.0
      %4831 = vmatprep.subr.mxu0 0.0
      %4832 = vmatpush1.msra.mxu0 0.0
      %4833 = vmatprep.subr.mxu0 0.0
      %4834 = vmatpush1.msra.mxu0 0.0
      %4835 = vmatprep.subr.mxu0 0.0
      %4836 = vmatpush1.msra.mxu0 0.0
      %4837 = vmatprep.subr.mxu0 0.0
      %4838 = vmatpush1.msra.mxu0 0.0
      %4839 = vmatprep.subr.mxu0 0.0
      %4840 = vmatpush1.msra.mxu0 0.0
      %4841 = vmatprep.subr.mxu0 0.0
      %4842 = vmatpush1.msra.mxu0 0.0
      %4843 = vmatprep.subr.mxu0 0.0
      %4844 = vmatpush1.msra.mxu0 0.0
      %4845 = vmatprep.subr.mxu0 0.0
      %4846 = vmatpush1.msra.mxu0 0.0
      %4847 = vmatprep.subr.mxu0 0.0
      %4848 = vmatpush1.msra.mxu0 0.0
      %4849 = vmatprep.subr.mxu0 0.0
      %4850 = vmatpush1.msra.mxu0 0.0
      %4851 = vmatprep.subr.mxu0 0.0
      %4852 = vmatpush1.msra.mxu0 0.0
      %4853 = vmatprep.subr.mxu0 0.0
      %4854 = vmatpush1.msra.mxu0 0.0
      %4855 = vmatprep.subr.mxu0 0.0
      %4856 = vmatpush1.msra.mxu0 0.0
      %4857 = vmatprep.subr.mxu0 0.0
      %4858 = vmatpush1.msra.mxu0 0.0
      %4859 = vmatprep.subr.mxu0 0.0
      %4860 = vmatpush1.msra.mxu0 %v4616
      %4861 = vmatprep.subr.mxu0 0.0
      %4862 = vmatpush2.msra.mxu0 0.0
      %4863 = vmatprep.subr.mxu0 0.0
      %4864 = vmatpush2.msra.mxu0 0.0
      %4865 = vmatprep.subr.mxu0 0.0
      %4866 = vmatpush2.msra.mxu0 0.0
      %4867 = vmatprep.subr.mxu0 0.0
      %4868 = vmatpush2.msra.mxu0 0.0
      %4869 = vmatprep.subr.mxu0 0.0
      %4870 = vmatpush2.msra.mxu0 0.0
      %4871 = vmatprep.subr.mxu0 0.0
      %4872 = vmatpush2.msra.mxu0 0.0
      %4873 = vmatprep.subr.mxu0 0.0
      %4874 = vmatpush2.msra.mxu0 0.0
      %4875 = vmatprep.subr.mxu0 0.0
      %4876 = vmatpush2.msra.mxu0 0.0
      %4877 = vmatprep.subr.mxu0 0.0
      %4878 = vmatpush2.msra.mxu0 0.0
      %4879 = vmatprep.subr.mxu0 0.0
      %4880 = vmatpush2.msra.mxu0 0.0
      %4881 = vmatprep.subr.mxu0 0.0
      %4882 = vmatpush2.msra.mxu0 0.0
      %4883 = vmatprep.subr.mxu0 0.0
      %4884 = vmatpush2.msra.mxu0 0.0
      %4885 = vmatprep.subr.mxu0 0.0
      %4886 = vmatpush2.msra.mxu0 0.0
      %4887 = vmatprep.subr.mxu0 0.0
      %4888 = vmatpush2.msra.mxu0 0.0
      %4889 = vmatprep.subr.mxu0 0.0
      %4890 = vmatpush2.msra.mxu0 0.0
      %4891 = vmatprep.subr.mxu0 0.0
      %4892 = vmatpush2.msra.mxu0 0.0
      %4893 = vmatprep.mubr.f32.mxu0 0.0
      %4894 = vmatmul.mubr.f32.gmra.mxu0 %v2504
      %v4895 = vpop.f32.mrf.mxu0
      %v4896 = vadd.f32 0.0, %v4895
      %v4897 = vpop.f32.mrf.mxu0
      %4898 = vdwg.mxu0
      %v4899 = vsub.f32 %v2576, %v4686
      %v4900 = vsub.f32 %v2576, %v4756
      %v4901 = vsub.f32 %v2576, %v4826
      %v4902 = vsub.f32 %v2576, %v4896
      %v4904 = vsel %vm833, %v4686, 0
      %4906 = vmatprep.subr.mxu0 0.0
      %4907 = vmatpush1.msra.mxu0 0.0
      %4908 = vmatprep.subr.mxu0 0.0
      %4909 = vmatpush1.msra.mxu0 0.0
      %4910 = vmatprep.subr.mxu0 0.0
      %4911 = vmatpush1.msra.mxu0 0.0
      %4912 = vmatprep.subr.mxu0 0.0
      %4913 = vmatpush1.msra.mxu0 0.0
      %4914 = vmatprep.subr.mxu0 0.0
      %4915 = vmatpush1.msra.mxu0 0.0
      %4916 = vmatprep.subr.mxu0 0.0
      %4917 = vmatpush1.msra.mxu0 0.0
      %4918 = vmatprep.subr.mxu0 0.0
      %4919 = vmatpush1.msra.mxu0 0.0
      %4920 = vmatprep.subr.mxu0 0.0
      %4921 = vmatpush1.msra.mxu0 0.0
      %4922 = vmatprep.subr.mxu0 0.0
      %4923 = vmatpush1.msra.mxu0 0.0
      %4924 = vmatprep.subr.mxu0 0.0
      %4925 = vmatpush1.msra.mxu0 0.0
      %4926 = vmatprep.subr.mxu0 0.0
      %4927 = vmatpush1.msra.mxu0 0.0
      %4928 = vmatprep.subr.mxu0 0.0
      %4929 = vmatpush1.msra.mxu0 0.0
      %4930 = vmatprep.subr.mxu0 0.0
      %4931 = vmatpush1.msra.mxu0 0.0
      %4932 = vmatprep.subr.mxu0 0.0
      %4933 = vmatpush1.msra.mxu0 0.0
      %4934 = vmatprep.subr.mxu0 0.0
      %4935 = vmatpush1.msra.mxu0 0.0
      %4936 = vmatprep.subr.mxu0 0.0
      %4937 = vmatpush1.msra.mxu0 %v4899
      %4938 = vmatprep.subr.mxu0 0.0
      %4939 = vmatpush2.msra.mxu0 0.0
      %4940 = vmatprep.subr.mxu0 0.0
      %4941 = vmatpush2.msra.mxu0 0.0
      %4942 = vmatprep.subr.mxu0 0.0
      %4943 = vmatpush2.msra.mxu0 0.0
      %4944 = vmatprep.subr.mxu0 0.0
      %4945 = vmatpush2.msra.mxu0 0.0
      %4946 = vmatprep.subr.mxu0 0.0
      %4947 = vmatpush2.msra.mxu0 0.0
      %4948 = vmatprep.subr.mxu0 0.0
      %4949 = vmatpush2.msra.mxu0 0.0
      %4950 = vmatprep.subr.mxu0 0.0
      %4951 = vmatpush2.msra.mxu0 0.0
      %4952 = vmatprep.subr.mxu0 0.0
      %4953 = vmatpush2.msra.mxu0 0.0
      %4954 = vmatprep.subr.mxu0 0.0
      %4955 = vmatpush2.msra.mxu0 0.0
      %4956 = vmatprep.subr.mxu0 0.0
      %4957 = vmatpush2.msra.mxu0 0.0
      %4958 = vmatprep.subr.mxu0 0.0
      %4959 = vmatpush2.msra.mxu0 0.0
      %4960 = vmatprep.subr.mxu0 0.0
      %4961 = vmatpush2.msra.mxu0 0.0
      %4962 = vmatprep.subr.mxu0 0.0
      %4963 = vmatpush2.msra.mxu0 0.0
      %4964 = vmatprep.subr.mxu0 0.0
      %4965 = vmatpush2.msra.mxu0 0.0
      %4966 = vmatprep.subr.mxu0 0.0
      %4967 = vmatpush2.msra.mxu0 0.0
      %4968 = vmatprep.subr.mxu0 0.0
      %4969 = vmatpush2.msra.mxu0 0.0
      %4970 = vmatprep.mubr.f32.mxu0 0.0
      %4971 = vmatmul.mubr.f32.gmra.mxu0 %v4904
      %v4972 = vpop.f32.mrf.mxu0
      %v4973 = vadd.f32 0.0, %v4972
      %v4974 = vpop.f32.mrf.mxu0
      %4975 = vdwg.mxu0
      %v4977 = vsel %vm833, %v4756, 0
      %4979 = vmatprep.subr.mxu0 0.0
      %4980 = vmatpush1.msra.mxu0 0.0
      %4981 = vmatprep.subr.mxu0 0.0
      %4982 = vmatpush1.msra.mxu0 0.0
      %4983 = vmatprep.subr.mxu0 0.0
      %4984 = vmatpush1.msra.mxu0 0.0
      %4985 = vmatprep.subr.mxu0 0.0
      %4986 = vmatpush1.msra.mxu0 0.0
      %4987 = vmatprep.subr.mxu0 0.0
      %4988 = vmatpush1.msra.mxu0 0.0
      %4989 = vmatprep.subr.mxu0 0.0
      %4990 = vmatpush1.msra.mxu0 0.0
      %4991 = vmatprep.subr.mxu0 0.0
      %4992 = vmatpush1.msra.mxu0 0.0
      %4993 = vmatprep.subr.mxu0 0.0
      %4994 = vmatpush1.msra.mxu0 0.0
      %4995 = vmatprep.subr.mxu0 0.0
      %4996 = vmatpush1.msra.mxu0 0.0
      %4997 = vmatprep.subr.mxu0 0.0
      %4998 = vmatpush1.msra.mxu0 0.0
      %4999 = vmatprep.subr.mxu0 0.0
      %5000 = vmatpush1.msra.mxu0 0.0
      %5001 = vmatprep.subr.mxu0 0.0
      %5002 = vmatpush1.msra.mxu0 0.0
      %5003 = vmatprep.subr.mxu0 0.0
      %5004 = vmatpush1.msra.mxu0 0.0
      %5005 = vmatprep.subr.mxu0 0.0
      %5006 = vmatpush1.msra.mxu0 0.0
      %5007 = vmatprep.subr.mxu0 0.0
      %5008 = vmatpush1.msra.mxu0 0.0
      %5009 = vmatprep.subr.mxu0 0.0
      %5010 = vmatpush1.msra.mxu0 %v4900
      %5011 = vmatprep.subr.mxu0 0.0
      %5012 = vmatpush2.msra.mxu0 0.0
      %5013 = vmatprep.subr.mxu0 0.0
      %5014 = vmatpush2.msra.mxu0 0.0
      %5015 = vmatprep.subr.mxu0 0.0
      %5016 = vmatpush2.msra.mxu0 0.0
      %5017 = vmatprep.subr.mxu0 0.0
      %5018 = vmatpush2.msra.mxu0 0.0
      %5019 = vmatprep.subr.mxu0 0.0
      %5020 = vmatpush2.msra.mxu0 0.0
      %5021 = vmatprep.subr.mxu0 0.0
      %5022 = vmatpush2.msra.mxu0 0.0
      %5023 = vmatprep.subr.mxu0 0.0
      %5024 = vmatpush2.msra.mxu0 0.0
      %5025 = vmatprep.subr.mxu0 0.0
      %5026 = vmatpush2.msra.mxu0 0.0
      %5027 = vmatprep.subr.mxu0 0.0
      %5028 = vmatpush2.msra.mxu0 0.0
      %5029 = vmatprep.subr.mxu0 0.0
      %5030 = vmatpush2.msra.mxu0 0.0
      %5031 = vmatprep.subr.mxu0 0.0
      %5032 = vmatpush2.msra.mxu0 0.0
      %5033 = vmatprep.subr.mxu0 0.0
      %5034 = vmatpush2.msra.mxu0 0.0
      %5035 = vmatprep.subr.mxu0 0.0
      %5036 = vmatpush2.msra.mxu0 0.0
      %5037 = vmatprep.subr.mxu0 0.0
      %5038 = vmatpush2.msra.mxu0 0.0
      %5039 = vmatprep.subr.mxu0 0.0
      %5040 = vmatpush2.msra.mxu0 0.0
      %5041 = vmatprep.subr.mxu0 0.0
      %5042 = vmatpush2.msra.mxu0 0.0
      %5043 = vmatprep.mubr.f32.mxu0 0.0
      %5044 = vmatmul.mubr.f32.gmra.mxu0 %v4977
      %v5045 = vpop.f32.mrf.mxu0
      %v5046 = vadd.f32 0.0, %v5045
      %v5047 = vpop.f32.mrf.mxu0
      %5048 = vdwg.mxu0
      %v5050 = vsel %vm833, %v4826, 0
      %5052 = vmatprep.subr.mxu0 0.0
      %5053 = vmatpush1.msra.mxu0 0.0
      %5054 = vmatprep.subr.mxu0 0.0
      %5055 = vmatpush1.msra.mxu0 0.0
      %5056 = vmatprep.subr.mxu0 0.0
      %5057 = vmatpush1.msra.mxu0 0.0
      %5058 = vmatprep.subr.mxu0 0.0
      %5059 = vmatpush1.msra.mxu0 0.0
      %5060 = vmatprep.subr.mxu0 0.0
      %5061 = vmatpush1.msra.mxu0 0.0
      %5062 = vmatprep.subr.mxu0 0.0
      %5063 = vmatpush1.msra.mxu0 0.0
      %5064 = vmatprep.subr.mxu0 0.0
      %5065 = vmatpush1.msra.mxu0 0.0
      %5066 = vmatprep.subr.mxu0 0.0
      %5067 = vmatpush1.msra.mxu0 0.0
      %5068 = vmatprep.subr.mxu0 0.0
      %5069 = vmatpush1.msra.mxu0 0.0
      %5070 = vmatprep.subr.mxu0 0.0
      %5071 = vmatpush1.msra.mxu0 0.0
      %5072 = vmatprep.subr.mxu0 0.0
      %5073 = vmatpush1.msra.mxu0 0.0
      %5074 = vmatprep.subr.mxu0 0.0
      %5075 = vmatpush1.msra.mxu0 0.0
      %5076 = vmatprep.subr.mxu0 0.0
      %5077 = vmatpush1.msra.mxu0 0.0
      %5078 = vmatprep.subr.mxu0 0.0
      %5079 = vmatpush1.msra.mxu0 0.0
      %5080 = vmatprep.subr.mxu0 0.0
      %5081 = vmatpush1.msra.mxu0 0.0
      %5082 = vmatprep.subr.mxu0 0.0
      %5083 = vmatpush1.msra.mxu0 %v4901
      %5084 = vmatprep.subr.mxu0 0.0
      %5085 = vmatpush2.msra.mxu0 0.0
      %5086 = vmatprep.subr.mxu0 0.0
      %5087 = vmatpush2.msra.mxu0 0.0
      %5088 = vmatprep.subr.mxu0 0.0
      %5089 = vmatpush2.msra.mxu0 0.0
      %5090 = vmatprep.subr.mxu0 0.0
      %5091 = vmatpush2.msra.mxu0 0.0
      %5092 = vmatprep.subr.mxu0 0.0
      %5093 = vmatpush2.msra.mxu0 0.0
      %5094 = vmatprep.subr.mxu0 0.0
      %5095 = vmatpush2.msra.mxu0 0.0
      %5096 = vmatprep.subr.mxu0 0.0
      %5097 = vmatpush2.msra.mxu0 0.0
      %5098 = vmatprep.subr.mxu0 0.0
      %5099 = vmatpush2.msra.mxu0 0.0
      %5100 = vmatprep.subr.mxu0 0.0
      %5101 = vmatpush2.msra.mxu0 0.0
      %5102 = vmatprep.subr.mxu0 0.0
      %5103 = vmatpush2.msra.mxu0 0.0
      %5104 = vmatprep.subr.mxu0 0.0
      %5105 = vmatpush2.msra.mxu0 0.0
      %5106 = vmatprep.subr.mxu0 0.0
      %5107 = vmatpush2.msra.mxu0 0.0
      %5108 = vmatprep.subr.mxu0 0.0
      %5109 = vmatpush2.msra.mxu0 0.0
      %5110 = vmatprep.subr.mxu0 0.0
      %5111 = vmatpush2.msra.mxu0 0.0
      %5112 = vmatprep.subr.mxu0 0.0
      %5113 = vmatpush2.msra.mxu0 0.0
      %5114 = vmatprep.subr.mxu0 0.0
      %5115 = vmatpush2.msra.mxu0 0.0
      %5116 = vmatprep.mubr.f32.mxu0 0.0
      %5117 = vmatmul.mubr.f32.gmra.mxu0 %v5050
      %v5118 = vpop.f32.mrf.mxu0
      %v5119 = vadd.f32 0.0, %v5118
      %v5120 = vpop.f32.mrf.mxu0
      %5121 = vdwg.mxu0
      %v5123 = vsel %vm833, %v4896, 0
      %5125 = vmatprep.subr.mxu0 0.0
      %5126 = vmatpush1.msra.mxu0 0.0
      %5127 = vmatprep.subr.mxu0 0.0
      %5128 = vmatpush1.msra.mxu0 0.0
      %5129 = vmatprep.subr.mxu0 0.0
      %5130 = vmatpush1.msra.mxu0 0.0
      %5131 = vmatprep.subr.mxu0 0.0
      %5132 = vmatpush1.msra.mxu0 0.0
      %5133 = vmatprep.subr.mxu0 0.0
      %5134 = vmatpush1.msra.mxu0 0.0
      %5135 = vmatprep.subr.mxu0 0.0
      %5136 = vmatpush1.msra.mxu0 0.0
      %5137 = vmatprep.subr.mxu0 0.0
      %5138 = vmatpush1.msra.mxu0 0.0
      %5139 = vmatprep.subr.mxu0 0.0
      %5140 = vmatpush1.msra.mxu0 0.0
      %5141 = vmatprep.subr.mxu0 0.0
      %5142 = vmatpush1.msra.mxu0 0.0
      %5143 = vmatprep.subr.mxu0 0.0
      %5144 = vmatpush1.msra.mxu0 0.0
      %5145 = vmatprep.subr.mxu0 0.0
      %5146 = vmatpush1.msra.mxu0 0.0
      %5147 = vmatprep.subr.mxu0 0.0
      %5148 = vmatpush1.msra.mxu0 0.0
      %5149 = vmatprep.subr.mxu0 0.0
      %5150 = vmatpush1.msra.mxu0 0.0
      %5151 = vmatprep.subr.mxu0 0.0
      %5152 = vmatpush1.msra.mxu0 0.0
      %5153 = vmatprep.subr.mxu0 0.0
      %5154 = vmatpush1.msra.mxu0 0.0
      %5155 = vmatprep.subr.mxu0 0.0
      %5156 = vmatpush1.msra.mxu0 %v4902
      %5157 = vmatprep.subr.mxu0 0.0
      %5158 = vmatpush2.msra.mxu0 0.0
      %5159 = vmatprep.subr.mxu0 0.0
      %5160 = vmatpush2.msra.mxu0 0.0
      %5161 = vmatprep.subr.mxu0 0.0
      %5162 = vmatpush2.msra.mxu0 0.0
      %5163 = vmatprep.subr.mxu0 0.0
      %5164 = vmatpush2.msra.mxu0 0.0
      %5165 = vmatprep.subr.mxu0 0.0
      %5166 = vmatpush2.msra.mxu0 0.0
      %5167 = vmatprep.subr.mxu0 0.0
      %5168 = vmatpush2.msra.mxu0 0.0
      %5169 = vmatprep.subr.mxu0 0.0
      %5170 = vmatpush2.msra.mxu0 0.0
      %5171 = vmatprep.subr.mxu0 0.0
      %5172 = vmatpush2.msra.mxu0 0.0
      %5173 = vmatprep.subr.mxu0 0.0
      %5174 = vmatpush2.msra.mxu0 0.0
      %5175 = vmatprep.subr.mxu0 0.0
      %5176 = vmatpush2.msra.mxu0 0.0
      %5177 = vmatprep.subr.mxu0 0.0
      %5178 = vmatpush2.msra.mxu0 0.0
      %5179 = vmatprep.subr.mxu0 0.0
      %5180 = vmatpush2.msra.mxu0 0.0
      %5181 = vmatprep.subr.mxu0 0.0
      %5182 = vmatpush2.msra.mxu0 0.0
      %5183 = vmatprep.subr.mxu0 0.0
      %5184 = vmatpush2.msra.mxu0 0.0
      %5185 = vmatprep.subr.mxu0 0.0
      %5186 = vmatpush2.msra.mxu0 0.0
      %5187 = vmatprep.subr.mxu0 0.0
      %5188 = vmatpush2.msra.mxu0 0.0
      %5189 = vmatprep.mubr.f32.mxu0 0.0
      %5190 = vmatmul.mubr.f32.gmra.mxu0 %v5123
      %v5191 = vpop.f32.mrf.mxu0
      %v5192 = vadd.f32 0.0, %v5191
      %v5193 = vpop.f32.mrf.mxu0
      %5194 = vdwg.mxu0
      %v5195 = vsub.f32 %v2581, %v4973
      %v5196 = vsub.f32 %v2581, %v5046
      %v5197 = vsub.f32 %v2581, %v5119
      %v5198 = vsub.f32 %v2581, %v5192
      %5199 = vmatprep.subr.mxu0 0.0
      %5200 = vmatpush1.msra.mxu0 0.0
      %5201 = vmatprep.subr.mxu0 0.0
      %5202 = vmatpush1.msra.mxu0 0.0
      %5203 = vmatprep.subr.mxu0 0.0
      %5204 = vmatpush1.msra.mxu0 0.0
      %5205 = vmatprep.subr.mxu0 0.0
      %5206 = vmatpush1.msra.mxu0 0.0
      %5207 = vmatprep.subr.mxu0 0.0
      %5208 = vmatpush1.msra.mxu0 0.0
      %5209 = vmatprep.subr.mxu0 0.0
      %5210 = vmatpush1.msra.mxu0 0.0
      %5211 = vmatprep.subr.mxu0 0.0
      %5212 = vmatpush1.msra.mxu0 0.0
      %5213 = vmatprep.subr.mxu0 0.0
      %5214 = vmatpush1.msra.mxu0 0.0
      %5215 = vmatprep.subr.mxu0 0.0
      %5216 = vmatpush1.msra.mxu0 0.0
      %5217 = vmatprep.subr.mxu0 0.0
      %5218 = vmatpush1.msra.mxu0 0.0
      %5219 = vmatprep.subr.mxu0 0.0
      %5220 = vmatpush1.msra.mxu0 0.0
      %5221 = vmatprep.subr.mxu0 0.0
      %5222 = vmatpush1.msra.mxu0 0.0
      %5223 = vmatprep.subr.mxu0 0.0
      %5224 = vmatpush1.msra.mxu0 0.0
      %5225 = vmatprep.subr.mxu0 0.0
      %5226 = vmatpush1.msra.mxu0 0.0
      %5227 = vmatprep.subr.mxu0 0.0
      %5228 = vmatpush1.msra.mxu0 0.0
      %5229 = vmatprep.subr.mxu0 0.0
      %5230 = vmatpush1.msra.mxu0 %v5195
      %5231 = vmatprep.subr.mxu0 0.0
      %5232 = vmatpush2.msra.mxu0 0.0
      %5233 = vmatprep.subr.mxu0 0.0
      %5234 = vmatpush2.msra.mxu0 0.0
      %5235 = vmatprep.subr.mxu0 0.0
      %5236 = vmatpush2.msra.mxu0 0.0
      %5237 = vmatprep.subr.mxu0 0.0
      %5238 = vmatpush2.msra.mxu0 0.0
      %5239 = vmatprep.subr.mxu0 0.0
      %5240 = vmatpush2.msra.mxu0 0.0
      %5241 = vmatprep.subr.mxu0 0.0
      %5242 = vmatpush2.msra.mxu0 0.0
      %5243 = vmatprep.subr.mxu0 0.0
      %5244 = vmatpush2.msra.mxu0 0.0
      %5245 = vmatprep.subr.mxu0 0.0
      %5246 = vmatpush2.msra.mxu0 0.0
      %5247 = vmatprep.subr.mxu0 0.0
      %5248 = vmatpush2.msra.mxu0 0.0
      %5249 = vmatprep.subr.mxu0 0.0
      %5250 = vmatpush2.msra.mxu0 0.0
      %5251 = vmatprep.subr.mxu0 0.0
      %5252 = vmatpush2.msra.mxu0 0.0
      %5253 = vmatprep.subr.mxu0 0.0
      %5254 = vmatpush2.msra.mxu0 0.0
      %5255 = vmatprep.subr.mxu0 0.0
      %5256 = vmatpush2.msra.mxu0 0.0
      %5257 = vmatprep.subr.mxu0 0.0
      %5258 = vmatpush2.msra.mxu0 0.0
      %5259 = vmatprep.subr.mxu0 0.0
      %5260 = vmatpush2.msra.mxu0 0.0
      %5261 = vmatprep.subr.mxu0 0.0
      %5262 = vmatpush2.msra.mxu0 0.0
      %5263 = vmatprep.mubr.f32.mxu0 0.0
      %5264 = vmatmul.mubr.f32.gmra.mxu0 %v4904
      %v5265 = vpop.f32.mrf.mxu0
      %v5266 = vadd.f32 0.0, %v5265
      %v5267 = vpop.f32.mrf.mxu0
      %5268 = vdwg.mxu0
      %5269 = vmatprep.subr.mxu0 0.0
      %5270 = vmatpush1.msra.mxu0 0.0
      %5271 = vmatprep.subr.mxu0 0.0
      %5272 = vmatpush1.msra.mxu0 0.0
      %5273 = vmatprep.subr.mxu0 0.0
      %5274 = vmatpush1.msra.mxu0 0.0
      %5275 = vmatprep.subr.mxu0 0.0
      %5276 = vmatpush1.msra.mxu0 0.0
      %5277 = vmatprep.subr.mxu0 0.0
      %5278 = vmatpush1.msra.mxu0 0.0
      %5279 = vmatprep.subr.mxu0 0.0
      %5280 = vmatpush1.msra.mxu0 0.0
      %5281 = vmatprep.subr.mxu0 0.0
      %5282 = vmatpush1.msra.mxu0 0.0
      %5283 = vmatprep.subr.mxu0 0.0
      %5284 = vmatpush1.msra.mxu0 0.0
      %5285 = vmatprep.subr.mxu0 0.0
      %5286 = vmatpush1.msra.mxu0 0.0
      %5287 = vmatprep.subr.mxu0 0.0
      %5288 = vmatpush1.msra.mxu0 0.0
      %5289 = vmatprep.subr.mxu0 0.0
      %5290 = vmatpush1.msra.mxu0 0.0
      %5291 = vmatprep.subr.mxu0 0.0
      %5292 = vmatpush1.msra.mxu0 0.0
      %5293 = vmatprep.subr.mxu0 0.0
      %5294 = vmatpush1.msra.mxu0 0.0
      %5295 = vmatprep.subr.mxu0 0.0
      %5296 = vmatpush1.msra.mxu0 0.0
      %5297 = vmatprep.subr.mxu0 0.0
      %5298 = vmatpush1.msra.mxu0 0.0
      %5299 = vmatprep.subr.mxu0 0.0
      %5300 = vmatpush1.msra.mxu0 %v5196
      %5301 = vmatprep.subr.mxu0 0.0
      %5302 = vmatpush2.msra.mxu0 0.0
      %5303 = vmatprep.subr.mxu0 0.0
      %5304 = vmatpush2.msra.mxu0 0.0
      %5305 = vmatprep.subr.mxu0 0.0
      %5306 = vmatpush2.msra.mxu0 0.0
      %5307 = vmatprep.subr.mxu0 0.0
      %5308 = vmatpush2.msra.mxu0 0.0
      %5309 = vmatprep.subr.mxu0 0.0
      %5310 = vmatpush2.msra.mxu0 0.0
      %5311 = vmatprep.subr.mxu0 0.0
      %5312 = vmatpush2.msra.mxu0 0.0
      %5313 = vmatprep.subr.mxu0 0.0
      %5314 = vmatpush2.msra.mxu0 0.0
      %5315 = vmatprep.subr.mxu0 0.0
      %5316 = vmatpush2.msra.mxu0 0.0
      %5317 = vmatprep.subr.mxu0 0.0
      %5318 = vmatpush2.msra.mxu0 0.0
      %5319 = vmatprep.subr.mxu0 0.0
      %5320 = vmatpush2.msra.mxu0 0.0
      %5321 = vmatprep.subr.mxu0 0.0
      %5322 = vmatpush2.msra.mxu0 0.0
      %5323 = vmatprep.subr.mxu0 0.0
      %5324 = vmatpush2.msra.mxu0 0.0
      %5325 = vmatprep.subr.mxu0 0.0
      %5326 = vmatpush2.msra.mxu0 0.0
      %5327 = vmatprep.subr.mxu0 0.0
      %5328 = vmatpush2.msra.mxu0 0.0
      %5329 = vmatprep.subr.mxu0 0.0
      %5330 = vmatpush2.msra.mxu0 0.0
      %5331 = vmatprep.subr.mxu0 0.0
      %5332 = vmatpush2.msra.mxu0 0.0
      %5333 = vmatprep.mubr.f32.mxu0 0.0
      %5334 = vmatmul.mubr.f32.gmra.mxu0 %v4977
      %v5335 = vpop.f32.mrf.mxu0
      %v5336 = vadd.f32 0.0, %v5335
      %v5337 = vpop.f32.mrf.mxu0
      %5338 = vdwg.mxu0
      %5339 = vmatprep.subr.mxu0 0.0
      %5340 = vmatpush1.msra.mxu0 0.0
      %5341 = vmatprep.subr.mxu0 0.0
      %5342 = vmatpush1.msra.mxu0 0.0
      %5343 = vmatprep.subr.mxu0 0.0
      %5344 = vmatpush1.msra.mxu0 0.0
      %5345 = vmatprep.subr.mxu0 0.0
      %5346 = vmatpush1.msra.mxu0 0.0
      %5347 = vmatprep.subr.mxu0 0.0
      %5348 = vmatpush1.msra.mxu0 0.0
      %5349 = vmatprep.subr.mxu0 0.0
      %5350 = vmatpush1.msra.mxu0 0.0
      %5351 = vmatprep.subr.mxu0 0.0
      %5352 = vmatpush1.msra.mxu0 0.0
      %5353 = vmatprep.subr.mxu0 0.0
      %5354 = vmatpush1.msra.mxu0 0.0
      %5355 = vmatprep.subr.mxu0 0.0
      %5356 = vmatpush1.msra.mxu0 0.0
      %5357 = vmatprep.subr.mxu0 0.0
      %5358 = vmatpush1.msra.mxu0 0.0
      %5359 = vmatprep.subr.mxu0 0.0
      %5360 = vmatpush1.msra.mxu0 0.0
      %5361 = vmatprep.subr.mxu0 0.0
      %5362 = vmatpush1.msra.mxu0 0.0
      %5363 = vmatprep.subr.mxu0 0.0
      %5364 = vmatpush1.msra.mxu0 0.0
      %5365 = vmatprep.subr.mxu0 0.0
      %5366 = vmatpush1.msra.mxu0 0.0
      %5367 = vmatprep.subr.mxu0 0.0
      %5368 = vmatpush1.msra.mxu0 0.0
      %5369 = vmatprep.subr.mxu0 0.0
      %5370 = vmatpush1.msra.mxu0 %v5197
      %5371 = vmatprep.subr.mxu0 0.0
      %5372 = vmatpush2.msra.mxu0 0.0
      %5373 = vmatprep.subr.mxu0 0.0
      %5374 = vmatpush2.msra.mxu0 0.0
      %5375 = vmatprep.subr.mxu0 0.0
      %5376 = vmatpush2.msra.mxu0 0.0
      %5377 = vmatprep.subr.mxu0 0.0
      %5378 = vmatpush2.msra.mxu0 0.0
      %5379 = vmatprep.subr.mxu0 0.0
      %5380 = vmatpush2.msra.mxu0 0.0
      %5381 = vmatprep.subr.mxu0 0.0
      %5382 = vmatpush2.msra.mxu0 0.0
      %5383 = vmatprep.subr.mxu0 0.0
      %5384 = vmatpush2.msra.mxu0 0.0
      %5385 = vmatprep.subr.mxu0 0.0
      %5386 = vmatpush2.msra.mxu0 0.0
      %5387 = vmatprep.subr.mxu0 0.0
      %5388 = vmatpush2.msra.mxu0 0.0
      %5389 = vmatprep.subr.mxu0 0.0
      %5390 = vmatpush2.msra.mxu0 0.0
      %5391 = vmatprep.subr.mxu0 0.0
      %5392 = vmatpush2.msra.mxu0 0.0
      %5393 = vmatprep.subr.mxu0 0.0
      %5394 = vmatpush2.msra.mxu0 0.0
      %5395 = vmatprep.subr.mxu0 0.0
      %5396 = vmatpush2.msra.mxu0 0.0
      %5397 = vmatprep.subr.mxu0 0.0
      %5398 = vmatpush2.msra.mxu0 0.0
      %5399 = vmatprep.subr.mxu0 0.0
      %5400 = vmatpush2.msra.mxu0 0.0
      %5401 = vmatprep.subr.mxu0 0.0
      %5402 = vmatpush2.msra.mxu0 0.0
      %5403 = vmatprep.mubr.f32.mxu0 0.0
      %5404 = vmatmul.mubr.f32.gmra.mxu0 %v5050
      %v5405 = vpop.f32.mrf.mxu0
      %v5406 = vadd.f32 0.0, %v5405
      %v5407 = vpop.f32.mrf.mxu0
      %5408 = vdwg.mxu0
      %5409 = vmatprep.subr.mxu0 0.0
      %5410 = vmatpush1.msra.mxu0 0.0
      %5411 = vmatprep.subr.mxu0 0.0
      %5412 = vmatpush1.msra.mxu0 0.0
      %5413 = vmatprep.subr.mxu0 0.0
      %5414 = vmatpush1.msra.mxu0 0.0
      %5415 = vmatprep.subr.mxu0 0.0
      %5416 = vmatpush1.msra.mxu0 0.0
      %5417 = vmatprep.subr.mxu0 0.0
      %5418 = vmatpush1.msra.mxu0 0.0
      %5419 = vmatprep.subr.mxu0 0.0
      %5420 = vmatpush1.msra.mxu0 0.0
      %5421 = vmatprep.subr.mxu0 0.0
      %5422 = vmatpush1.msra.mxu0 0.0
      %5423 = vmatprep.subr.mxu0 0.0
      %5424 = vmatpush1.msra.mxu0 0.0
      %5425 = vmatprep.subr.mxu0 0.0
      %5426 = vmatpush1.msra.mxu0 0.0
      %5427 = vmatprep.subr.mxu0 0.0
      %5428 = vmatpush1.msra.mxu0 0.0
      %5429 = vmatprep.subr.mxu0 0.0
      %5430 = vmatpush1.msra.mxu0 0.0
      %5431 = vmatprep.subr.mxu0 0.0
      %5432 = vmatpush1.msra.mxu0 0.0
      %5433 = vmatprep.subr.mxu0 0.0
      %5434 = vmatpush1.msra.mxu0 0.0
      %5435 = vmatprep.subr.mxu0 0.0
      %5436 = vmatpush1.msra.mxu0 0.0
      %5437 = vmatprep.subr.mxu0 0.0
      %5438 = vmatpush1.msra.mxu0 0.0
      %5439 = vmatprep.subr.mxu0 0.0
      %5440 = vmatpush1.msra.mxu0 %v5198
      %5441 = vmatprep.subr.mxu0 0.0
      %5442 = vmatpush2.msra.mxu0 0.0
      %5443 = vmatprep.subr.mxu0 0.0
      %5444 = vmatpush2.msra.mxu0 0.0
      %5445 = vmatprep.subr.mxu0 0.0
      %5446 = vmatpush2.msra.mxu0 0.0
      %5447 = vmatprep.subr.mxu0 0.0
      %5448 = vmatpush2.msra.mxu0 0.0
      %5449 = vmatprep.subr.mxu0 0.0
      %5450 = vmatpush2.msra.mxu0 0.0
      %5451 = vmatprep.subr.mxu0 0.0
      %5452 = vmatpush2.msra.mxu0 0.0
      %5453 = vmatprep.subr.mxu0 0.0
      %5454 = vmatpush2.msra.mxu0 0.0
      %5455 = vmatprep.subr.mxu0 0.0
      %5456 = vmatpush2.msra.mxu0 0.0
      %5457 = vmatprep.subr.mxu0 0.0
      %5458 = vmatpush2.msra.mxu0 0.0
      %5459 = vmatprep.subr.mxu0 0.0
      %5460 = vmatpush2.msra.mxu0 0.0
      %5461 = vmatprep.subr.mxu0 0.0
      %5462 = vmatpush2.msra.mxu0 0.0
      %5463 = vmatprep.subr.mxu0 0.0
      %5464 = vmatpush2.msra.mxu0 0.0
      %5465 = vmatprep.subr.mxu0 0.0
      %5466 = vmatpush2.msra.mxu0 0.0
      %5467 = vmatprep.subr.mxu0 0.0
      %5468 = vmatpush2.msra.mxu0 0.0
      %5469 = vmatprep.subr.mxu0 0.0
      %5470 = vmatpush2.msra.mxu0 0.0
      %5471 = vmatprep.subr.mxu0 0.0
      %5472 = vmatpush2.msra.mxu0 0.0
      %5473 = vmatprep.mubr.f32.mxu0 0.0
      %5474 = vmatmul.mubr.f32.gmra.mxu0 %v5123
      %v5475 = vpop.f32.mrf.mxu0
      %v5476 = vadd.f32 0.0, %v5475
      %v5477 = vpop.f32.mrf.mxu0
      %5478 = vdwg.mxu0
      %v5479 = vsub.f32 %v2878, %v5266
      %v5480 = vsub.f32 %v2878, %v5336
      %v5481 = vsub.f32 %v2878, %v5406
      %v5482 = vsub.f32 %v2878, %v5476
      %v5483 = vmul.f32 %v4397, 0.25
      %v5484 = vmul.f32 %v4470, 0.25
      %v5485 = vmul.f32 %v4543, 0.25
      %v5486 = vmul.f32 %v4616, 0.25
      %v5488 = vsel %vm833, %v5483, 0
      %5490 = vmatprep.subr.mxu0 0.0
      %5491 = vmatpush1.msra.mxu0 0.0
      %5492 = vmatprep.subr.mxu0 0.0
      %5493 = vmatpush1.msra.mxu0 0.0
      %5494 = vmatprep.subr.mxu0 0.0
      %5495 = vmatpush1.msra.mxu0 0.0
      %5496 = vmatprep.subr.mxu0 0.0
      %5497 = vmatpush1.msra.mxu0 0.0
      %5498 = vmatprep.subr.mxu0 0.0
      %5499 = vmatpush1.msra.mxu0 0.0
      %5500 = vmatprep.subr.mxu0 0.0
      %5501 = vmatpush1.msra.mxu0 0.0
      %5502 = vmatprep.subr.mxu0 0.0
      %5503 = vmatpush1.msra.mxu0 0.0
      %5504 = vmatprep.subr.mxu0 0.0
      %5505 = vmatpush1.msra.mxu0 0.0
      %5506 = vmatprep.subr.mxu0 0.0
      %5507 = vmatpush1.msra.mxu0 0.0
      %5508 = vmatprep.subr.mxu0 0.0
      %5509 = vmatpush1.msra.mxu0 0.0
      %5510 = vmatprep.subr.mxu0 0.0
      %5511 = vmatpush1.msra.mxu0 0.0
      %5512 = vmatprep.subr.mxu0 0.0
      %5513 = vmatpush1.msra.mxu0 0.0
      %5514 = vmatprep.subr.mxu0 0.0
      %5515 = vmatpush1.msra.mxu0 0.0
      %5516 = vmatprep.subr.mxu0 0.0
      %5517 = vmatpush1.msra.mxu0 0.0
      %5518 = vmatprep.subr.mxu0 0.0
      %5519 = vmatpush1.msra.mxu0 0.0
      %5520 = vmatprep.subr.mxu0 0.0
      %5521 = vmatpush1.msra.mxu0 %v5479
      %5522 = vmatprep.subr.mxu0 0.0
      %5523 = vmatpush2.msra.mxu0 0.0
      %5524 = vmatprep.subr.mxu0 0.0
      %5525 = vmatpush2.msra.mxu0 0.0
      %5526 = vmatprep.subr.mxu0 0.0
      %5527 = vmatpush2.msra.mxu0 0.0
      %5528 = vmatprep.subr.mxu0 0.0
      %5529 = vmatpush2.msra.mxu0 0.0
      %5530 = vmatprep.subr.mxu0 0.0
      %5531 = vmatpush2.msra.mxu0 0.0
      %5532 = vmatprep.subr.mxu0 0.0
      %5533 = vmatpush2.msra.mxu0 0.0
      %5534 = vmatprep.subr.mxu0 0.0
      %5535 = vmatpush2.msra.mxu0 0.0
      %5536 = vmatprep.subr.mxu0 0.0
      %5537 = vmatpush2.msra.mxu0 0.0
      %5538 = vmatprep.subr.mxu0 0.0
      %5539 = vmatpush2.msra.mxu0 0.0
      %5540 = vmatprep.subr.mxu0 0.0
      %5541 = vmatpush2.msra.mxu0 0.0
      %5542 = vmatprep.subr.mxu0 0.0
      %5543 = vmatpush2.msra.mxu0 0.0
      %5544 = vmatprep.subr.mxu0 0.0
      %5545 = vmatpush2.msra.mxu0 0.0
      %5546 = vmatprep.subr.mxu0 0.0
      %5547 = vmatpush2.msra.mxu0 0.0
      %5548 = vmatprep.subr.mxu0 0.0
      %5549 = vmatpush2.msra.mxu0 0.0
      %5550 = vmatprep.subr.mxu0 0.0
      %5551 = vmatpush2.msra.mxu0 0.0
      %5552 = vmatprep.subr.mxu0 0.0
      %5553 = vmatpush2.msra.mxu0 0.0
      %5554 = vmatprep.mubr.f32.mxu0 0.0
      %5555 = vmatmul.mubr.f32.gmra.mxu0 %v5488
      %v5556 = vpop.f32.mrf.mxu0
      %v5557 = vadd.f32 0.0, %v5556
      %v5558 = vpop.f32.mrf.mxu0
      %5559 = vdwg.mxu0
      %v5561 = vsel %vm833, %v5484, 0
      %5563 = vmatprep.subr.mxu0 0.0
      %5564 = vmatpush1.msra.mxu0 0.0
      %5565 = vmatprep.subr.mxu0 0.0
      %5566 = vmatpush1.msra.mxu0 0.0
      %5567 = vmatprep.subr.mxu0 0.0
      %5568 = vmatpush1.msra.mxu0 0.0
      %5569 = vmatprep.subr.mxu0 0.0
      %5570 = vmatpush1.msra.mxu0 0.0
      %5571 = vmatprep.subr.mxu0 0.0
      %5572 = vmatpush1.msra.mxu0 0.0
      %5573 = vmatprep.subr.mxu0 0.0
      %5574 = vmatpush1.msra.mxu0 0.0
      %5575 = vmatprep.subr.mxu0 0.0
      %5576 = vmatpush1.msra.mxu0 0.0
      %5577 = vmatprep.subr.mxu0 0.0
      %5578 = vmatpush1.msra.mxu0 0.0
      %5579 = vmatprep.subr.mxu0 0.0
      %5580 = vmatpush1.msra.mxu0 0.0
      %5581 = vmatprep.subr.mxu0 0.0
      %5582 = vmatpush1.msra.mxu0 0.0
      %5583 = vmatprep.subr.mxu0 0.0
      %5584 = vmatpush1.msra.mxu0 0.0
      %5585 = vmatprep.subr.mxu0 0.0
      %5586 = vmatpush1.msra.mxu0 0.0
      %5587 = vmatprep.subr.mxu0 0.0
      %5588 = vmatpush1.msra.mxu0 0.0
      %5589 = vmatprep.subr.mxu0 0.0
      %5590 = vmatpush1.msra.mxu0 0.0
      %5591 = vmatprep.subr.mxu0 0.0
      %5592 = vmatpush1.msra.mxu0 0.0
      %5593 = vmatprep.subr.mxu0 0.0
      %5594 = vmatpush1.msra.mxu0 %v5480
      %5595 = vmatprep.subr.mxu0 0.0
      %5596 = vmatpush2.msra.mxu0 0.0
      %5597 = vmatprep.subr.mxu0 0.0
      %5598 = vmatpush2.msra.mxu0 0.0
      %5599 = vmatprep.subr.mxu0 0.0
      %5600 = vmatpush2.msra.mxu0 0.0
      %5601 = vmatprep.subr.mxu0 0.0
      %5602 = vmatpush2.msra.mxu0 0.0
      %5603 = vmatprep.subr.mxu0 0.0
      %5604 = vmatpush2.msra.mxu0 0.0
      %5605 = vmatprep.subr.mxu0 0.0
      %5606 = vmatpush2.msra.mxu0 0.0
      %5607 = vmatprep.subr.mxu0 0.0
      %5608 = vmatpush2.msra.mxu0 0.0
      %5609 = vmatprep.subr.mxu0 0.0
      %5610 = vmatpush2.msra.mxu0 0.0
      %5611 = vmatprep.subr.mxu0 0.0
      %5612 = vmatpush2.msra.mxu0 0.0
      %5613 = vmatprep.subr.mxu0 0.0
      %5614 = vmatpush2.msra.mxu0 0.0
      %5615 = vmatprep.subr.mxu0 0.0
      %5616 = vmatpush2.msra.mxu0 0.0
      %5617 = vmatprep.subr.mxu0 0.0
      %5618 = vmatpush2.msra.mxu0 0.0
      %5619 = vmatprep.subr.mxu0 0.0
      %5620 = vmatpush2.msra.mxu0 0.0
      %5621 = vmatprep.subr.mxu0 0.0
      %5622 = vmatpush2.msra.mxu0 0.0
      %5623 = vmatprep.subr.mxu0 0.0
      %5624 = vmatpush2.msra.mxu0 0.0
      %5625 = vmatprep.subr.mxu0 0.0
      %5626 = vmatpush2.msra.mxu0 0.0
      %5627 = vmatprep.mubr.f32.mxu0 0.0
      %5628 = vmatmul.mubr.f32.gmra.mxu0 %v5561
      %v5629 = vpop.f32.mrf.mxu0
      %v5630 = vadd.f32 0.0, %v5629
      %v5631 = vpop.f32.mrf.mxu0
      %5632 = vdwg.mxu0
      %v5634 = vsel %vm833, %v5485, 0
      %5636 = vmatprep.subr.mxu0 0.0
      %5637 = vmatpush1.msra.mxu0 0.0
      %5638 = vmatprep.subr.mxu0 0.0
      %5639 = vmatpush1.msra.mxu0 0.0
      %5640 = vmatprep.subr.mxu0 0.0
      %5641 = vmatpush1.msra.mxu0 0.0
      %5642 = vmatprep.subr.mxu0 0.0
      %5643 = vmatpush1.msra.mxu0 0.0
      %5644 = vmatprep.subr.mxu0 0.0
      %5645 = vmatpush1.msra.mxu0 0.0
      %5646 = vmatprep.subr.mxu0 0.0
      %5647 = vmatpush1.msra.mxu0 0.0
      %5648 = vmatprep.subr.mxu0 0.0
      %5649 = vmatpush1.msra.mxu0 0.0
      %5650 = vmatprep.subr.mxu0 0.0
      %5651 = vmatpush1.msra.mxu0 0.0
      %5652 = vmatprep.subr.mxu0 0.0
      %5653 = vmatpush1.msra.mxu0 0.0
      %5654 = vmatprep.subr.mxu0 0.0
      %5655 = vmatpush1.msra.mxu0 0.0
      %5656 = vmatprep.subr.mxu0 0.0
      %5657 = vmatpush1.msra.mxu0 0.0
      %5658 = vmatprep.subr.mxu0 0.0
      %5659 = vmatpush1.msra.mxu0 0.0
      %5660 = vmatprep.subr.mxu0 0.0
      %5661 = vmatpush1.msra.mxu0 0.0
      %5662 = vmatprep.subr.mxu0 0.0
      %5663 = vmatpush1.msra.mxu0 0.0
      %5664 = vmatprep.subr.mxu0 0.0
      %5665 = vmatpush1.msra.mxu0 0.0
      %5666 = vmatprep.subr.mxu0 0.0
      %5667 = vmatpush1.msra.mxu0 %v5481
      %5668 = vmatprep.subr.mxu0 0.0
      %5669 = vmatpush2.msra.mxu0 0.0
      %5670 = vmatprep.subr.mxu0 0.0
      %5671 = vmatpush2.msra.mxu0 0.0
      %5672 = vmatprep.subr.mxu0 0.0
      %5673 = vmatpush2.msra.mxu0 0.0
      %5674 = vmatprep.subr.mxu0 0.0
      %5675 = vmatpush2.msra.mxu0 0.0
      %5676 = vmatprep.subr.mxu0 0.0
      %5677 = vmatpush2.msra.mxu0 0.0
      %5678 = vmatprep.subr.mxu0 0.0
      %5679 = vmatpush2.msra.mxu0 0.0
      %5680 = vmatprep.subr.mxu0 0.0
      %5681 = vmatpush2.msra.mxu0 0.0
      %5682 = vmatprep.subr.mxu0 0.0
      %5683 = vmatpush2.msra.mxu0 0.0
      %5684 = vmatprep.subr.mxu0 0.0
      %5685 = vmatpush2.msra.mxu0 0.0
      %5686 = vmatprep.subr.mxu0 0.0
      %5687 = vmatpush2.msra.mxu0 0.0
      %5688 = vmatprep.subr.mxu0 0.0
      %5689 = vmatpush2.msra.mxu0 0.0
      %5690 = vmatprep.subr.mxu0 0.0
      %5691 = vmatpush2.msra.mxu0 0.0
      %5692 = vmatprep.subr.mxu0 0.0
      %5693 = vmatpush2.msra.mxu0 0.0
      %5694 = vmatprep.subr.mxu0 0.0
      %5695 = vmatpush2.msra.mxu0 0.0
      %5696 = vmatprep.subr.mxu0 0.0
      %5697 = vmatpush2.msra.mxu0 0.0
      %5698 = vmatprep.subr.mxu0 0.0
      %5699 = vmatpush2.msra.mxu0 0.0
      %5700 = vmatprep.mubr.f32.mxu0 0.0
      %5701 = vmatmul.mubr.f32.gmra.mxu0 %v5634
      %v5702 = vpop.f32.mrf.mxu0
      %v5703 = vadd.f32 0.0, %v5702
      %v5704 = vpop.f32.mrf.mxu0
      %5705 = vdwg.mxu0
      %v5707 = vsel %vm833, %v5486, 0
      %5709 = vmatprep.subr.mxu0 0.0
      %5710 = vmatpush1.msra.mxu0 0.0
      %5711 = vmatprep.subr.mxu0 0.0
      %5712 = vmatpush1.msra.mxu0 0.0
      %5713 = vmatprep.subr.mxu0 0.0
      %5714 = vmatpush1.msra.mxu0 0.0
      %5715 = vmatprep.subr.mxu0 0.0
      %5716 = vmatpush1.msra.mxu0 0.0
      %5717 = vmatprep.subr.mxu0 0.0
      %5718 = vmatpush1.msra.mxu0 0.0
      %5719 = vmatprep.subr.mxu0 0.0
      %5720 = vmatpush1.msra.mxu0 0.0
      %5721 = vmatprep.subr.mxu0 0.0
      %5722 = vmatpush1.msra.mxu0 0.0
      %5723 = vmatprep.subr.mxu0 0.0
      %5724 = vmatpush1.msra.mxu0 0.0
      %5725 = vmatprep.subr.mxu0 0.0
      %5726 = vmatpush1.msra.mxu0 0.0
      %5727 = vmatprep.subr.mxu0 0.0
      %5728 = vmatpush1.msra.mxu0 0.0
      %5729 = vmatprep.subr.mxu0 0.0
      %5730 = vmatpush1.msra.mxu0 0.0
      %5731 = vmatprep.subr.mxu0 0.0
      %5732 = vmatpush1.msra.mxu0 0.0
      %5733 = vmatprep.subr.mxu0 0.0
      %5734 = vmatpush1.msra.mxu0 0.0
      %5735 = vmatprep.subr.mxu0 0.0
      %5736 = vmatpush1.msra.mxu0 0.0
      %5737 = vmatprep.subr.mxu0 0.0
      %5738 = vmatpush1.msra.mxu0 0.0
      %5739 = vmatprep.subr.mxu0 0.0
      %5740 = vmatpush1.msra.mxu0 %v5482
      %5741 = vmatprep.subr.mxu0 0.0
      %5742 = vmatpush2.msra.mxu0 0.0
      %5743 = vmatprep.subr.mxu0 0.0
      %5744 = vmatpush2.msra.mxu0 0.0
      %5745 = vmatprep.subr.mxu0 0.0
      %5746 = vmatpush2.msra.mxu0 0.0
      %5747 = vmatprep.subr.mxu0 0.0
      %5748 = vmatpush2.msra.mxu0 0.0
      %5749 = vmatprep.subr.mxu0 0.0
      %5750 = vmatpush2.msra.mxu0 0.0
      %5751 = vmatprep.subr.mxu0 0.0
      %5752 = vmatpush2.msra.mxu0 0.0
      %5753 = vmatprep.subr.mxu0 0.0
      %5754 = vmatpush2.msra.mxu0 0.0
      %5755 = vmatprep.subr.mxu0 0.0
      %5756 = vmatpush2.msra.mxu0 0.0
      %5757 = vmatprep.subr.mxu0 0.0
      %5758 = vmatpush2.msra.mxu0 0.0
      %5759 = vmatprep.subr.mxu0 0.0
      %5760 = vmatpush2.msra.mxu0 0.0
      %5761 = vmatprep.subr.mxu0 0.0
      %5762 = vmatpush2.msra.mxu0 0.0
      %5763 = vmatprep.subr.mxu0 0.0
      %5764 = vmatpush2.msra.mxu0 0.0
      %5765 = vmatprep.subr.mxu0 0.0
      %5766 = vmatpush2.msra.mxu0 0.0
      %5767 = vmatprep.subr.mxu0 0.0
      %5768 = vmatpush2.msra.mxu0 0.0
      %5769 = vmatprep.subr.mxu0 0.0
      %5770 = vmatpush2.msra.mxu0 0.0
      %5771 = vmatprep.subr.mxu0 0.0
      %5772 = vmatpush2.msra.mxu0 0.0
      %5773 = vmatprep.mubr.f32.mxu0 0.0
      %5774 = vmatmul.mubr.f32.gmra.mxu0 %v5707
      %v5775 = vpop.f32.mrf.mxu0
      %v5776 = vadd.f32 0.0, %v5775
      %v5777 = vpop.f32.mrf.mxu0
      %5778 = vdwg.mxu0
      %5779 = vmatprep.subr.mxu0 0.0
      %5780 = vmatpush1.msra.mxu0 0.0
      %5781 = vmatprep.subr.mxu0 0.0
      %5782 = vmatpush1.msra.mxu0 0.0
      %5783 = vmatprep.subr.mxu0 0.0
      %5784 = vmatpush1.msra.mxu0 0.0
      %5785 = vmatprep.subr.mxu0 0.0
      %5786 = vmatpush1.msra.mxu0 0.0
      %5787 = vmatprep.subr.mxu0 0.0
      %5788 = vmatpush1.msra.mxu0 0.0
      %5789 = vmatprep.subr.mxu0 0.0
      %5790 = vmatpush1.msra.mxu0 0.0
      %5791 = vmatprep.subr.mxu0 0.0
      %5792 = vmatpush1.msra.mxu0 0.0
      %5793 = vmatprep.subr.mxu0 0.0
      %5794 = vmatpush1.msra.mxu0 0.0
      %5795 = vmatprep.subr.mxu0 0.0
      %5796 = vmatpush1.msra.mxu0 0.0
      %5797 = vmatprep.subr.mxu0 0.0
      %5798 = vmatpush1.msra.mxu0 0.0
      %5799 = vmatprep.subr.mxu0 0.0
      %5800 = vmatpush1.msra.mxu0 0.0
      %5801 = vmatprep.subr.mxu0 0.0
      %5802 = vmatpush1.msra.mxu0 0.0
      %5803 = vmatprep.subr.mxu0 0.0
      %5804 = vmatpush1.msra.mxu0 0.0
      %5805 = vmatprep.subr.mxu0 0.0
      %5806 = vmatpush1.msra.mxu0 0.0
      %5807 = vmatprep.subr.mxu0 0.0
      %5808 = vmatpush1.msra.mxu0 0.0
      %5809 = vmatprep.subr.mxu0 0.0
      %5810 = vmatpush1.msra.mxu0 %v5557
      %5811 = vmatprep.subr.mxu0 0.0
      %5812 = vmatpush2.msra.mxu0 0.0
      %5813 = vmatprep.subr.mxu0 0.0
      %5814 = vmatpush2.msra.mxu0 0.0
      %5815 = vmatprep.subr.mxu0 0.0
      %5816 = vmatpush2.msra.mxu0 0.0
      %5817 = vmatprep.subr.mxu0 0.0
      %5818 = vmatpush2.msra.mxu0 0.0
      %5819 = vmatprep.subr.mxu0 0.0
      %5820 = vmatpush2.msra.mxu0 0.0
      %5821 = vmatprep.subr.mxu0 0.0
      %5822 = vmatpush2.msra.mxu0 0.0
      %5823 = vmatprep.subr.mxu0 0.0
      %5824 = vmatpush2.msra.mxu0 0.0
      %5825 = vmatprep.subr.mxu0 0.0
      %5826 = vmatpush2.msra.mxu0 0.0
      %5827 = vmatprep.subr.mxu0 0.0
      %5828 = vmatpush2.msra.mxu0 0.0
      %5829 = vmatprep.subr.mxu0 0.0
      %5830 = vmatpush2.msra.mxu0 0.0
      %5831 = vmatprep.subr.mxu0 0.0
      %5832 = vmatpush2.msra.mxu0 0.0
      %5833 = vmatprep.subr.mxu0 0.0
      %5834 = vmatpush2.msra.mxu0 0.0
      %5835 = vmatprep.subr.mxu0 0.0
      %5836 = vmatpush2.msra.mxu0 0.0
      %5837 = vmatprep.subr.mxu0 0.0
      %5838 = vmatpush2.msra.mxu0 0.0
      %5839 = vmatprep.subr.mxu0 0.0
      %5840 = vmatpush2.msra.mxu0 0.0
      %5841 = vmatprep.subr.mxu0 0.0
      %5842 = vmatpush2.msra.mxu0 0.0
      %5843 = vmatprep.mubr.f32.mxu0 0.0
      %5844 = vmatmul.mubr.f32.gmra.mxu0 %v2285
      %v5845 = vpop.f32.mrf.mxu0
      %v5846 = vadd.f32 0.0, %v5845
      %v5847 = vpop.f32.mrf.mxu0
      %5848 = vdwg.mxu0
      %5849 = vmatprep.subr.mxu0 0.0
      %5850 = vmatpush1.msra.mxu0 0.0
      %5851 = vmatprep.subr.mxu0 0.0
      %5852 = vmatpush1.msra.mxu0 0.0
      %5853 = vmatprep.subr.mxu0 0.0
      %5854 = vmatpush1.msra.mxu0 0.0
      %5855 = vmatprep.subr.mxu0 0.0
      %5856 = vmatpush1.msra.mxu0 0.0
      %5857 = vmatprep.subr.mxu0 0.0
      %5858 = vmatpush1.msra.mxu0 0.0
      %5859 = vmatprep.subr.mxu0 0.0
      %5860 = vmatpush1.msra.mxu0 0.0
      %5861 = vmatprep.subr.mxu0 0.0
      %5862 = vmatpush1.msra.mxu0 0.0
      %5863 = vmatprep.subr.mxu0 0.0
      %5864 = vmatpush1.msra.mxu0 0.0
      %5865 = vmatprep.subr.mxu0 0.0
      %5866 = vmatpush1.msra.mxu0 0.0
      %5867 = vmatprep.subr.mxu0 0.0
      %5868 = vmatpush1.msra.mxu0 0.0
      %5869 = vmatprep.subr.mxu0 0.0
      %5870 = vmatpush1.msra.mxu0 0.0
      %5871 = vmatprep.subr.mxu0 0.0
      %5872 = vmatpush1.msra.mxu0 0.0
      %5873 = vmatprep.subr.mxu0 0.0
      %5874 = vmatpush1.msra.mxu0 0.0
      %5875 = vmatprep.subr.mxu0 0.0
      %5876 = vmatpush1.msra.mxu0 0.0
      %5877 = vmatprep.subr.mxu0 0.0
      %5878 = vmatpush1.msra.mxu0 0.0
      %5879 = vmatprep.subr.mxu0 0.0
      %5880 = vmatpush1.msra.mxu0 %v5630
      %5881 = vmatprep.subr.mxu0 0.0
      %5882 = vmatpush2.msra.mxu0 0.0
      %5883 = vmatprep.subr.mxu0 0.0
      %5884 = vmatpush2.msra.mxu0 0.0
      %5885 = vmatprep.subr.mxu0 0.0
      %5886 = vmatpush2.msra.mxu0 0.0
      %5887 = vmatprep.subr.mxu0 0.0
      %5888 = vmatpush2.msra.mxu0 0.0
      %5889 = vmatprep.subr.mxu0 0.0
      %5890 = vmatpush2.msra.mxu0 0.0
      %5891 = vmatprep.subr.mxu0 0.0
      %5892 = vmatpush2.msra.mxu0 0.0
      %5893 = vmatprep.subr.mxu0 0.0
      %5894 = vmatpush2.msra.mxu0 0.0
      %5895 = vmatprep.subr.mxu0 0.0
      %5896 = vmatpush2.msra.mxu0 0.0
      %5897 = vmatprep.subr.mxu0 0.0
      %5898 = vmatpush2.msra.mxu0 0.0
      %5899 = vmatprep.subr.mxu0 0.0
      %5900 = vmatpush2.msra.mxu0 0.0
      %5901 = vmatprep.subr.mxu0 0.0
      %5902 = vmatpush2.msra.mxu0 0.0
      %5903 = vmatprep.subr.mxu0 0.0
      %5904 = vmatpush2.msra.mxu0 0.0
      %5905 = vmatprep.subr.mxu0 0.0
      %5906 = vmatpush2.msra.mxu0 0.0
      %5907 = vmatprep.subr.mxu0 0.0
      %5908 = vmatpush2.msra.mxu0 0.0
      %5909 = vmatprep.subr.mxu0 0.0
      %5910 = vmatpush2.msra.mxu0 0.0
      %5911 = vmatprep.subr.mxu0 0.0
      %5912 = vmatpush2.msra.mxu0 0.0
      %5913 = vmatprep.mubr.f32.mxu0 0.0
      %5914 = vmatmul.mubr.f32.gmra.mxu0 %v2358
      %v5915 = vpop.f32.mrf.mxu0
      %v5916 = vadd.f32 0.0, %v5915
      %v5917 = vpop.f32.mrf.mxu0
      %5918 = vdwg.mxu0
      %5919 = vmatprep.subr.mxu0 0.0
      %5920 = vmatpush1.msra.mxu0 0.0
      %5921 = vmatprep.subr.mxu0 0.0
      %5922 = vmatpush1.msra.mxu0 0.0
      %5923 = vmatprep.subr.mxu0 0.0
      %5924 = vmatpush1.msra.mxu0 0.0
      %5925 = vmatprep.subr.mxu0 0.0
      %5926 = vmatpush1.msra.mxu0 0.0
      %5927 = vmatprep.subr.mxu0 0.0
      %5928 = vmatpush1.msra.mxu0 0.0
      %5929 = vmatprep.subr.mxu0 0.0
      %5930 = vmatpush1.msra.mxu0 0.0
      %5931 = vmatprep.subr.mxu0 0.0
      %5932 = vmatpush1.msra.mxu0 0.0
      %5933 = vmatprep.subr.mxu0 0.0
      %5934 = vmatpush1.msra.mxu0 0.0
      %5935 = vmatprep.subr.mxu0 0.0
      %5936 = vmatpush1.msra.mxu0 0.0
      %5937 = vmatprep.subr.mxu0 0.0
      %5938 = vmatpush1.msra.mxu0 0.0
      %5939 = vmatprep.subr.mxu0 0.0
      %5940 = vmatpush1.msra.mxu0 0.0
      %5941 = vmatprep.subr.mxu0 0.0
      %5942 = vmatpush1.msra.mxu0 0.0
      %5943 = vmatprep.subr.mxu0 0.0
      %5944 = vmatpush1.msra.mxu0 0.0
      %5945 = vmatprep.subr.mxu0 0.0
      %5946 = vmatpush1.msra.mxu0 0.0
      %5947 = vmatprep.subr.mxu0 0.0
      %5948 = vmatpush1.msra.mxu0 0.0
      %5949 = vmatprep.subr.mxu0 0.0
      %5950 = vmatpush1.msra.mxu0 %v5703
      %5951 = vmatprep.subr.mxu0 0.0
      %5952 = vmatpush2.msra.mxu0 0.0
      %5953 = vmatprep.subr.mxu0 0.0
      %5954 = vmatpush2.msra.mxu0 0.0
      %5955 = vmatprep.subr.mxu0 0.0
      %5956 = vmatpush2.msra.mxu0 0.0
      %5957 = vmatprep.subr.mxu0 0.0
      %5958 = vmatpush2.msra.mxu0 0.0
      %5959 = vmatprep.subr.mxu0 0.0
      %5960 = vmatpush2.msra.mxu0 0.0
      %5961 = vmatprep.subr.mxu0 0.0
      %5962 = vmatpush2.msra.mxu0 0.0
      %5963 = vmatprep.subr.mxu0 0.0
      %5964 = vmatpush2.msra.mxu0 0.0
      %5965 = vmatprep.subr.mxu0 0.0
      %5966 = vmatpush2.msra.mxu0 0.0
      %5967 = vmatprep.subr.mxu0 0.0
      %5968 = vmatpush2.msra.mxu0 0.0
      %5969 = vmatprep.subr.mxu0 0.0
      %5970 = vmatpush2.msra.mxu0 0.0
      %5971 = vmatprep.subr.mxu0 0.0
      %5972 = vmatpush2.msra.mxu0 0.0
      %5973 = vmatprep.subr.mxu0 0.0
      %5974 = vmatpush2.msra.mxu0 0.0
      %5975 = vmatprep.subr.mxu0 0.0
      %5976 = vmatpush2.msra.mxu0 0.0
      %5977 = vmatprep.subr.mxu0 0.0
      %5978 = vmatpush2.msra.mxu0 0.0
      %5979 = vmatprep.subr.mxu0 0.0
      %5980 = vmatpush2.msra.mxu0 0.0
      %5981 = vmatprep.subr.mxu0 0.0
      %5982 = vmatpush2.msra.mxu0 0.0
      %5983 = vmatprep.mubr.f32.mxu0 0.0
      %5984 = vmatmul.mubr.f32.gmra.mxu0 %v2431
      %v5985 = vpop.f32.mrf.mxu0
      %v5986 = vadd.f32 0.0, %v5985
      %v5987 = vpop.f32.mrf.mxu0
      %5988 = vdwg.mxu0
      %5989 = vmatprep.subr.mxu0 0.0
      %5990 = vmatpush1.msra.mxu0 0.0
      %5991 = vmatprep.subr.mxu0 0.0
      %5992 = vmatpush1.msra.mxu0 0.0
      %5993 = vmatprep.subr.mxu0 0.0
      %5994 = vmatpush1.msra.mxu0 0.0
      %5995 = vmatprep.subr.mxu0 0.0
      %5996 = vmatpush1.msra.mxu0 0.0
      %5997 = vmatprep.subr.mxu0 0.0
      %5998 = vmatpush1.msra.mxu0 0.0
      %5999 = vmatprep.subr.mxu0 0.0
      %6000 = vmatpush1.msra.mxu0 0.0
      %6001 = vmatprep.subr.mxu0 0.0
      %6002 = vmatpush1.msra.mxu0 0.0
      %6003 = vmatprep.subr.mxu0 0.0
      %6004 = vmatpush1.msra.mxu0 0.0
      %6005 = vmatprep.subr.mxu0 0.0
      %6006 = vmatpush1.msra.mxu0 0.0
      %6007 = vmatprep.subr.mxu0 0.0
      %6008 = vmatpush1.msra.mxu0 0.0
      %6009 = vmatprep.subr.mxu0 0.0
      %6010 = vmatpush1.msra.mxu0 0.0
      %6011 = vmatprep.subr.mxu0 0.0
      %6012 = vmatpush1.msra.mxu0 0.0
      %6013 = vmatprep.subr.mxu0 0.0
      %6014 = vmatpush1.msra.mxu0 0.0
      %6015 = vmatprep.subr.mxu0 0.0
      %6016 = vmatpush1.msra.mxu0 0.0
      %6017 = vmatprep.subr.mxu0 0.0
      %6018 = vmatpush1.msra.mxu0 0.0
      %6019 = vmatprep.subr.mxu0 0.0
      %6020 = vmatpush1.msra.mxu0 %v5776
      %6021 = vmatprep.subr.mxu0 0.0
      %6022 = vmatpush2.msra.mxu0 0.0
      %6023 = vmatprep.subr.mxu0 0.0
      %6024 = vmatpush2.msra.mxu0 0.0
      %6025 = vmatprep.subr.mxu0 0.0
      %6026 = vmatpush2.msra.mxu0 0.0
      %6027 = vmatprep.subr.mxu0 0.0
      %6028 = vmatpush2.msra.mxu0 0.0
      %6029 = vmatprep.subr.mxu0 0.0
      %6030 = vmatpush2.msra.mxu0 0.0
      %6031 = vmatprep.subr.mxu0 0.0
      %6032 = vmatpush2.msra.mxu0 0.0
      %6033 = vmatprep.subr.mxu0 0.0
      %6034 = vmatpush2.msra.mxu0 0.0
      %6035 = vmatprep.subr.mxu0 0.0
      %6036 = vmatpush2.msra.mxu0 0.0
      %6037 = vmatprep.subr.mxu0 0.0
      %6038 = vmatpush2.msra.mxu0 0.0
      %6039 = vmatprep.subr.mxu0 0.0
      %6040 = vmatpush2.msra.mxu0 0.0
      %6041 = vmatprep.subr.mxu0 0.0
      %6042 = vmatpush2.msra.mxu0 0.0
      %6043 = vmatprep.subr.mxu0 0.0
      %6044 = vmatpush2.msra.mxu0 0.0
      %6045 = vmatprep.subr.mxu0 0.0
      %6046 = vmatpush2.msra.mxu0 0.0
      %6047 = vmatprep.subr.mxu0 0.0
      %6048 = vmatpush2.msra.mxu0 0.0
      %6049 = vmatprep.subr.mxu0 0.0
      %6050 = vmatpush2.msra.mxu0 0.0
      %6051 = vmatprep.subr.mxu0 0.0
      %6052 = vmatpush2.msra.mxu0 0.0
      %6053 = vmatprep.mubr.f32.mxu0 0.0
      %6054 = vmatmul.mubr.f32.gmra.mxu0 %v2504
      %v6055 = vpop.f32.mrf.mxu0
      %v6056 = vadd.f32 0.0, %v6055
      %v6057 = vpop.f32.mrf.mxu0
      %6058 = vdwg.mxu0
      %v6059 = vsub.f32 %v2576, %v5846
      %v6060 = vsub.f32 %v2576, %v5916
      %v6061 = vsub.f32 %v2576, %v5986
      %v6062 = vsub.f32 %v2576, %v6056
      %v6064 = vsel %vm833, %v5846, 0
      %6066 = vmatprep.subr.mxu0 0.0
      %6067 = vmatpush1.msra.mxu0 0.0
      %6068 = vmatprep.subr.mxu0 0.0
      %6069 = vmatpush1.msra.mxu0 0.0
      %6070 = vmatprep.subr.mxu0 0.0
      %6071 = vmatpush1.msra.mxu0 0.0
      %6072 = vmatprep.subr.mxu0 0.0
      %6073 = vmatpush1.msra.mxu0 0.0
      %6074 = vmatprep.subr.mxu0 0.0
      %6075 = vmatpush1.msra.mxu0 0.0
      %6076 = vmatprep.subr.mxu0 0.0
      %6077 = vmatpush1.msra.mxu0 0.0
      %6078 = vmatprep.subr.mxu0 0.0
      %6079 = vmatpush1.msra.mxu0 0.0
      %6080 = vmatprep.subr.mxu0 0.0
      %6081 = vmatpush1.msra.mxu0 0.0
      %6082 = vmatprep.subr.mxu0 0.0
      %6083 = vmatpush1.msra.mxu0 0.0
      %6084 = vmatprep.subr.mxu0 0.0
      %6085 = vmatpush1.msra.mxu0 0.0
      %6086 = vmatprep.subr.mxu0 0.0
      %6087 = vmatpush1.msra.mxu0 0.0
      %6088 = vmatprep.subr.mxu0 0.0
      %6089 = vmatpush1.msra.mxu0 0.0
      %6090 = vmatprep.subr.mxu0 0.0
      %6091 = vmatpush1.msra.mxu0 0.0
      %6092 = vmatprep.subr.mxu0 0.0
      %6093 = vmatpush1.msra.mxu0 0.0
      %6094 = vmatprep.subr.mxu0 0.0
      %6095 = vmatpush1.msra.mxu0 0.0
      %6096 = vmatprep.subr.mxu0 0.0
      %6097 = vmatpush1.msra.mxu0 %v6059
      %6098 = vmatprep.subr.mxu0 0.0
      %6099 = vmatpush2.msra.mxu0 0.0
      %6100 = vmatprep.subr.mxu0 0.0
      %6101 = vmatpush2.msra.mxu0 0.0
      %6102 = vmatprep.subr.mxu0 0.0
      %6103 = vmatpush2.msra.mxu0 0.0
      %6104 = vmatprep.subr.mxu0 0.0
      %6105 = vmatpush2.msra.mxu0 0.0
      %6106 = vmatprep.subr.mxu0 0.0
      %6107 = vmatpush2.msra.mxu0 0.0
      %6108 = vmatprep.subr.mxu0 0.0
      %6109 = vmatpush2.msra.mxu0 0.0
      %6110 = vmatprep.subr.mxu0 0.0
      %6111 = vmatpush2.msra.mxu0 0.0
      %6112 = vmatprep.subr.mxu0 0.0
      %6113 = vmatpush2.msra.mxu0 0.0
      %6114 = vmatprep.subr.mxu0 0.0
      %6115 = vmatpush2.msra.mxu0 0.0
      %6116 = vmatprep.subr.mxu0 0.0
      %6117 = vmatpush2.msra.mxu0 0.0
      %6118 = vmatprep.subr.mxu0 0.0
      %6119 = vmatpush2.msra.mxu0 0.0
      %6120 = vmatprep.subr.mxu0 0.0
      %6121 = vmatpush2.msra.mxu0 0.0
      %6122 = vmatprep.subr.mxu0 0.0
      %6123 = vmatpush2.msra.mxu0 0.0
      %6124 = vmatprep.subr.mxu0 0.0
      %6125 = vmatpush2.msra.mxu0 0.0
      %6126 = vmatprep.subr.mxu0 0.0
      %6127 = vmatpush2.msra.mxu0 0.0
      %6128 = vmatprep.subr.mxu0 0.0
      %6129 = vmatpush2.msra.mxu0 0.0
      %6130 = vmatprep.mubr.f32.mxu0 0.0
      %6131 = vmatmul.mubr.f32.gmra.mxu0 %v6064
      %v6132 = vpop.f32.mrf.mxu0
      %v6133 = vadd.f32 0.0, %v6132
      %v6134 = vpop.f32.mrf.mxu0
      %6135 = vdwg.mxu0
      %v6137 = vsel %vm833, %v5916, 0
      %6139 = vmatprep.subr.mxu0 0.0
      %6140 = vmatpush1.msra.mxu0 0.0
      %6141 = vmatprep.subr.mxu0 0.0
      %6142 = vmatpush1.msra.mxu0 0.0
      %6143 = vmatprep.subr.mxu0 0.0
      %6144 = vmatpush1.msra.mxu0 0.0
      %6145 = vmatprep.subr.mxu0 0.0
      %6146 = vmatpush1.msra.mxu0 0.0
      %6147 = vmatprep.subr.mxu0 0.0
      %6148 = vmatpush1.msra.mxu0 0.0
      %6149 = vmatprep.subr.mxu0 0.0
      %6150 = vmatpush1.msra.mxu0 0.0
      %6151 = vmatprep.subr.mxu0 0.0
      %6152 = vmatpush1.msra.mxu0 0.0
      %6153 = vmatprep.subr.mxu0 0.0
      %6154 = vmatpush1.msra.mxu0 0.0
      %6155 = vmatprep.subr.mxu0 0.0
      %6156 = vmatpush1.msra.mxu0 0.0
      %6157 = vmatprep.subr.mxu0 0.0
      %6158 = vmatpush1.msra.mxu0 0.0
      %6159 = vmatprep.subr.mxu0 0.0
      %6160 = vmatpush1.msra.mxu0 0.0
      %6161 = vmatprep.subr.mxu0 0.0
      %6162 = vmatpush1.msra.mxu0 0.0
      %6163 = vmatprep.subr.mxu0 0.0
      %6164 = vmatpush1.msra.mxu0 0.0
      %6165 = vmatprep.subr.mxu0 0.0
      %6166 = vmatpush1.msra.mxu0 0.0
      %6167 = vmatprep.subr.mxu0 0.0
      %6168 = vmatpush1.msra.mxu0 0.0
      %6169 = vmatprep.subr.mxu0 0.0
      %6170 = vmatpush1.msra.mxu0 %v6060
      %6171 = vmatprep.subr.mxu0 0.0
      %6172 = vmatpush2.msra.mxu0 0.0
      %6173 = vmatprep.subr.mxu0 0.0
      %6174 = vmatpush2.msra.mxu0 0.0
      %6175 = vmatprep.subr.mxu0 0.0
      %6176 = vmatpush2.msra.mxu0 0.0
      %6177 = vmatprep.subr.mxu0 0.0
      %6178 = vmatpush2.msra.mxu0 0.0
      %6179 = vmatprep.subr.mxu0 0.0
      %6180 = vmatpush2.msra.mxu0 0.0
      %6181 = vmatprep.subr.mxu0 0.0
      %6182 = vmatpush2.msra.mxu0 0.0
      %6183 = vmatprep.subr.mxu0 0.0
      %6184 = vmatpush2.msra.mxu0 0.0
      %6185 = vmatprep.subr.mxu0 0.0
      %6186 = vmatpush2.msra.mxu0 0.0
      %6187 = vmatprep.subr.mxu0 0.0
      %6188 = vmatpush2.msra.mxu0 0.0
      %6189 = vmatprep.subr.mxu0 0.0
      %6190 = vmatpush2.msra.mxu0 0.0
      %6191 = vmatprep.subr.mxu0 0.0
      %6192 = vmatpush2.msra.mxu0 0.0
      %6193 = vmatprep.subr.mxu0 0.0
      %6194 = vmatpush2.msra.mxu0 0.0
      %6195 = vmatprep.subr.mxu0 0.0
      %6196 = vmatpush2.msra.mxu0 0.0
      %6197 = vmatprep.subr.mxu0 0.0
      %6198 = vmatpush2.msra.mxu0 0.0
      %6199 = vmatprep.subr.mxu0 0.0
      %6200 = vmatpush2.msra.mxu0 0.0
      %6201 = vmatprep.subr.mxu0 0.0
      %6202 = vmatpush2.msra.mxu0 0.0
      %6203 = vmatprep.mubr.f32.mxu0 0.0
      %6204 = vmatmul.mubr.f32.gmra.mxu0 %v6137
      %v6205 = vpop.f32.mrf.mxu0
      %v6206 = vadd.f32 0.0, %v6205
      %v6207 = vpop.f32.mrf.mxu0
      %6208 = vdwg.mxu0
      %v6210 = vsel %vm833, %v5986, 0
      %6212 = vmatprep.subr.mxu0 0.0
      %6213 = vmatpush1.msra.mxu0 0.0
      %6214 = vmatprep.subr.mxu0 0.0
      %6215 = vmatpush1.msra.mxu0 0.0
      %6216 = vmatprep.subr.mxu0 0.0
      %6217 = vmatpush1.msra.mxu0 0.0
      %6218 = vmatprep.subr.mxu0 0.0
      %6219 = vmatpush1.msra.mxu0 0.0
      %6220 = vmatprep.subr.mxu0 0.0
      %6221 = vmatpush1.msra.mxu0 0.0
      %6222 = vmatprep.subr.mxu0 0.0
      %6223 = vmatpush1.msra.mxu0 0.0
      %6224 = vmatprep.subr.mxu0 0.0
      %6225 = vmatpush1.msra.mxu0 0.0
      %6226 = vmatprep.subr.mxu0 0.0
      %6227 = vmatpush1.msra.mxu0 0.0
      %6228 = vmatprep.subr.mxu0 0.0
      %6229 = vmatpush1.msra.mxu0 0.0
      %6230 = vmatprep.subr.mxu0 0.0
      %6231 = vmatpush1.msra.mxu0 0.0
      %6232 = vmatprep.subr.mxu0 0.0
      %6233 = vmatpush1.msra.mxu0 0.0
      %6234 = vmatprep.subr.mxu0 0.0
      %6235 = vmatpush1.msra.mxu0 0.0
      %6236 = vmatprep.subr.mxu0 0.0
      %6237 = vmatpush1.msra.mxu0 0.0
      %6238 = vmatprep.subr.mxu0 0.0
      %6239 = vmatpush1.msra.mxu0 0.0
      %6240 = vmatprep.subr.mxu0 0.0
      %6241 = vmatpush1.msra.mxu0 0.0
      %6242 = vmatprep.subr.mxu0 0.0
      %6243 = vmatpush1.msra.mxu0 %v6061
      %6244 = vmatprep.subr.mxu0 0.0
      %6245 = vmatpush2.msra.mxu0 0.0
      %6246 = vmatprep.subr.mxu0 0.0
      %6247 = vmatpush2.msra.mxu0 0.0
      %6248 = vmatprep.subr.mxu0 0.0
      %6249 = vmatpush2.msra.mxu0 0.0
      %6250 = vmatprep.subr.mxu0 0.0
      %6251 = vmatpush2.msra.mxu0 0.0
      %6252 = vmatprep.subr.mxu0 0.0
      %6253 = vmatpush2.msra.mxu0 0.0
      %6254 = vmatprep.subr.mxu0 0.0
      %6255 = vmatpush2.msra.mxu0 0.0
      %6256 = vmatprep.subr.mxu0 0.0
      %6257 = vmatpush2.msra.mxu0 0.0
      %6258 = vmatprep.subr.mxu0 0.0
      %6259 = vmatpush2.msra.mxu0 0.0
      %6260 = vmatprep.subr.mxu0 0.0
      %6261 = vmatpush2.msra.mxu0 0.0
      %6262 = vmatprep.subr.mxu0 0.0
      %6263 = vmatpush2.msra.mxu0 0.0
      %6264 = vmatprep.subr.mxu0 0.0
      %6265 = vmatpush2.msra.mxu0 0.0
      %6266 = vmatprep.subr.mxu0 0.0
      %6267 = vmatpush2.msra.mxu0 0.0
      %6268 = vmatprep.subr.mxu0 0.0
      %6269 = vmatpush2.msra.mxu0 0.0
      %6270 = vmatprep.subr.mxu0 0.0
      %6271 = vmatpush2.msra.mxu0 0.0
      %6272 = vmatprep.subr.mxu0 0.0
      %6273 = vmatpush2.msra.mxu0 0.0
      %6274 = vmatprep.subr.mxu0 0.0
      %6275 = vmatpush2.msra.mxu0 0.0
      %6276 = vmatprep.mubr.f32.mxu0 0.0
      %6277 = vmatmul.mubr.f32.gmra.mxu0 %v6210
      %v6278 = vpop.f32.mrf.mxu0
      %v6279 = vadd.f32 0.0, %v6278
      %v6280 = vpop.f32.mrf.mxu0
      %6281 = vdwg.mxu0
      %v6283 = vsel %vm833, %v6056, 0
      %6285 = vmatprep.subr.mxu0 0.0
      %6286 = vmatpush1.msra.mxu0 0.0
      %6287 = vmatprep.subr.mxu0 0.0
      %6288 = vmatpush1.msra.mxu0 0.0
      %6289 = vmatprep.subr.mxu0 0.0
      %6290 = vmatpush1.msra.mxu0 0.0
      %6291 = vmatprep.subr.mxu0 0.0
      %6292 = vmatpush1.msra.mxu0 0.0
      %6293 = vmatprep.subr.mxu0 0.0
      %6294 = vmatpush1.msra.mxu0 0.0
      %6295 = vmatprep.subr.mxu0 0.0
      %6296 = vmatpush1.msra.mxu0 0.0
      %6297 = vmatprep.subr.mxu0 0.0
      %6298 = vmatpush1.msra.mxu0 0.0
      %6299 = vmatprep.subr.mxu0 0.0
      %6300 = vmatpush1.msra.mxu0 0.0
      %6301 = vmatprep.subr.mxu0 0.0
      %6302 = vmatpush1.msra.mxu0 0.0
      %6303 = vmatprep.subr.mxu0 0.0
      %6304 = vmatpush1.msra.mxu0 0.0
      %6305 = vmatprep.subr.mxu0 0.0
      %6306 = vmatpush1.msra.mxu0 0.0
      %6307 = vmatprep.subr.mxu0 0.0
      %6308 = vmatpush1.msra.mxu0 0.0
      %6309 = vmatprep.subr.mxu0 0.0
      %6310 = vmatpush1.msra.mxu0 0.0
      %6311 = vmatprep.subr.mxu0 0.0
      %6312 = vmatpush1.msra.mxu0 0.0
      %6313 = vmatprep.subr.mxu0 0.0
      %6314 = vmatpush1.msra.mxu0 0.0
      %6315 = vmatprep.subr.mxu0 0.0
      %6316 = vmatpush1.msra.mxu0 %v6062
      %6317 = vmatprep.subr.mxu0 0.0
      %6318 = vmatpush2.msra.mxu0 0.0
      %6319 = vmatprep.subr.mxu0 0.0
      %6320 = vmatpush2.msra.mxu0 0.0
      %6321 = vmatprep.subr.mxu0 0.0
      %6322 = vmatpush2.msra.mxu0 0.0
      %6323 = vmatprep.subr.mxu0 0.0
      %6324 = vmatpush2.msra.mxu0 0.0
      %6325 = vmatprep.subr.mxu0 0.0
      %6326 = vmatpush2.msra.mxu0 0.0
      %6327 = vmatprep.subr.mxu0 0.0
      %6328 = vmatpush2.msra.mxu0 0.0
      %6329 = vmatprep.subr.mxu0 0.0
      %6330 = vmatpush2.msra.mxu0 0.0
      %6331 = vmatprep.subr.mxu0 0.0
      %6332 = vmatpush2.msra.mxu0 0.0
      %6333 = vmatprep.subr.mxu0 0.0
      %6334 = vmatpush2.msra.mxu0 0.0
      %6335 = vmatprep.subr.mxu0 0.0
      %6336 = vmatpush2.msra.mxu0 0.0
      %6337 = vmatprep.subr.mxu0 0.0
      %6338 = vmatpush2.msra.mxu0 0.0
      %6339 = vmatprep.subr.mxu0 0.0
      %6340 = vmatpush2.msra.mxu0 0.0
      %6341 = vmatprep.subr.mxu0 0.0
      %6342 = vmatpush2.msra.mxu0 0.0
      %6343 = vmatprep.subr.mxu0 0.0
      %6344 = vmatpush2.msra.mxu0 0.0
      %6345 = vmatprep.subr.mxu0 0.0
      %6346 = vmatpush2.msra.mxu0 0.0
      %6347 = vmatprep.subr.mxu0 0.0
      %6348 = vmatpush2.msra.mxu0 0.0
      %6349 = vmatprep.mubr.f32.mxu0 0.0
      %6350 = vmatmul.mubr.f32.gmra.mxu0 %v6283
      %v6351 = vpop.f32.mrf.mxu0
      %v6352 = vadd.f32 0.0, %v6351
      %v6353 = vpop.f32.mrf.mxu0
      %6354 = vdwg.mxu0
      %v6355 = vsub.f32 %v2581, %v6133
      %v6356 = vsub.f32 %v2581, %v6206
      %v6357 = vsub.f32 %v2581, %v6279
      %v6358 = vsub.f32 %v2581, %v6352
      %6359 = vmatprep.subr.mxu0 0.0
      %6360 = vmatpush1.msra.mxu0 0.0
      %6361 = vmatprep.subr.mxu0 0.0
      %6362 = vmatpush1.msra.mxu0 0.0
      %6363 = vmatprep.subr.mxu0 0.0
      %6364 = vmatpush1.msra.mxu0 0.0
      %6365 = vmatprep.subr.mxu0 0.0
      %6366 = vmatpush1.msra.mxu0 0.0
      %6367 = vmatprep.subr.mxu0 0.0
      %6368 = vmatpush1.msra.mxu0 0.0
      %6369 = vmatprep.subr.mxu0 0.0
      %6370 = vmatpush1.msra.mxu0 0.0
      %6371 = vmatprep.subr.mxu0 0.0
      %6372 = vmatpush1.msra.mxu0 0.0
      %6373 = vmatprep.subr.mxu0 0.0
      %6374 = vmatpush1.msra.mxu0 0.0
      %6375 = vmatprep.subr.mxu0 0.0
      %6376 = vmatpush1.msra.mxu0 0.0
      %6377 = vmatprep.subr.mxu0 0.0
      %6378 = vmatpush1.msra.mxu0 0.0
      %6379 = vmatprep.subr.mxu0 0.0
      %6380 = vmatpush1.msra.mxu0 0.0
      %6381 = vmatprep.subr.mxu0 0.0
      %6382 = vmatpush1.msra.mxu0 0.0
      %6383 = vmatprep.subr.mxu0 0.0
      %6384 = vmatpush1.msra.mxu0 0.0
      %6385 = vmatprep.subr.mxu0 0.0
      %6386 = vmatpush1.msra.mxu0 0.0
      %6387 = vmatprep.subr.mxu0 0.0
      %6388 = vmatpush1.msra.mxu0 0.0
      %6389 = vmatprep.subr.mxu0 0.0
      %6390 = vmatpush1.msra.mxu0 %v6355
      %6391 = vmatprep.subr.mxu0 0.0
      %6392 = vmatpush2.msra.mxu0 0.0
      %6393 = vmatprep.subr.mxu0 0.0
      %6394 = vmatpush2.msra.mxu0 0.0
      %6395 = vmatprep.subr.mxu0 0.0
      %6396 = vmatpush2.msra.mxu0 0.0
      %6397 = vmatprep.subr.mxu0 0.0
      %6398 = vmatpush2.msra.mxu0 0.0
      %6399 = vmatprep.subr.mxu0 0.0
      %6400 = vmatpush2.msra.mxu0 0.0
      %6401 = vmatprep.subr.mxu0 0.0
      %6402 = vmatpush2.msra.mxu0 0.0
      %6403 = vmatprep.subr.mxu0 0.0
      %6404 = vmatpush2.msra.mxu0 0.0
      %6405 = vmatprep.subr.mxu0 0.0
      %6406 = vmatpush2.msra.mxu0 0.0
      %6407 = vmatprep.subr.mxu0 0.0
      %6408 = vmatpush2.msra.mxu0 0.0
      %6409 = vmatprep.subr.mxu0 0.0
      %6410 = vmatpush2.msra.mxu0 0.0
      %6411 = vmatprep.subr.mxu0 0.0
      %6412 = vmatpush2.msra.mxu0 0.0
      %6413 = vmatprep.subr.mxu0 0.0
      %6414 = vmatpush2.msra.mxu0 0.0
      %6415 = vmatprep.subr.mxu0 0.0
      %6416 = vmatpush2.msra.mxu0 0.0
      %6417 = vmatprep.subr.mxu0 0.0
      %6418 = vmatpush2.msra.mxu0 0.0
      %6419 = vmatprep.subr.mxu0 0.0
      %6420 = vmatpush2.msra.mxu0 0.0
      %6421 = vmatprep.subr.mxu0 0.0
      %6422 = vmatpush2.msra.mxu0 0.0
      %6423 = vmatprep.mubr.f32.mxu0 0.0
      %6424 = vmatmul.mubr.f32.gmra.mxu0 %v6064
      %v6425 = vpop.f32.mrf.mxu0
      %v6426 = vadd.f32 0.0, %v6425
      %v6427 = vpop.f32.mrf.mxu0
      %6428 = vdwg.mxu0
      %6429 = vmatprep.subr.mxu0 0.0
      %6430 = vmatpush1.msra.mxu0 0.0
      %6431 = vmatprep.subr.mxu0 0.0
      %6432 = vmatpush1.msra.mxu0 0.0
      %6433 = vmatprep.subr.mxu0 0.0
      %6434 = vmatpush1.msra.mxu0 0.0
      %6435 = vmatprep.subr.mxu0 0.0
      %6436 = vmatpush1.msra.mxu0 0.0
      %6437 = vmatprep.subr.mxu0 0.0
      %6438 = vmatpush1.msra.mxu0 0.0
      %6439 = vmatprep.subr.mxu0 0.0
      %6440 = vmatpush1.msra.mxu0 0.0
      %6441 = vmatprep.subr.mxu0 0.0
      %6442 = vmatpush1.msra.mxu0 0.0
      %6443 = vmatprep.subr.mxu0 0.0
      %6444 = vmatpush1.msra.mxu0 0.0
      %6445 = vmatprep.subr.mxu0 0.0
      %6446 = vmatpush1.msra.mxu0 0.0
      %6447 = vmatprep.subr.mxu0 0.0
      %6448 = vmatpush1.msra.mxu0 0.0
      %6449 = vmatprep.subr.mxu0 0.0
      %6450 = vmatpush1.msra.mxu0 0.0
      %6451 = vmatprep.subr.mxu0 0.0
      %6452 = vmatpush1.msra.mxu0 0.0
      %6453 = vmatprep.subr.mxu0 0.0
      %6454 = vmatpush1.msra.mxu0 0.0
      %6455 = vmatprep.subr.mxu0 0.0
      %6456 = vmatpush1.msra.mxu0 0.0
      %6457 = vmatprep.subr.mxu0 0.0
      %6458 = vmatpush1.msra.mxu0 0.0
      %6459 = vmatprep.subr.mxu0 0.0
      %6460 = vmatpush1.msra.mxu0 %v6356
      %6461 = vmatprep.subr.mxu0 0.0
      %6462 = vmatpush2.msra.mxu0 0.0
      %6463 = vmatprep.subr.mxu0 0.0
      %6464 = vmatpush2.msra.mxu0 0.0
      %6465 = vmatprep.subr.mxu0 0.0
      %6466 = vmatpush2.msra.mxu0 0.0
      %6467 = vmatprep.subr.mxu0 0.0
      %6468 = vmatpush2.msra.mxu0 0.0
      %6469 = vmatprep.subr.mxu0 0.0
      %6470 = vmatpush2.msra.mxu0 0.0
      %6471 = vmatprep.subr.mxu0 0.0
      %6472 = vmatpush2.msra.mxu0 0.0
      %6473 = vmatprep.subr.mxu0 0.0
      %6474 = vmatpush2.msra.mxu0 0.0
      %6475 = vmatprep.subr.mxu0 0.0
      %6476 = vmatpush2.msra.mxu0 0.0
      %6477 = vmatprep.subr.mxu0 0.0
      %6478 = vmatpush2.msra.mxu0 0.0
      %6479 = vmatprep.subr.mxu0 0.0
      %6480 = vmatpush2.msra.mxu0 0.0
      %6481 = vmatprep.subr.mxu0 0.0
      %6482 = vmatpush2.msra.mxu0 0.0
      %6483 = vmatprep.subr.mxu0 0.0
      %6484 = vmatpush2.msra.mxu0 0.0
      %6485 = vmatprep.subr.mxu0 0.0
      %6486 = vmatpush2.msra.mxu0 0.0
      %6487 = vmatprep.subr.mxu0 0.0
      %6488 = vmatpush2.msra.mxu0 0.0
      %6489 = vmatprep.subr.mxu0 0.0
      %6490 = vmatpush2.msra.mxu0 0.0
      %6491 = vmatprep.subr.mxu0 0.0
      %6492 = vmatpush2.msra.mxu0 0.0
      %6493 = vmatprep.mubr.f32.mxu0 0.0
      %6494 = vmatmul.mubr.f32.gmra.mxu0 %v6137
      %v6495 = vpop.f32.mrf.mxu0
      %v6496 = vadd.f32 0.0, %v6495
      %v6497 = vpop.f32.mrf.mxu0
      %6498 = vdwg.mxu0
      %6499 = vmatprep.subr.mxu0 0.0
      %6500 = vmatpush1.msra.mxu0 0.0
      %6501 = vmatprep.subr.mxu0 0.0
      %6502 = vmatpush1.msra.mxu0 0.0
      %6503 = vmatprep.subr.mxu0 0.0
      %6504 = vmatpush1.msra.mxu0 0.0
      %6505 = vmatprep.subr.mxu0 0.0
      %6506 = vmatpush1.msra.mxu0 0.0
      %6507 = vmatprep.subr.mxu0 0.0
      %6508 = vmatpush1.msra.mxu0 0.0
      %6509 = vmatprep.subr.mxu0 0.0
      %6510 = vmatpush1.msra.mxu0 0.0
      %6511 = vmatprep.subr.mxu0 0.0
      %6512 = vmatpush1.msra.mxu0 0.0
      %6513 = vmatprep.subr.mxu0 0.0
      %6514 = vmatpush1.msra.mxu0 0.0
      %6515 = vmatprep.subr.mxu0 0.0
      %6516 = vmatpush1.msra.mxu0 0.0
      %6517 = vmatprep.subr.mxu0 0.0
      %6518 = vmatpush1.msra.mxu0 0.0
      %6519 = vmatprep.subr.mxu0 0.0
      %6520 = vmatpush1.msra.mxu0 0.0
      %6521 = vmatprep.subr.mxu0 0.0
      %6522 = vmatpush1.msra.mxu0 0.0
      %6523 = vmatprep.subr.mxu0 0.0
      %6524 = vmatpush1.msra.mxu0 0.0
      %6525 = vmatprep.subr.mxu0 0.0
      %6526 = vmatpush1.msra.mxu0 0.0
      %6527 = vmatprep.subr.mxu0 0.0
      %6528 = vmatpush1.msra.mxu0 0.0
      %6529 = vmatprep.subr.mxu0 0.0
      %6530 = vmatpush1.msra.mxu0 %v6357
      %6531 = vmatprep.subr.mxu0 0.0
      %6532 = vmatpush2.msra.mxu0 0.0
      %6533 = vmatprep.subr.mxu0 0.0
      %6534 = vmatpush2.msra.mxu0 0.0
      %6535 = vmatprep.subr.mxu0 0.0
      %6536 = vmatpush2.msra.mxu0 0.0
      %6537 = vmatprep.subr.mxu0 0.0
      %6538 = vmatpush2.msra.mxu0 0.0
      %6539 = vmatprep.subr.mxu0 0.0
      %6540 = vmatpush2.msra.mxu0 0.0
      %6541 = vmatprep.subr.mxu0 0.0
      %6542 = vmatpush2.msra.mxu0 0.0
      %6543 = vmatprep.subr.mxu0 0.0
      %6544 = vmatpush2.msra.mxu0 0.0
      %6545 = vmatprep.subr.mxu0 0.0
      %6546 = vmatpush2.msra.mxu0 0.0
      %6547 = vmatprep.subr.mxu0 0.0
      %6548 = vmatpush2.msra.mxu0 0.0
      %6549 = vmatprep.subr.mxu0 0.0
      %6550 = vmatpush2.msra.mxu0 0.0
      %6551 = vmatprep.subr.mxu0 0.0
      %6552 = vmatpush2.msra.mxu0 0.0
      %6553 = vmatprep.subr.mxu0 0.0
      %6554 = vmatpush2.msra.mxu0 0.0
      %6555 = vmatprep.subr.mxu0 0.0
      %6556 = vmatpush2.msra.mxu0 0.0
      %6557 = vmatprep.subr.mxu0 0.0
      %6558 = vmatpush2.msra.mxu0 0.0
      %6559 = vmatprep.subr.mxu0 0.0
      %6560 = vmatpush2.msra.mxu0 0.0
      %6561 = vmatprep.subr.mxu0 0.0
      %6562 = vmatpush2.msra.mxu0 0.0
      %6563 = vmatprep.mubr.f32.mxu0 0.0
      %6564 = vmatmul.mubr.f32.gmra.mxu0 %v6210
      %v6565 = vpop.f32.mrf.mxu0
      %v6566 = vadd.f32 0.0, %v6565
      %v6567 = vpop.f32.mrf.mxu0
      %6568 = vdwg.mxu0
      %6569 = vmatprep.subr.mxu0 0.0
      %6570 = vmatpush1.msra.mxu0 0.0
      %6571 = vmatprep.subr.mxu0 0.0
      %6572 = vmatpush1.msra.mxu0 0.0
      %6573 = vmatprep.subr.mxu0 0.0
      %6574 = vmatpush1.msra.mxu0 0.0
      %6575 = vmatprep.subr.mxu0 0.0
      %6576 = vmatpush1.msra.mxu0 0.0
      %6577 = vmatprep.subr.mxu0 0.0
      %6578 = vmatpush1.msra.mxu0 0.0
      %6579 = vmatprep.subr.mxu0 0.0
      %6580 = vmatpush1.msra.mxu0 0.0
      %6581 = vmatprep.subr.mxu0 0.0
      %6582 = vmatpush1.msra.mxu0 0.0
      %6583 = vmatprep.subr.mxu0 0.0
      %6584 = vmatpush1.msra.mxu0 0.0
      %6585 = vmatprep.subr.mxu0 0.0
      %6586 = vmatpush1.msra.mxu0 0.0
      %6587 = vmatprep.subr.mxu0 0.0
      %6588 = vmatpush1.msra.mxu0 0.0
      %6589 = vmatprep.subr.mxu0 0.0
      %6590 = vmatpush1.msra.mxu0 0.0
      %6591 = vmatprep.subr.mxu0 0.0
      %6592 = vmatpush1.msra.mxu0 0.0
      %6593 = vmatprep.subr.mxu0 0.0
      %6594 = vmatpush1.msra.mxu0 0.0
      %6595 = vmatprep.subr.mxu0 0.0
      %6596 = vmatpush1.msra.mxu0 0.0
      %6597 = vmatprep.subr.mxu0 0.0
      %6598 = vmatpush1.msra.mxu0 0.0
      %6599 = vmatprep.subr.mxu0 0.0
      %6600 = vmatpush1.msra.mxu0 %v6358
      %6601 = vmatprep.subr.mxu0 0.0
      %6602 = vmatpush2.msra.mxu0 0.0
      %6603 = vmatprep.subr.mxu0 0.0
      %6604 = vmatpush2.msra.mxu0 0.0
      %6605 = vmatprep.subr.mxu0 0.0
      %6606 = vmatpush2.msra.mxu0 0.0
      %6607 = vmatprep.subr.mxu0 0.0
      %6608 = vmatpush2.msra.mxu0 0.0
      %6609 = vmatprep.subr.mxu0 0.0
      %6610 = vmatpush2.msra.mxu0 0.0
      %6611 = vmatprep.subr.mxu0 0.0
      %6612 = vmatpush2.msra.mxu0 0.0
      %6613 = vmatprep.subr.mxu0 0.0
      %6614 = vmatpush2.msra.mxu0 0.0
      %6615 = vmatprep.subr.mxu0 0.0
      %6616 = vmatpush2.msra.mxu0 0.0
      %6617 = vmatprep.subr.mxu0 0.0
      %6618 = vmatpush2.msra.mxu0 0.0
      %6619 = vmatprep.subr.mxu0 0.0
      %6620 = vmatpush2.msra.mxu0 0.0
      %6621 = vmatprep.subr.mxu0 0.0
      %6622 = vmatpush2.msra.mxu0 0.0
      %6623 = vmatprep.subr.mxu0 0.0
      %6624 = vmatpush2.msra.mxu0 0.0
      %6625 = vmatprep.subr.mxu0 0.0
      %6626 = vmatpush2.msra.mxu0 0.0
      %6627 = vmatprep.subr.mxu0 0.0
      %6628 = vmatpush2.msra.mxu0 0.0
      %6629 = vmatprep.subr.mxu0 0.0
      %6630 = vmatpush2.msra.mxu0 0.0
      %6631 = vmatprep.subr.mxu0 0.0
      %6632 = vmatpush2.msra.mxu0 0.0
      %6633 = vmatprep.mubr.f32.mxu0 0.0
      %6634 = vmatmul.mubr.f32.gmra.mxu0 %v6283
      %v6635 = vpop.f32.mrf.mxu0
      %v6636 = vadd.f32 0.0, %v6635
      %v6637 = vpop.f32.mrf.mxu0
      %6638 = vdwg.mxu0
      %v6639 = vsub.f32 %v2878, %v6426
      %v6640 = vsub.f32 %v2878, %v6496
      %v6641 = vsub.f32 %v2878, %v6566
      %v6642 = vsub.f32 %v2878, %v6636
      %v6643 = vmul.f32 %v5557, 0.25
      %v6644 = vmul.f32 %v5630, 0.25
      %v6645 = vmul.f32 %v5703, 0.25
      %v6646 = vmul.f32 %v5776, 0.25
      %v6648 = vsel %vm833, %v6643, 0
      %6650 = vmatprep.subr.mxu0 0.0
      %6651 = vmatpush1.msra.mxu0 0.0
      %6652 = vmatprep.subr.mxu0 0.0
      %6653 = vmatpush1.msra.mxu0 0.0
      %6654 = vmatprep.subr.mxu0 0.0
      %6655 = vmatpush1.msra.mxu0 0.0
      %6656 = vmatprep.subr.mxu0 0.0
      %6657 = vmatpush1.msra.mxu0 0.0
      %6658 = vmatprep.subr.mxu0 0.0
      %6659 = vmatpush1.msra.mxu0 0.0
      %6660 = vmatprep.subr.mxu0 0.0
      %6661 = vmatpush1.msra.mxu0 0.0
      %6662 = vmatprep.subr.mxu0 0.0
      %6663 = vmatpush1.msra.mxu0 0.0
      %6664 = vmatprep.subr.mxu0 0.0
      %6665 = vmatpush1.msra.mxu0 0.0
      %6666 = vmatprep.subr.mxu0 0.0
      %6667 = vmatpush1.msra.mxu0 0.0
      %6668 = vmatprep.subr.mxu0 0.0
      %6669 = vmatpush1.msra.mxu0 0.0
      %6670 = vmatprep.subr.mxu0 0.0
      %6671 = vmatpush1.msra.mxu0 0.0
      %6672 = vmatprep.subr.mxu0 0.0
      %6673 = vmatpush1.msra.mxu0 0.0
      %6674 = vmatprep.subr.mxu0 0.0
      %6675 = vmatpush1.msra.mxu0 0.0
      %6676 = vmatprep.subr.mxu0 0.0
      %6677 = vmatpush1.msra.mxu0 0.0
      %6678 = vmatprep.subr.mxu0 0.0
      %6679 = vmatpush1.msra.mxu0 0.0
      %6680 = vmatprep.subr.mxu0 0.0
      %6681 = vmatpush1.msra.mxu0 %v6639
      %6682 = vmatprep.subr.mxu0 0.0
      %6683 = vmatpush2.msra.mxu0 0.0
      %6684 = vmatprep.subr.mxu0 0.0
      %6685 = vmatpush2.msra.mxu0 0.0
      %6686 = vmatprep.subr.mxu0 0.0
      %6687 = vmatpush2.msra.mxu0 0.0
      %6688 = vmatprep.subr.mxu0 0.0
      %6689 = vmatpush2.msra.mxu0 0.0
      %6690 = vmatprep.subr.mxu0 0.0
      %6691 = vmatpush2.msra.mxu0 0.0
      %6692 = vmatprep.subr.mxu0 0.0
      %6693 = vmatpush2.msra.mxu0 0.0
      %6694 = vmatprep.subr.mxu0 0.0
      %6695 = vmatpush2.msra.mxu0 0.0
      %6696 = vmatprep.subr.mxu0 0.0
      %6697 = vmatpush2.msra.mxu0 0.0
      %6698 = vmatprep.subr.mxu0 0.0
      %6699 = vmatpush2.msra.mxu0 0.0
      %6700 = vmatprep.subr.mxu0 0.0
      %6701 = vmatpush2.msra.mxu0 0.0
      %6702 = vmatprep.subr.mxu0 0.0
      %6703 = vmatpush2.msra.mxu0 0.0
      %6704 = vmatprep.subr.mxu0 0.0
      %6705 = vmatpush2.msra.mxu0 0.0
      %6706 = vmatprep.subr.mxu0 0.0
      %6707 = vmatpush2.msra.mxu0 0.0
      %6708 = vmatprep.subr.mxu0 0.0
      %6709 = vmatpush2.msra.mxu0 0.0
      %6710 = vmatprep.subr.mxu0 0.0
      %6711 = vmatpush2.msra.mxu0 0.0
      %6712 = vmatprep.subr.mxu0 0.0
      %6713 = vmatpush2.msra.mxu0 0.0
      %6714 = vmatprep.mubr.f32.mxu0 0.0
      %6715 = vmatmul.mubr.f32.gmra.mxu0 %v6648
      %v6716 = vpop.f32.mrf.mxu0
      %v6717 = vadd.f32 0.0, %v6716
      %v6718 = vpop.f32.mrf.mxu0
      %6719 = vdwg.mxu0
      %v6721 = vsel %vm833, %v6644, 0
      %6723 = vmatprep.subr.mxu0 0.0
      %6724 = vmatpush1.msra.mxu0 0.0
      %6725 = vmatprep.subr.mxu0 0.0
      %6726 = vmatpush1.msra.mxu0 0.0
      %6727 = vmatprep.subr.mxu0 0.0
      %6728 = vmatpush1.msra.mxu0 0.0
      %6729 = vmatprep.subr.mxu0 0.0
      %6730 = vmatpush1.msra.mxu0 0.0
      %6731 = vmatprep.subr.mxu0 0.0
      %6732 = vmatpush1.msra.mxu0 0.0
      %6733 = vmatprep.subr.mxu0 0.0
      %6734 = vmatpush1.msra.mxu0 0.0
      %6735 = vmatprep.subr.mxu0 0.0
      %6736 = vmatpush1.msra.mxu0 0.0
      %6737 = vmatprep.subr.mxu0 0.0
      %6738 = vmatpush1.msra.mxu0 0.0
      %6739 = vmatprep.subr.mxu0 0.0
      %6740 = vmatpush1.msra.mxu0 0.0
      %6741 = vmatprep.subr.mxu0 0.0
      %6742 = vmatpush1.msra.mxu0 0.0
      %6743 = vmatprep.subr.mxu0 0.0
      %6744 = vmatpush1.msra.mxu0 0.0
      %6745 = vmatprep.subr.mxu0 0.0
      %6746 = vmatpush1.msra.mxu0 0.0
      %6747 = vmatprep.subr.mxu0 0.0
      %6748 = vmatpush1.msra.mxu0 0.0
      %6749 = vmatprep.subr.mxu0 0.0
      %6750 = vmatpush1.msra.mxu0 0.0
      %6751 = vmatprep.subr.mxu0 0.0
      %6752 = vmatpush1.msra.mxu0 0.0
      %6753 = vmatprep.subr.mxu0 0.0
      %6754 = vmatpush1.msra.mxu0 %v6640
      %6755 = vmatprep.subr.mxu0 0.0
      %6756 = vmatpush2.msra.mxu0 0.0
      %6757 = vmatprep.subr.mxu0 0.0
      %6758 = vmatpush2.msra.mxu0 0.0
      %6759 = vmatprep.subr.mxu0 0.0
      %6760 = vmatpush2.msra.mxu0 0.0
      %6761 = vmatprep.subr.mxu0 0.0
      %6762 = vmatpush2.msra.mxu0 0.0
      %6763 = vmatprep.subr.mxu0 0.0
      %6764 = vmatpush2.msra.mxu0 0.0
      %6765 = vmatprep.subr.mxu0 0.0
      %6766 = vmatpush2.msra.mxu0 0.0
      %6767 = vmatprep.subr.mxu0 0.0
      %6768 = vmatpush2.msra.mxu0 0.0
      %6769 = vmatprep.subr.mxu0 0.0
      %6770 = vmatpush2.msra.mxu0 0.0
      %6771 = vmatprep.subr.mxu0 0.0
      %6772 = vmatpush2.msra.mxu0 0.0
      %6773 = vmatprep.subr.mxu0 0.0
      %6774 = vmatpush2.msra.mxu0 0.0
      %6775 = vmatprep.subr.mxu0 0.0
      %6776 = vmatpush2.msra.mxu0 0.0
      %6777 = vmatprep.subr.mxu0 0.0
      %6778 = vmatpush2.msra.mxu0 0.0
      %6779 = vmatprep.subr.mxu0 0.0
      %6780 = vmatpush2.msra.mxu0 0.0
      %6781 = vmatprep.subr.mxu0 0.0
      %6782 = vmatpush2.msra.mxu0 0.0
      %6783 = vmatprep.subr.mxu0 0.0
      %6784 = vmatpush2.msra.mxu0 0.0
      %6785 = vmatprep.subr.mxu0 0.0
      %6786 = vmatpush2.msra.mxu0 0.0
      %6787 = vmatprep.mubr.f32.mxu0 0.0
      %6788 = vmatmul.mubr.f32.gmra.mxu0 %v6721
      %v6789 = vpop.f32.mrf.mxu0
      %v6790 = vadd.f32 0.0, %v6789
      %v6791 = vpop.f32.mrf.mxu0
      %6792 = vdwg.mxu0
      %v6794 = vsel %vm833, %v6645, 0
      %6796 = vmatprep.subr.mxu0 0.0
      %6797 = vmatpush1.msra.mxu0 0.0
      %6798 = vmatprep.subr.mxu0 0.0
      %6799 = vmatpush1.msra.mxu0 0.0
      %6800 = vmatprep.subr.mxu0 0.0
      %6801 = vmatpush1.msra.mxu0 0.0
      %6802 = vmatprep.subr.mxu0 0.0
      %6803 = vmatpush1.msra.mxu0 0.0
      %6804 = vmatprep.subr.mxu0 0.0
      %6805 = vmatpush1.msra.mxu0 0.0
      %6806 = vmatprep.subr.mxu0 0.0
      %6807 = vmatpush1.msra.mxu0 0.0
      %6808 = vmatprep.subr.mxu0 0.0
      %6809 = vmatpush1.msra.mxu0 0.0
      %6810 = vmatprep.subr.mxu0 0.0
      %6811 = vmatpush1.msra.mxu0 0.0
      %6812 = vmatprep.subr.mxu0 0.0
      %6813 = vmatpush1.msra.mxu0 0.0
      %6814 = vmatprep.subr.mxu0 0.0
      %6815 = vmatpush1.msra.mxu0 0.0
      %6816 = vmatprep.subr.mxu0 0.0
      %6817 = vmatpush1.msra.mxu0 0.0
      %6818 = vmatprep.subr.mxu0 0.0
      %6819 = vmatpush1.msra.mxu0 0.0
      %6820 = vmatprep.subr.mxu0 0.0
      %6821 = vmatpush1.msra.mxu0 0.0
      %6822 = vmatprep.subr.mxu0 0.0
      %6823 = vmatpush1.msra.mxu0 0.0
      %6824 = vmatprep.subr.mxu0 0.0
      %6825 = vmatpush1.msra.mxu0 0.0
      %6826 = vmatprep.subr.mxu0 0.0
      %6827 = vmatpush1.msra.mxu0 %v6641
      %6828 = vmatprep.subr.mxu0 0.0
      %6829 = vmatpush2.msra.mxu0 0.0
      %6830 = vmatprep.subr.mxu0 0.0
      %6831 = vmatpush2.msra.mxu0 0.0
      %6832 = vmatprep.subr.mxu0 0.0
      %6833 = vmatpush2.msra.mxu0 0.0
      %6834 = vmatprep.subr.mxu0 0.0
      %6835 = vmatpush2.msra.mxu0 0.0
      %6836 = vmatprep.subr.mxu0 0.0
      %6837 = vmatpush2.msra.mxu0 0.0
      %6838 = vmatprep.subr.mxu0 0.0
      %6839 = vmatpush2.msra.mxu0 0.0
      %6840 = vmatprep.subr.mxu0 0.0
      %6841 = vmatpush2.msra.mxu0 0.0
      %6842 = vmatprep.subr.mxu0 0.0
      %6843 = vmatpush2.msra.mxu0 0.0
      %6844 = vmatprep.subr.mxu0 0.0
      %6845 = vmatpush2.msra.mxu0 0.0
      %6846 = vmatprep.subr.mxu0 0.0
      %6847 = vmatpush2.msra.mxu0 0.0
      %6848 = vmatprep.subr.mxu0 0.0
      %6849 = vmatpush2.msra.mxu0 0.0
      %6850 = vmatprep.subr.mxu0 0.0
      %6851 = vmatpush2.msra.mxu0 0.0
      %6852 = vmatprep.subr.mxu0 0.0
      %6853 = vmatpush2.msra.mxu0 0.0
      %6854 = vmatprep.subr.mxu0 0.0
      %6855 = vmatpush2.msra.mxu0 0.0
      %6856 = vmatprep.subr.mxu0 0.0
      %6857 = vmatpush2.msra.mxu0 0.0
      %6858 = vmatprep.subr.mxu0 0.0
      %6859 = vmatpush2.msra.mxu0 0.0
      %6860 = vmatprep.mubr.f32.mxu0 0.0
      %6861 = vmatmul.mubr.f32.gmra.mxu0 %v6794
      %v6862 = vpop.f32.mrf.mxu0
      %v6863 = vadd.f32 0.0, %v6862
      %v6864 = vpop.f32.mrf.mxu0
      %6865 = vdwg.mxu0
      %v6867 = vsel %vm833, %v6646, 0
      %6869 = vmatprep.subr.mxu0 0.0
      %6870 = vmatpush1.msra.mxu0 0.0
      %6871 = vmatprep.subr.mxu0 0.0
      %6872 = vmatpush1.msra.mxu0 0.0
      %6873 = vmatprep.subr.mxu0 0.0
      %6874 = vmatpush1.msra.mxu0 0.0
      %6875 = vmatprep.subr.mxu0 0.0
      %6876 = vmatpush1.msra.mxu0 0.0
      %6877 = vmatprep.subr.mxu0 0.0
      %6878 = vmatpush1.msra.mxu0 0.0
      %6879 = vmatprep.subr.mxu0 0.0
      %6880 = vmatpush1.msra.mxu0 0.0
      %6881 = vmatprep.subr.mxu0 0.0
      %6882 = vmatpush1.msra.mxu0 0.0
      %6883 = vmatprep.subr.mxu0 0.0
      %6884 = vmatpush1.msra.mxu0 0.0
      %6885 = vmatprep.subr.mxu0 0.0
      %6886 = vmatpush1.msra.mxu0 0.0
      %6887 = vmatprep.subr.mxu0 0.0
      %6888 = vmatpush1.msra.mxu0 0.0
      %6889 = vmatprep.subr.mxu0 0.0
      %6890 = vmatpush1.msra.mxu0 0.0
      %6891 = vmatprep.subr.mxu0 0.0
      %6892 = vmatpush1.msra.mxu0 0.0
      %6893 = vmatprep.subr.mxu0 0.0
      %6894 = vmatpush1.msra.mxu0 0.0
      %6895 = vmatprep.subr.mxu0 0.0
      %6896 = vmatpush1.msra.mxu0 0.0
      %6897 = vmatprep.subr.mxu0 0.0
      %6898 = vmatpush1.msra.mxu0 0.0
      %6899 = vmatprep.subr.mxu0 0.0
      %6900 = vmatpush1.msra.mxu0 %v6642
      %6901 = vmatprep.subr.mxu0 0.0
      %6902 = vmatpush2.msra.mxu0 0.0
      %6903 = vmatprep.subr.mxu0 0.0
      %6904 = vmatpush2.msra.mxu0 0.0
      %6905 = vmatprep.subr.mxu0 0.0
      %6906 = vmatpush2.msra.mxu0 0.0
      %6907 = vmatprep.subr.mxu0 0.0
      %6908 = vmatpush2.msra.mxu0 0.0
      %6909 = vmatprep.subr.mxu0 0.0
      %6910 = vmatpush2.msra.mxu0 0.0
      %6911 = vmatprep.subr.mxu0 0.0
      %6912 = vmatpush2.msra.mxu0 0.0
      %6913 = vmatprep.subr.mxu0 0.0
      %6914 = vmatpush2.msra.mxu0 0.0
      %6915 = vmatprep.subr.mxu0 0.0
      %6916 = vmatpush2.msra.mxu0 0.0
      %6917 = vmatprep.subr.mxu0 0.0
      %6918 = vmatpush2.msra.mxu0 0.0
      %6919 = vmatprep.subr.mxu0 0.0
      %6920 = vmatpush2.msra.mxu0 0.0
      %6921 = vmatprep.subr.mxu0 0.0
      %6922 = vmatpush2.msra.mxu0 0.0
      %6923 = vmatprep.subr.mxu0 0.0
      %6924 = vmatpush2.msra.mxu0 0.0
      %6925 = vmatprep.subr.mxu0 0.0
      %6926 = vmatpush2.msra.mxu0 0.0
      %6927 = vmatprep.subr.mxu0 0.0
      %6928 = vmatpush2.msra.mxu0 0.0
      %6929 = vmatprep.subr.mxu0 0.0
      %6930 = vmatpush2.msra.mxu0 0.0
      %6931 = vmatprep.subr.mxu0 0.0
      %6932 = vmatpush2.msra.mxu0 0.0
      %6933 = vmatprep.mubr.f32.mxu0 0.0
      %6934 = vmatmul.mubr.f32.gmra.mxu0 %v6867
      %v6935 = vpop.f32.mrf.mxu0
      %v6936 = vadd.f32 0.0, %v6935
      %v6937 = vpop.f32.mrf.mxu0
      %6938 = vdwg.mxu0
      %6939 = vmatprep.subr.mxu0 0.0
      %6940 = vmatpush1.msra.mxu0 0.0
      %6941 = vmatprep.subr.mxu0 0.0
      %6942 = vmatpush1.msra.mxu0 0.0
      %6943 = vmatprep.subr.mxu0 0.0
      %6944 = vmatpush1.msra.mxu0 0.0
      %6945 = vmatprep.subr.mxu0 0.0
      %6946 = vmatpush1.msra.mxu0 0.0
      %6947 = vmatprep.subr.mxu0 0.0
      %6948 = vmatpush1.msra.mxu0 0.0
      %6949 = vmatprep.subr.mxu0 0.0
      %6950 = vmatpush1.msra.mxu0 0.0
      %6951 = vmatprep.subr.mxu0 0.0
      %6952 = vmatpush1.msra.mxu0 0.0
      %6953 = vmatprep.subr.mxu0 0.0
      %6954 = vmatpush1.msra.mxu0 0.0
      %6955 = vmatprep.subr.mxu0 0.0
      %6956 = vmatpush1.msra.mxu0 0.0
      %6957 = vmatprep.subr.mxu0 0.0
      %6958 = vmatpush1.msra.mxu0 0.0
      %6959 = vmatprep.subr.mxu0 0.0
      %6960 = vmatpush1.msra.mxu0 0.0
      %6961 = vmatprep.subr.mxu0 0.0
      %6962 = vmatpush1.msra.mxu0 0.0
      %6963 = vmatprep.subr.mxu0 0.0
      %6964 = vmatpush1.msra.mxu0 0.0
      %6965 = vmatprep.subr.mxu0 0.0
      %6966 = vmatpush1.msra.mxu0 0.0
      %6967 = vmatprep.subr.mxu0 0.0
      %6968 = vmatpush1.msra.mxu0 0.0
      %6969 = vmatprep.subr.mxu0 0.0
      %6970 = vmatpush1.msra.mxu0 %v6717
      %6971 = vmatprep.subr.mxu0 0.0
      %6972 = vmatpush2.msra.mxu0 0.0
      %6973 = vmatprep.subr.mxu0 0.0
      %6974 = vmatpush2.msra.mxu0 0.0
      %6975 = vmatprep.subr.mxu0 0.0
      %6976 = vmatpush2.msra.mxu0 0.0
      %6977 = vmatprep.subr.mxu0 0.0
      %6978 = vmatpush2.msra.mxu0 0.0
      %6979 = vmatprep.subr.mxu0 0.0
      %6980 = vmatpush2.msra.mxu0 0.0
      %6981 = vmatprep.subr.mxu0 0.0
      %6982 = vmatpush2.msra.mxu0 0.0
      %6983 = vmatprep.subr.mxu0 0.0
      %6984 = vmatpush2.msra.mxu0 0.0
      %6985 = vmatprep.subr.mxu0 0.0
      %6986 = vmatpush2.msra.mxu0 0.0
      %6987 = vmatprep.subr.mxu0 0.0
      %6988 = vmatpush2.msra.mxu0 0.0
      %6989 = vmatprep.subr.mxu0 0.0
      %6990 = vmatpush2.msra.mxu0 0.0
      %6991 = vmatprep.subr.mxu0 0.0
      %6992 = vmatpush2.msra.mxu0 0.0
      %6993 = vmatprep.subr.mxu0 0.0
      %6994 = vmatpush2.msra.mxu0 0.0
      %6995 = vmatprep.subr.mxu0 0.0
      %6996 = vmatpush2.msra.mxu0 0.0
      %6997 = vmatprep.subr.mxu0 0.0
      %6998 = vmatpush2.msra.mxu0 0.0
      %6999 = vmatprep.subr.mxu0 0.0
      %7000 = vmatpush2.msra.mxu0 0.0
      %7001 = vmatprep.subr.mxu0 0.0
      %7002 = vmatpush2.msra.mxu0 0.0
      %7003 = vmatprep.mubr.f32.mxu0 0.0
      %7004 = vmatmul.mubr.f32.gmra.mxu0 %v2285
      %v7005 = vpop.f32.mrf.mxu0
      %v7006 = vadd.f32 0.0, %v7005
      %v7007 = vpop.f32.mrf.mxu0
      %7008 = vdwg.mxu0
      %7009 = vmatprep.subr.mxu0 0.0
      %7010 = vmatpush1.msra.mxu0 0.0
      %7011 = vmatprep.subr.mxu0 0.0
      %7012 = vmatpush1.msra.mxu0 0.0
      %7013 = vmatprep.subr.mxu0 0.0
      %7014 = vmatpush1.msra.mxu0 0.0
      %7015 = vmatprep.subr.mxu0 0.0
      %7016 = vmatpush1.msra.mxu0 0.0
      %7017 = vmatprep.subr.mxu0 0.0
      %7018 = vmatpush1.msra.mxu0 0.0
      %7019 = vmatprep.subr.mxu0 0.0
      %7020 = vmatpush1.msra.mxu0 0.0
      %7021 = vmatprep.subr.mxu0 0.0
      %7022 = vmatpush1.msra.mxu0 0.0
      %7023 = vmatprep.subr.mxu0 0.0
      %7024 = vmatpush1.msra.mxu0 0.0
      %7025 = vmatprep.subr.mxu0 0.0
      %7026 = vmatpush1.msra.mxu0 0.0
      %7027 = vmatprep.subr.mxu0 0.0
      %7028 = vmatpush1.msra.mxu0 0.0
      %7029 = vmatprep.subr.mxu0 0.0
      %7030 = vmatpush1.msra.mxu0 0.0
      %7031 = vmatprep.subr.mxu0 0.0
      %7032 = vmatpush1.msra.mxu0 0.0
      %7033 = vmatprep.subr.mxu0 0.0
      %7034 = vmatpush1.msra.mxu0 0.0
      %7035 = vmatprep.subr.mxu0 0.0
      %7036 = vmatpush1.msra.mxu0 0.0
      %7037 = vmatprep.subr.mxu0 0.0
      %7038 = vmatpush1.msra.mxu0 0.0
      %7039 = vmatprep.subr.mxu0 0.0
      %7040 = vmatpush1.msra.mxu0 %v6790
      %7041 = vmatprep.subr.mxu0 0.0
      %7042 = vmatpush2.msra.mxu0 0.0
      %7043 = vmatprep.subr.mxu0 0.0
      %7044 = vmatpush2.msra.mxu0 0.0
      %7045 = vmatprep.subr.mxu0 0.0
      %7046 = vmatpush2.msra.mxu0 0.0
      %7047 = vmatprep.subr.mxu0 0.0
      %7048 = vmatpush2.msra.mxu0 0.0
      %7049 = vmatprep.subr.mxu0 0.0
      %7050 = vmatpush2.msra.mxu0 0.0
      %7051 = vmatprep.subr.mxu0 0.0
      %7052 = vmatpush2.msra.mxu0 0.0
      %7053 = vmatprep.subr.mxu0 0.0
      %7054 = vmatpush2.msra.mxu0 0.0
      %7055 = vmatprep.subr.mxu0 0.0
      %7056 = vmatpush2.msra.mxu0 0.0
      %7057 = vmatprep.subr.mxu0 0.0
      %7058 = vmatpush2.msra.mxu0 0.0
      %7059 = vmatprep.subr.mxu0 0.0
      %7060 = vmatpush2.msra.mxu0 0.0
      %7061 = vmatprep.subr.mxu0 0.0
      %7062 = vmatpush2.msra.mxu0 0.0
      %7063 = vmatprep.subr.mxu0 0.0
      %7064 = vmatpush2.msra.mxu0 0.0
      %7065 = vmatprep.subr.mxu0 0.0
      %7066 = vmatpush2.msra.mxu0 0.0
      %7067 = vmatprep.subr.mxu0 0.0
      %7068 = vmatpush2.msra.mxu0 0.0
      %7069 = vmatprep.subr.mxu0 0.0
      %7070 = vmatpush2.msra.mxu0 0.0
      %7071 = vmatprep.subr.mxu0 0.0
      %7072 = vmatpush2.msra.mxu0 0.0
      %7073 = vmatprep.mubr.f32.mxu0 0.0
      %7074 = vmatmul.mubr.f32.gmra.mxu0 %v2358
      %v7075 = vpop.f32.mrf.mxu0
      %v7076 = vadd.f32 0.0, %v7075
      %v7077 = vpop.f32.mrf.mxu0
      %7078 = vdwg.mxu0
      %7079 = vmatprep.subr.mxu0 0.0
      %7080 = vmatpush1.msra.mxu0 0.0
      %7081 = vmatprep.subr.mxu0 0.0
      %7082 = vmatpush1.msra.mxu0 0.0
      %7083 = vmatprep.subr.mxu0 0.0
      %7084 = vmatpush1.msra.mxu0 0.0
      %7085 = vmatprep.subr.mxu0 0.0
      %7086 = vmatpush1.msra.mxu0 0.0
      %7087 = vmatprep.subr.mxu0 0.0
      %7088 = vmatpush1.msra.mxu0 0.0
      %7089 = vmatprep.subr.mxu0 0.0
      %7090 = vmatpush1.msra.mxu0 0.0
      %7091 = vmatprep.subr.mxu0 0.0
      %7092 = vmatpush1.msra.mxu0 0.0
      %7093 = vmatprep.subr.mxu0 0.0
      %7094 = vmatpush1.msra.mxu0 0.0
      %7095 = vmatprep.subr.mxu0 0.0
      %7096 = vmatpush1.msra.mxu0 0.0
      %7097 = vmatprep.subr.mxu0 0.0
      %7098 = vmatpush1.msra.mxu0 0.0
      %7099 = vmatprep.subr.mxu0 0.0
      %7100 = vmatpush1.msra.mxu0 0.0
      %7101 = vmatprep.subr.mxu0 0.0
      %7102 = vmatpush1.msra.mxu0 0.0
      %7103 = vmatprep.subr.mxu0 0.0
      %7104 = vmatpush1.msra.mxu0 0.0
      %7105 = vmatprep.subr.mxu0 0.0
      %7106 = vmatpush1.msra.mxu0 0.0
      %7107 = vmatprep.subr.mxu0 0.0
      %7108 = vmatpush1.msra.mxu0 0.0
      %7109 = vmatprep.subr.mxu0 0.0
      %7110 = vmatpush1.msra.mxu0 %v6863
      %7111 = vmatprep.subr.mxu0 0.0
      %7112 = vmatpush2.msra.mxu0 0.0
      %7113 = vmatprep.subr.mxu0 0.0
      %7114 = vmatpush2.msra.mxu0 0.0
      %7115 = vmatprep.subr.mxu0 0.0
      %7116 = vmatpush2.msra.mxu0 0.0
      %7117 = vmatprep.subr.mxu0 0.0
      %7118 = vmatpush2.msra.mxu0 0.0
      %7119 = vmatprep.subr.mxu0 0.0
      %7120 = vmatpush2.msra.mxu0 0.0
      %7121 = vmatprep.subr.mxu0 0.0
      %7122 = vmatpush2.msra.mxu0 0.0
      %7123 = vmatprep.subr.mxu0 0.0
      %7124 = vmatpush2.msra.mxu0 0.0
      %7125 = vmatprep.subr.mxu0 0.0
      %7126 = vmatpush2.msra.mxu0 0.0
      %7127 = vmatprep.subr.mxu0 0.0
      %7128 = vmatpush2.msra.mxu0 0.0
      %7129 = vmatprep.subr.mxu0 0.0
      %7130 = vmatpush2.msra.mxu0 0.0
      %7131 = vmatprep.subr.mxu0 0.0
      %7132 = vmatpush2.msra.mxu0 0.0
      %7133 = vmatprep.subr.mxu0 0.0
      %7134 = vmatpush2.msra.mxu0 0.0
      %7135 = vmatprep.subr.mxu0 0.0
      %7136 = vmatpush2.msra.mxu0 0.0
      %7137 = vmatprep.subr.mxu0 0.0
      %7138 = vmatpush2.msra.mxu0 0.0
      %7139 = vmatprep.subr.mxu0 0.0
      %7140 = vmatpush2.msra.mxu0 0.0
      %7141 = vmatprep.subr.mxu0 0.0
      %7142 = vmatpush2.msra.mxu0 0.0
      %7143 = vmatprep.mubr.f32.mxu0 0.0
      %7144 = vmatmul.mubr.f32.gmra.mxu0 %v2431
      %v7145 = vpop.f32.mrf.mxu0
      %v7146 = vadd.f32 0.0, %v7145
      %v7147 = vpop.f32.mrf.mxu0
      %7148 = vdwg.mxu0
      %7149 = vmatprep.subr.mxu0 0.0
      %7150 = vmatpush1.msra.mxu0 0.0
      %7151 = vmatprep.subr.mxu0 0.0
      %7152 = vmatpush1.msra.mxu0 0.0
      %7153 = vmatprep.subr.mxu0 0.0
      %7154 = vmatpush1.msra.mxu0 0.0
      %7155 = vmatprep.subr.mxu0 0.0
      %7156 = vmatpush1.msra.mxu0 0.0
      %7157 = vmatprep.subr.mxu0 0.0
      %7158 = vmatpush1.msra.mxu0 0.0
      %7159 = vmatprep.subr.mxu0 0.0
      %7160 = vmatpush1.msra.mxu0 0.0
      %7161 = vmatprep.subr.mxu0 0.0
      %7162 = vmatpush1.msra.mxu0 0.0
      %7163 = vmatprep.subr.mxu0 0.0
      %7164 = vmatpush1.msra.mxu0 0.0
      %7165 = vmatprep.subr.mxu0 0.0
      %7166 = vmatpush1.msra.mxu0 0.0
      %7167 = vmatprep.subr.mxu0 0.0
      %7168 = vmatpush1.msra.mxu0 0.0
      %7169 = vmatprep.subr.mxu0 0.0
      %7170 = vmatpush1.msra.mxu0 0.0
      %7171 = vmatprep.subr.mxu0 0.0
      %7172 = vmatpush1.msra.mxu0 0.0
      %7173 = vmatprep.subr.mxu0 0.0
      %7174 = vmatpush1.msra.mxu0 0.0
      %7175 = vmatprep.subr.mxu0 0.0
      %7176 = vmatpush1.msra.mxu0 0.0
      %7177 = vmatprep.subr.mxu0 0.0
      %7178 = vmatpush1.msra.mxu0 0.0
      %7179 = vmatprep.subr.mxu0 0.0
      %7180 = vmatpush1.msra.mxu0 %v6936
      %7181 = vmatprep.subr.mxu0 0.0
      %7182 = vmatpush2.msra.mxu0 0.0
      %7183 = vmatprep.subr.mxu0 0.0
      %7184 = vmatpush2.msra.mxu0 0.0
      %7185 = vmatprep.subr.mxu0 0.0
      %7186 = vmatpush2.msra.mxu0 0.0
      %7187 = vmatprep.subr.mxu0 0.0
      %7188 = vmatpush2.msra.mxu0 0.0
      %7189 = vmatprep.subr.mxu0 0.0
      %7190 = vmatpush2.msra.mxu0 0.0
      %7191 = vmatprep.subr.mxu0 0.0
      %7192 = vmatpush2.msra.mxu0 0.0
      %7193 = vmatprep.subr.mxu0 0.0
      %7194 = vmatpush2.msra.mxu0 0.0
      %7195 = vmatprep.subr.mxu0 0.0
      %7196 = vmatpush2.msra.mxu0 0.0
      %7197 = vmatprep.subr.mxu0 0.0
      %7198 = vmatpush2.msra.mxu0 0.0
      %7199 = vmatprep.subr.mxu0 0.0
      %7200 = vmatpush2.msra.mxu0 0.0
      %7201 = vmatprep.subr.mxu0 0.0
      %7202 = vmatpush2.msra.mxu0 0.0
      %7203 = vmatprep.subr.mxu0 0.0
      %7204 = vmatpush2.msra.mxu0 0.0
      %7205 = vmatprep.subr.mxu0 0.0
      %7206 = vmatpush2.msra.mxu0 0.0
      %7207 = vmatprep.subr.mxu0 0.0
      %7208 = vmatpush2.msra.mxu0 0.0
      %7209 = vmatprep.subr.mxu0 0.0
      %7210 = vmatpush2.msra.mxu0 0.0
      %7211 = vmatprep.subr.mxu0 0.0
      %7212 = vmatpush2.msra.mxu0 0.0
      %7213 = vmatprep.mubr.f32.mxu0 0.0
      %7214 = vmatmul.mubr.f32.gmra.mxu0 %v2504
      %v7215 = vpop.f32.mrf.mxu0
      %v7216 = vadd.f32 0.0, %v7215
      %v7217 = vpop.f32.mrf.mxu0
      %7218 = vdwg.mxu0
      %v7219 = vsub.f32 %v2576, %v7006
      %v7220 = vsub.f32 %v2576, %v7076
      %v7221 = vsub.f32 %v2576, %v7146
      %v7222 = vsub.f32 %v2576, %v7216
      %v7224 = vsel %vm833, %v7006, 0
      %7226 = vmatprep.subr.mxu0 0.0
      %7227 = vmatpush1.msra.mxu0 0.0
      %7228 = vmatprep.subr.mxu0 0.0
      %7229 = vmatpush1.msra.mxu0 0.0
      %7230 = vmatprep.subr.mxu0 0.0
      %7231 = vmatpush1.msra.mxu0 0.0
      %7232 = vmatprep.subr.mxu0 0.0
      %7233 = vmatpush1.msra.mxu0 0.0
      %7234 = vmatprep.subr.mxu0 0.0
      %7235 = vmatpush1.msra.mxu0 0.0
      %7236 = vmatprep.subr.mxu0 0.0
      %7237 = vmatpush1.msra.mxu0 0.0
      %7238 = vmatprep.subr.mxu0 0.0
      %7239 = vmatpush1.msra.mxu0 0.0
      %7240 = vmatprep.subr.mxu0 0.0
      %7241 = vmatpush1.msra.mxu0 0.0
      %7242 = vmatprep.subr.mxu0 0.0
      %7243 = vmatpush1.msra.mxu0 0.0
      %7244 = vmatprep.subr.mxu0 0.0
      %7245 = vmatpush1.msra.mxu0 0.0
      %7246 = vmatprep.subr.mxu0 0.0
      %7247 = vmatpush1.msra.mxu0 0.0
      %7248 = vmatprep.subr.mxu0 0.0
      %7249 = vmatpush1.msra.mxu0 0.0
      %7250 = vmatprep.subr.mxu0 0.0
      %7251 = vmatpush1.msra.mxu0 0.0
      %7252 = vmatprep.subr.mxu0 0.0
      %7253 = vmatpush1.msra.mxu0 0.0
      %7254 = vmatprep.subr.mxu0 0.0
      %7255 = vmatpush1.msra.mxu0 0.0
      %7256 = vmatprep.subr.mxu0 0.0
      %7257 = vmatpush1.msra.mxu0 %v7219
      %7258 = vmatprep.subr.mxu0 0.0
      %7259 = vmatpush2.msra.mxu0 0.0
      %7260 = vmatprep.subr.mxu0 0.0
      %7261 = vmatpush2.msra.mxu0 0.0
      %7262 = vmatprep.subr.mxu0 0.0
      %7263 = vmatpush2.msra.mxu0 0.0
      %7264 = vmatprep.subr.mxu0 0.0
      %7265 = vmatpush2.msra.mxu0 0.0
      %7266 = vmatprep.subr.mxu0 0.0
      %7267 = vmatpush2.msra.mxu0 0.0
      %7268 = vmatprep.subr.mxu0 0.0
      %7269 = vmatpush2.msra.mxu0 0.0
      %7270 = vmatprep.subr.mxu0 0.0
      %7271 = vmatpush2.msra.mxu0 0.0
      %7272 = vmatprep.subr.mxu0 0.0
      %7273 = vmatpush2.msra.mxu0 0.0
      %7274 = vmatprep.subr.mxu0 0.0
      %7275 = vmatpush2.msra.mxu0 0.0
      %7276 = vmatprep.subr.mxu0 0.0
      %7277 = vmatpush2.msra.mxu0 0.0
      %7278 = vmatprep.subr.mxu0 0.0
      %7279 = vmatpush2.msra.mxu0 0.0
      %7280 = vmatprep.subr.mxu0 0.0
      %7281 = vmatpush2.msra.mxu0 0.0
      %7282 = vmatprep.subr.mxu0 0.0
      %7283 = vmatpush2.msra.mxu0 0.0
      %7284 = vmatprep.subr.mxu0 0.0
      %7285 = vmatpush2.msra.mxu0 0.0
      %7286 = vmatprep.subr.mxu0 0.0
      %7287 = vmatpush2.msra.mxu0 0.0
      %7288 = vmatprep.subr.mxu0 0.0
      %7289 = vmatpush2.msra.mxu0 0.0
      %7290 = vmatprep.mubr.f32.mxu0 0.0
      %7291 = vmatmul.mubr.f32.gmra.mxu0 %v7224
      %v7292 = vpop.f32.mrf.mxu0
      %v7293 = vadd.f32 0.0, %v7292
      %v7294 = vpop.f32.mrf.mxu0
      %7295 = vdwg.mxu0
      %v7297 = vsel %vm833, %v7076, 0
      %7299 = vmatprep.subr.mxu0 0.0
      %7300 = vmatpush1.msra.mxu0 0.0
      %7301 = vmatprep.subr.mxu0 0.0
      %7302 = vmatpush1.msra.mxu0 0.0
      %7303 = vmatprep.subr.mxu0 0.0
      %7304 = vmatpush1.msra.mxu0 0.0
      %7305 = vmatprep.subr.mxu0 0.0
      %7306 = vmatpush1.msra.mxu0 0.0
      %7307 = vmatprep.subr.mxu0 0.0
      %7308 = vmatpush1.msra.mxu0 0.0
      %7309 = vmatprep.subr.mxu0 0.0
      %7310 = vmatpush1.msra.mxu0 0.0
      %7311 = vmatprep.subr.mxu0 0.0
      %7312 = vmatpush1.msra.mxu0 0.0
      %7313 = vmatprep.subr.mxu0 0.0
      %7314 = vmatpush1.msra.mxu0 0.0
      %7315 = vmatprep.subr.mxu0 0.0
      %7316 = vmatpush1.msra.mxu0 0.0
      %7317 = vmatprep.subr.mxu0 0.0
      %7318 = vmatpush1.msra.mxu0 0.0
      %7319 = vmatprep.subr.mxu0 0.0
      %7320 = vmatpush1.msra.mxu0 0.0
      %7321 = vmatprep.subr.mxu0 0.0
      %7322 = vmatpush1.msra.mxu0 0.0
      %7323 = vmatprep.subr.mxu0 0.0
      %7324 = vmatpush1.msra.mxu0 0.0
      %7325 = vmatprep.subr.mxu0 0.0
      %7326 = vmatpush1.msra.mxu0 0.0
      %7327 = vmatprep.subr.mxu0 0.0
      %7328 = vmatpush1.msra.mxu0 0.0
      %7329 = vmatprep.subr.mxu0 0.0
      %7330 = vmatpush1.msra.mxu0 %v7220
      %7331 = vmatprep.subr.mxu0 0.0
      %7332 = vmatpush2.msra.mxu0 0.0
      %7333 = vmatprep.subr.mxu0 0.0
      %7334 = vmatpush2.msra.mxu0 0.0
      %7335 = vmatprep.subr.mxu0 0.0
      %7336 = vmatpush2.msra.mxu0 0.0
      %7337 = vmatprep.subr.mxu0 0.0
      %7338 = vmatpush2.msra.mxu0 0.0
      %7339 = vmatprep.subr.mxu0 0.0
      %7340 = vmatpush2.msra.mxu0 0.0
      %7341 = vmatprep.subr.mxu0 0.0
      %7342 = vmatpush2.msra.mxu0 0.0
      %7343 = vmatprep.subr.mxu0 0.0
      %7344 = vmatpush2.msra.mxu0 0.0
      %7345 = vmatprep.subr.mxu0 0.0
      %7346 = vmatpush2.msra.mxu0 0.0
      %7347 = vmatprep.subr.mxu0 0.0
      %7348 = vmatpush2.msra.mxu0 0.0
      %7349 = vmatprep.subr.mxu0 0.0
      %7350 = vmatpush2.msra.mxu0 0.0
      %7351 = vmatprep.subr.mxu0 0.0
      %7352 = vmatpush2.msra.mxu0 0.0
      %7353 = vmatprep.subr.mxu0 0.0
      %7354 = vmatpush2.msra.mxu0 0.0
      %7355 = vmatprep.subr.mxu0 0.0
      %7356 = vmatpush2.msra.mxu0 0.0
      %7357 = vmatprep.subr.mxu0 0.0
      %7358 = vmatpush2.msra.mxu0 0.0
      %7359 = vmatprep.subr.mxu0 0.0
      %7360 = vmatpush2.msra.mxu0 0.0
      %7361 = vmatprep.subr.mxu0 0.0
      %7362 = vmatpush2.msra.mxu0 0.0
      %7363 = vmatprep.mubr.f32.mxu0 0.0
      %7364 = vmatmul.mubr.f32.gmra.mxu0 %v7297
      %v7365 = vpop.f32.mrf.mxu0
      %v7366 = vadd.f32 0.0, %v7365
      %v7367 = vpop.f32.mrf.mxu0
      %7368 = vdwg.mxu0
      %v7370 = vsel %vm833, %v7146, 0
      %7372 = vmatprep.subr.mxu0 0.0
      %7373 = vmatpush1.msra.mxu0 0.0
      %7374 = vmatprep.subr.mxu0 0.0
      %7375 = vmatpush1.msra.mxu0 0.0
      %7376 = vmatprep.subr.mxu0 0.0
      %7377 = vmatpush1.msra.mxu0 0.0
      %7378 = vmatprep.subr.mxu0 0.0
      %7379 = vmatpush1.msra.mxu0 0.0
      %7380 = vmatprep.subr.mxu0 0.0
      %7381 = vmatpush1.msra.mxu0 0.0
      %7382 = vmatprep.subr.mxu0 0.0
      %7383 = vmatpush1.msra.mxu0 0.0
      %7384 = vmatprep.subr.mxu0 0.0
      %7385 = vmatpush1.msra.mxu0 0.0
      %7386 = vmatprep.subr.mxu0 0.0
      %7387 = vmatpush1.msra.mxu0 0.0
      %7388 = vmatprep.subr.mxu0 0.0
      %7389 = vmatpush1.msra.mxu0 0.0
      %7390 = vmatprep.subr.mxu0 0.0
      %7391 = vmatpush1.msra.mxu0 0.0
      %7392 = vmatprep.subr.mxu0 0.0
      %7393 = vmatpush1.msra.mxu0 0.0
      %7394 = vmatprep.subr.mxu0 0.0
      %7395 = vmatpush1.msra.mxu0 0.0
      %7396 = vmatprep.subr.mxu0 0.0
      %7397 = vmatpush1.msra.mxu0 0.0
      %7398 = vmatprep.subr.mxu0 0.0
      %7399 = vmatpush1.msra.mxu0 0.0
      %7400 = vmatprep.subr.mxu0 0.0
      %7401 = vmatpush1.msra.mxu0 0.0
      %7402 = vmatprep.subr.mxu0 0.0
      %7403 = vmatpush1.msra.mxu0 %v7221
      %7404 = vmatprep.subr.mxu0 0.0
      %7405 = vmatpush2.msra.mxu0 0.0
      %7406 = vmatprep.subr.mxu0 0.0
      %7407 = vmatpush2.msra.mxu0 0.0
      %7408 = vmatprep.subr.mxu0 0.0
      %7409 = vmatpush2.msra.mxu0 0.0
      %7410 = vmatprep.subr.mxu0 0.0
      %7411 = vmatpush2.msra.mxu0 0.0
      %7412 = vmatprep.subr.mxu0 0.0
      %7413 = vmatpush2.msra.mxu0 0.0
      %7414 = vmatprep.subr.mxu0 0.0
      %7415 = vmatpush2.msra.mxu0 0.0
      %7416 = vmatprep.subr.mxu0 0.0
      %7417 = vmatpush2.msra.mxu0 0.0
      %7418 = vmatprep.subr.mxu0 0.0
      %7419 = vmatpush2.msra.mxu0 0.0
      %7420 = vmatprep.subr.mxu0 0.0
      %7421 = vmatpush2.msra.mxu0 0.0
      %7422 = vmatprep.subr.mxu0 0.0
      %7423 = vmatpush2.msra.mxu0 0.0
      %7424 = vmatprep.subr.mxu0 0.0
      %7425 = vmatpush2.msra.mxu0 0.0
      %7426 = vmatprep.subr.mxu0 0.0
      %7427 = vmatpush2.msra.mxu0 0.0
      %7428 = vmatprep.subr.mxu0 0.0
      %7429 = vmatpush2.msra.mxu0 0.0
      %7430 = vmatprep.subr.mxu0 0.0
      %7431 = vmatpush2.msra.mxu0 0.0
      %7432 = vmatprep.subr.mxu0 0.0
      %7433 = vmatpush2.msra.mxu0 0.0
      %7434 = vmatprep.subr.mxu0 0.0
      %7435 = vmatpush2.msra.mxu0 0.0
      %7436 = vmatprep.mubr.f32.mxu0 0.0
      %7437 = vmatmul.mubr.f32.gmra.mxu0 %v7370
      %v7438 = vpop.f32.mrf.mxu0
      %v7439 = vadd.f32 0.0, %v7438
      %v7440 = vpop.f32.mrf.mxu0
      %7441 = vdwg.mxu0
      %v7443 = vsel %vm833, %v7216, 0
      %7445 = vmatprep.subr.mxu0 0.0
      %7446 = vmatpush1.msra.mxu0 0.0
      %7447 = vmatprep.subr.mxu0 0.0
      %7448 = vmatpush1.msra.mxu0 0.0
      %7449 = vmatprep.subr.mxu0 0.0
      %7450 = vmatpush1.msra.mxu0 0.0
      %7451 = vmatprep.subr.mxu0 0.0
      %7452 = vmatpush1.msra.mxu0 0.0
      %7453 = vmatprep.subr.mxu0 0.0
      %7454 = vmatpush1.msra.mxu0 0.0
      %7455 = vmatprep.subr.mxu0 0.0
      %7456 = vmatpush1.msra.mxu0 0.0
      %7457 = vmatprep.subr.mxu0 0.0
      %7458 = vmatpush1.msra.mxu0 0.0
      %7459 = vmatprep.subr.mxu0 0.0
      %7460 = vmatpush1.msra.mxu0 0.0
      %7461 = vmatprep.subr.mxu0 0.0
      %7462 = vmatpush1.msra.mxu0 0.0
      %7463 = vmatprep.subr.mxu0 0.0
      %7464 = vmatpush1.msra.mxu0 0.0
      %7465 = vmatprep.subr.mxu0 0.0
      %7466 = vmatpush1.msra.mxu0 0.0
      %7467 = vmatprep.subr.mxu0 0.0
      %7468 = vmatpush1.msra.mxu0 0.0
      %7469 = vmatprep.subr.mxu0 0.0
      %7470 = vmatpush1.msra.mxu0 0.0
      %7471 = vmatprep.subr.mxu0 0.0
      %7472 = vmatpush1.msra.mxu0 0.0
      %7473 = vmatprep.subr.mxu0 0.0
      %7474 = vmatpush1.msra.mxu0 0.0
      %7475 = vmatprep.subr.mxu0 0.0
      %7476 = vmatpush1.msra.mxu0 %v7222
      %7477 = vmatprep.subr.mxu0 0.0
      %7478 = vmatpush2.msra.mxu0 0.0
      %7479 = vmatprep.subr.mxu0 0.0
      %7480 = vmatpush2.msra.mxu0 0.0
      %7481 = vmatprep.subr.mxu0 0.0
      %7482 = vmatpush2.msra.mxu0 0.0
      %7483 = vmatprep.subr.mxu0 0.0
      %7484 = vmatpush2.msra.mxu0 0.0
      %7485 = vmatprep.subr.mxu0 0.0
      %7486 = vmatpush2.msra.mxu0 0.0
      %7487 = vmatprep.subr.mxu0 0.0
      %7488 = vmatpush2.msra.mxu0 0.0
      %7489 = vmatprep.subr.mxu0 0.0
      %7490 = vmatpush2.msra.mxu0 0.0
      %7491 = vmatprep.subr.mxu0 0.0
      %7492 = vmatpush2.msra.mxu0 0.0
      %7493 = vmatprep.subr.mxu0 0.0
      %7494 = vmatpush2.msra.mxu0 0.0
      %7495 = vmatprep.subr.mxu0 0.0
      %7496 = vmatpush2.msra.mxu0 0.0
      %7497 = vmatprep.subr.mxu0 0.0
      %7498 = vmatpush2.msra.mxu0 0.0
      %7499 = vmatprep.subr.mxu0 0.0
      %7500 = vmatpush2.msra.mxu0 0.0
      %7501 = vmatprep.subr.mxu0 0.0
      %7502 = vmatpush2.msra.mxu0 0.0
      %7503 = vmatprep.subr.mxu0 0.0
      %7504 = vmatpush2.msra.mxu0 0.0
      %7505 = vmatprep.subr.mxu0 0.0
      %7506 = vmatpush2.msra.mxu0 0.0
      %7507 = vmatprep.subr.mxu0 0.0
      %7508 = vmatpush2.msra.mxu0 0.0
      %7509 = vmatprep.mubr.f32.mxu0 0.0
      %7510 = vmatmul.mubr.f32.gmra.mxu0 %v7443
      %v7511 = vpop.f32.mrf.mxu0
      %v7512 = vadd.f32 0.0, %v7511
      %v7513 = vpop.f32.mrf.mxu0
      %7514 = vdwg.mxu0
      %v7515 = vsub.f32 %v2581, %v7293
      %v7516 = vsub.f32 %v2581, %v7366
      %v7517 = vsub.f32 %v2581, %v7439
      %v7518 = vsub.f32 %v2581, %v7512
      %7519 = vmatprep.subr.mxu0 0.0
      %7520 = vmatpush1.msra.mxu0 0.0
      %7521 = vmatprep.subr.mxu0 0.0
      %7522 = vmatpush1.msra.mxu0 0.0
      %7523 = vmatprep.subr.mxu0 0.0
      %7524 = vmatpush1.msra.mxu0 0.0
      %7525 = vmatprep.subr.mxu0 0.0
      %7526 = vmatpush1.msra.mxu0 0.0
      %7527 = vmatprep.subr.mxu0 0.0
      %7528 = vmatpush1.msra.mxu0 0.0
      %7529 = vmatprep.subr.mxu0 0.0
      %7530 = vmatpush1.msra.mxu0 0.0
      %7531 = vmatprep.subr.mxu0 0.0
      %7532 = vmatpush1.msra.mxu0 0.0
      %7533 = vmatprep.subr.mxu0 0.0
      %7534 = vmatpush1.msra.mxu0 0.0
      %7535 = vmatprep.subr.mxu0 0.0
      %7536 = vmatpush1.msra.mxu0 0.0
      %7537 = vmatprep.subr.mxu0 0.0
      %7538 = vmatpush1.msra.mxu0 0.0
      %7539 = vmatprep.subr.mxu0 0.0
      %7540 = vmatpush1.msra.mxu0 0.0
      %7541 = vmatprep.subr.mxu0 0.0
      %7542 = vmatpush1.msra.mxu0 0.0
      %7543 = vmatprep.subr.mxu0 0.0
      %7544 = vmatpush1.msra.mxu0 0.0
      %7545 = vmatprep.subr.mxu0 0.0
      %7546 = vmatpush1.msra.mxu0 0.0
      %7547 = vmatprep.subr.mxu0 0.0
      %7548 = vmatpush1.msra.mxu0 0.0
      %7549 = vmatprep.subr.mxu0 0.0
      %7550 = vmatpush1.msra.mxu0 %v7515
      %7551 = vmatprep.subr.mxu0 0.0
      %7552 = vmatpush2.msra.mxu0 0.0
      %7553 = vmatprep.subr.mxu0 0.0
      %7554 = vmatpush2.msra.mxu0 0.0
      %7555 = vmatprep.subr.mxu0 0.0
      %7556 = vmatpush2.msra.mxu0 0.0
      %7557 = vmatprep.subr.mxu0 0.0
      %7558 = vmatpush2.msra.mxu0 0.0
      %7559 = vmatprep.subr.mxu0 0.0
      %7560 = vmatpush2.msra.mxu0 0.0
      %7561 = vmatprep.subr.mxu0 0.0
      %7562 = vmatpush2.msra.mxu0 0.0
      %7563 = vmatprep.subr.mxu0 0.0
      %7564 = vmatpush2.msra.mxu0 0.0
      %7565 = vmatprep.subr.mxu0 0.0
      %7566 = vmatpush2.msra.mxu0 0.0
      %7567 = vmatprep.subr.mxu0 0.0
      %7568 = vmatpush2.msra.mxu0 0.0
      %7569 = vmatprep.subr.mxu0 0.0
      %7570 = vmatpush2.msra.mxu0 0.0
      %7571 = vmatprep.subr.mxu0 0.0
      %7572 = vmatpush2.msra.mxu0 0.0
      %7573 = vmatprep.subr.mxu0 0.0
      %7574 = vmatpush2.msra.mxu0 0.0
      %7575 = vmatprep.subr.mxu0 0.0
      %7576 = vmatpush2.msra.mxu0 0.0
      %7577 = vmatprep.subr.mxu0 0.0
      %7578 = vmatpush2.msra.mxu0 0.0
      %7579 = vmatprep.subr.mxu0 0.0
      %7580 = vmatpush2.msra.mxu0 0.0
      %7581 = vmatprep.subr.mxu0 0.0
      %7582 = vmatpush2.msra.mxu0 0.0
      %7583 = vmatprep.mubr.f32.mxu0 0.0
      %7584 = vmatmul.mubr.f32.gmra.mxu0 %v7224
      %v7585 = vpop.f32.mrf.mxu0
      %v7586 = vadd.f32 0.0, %v7585
      %v7587 = vpop.f32.mrf.mxu0
      %7588 = vdwg.mxu0
      %7589 = vmatprep.subr.mxu0 0.0
      %7590 = vmatpush1.msra.mxu0 0.0
      %7591 = vmatprep.subr.mxu0 0.0
      %7592 = vmatpush1.msra.mxu0 0.0
      %7593 = vmatprep.subr.mxu0 0.0
      %7594 = vmatpush1.msra.mxu0 0.0
      %7595 = vmatprep.subr.mxu0 0.0
      %7596 = vmatpush1.msra.mxu0 0.0
      %7597 = vmatprep.subr.mxu0 0.0
      %7598 = vmatpush1.msra.mxu0 0.0
      %7599 = vmatprep.subr.mxu0 0.0
      %7600 = vmatpush1.msra.mxu0 0.0
      %7601 = vmatprep.subr.mxu0 0.0
      %7602 = vmatpush1.msra.mxu0 0.0
      %7603 = vmatprep.subr.mxu0 0.0
      %7604 = vmatpush1.msra.mxu0 0.0
      %7605 = vmatprep.subr.mxu0 0.0
      %7606 = vmatpush1.msra.mxu0 0.0
      %7607 = vmatprep.subr.mxu0 0.0
      %7608 = vmatpush1.msra.mxu0 0.0
      %7609 = vmatprep.subr.mxu0 0.0
      %7610 = vmatpush1.msra.mxu0 0.0
      %7611 = vmatprep.subr.mxu0 0.0
      %7612 = vmatpush1.msra.mxu0 0.0
      %7613 = vmatprep.subr.mxu0 0.0
      %7614 = vmatpush1.msra.mxu0 0.0
      %7615 = vmatprep.subr.mxu0 0.0
      %7616 = vmatpush1.msra.mxu0 0.0
      %7617 = vmatprep.subr.mxu0 0.0
      %7618 = vmatpush1.msra.mxu0 0.0
      %7619 = vmatprep.subr.mxu0 0.0
      %7620 = vmatpush1.msra.mxu0 %v7516
      %7621 = vmatprep.subr.mxu0 0.0
      %7622 = vmatpush2.msra.mxu0 0.0
      %7623 = vmatprep.subr.mxu0 0.0
      %7624 = vmatpush2.msra.mxu0 0.0
      %7625 = vmatprep.subr.mxu0 0.0
      %7626 = vmatpush2.msra.mxu0 0.0
      %7627 = vmatprep.subr.mxu0 0.0
      %7628 = vmatpush2.msra.mxu0 0.0
      %7629 = vmatprep.subr.mxu0 0.0
      %7630 = vmatpush2.msra.mxu0 0.0
      %7631 = vmatprep.subr.mxu0 0.0
      %7632 = vmatpush2.msra.mxu0 0.0
      %7633 = vmatprep.subr.mxu0 0.0
      %7634 = vmatpush2.msra.mxu0 0.0
      %7635 = vmatprep.subr.mxu0 0.0
      %7636 = vmatpush2.msra.mxu0 0.0
      %7637 = vmatprep.subr.mxu0 0.0
      %7638 = vmatpush2.msra.mxu0 0.0
      %7639 = vmatprep.subr.mxu0 0.0
      %7640 = vmatpush2.msra.mxu0 0.0
      %7641 = vmatprep.subr.mxu0 0.0
      %7642 = vmatpush2.msra.mxu0 0.0
      %7643 = vmatprep.subr.mxu0 0.0
      %7644 = vmatpush2.msra.mxu0 0.0
      %7645 = vmatprep.subr.mxu0 0.0
      %7646 = vmatpush2.msra.mxu0 0.0
      %7647 = vmatprep.subr.mxu0 0.0
      %7648 = vmatpush2.msra.mxu0 0.0
      %7649 = vmatprep.subr.mxu0 0.0
      %7650 = vmatpush2.msra.mxu0 0.0
      %7651 = vmatprep.subr.mxu0 0.0
      %7652 = vmatpush2.msra.mxu0 0.0
      %7653 = vmatprep.mubr.f32.mxu0 0.0
      %7654 = vmatmul.mubr.f32.gmra.mxu0 %v7297
      %v7655 = vpop.f32.mrf.mxu0
      %v7656 = vadd.f32 0.0, %v7655
      %v7657 = vpop.f32.mrf.mxu0
      %7658 = vdwg.mxu0
      %7659 = vmatprep.subr.mxu0 0.0
      %7660 = vmatpush1.msra.mxu0 0.0
      %7661 = vmatprep.subr.mxu0 0.0
      %7662 = vmatpush1.msra.mxu0 0.0
      %7663 = vmatprep.subr.mxu0 0.0
      %7664 = vmatpush1.msra.mxu0 0.0
      %7665 = vmatprep.subr.mxu0 0.0
      %7666 = vmatpush1.msra.mxu0 0.0
      %7667 = vmatprep.subr.mxu0 0.0
      %7668 = vmatpush1.msra.mxu0 0.0
      %7669 = vmatprep.subr.mxu0 0.0
      %7670 = vmatpush1.msra.mxu0 0.0
      %7671 = vmatprep.subr.mxu0 0.0
      %7672 = vmatpush1.msra.mxu0 0.0
      %7673 = vmatprep.subr.mxu0 0.0
      %7674 = vmatpush1.msra.mxu0 0.0
      %7675 = vmatprep.subr.mxu0 0.0
      %7676 = vmatpush1.msra.mxu0 0.0
      %7677 = vmatprep.subr.mxu0 0.0
      %7678 = vmatpush1.msra.mxu0 0.0
      %7679 = vmatprep.subr.mxu0 0.0
      %7680 = vmatpush1.msra.mxu0 0.0
      %7681 = vmatprep.subr.mxu0 0.0
      %7682 = vmatpush1.msra.mxu0 0.0
      %7683 = vmatprep.subr.mxu0 0.0
      %7684 = vmatpush1.msra.mxu0 0.0
      %7685 = vmatprep.subr.mxu0 0.0
      %7686 = vmatpush1.msra.mxu0 0.0
      %7687 = vmatprep.subr.mxu0 0.0
      %7688 = vmatpush1.msra.mxu0 0.0
      %7689 = vmatprep.subr.mxu0 0.0
      %7690 = vmatpush1.msra.mxu0 %v7517
      %7691 = vmatprep.subr.mxu0 0.0
      %7692 = vmatpush2.msra.mxu0 0.0
      %7693 = vmatprep.subr.mxu0 0.0
      %7694 = vmatpush2.msra.mxu0 0.0
      %7695 = vmatprep.subr.mxu0 0.0
      %7696 = vmatpush2.msra.mxu0 0.0
      %7697 = vmatprep.subr.mxu0 0.0
      %7698 = vmatpush2.msra.mxu0 0.0
      %7699 = vmatprep.subr.mxu0 0.0
      %7700 = vmatpush2.msra.mxu0 0.0
      %7701 = vmatprep.subr.mxu0 0.0
      %7702 = vmatpush2.msra.mxu0 0.0
      %7703 = vmatprep.subr.mxu0 0.0
      %7704 = vmatpush2.msra.mxu0 0.0
      %7705 = vmatprep.subr.mxu0 0.0
      %7706 = vmatpush2.msra.mxu0 0.0
      %7707 = vmatprep.subr.mxu0 0.0
      %7708 = vmatpush2.msra.mxu0 0.0
      %7709 = vmatprep.subr.mxu0 0.0
      %7710 = vmatpush2.msra.mxu0 0.0
      %7711 = vmatprep.subr.mxu0 0.0
      %7712 = vmatpush2.msra.mxu0 0.0
      %7713 = vmatprep.subr.mxu0 0.0
      %7714 = vmatpush2.msra.mxu0 0.0
      %7715 = vmatprep.subr.mxu0 0.0
      %7716 = vmatpush2.msra.mxu0 0.0
      %7717 = vmatprep.subr.mxu0 0.0
      %7718 = vmatpush2.msra.mxu0 0.0
      %7719 = vmatprep.subr.mxu0 0.0
      %7720 = vmatpush2.msra.mxu0 0.0
      %7721 = vmatprep.subr.mxu0 0.0
      %7722 = vmatpush2.msra.mxu0 0.0
      %7723 = vmatprep.mubr.f32.mxu0 0.0
      %7724 = vmatmul.mubr.f32.gmra.mxu0 %v7370
      %v7725 = vpop.f32.mrf.mxu0
      %v7726 = vadd.f32 0.0, %v7725
      %v7727 = vpop.f32.mrf.mxu0
      %7728 = vdwg.mxu0
      %7729 = vmatprep.subr.mxu0 0.0
      %7730 = vmatpush1.msra.mxu0 0.0
      %7731 = vmatprep.subr.mxu0 0.0
      %7732 = vmatpush1.msra.mxu0 0.0
      %7733 = vmatprep.subr.mxu0 0.0
      %7734 = vmatpush1.msra.mxu0 0.0
      %7735 = vmatprep.subr.mxu0 0.0
      %7736 = vmatpush1.msra.mxu0 0.0
      %7737 = vmatprep.subr.mxu0 0.0
      %7738 = vmatpush1.msra.mxu0 0.0
      %7739 = vmatprep.subr.mxu0 0.0
      %7740 = vmatpush1.msra.mxu0 0.0
      %7741 = vmatprep.subr.mxu0 0.0
      %7742 = vmatpush1.msra.mxu0 0.0
      %7743 = vmatprep.subr.mxu0 0.0
      %7744 = vmatpush1.msra.mxu0 0.0
      %7745 = vmatprep.subr.mxu0 0.0
      %7746 = vmatpush1.msra.mxu0 0.0
      %7747 = vmatprep.subr.mxu0 0.0
      %7748 = vmatpush1.msra.mxu0 0.0
      %7749 = vmatprep.subr.mxu0 0.0
      %7750 = vmatpush1.msra.mxu0 0.0
      %7751 = vmatprep.subr.mxu0 0.0
      %7752 = vmatpush1.msra.mxu0 0.0
      %7753 = vmatprep.subr.mxu0 0.0
      %7754 = vmatpush1.msra.mxu0 0.0
      %7755 = vmatprep.subr.mxu0 0.0
      %7756 = vmatpush1.msra.mxu0 0.0
      %7757 = vmatprep.subr.mxu0 0.0
      %7758 = vmatpush1.msra.mxu0 0.0
      %7759 = vmatprep.subr.mxu0 0.0
      %7760 = vmatpush1.msra.mxu0 %v7518
      %7761 = vmatprep.subr.mxu0 0.0
      %7762 = vmatpush2.msra.mxu0 0.0
      %7763 = vmatprep.subr.mxu0 0.0
      %7764 = vmatpush2.msra.mxu0 0.0
      %7765 = vmatprep.subr.mxu0 0.0
      %7766 = vmatpush2.msra.mxu0 0.0
      %7767 = vmatprep.subr.mxu0 0.0
      %7768 = vmatpush2.msra.mxu0 0.0
      %7769 = vmatprep.subr.mxu0 0.0
      %7770 = vmatpush2.msra.mxu0 0.0
      %7771 = vmatprep.subr.mxu0 0.0
      %7772 = vmatpush2.msra.mxu0 0.0
      %7773 = vmatprep.subr.mxu0 0.0
      %7774 = vmatpush2.msra.mxu0 0.0
      %7775 = vmatprep.subr.mxu0 0.0
      %7776 = vmatpush2.msra.mxu0 0.0
      %7777 = vmatprep.subr.mxu0 0.0
      %7778 = vmatpush2.msra.mxu0 0.0
      %7779 = vmatprep.subr.mxu0 0.0
      %7780 = vmatpush2.msra.mxu0 0.0
      %7781 = vmatprep.subr.mxu0 0.0
      %7782 = vmatpush2.msra.mxu0 0.0
      %7783 = vmatprep.subr.mxu0 0.0
      %7784 = vmatpush2.msra.mxu0 0.0
      %7785 = vmatprep.subr.mxu0 0.0
      %7786 = vmatpush2.msra.mxu0 0.0
      %7787 = vmatprep.subr.mxu0 0.0
      %7788 = vmatpush2.msra.mxu0 0.0
      %7789 = vmatprep.subr.mxu0 0.0
      %7790 = vmatpush2.msra.mxu0 0.0
      %7791 = vmatprep.subr.mxu0 0.0
      %7792 = vmatpush2.msra.mxu0 0.0
      %7793 = vmatprep.mubr.f32.mxu0 0.0
      %7794 = vmatmul.mubr.f32.gmra.mxu0 %v7443
      %v7795 = vpop.f32.mrf.mxu0
      %v7796 = vadd.f32 0.0, %v7795
      %v7797 = vpop.f32.mrf.mxu0
      %7798 = vdwg.mxu0
      %v7799 = vsub.f32 %v2878, %v7586
      %v7800 = vsub.f32 %v2878, %v7656
      %v7801 = vsub.f32 %v2878, %v7726
      %v7802 = vsub.f32 %v2878, %v7796
      %v7803 = vmul.f32 %v6717, 0.25
      %v7804 = vmul.f32 %v6790, 0.25
      %v7805 = vmul.f32 %v6863, 0.25
      %v7806 = vmul.f32 %v6936, 0.25
      %v7808 = vsel %vm833, %v7803, 0
      %7810 = vmatprep.subr.mxu0 0.0
      %7811 = vmatpush1.msra.mxu0 0.0
      %7812 = vmatprep.subr.mxu0 0.0
      %7813 = vmatpush1.msra.mxu0 0.0
      %7814 = vmatprep.subr.mxu0 0.0
      %7815 = vmatpush1.msra.mxu0 0.0
      %7816 = vmatprep.subr.mxu0 0.0
      %7817 = vmatpush1.msra.mxu0 0.0
      %7818 = vmatprep.subr.mxu0 0.0
      %7819 = vmatpush1.msra.mxu0 0.0
      %7820 = vmatprep.subr.mxu0 0.0
      %7821 = vmatpush1.msra.mxu0 0.0
      %7822 = vmatprep.subr.mxu0 0.0
      %7823 = vmatpush1.msra.mxu0 0.0
      %7824 = vmatprep.subr.mxu0 0.0
      %7825 = vmatpush1.msra.mxu0 0.0
      %7826 = vmatprep.subr.mxu0 0.0
      %7827 = vmatpush1.msra.mxu0 0.0
      %7828 = vmatprep.subr.mxu0 0.0
      %7829 = vmatpush1.msra.mxu0 0.0
      %7830 = vmatprep.subr.mxu0 0.0
      %7831 = vmatpush1.msra.mxu0 0.0
      %7832 = vmatprep.subr.mxu0 0.0
      %7833 = vmatpush1.msra.mxu0 0.0
      %7834 = vmatprep.subr.mxu0 0.0
      %7835 = vmatpush1.msra.mxu0 0.0
      %7836 = vmatprep.subr.mxu0 0.0
      %7837 = vmatpush1.msra.mxu0 0.0
      %7838 = vmatprep.subr.mxu0 0.0
      %7839 = vmatpush1.msra.mxu0 0.0
      %7840 = vmatprep.subr.mxu0 0.0
      %7841 = vmatpush1.msra.mxu0 %v7799
      %7842 = vmatprep.subr.mxu0 0.0
      %7843 = vmatpush2.msra.mxu0 0.0
      %7844 = vmatprep.subr.mxu0 0.0
      %7845 = vmatpush2.msra.mxu0 0.0
      %7846 = vmatprep.subr.mxu0 0.0
      %7847 = vmatpush2.msra.mxu0 0.0
      %7848 = vmatprep.subr.mxu0 0.0
      %7849 = vmatpush2.msra.mxu0 0.0
      %7850 = vmatprep.subr.mxu0 0.0
      %7851 = vmatpush2.msra.mxu0 0.0
      %7852 = vmatprep.subr.mxu0 0.0
      %7853 = vmatpush2.msra.mxu0 0.0
      %7854 = vmatprep.subr.mxu0 0.0
      %7855 = vmatpush2.msra.mxu0 0.0
      %7856 = vmatprep.subr.mxu0 0.0
      %7857 = vmatpush2.msra.mxu0 0.0
      %7858 = vmatprep.subr.mxu0 0.0
      %7859 = vmatpush2.msra.mxu0 0.0
      %7860 = vmatprep.subr.mxu0 0.0
      %7861 = vmatpush2.msra.mxu0 0.0
      %7862 = vmatprep.subr.mxu0 0.0
      %7863 = vmatpush2.msra.mxu0 0.0
      %7864 = vmatprep.subr.mxu0 0.0
      %7865 = vmatpush2.msra.mxu0 0.0
      %7866 = vmatprep.subr.mxu0 0.0
      %7867 = vmatpush2.msra.mxu0 0.0
      %7868 = vmatprep.subr.mxu0 0.0
      %7869 = vmatpush2.msra.mxu0 0.0
      %7870 = vmatprep.subr.mxu0 0.0
      %7871 = vmatpush2.msra.mxu0 0.0
      %7872 = vmatprep.subr.mxu0 0.0
      %7873 = vmatpush2.msra.mxu0 0.0
      %7874 = vmatprep.mubr.f32.mxu0 0.0
      %7875 = vmatmul.mubr.f32.gmra.mxu0 %v7808
      %v7876 = vpop.f32.mrf.mxu0
      %v7877 = vadd.f32 0.0, %v7876
      %v7878 = vpop.f32.mrf.mxu0
      %7879 = vdwg.mxu0
      %v7881 = vsel %vm833, %v7804, 0
      %7883 = vmatprep.subr.mxu0 0.0
      %7884 = vmatpush1.msra.mxu0 0.0
      %7885 = vmatprep.subr.mxu0 0.0
      %7886 = vmatpush1.msra.mxu0 0.0
      %7887 = vmatprep.subr.mxu0 0.0
      %7888 = vmatpush1.msra.mxu0 0.0
      %7889 = vmatprep.subr.mxu0 0.0
      %7890 = vmatpush1.msra.mxu0 0.0
      %7891 = vmatprep.subr.mxu0 0.0
      %7892 = vmatpush1.msra.mxu0 0.0
      %7893 = vmatprep.subr.mxu0 0.0
      %7894 = vmatpush1.msra.mxu0 0.0
      %7895 = vmatprep.subr.mxu0 0.0
      %7896 = vmatpush1.msra.mxu0 0.0
      %7897 = vmatprep.subr.mxu0 0.0
      %7898 = vmatpush1.msra.mxu0 0.0
      %7899 = vmatprep.subr.mxu0 0.0
      %7900 = vmatpush1.msra.mxu0 0.0
      %7901 = vmatprep.subr.mxu0 0.0
      %7902 = vmatpush1.msra.mxu0 0.0
      %7903 = vmatprep.subr.mxu0 0.0
      %7904 = vmatpush1.msra.mxu0 0.0
      %7905 = vmatprep.subr.mxu0 0.0
      %7906 = vmatpush1.msra.mxu0 0.0
      %7907 = vmatprep.subr.mxu0 0.0
      %7908 = vmatpush1.msra.mxu0 0.0
      %7909 = vmatprep.subr.mxu0 0.0
      %7910 = vmatpush1.msra.mxu0 0.0
      %7911 = vmatprep.subr.mxu0 0.0
      %7912 = vmatpush1.msra.mxu0 0.0
      %7913 = vmatprep.subr.mxu0 0.0
      %7914 = vmatpush1.msra.mxu0 %v7800
      %7915 = vmatprep.subr.mxu0 0.0
      %7916 = vmatpush2.msra.mxu0 0.0
      %7917 = vmatprep.subr.mxu0 0.0
      %7918 = vmatpush2.msra.mxu0 0.0
      %7919 = vmatprep.subr.mxu0 0.0
      %7920 = vmatpush2.msra.mxu0 0.0
      %7921 = vmatprep.subr.mxu0 0.0
      %7922 = vmatpush2.msra.mxu0 0.0
      %7923 = vmatprep.subr.mxu0 0.0
      %7924 = vmatpush2.msra.mxu0 0.0
      %7925 = vmatprep.subr.mxu0 0.0
      %7926 = vmatpush2.msra.mxu0 0.0
      %7927 = vmatprep.subr.mxu0 0.0
      %7928 = vmatpush2.msra.mxu0 0.0
      %7929 = vmatprep.subr.mxu0 0.0
      %7930 = vmatpush2.msra.mxu0 0.0
      %7931 = vmatprep.subr.mxu0 0.0
      %7932 = vmatpush2.msra.mxu0 0.0
      %7933 = vmatprep.subr.mxu0 0.0
      %7934 = vmatpush2.msra.mxu0 0.0
      %7935 = vmatprep.subr.mxu0 0.0
      %7936 = vmatpush2.msra.mxu0 0.0
      %7937 = vmatprep.subr.mxu0 0.0
      %7938 = vmatpush2.msra.mxu0 0.0
      %7939 = vmatprep.subr.mxu0 0.0
      %7940 = vmatpush2.msra.mxu0 0.0
      %7941 = vmatprep.subr.mxu0 0.0
      %7942 = vmatpush2.msra.mxu0 0.0
      %7943 = vmatprep.subr.mxu0 0.0
      %7944 = vmatpush2.msra.mxu0 0.0
      %7945 = vmatprep.subr.mxu0 0.0
      %7946 = vmatpush2.msra.mxu0 0.0
      %7947 = vmatprep.mubr.f32.mxu0 0.0
      %7948 = vmatmul.mubr.f32.gmra.mxu0 %v7881
      %v7949 = vpop.f32.mrf.mxu0
      %v7950 = vadd.f32 0.0, %v7949
      %v7951 = vpop.f32.mrf.mxu0
      %7952 = vdwg.mxu0
      %v7954 = vsel %vm833, %v7805, 0
      %7956 = vmatprep.subr.mxu0 0.0
      %7957 = vmatpush1.msra.mxu0 0.0
      %7958 = vmatprep.subr.mxu0 0.0
      %7959 = vmatpush1.msra.mxu0 0.0
      %7960 = vmatprep.subr.mxu0 0.0
      %7961 = vmatpush1.msra.mxu0 0.0
      %7962 = vmatprep.subr.mxu0 0.0
      %7963 = vmatpush1.msra.mxu0 0.0
      %7964 = vmatprep.subr.mxu0 0.0
      %7965 = vmatpush1.msra.mxu0 0.0
      %7966 = vmatprep.subr.mxu0 0.0
      %7967 = vmatpush1.msra.mxu0 0.0
      %7968 = vmatprep.subr.mxu0 0.0
      %7969 = vmatpush1.msra.mxu0 0.0
      %7970 = vmatprep.subr.mxu0 0.0
      %7971 = vmatpush1.msra.mxu0 0.0
      %7972 = vmatprep.subr.mxu0 0.0
      %7973 = vmatpush1.msra.mxu0 0.0
      %7974 = vmatprep.subr.mxu0 0.0
      %7975 = vmatpush1.msra.mxu0 0.0
      %7976 = vmatprep.subr.mxu0 0.0
      %7977 = vmatpush1.msra.mxu0 0.0
      %7978 = vmatprep.subr.mxu0 0.0
      %7979 = vmatpush1.msra.mxu0 0.0
      %7980 = vmatprep.subr.mxu0 0.0
      %7981 = vmatpush1.msra.mxu0 0.0
      %7982 = vmatprep.subr.mxu0 0.0
      %7983 = vmatpush1.msra.mxu0 0.0
      %7984 = vmatprep.subr.mxu0 0.0
      %7985 = vmatpush1.msra.mxu0 0.0
      %7986 = vmatprep.subr.mxu0 0.0
      %7987 = vmatpush1.msra.mxu0 %v7801
      %7988 = vmatprep.subr.mxu0 0.0
      %7989 = vmatpush2.msra.mxu0 0.0
      %7990 = vmatprep.subr.mxu0 0.0
      %7991 = vmatpush2.msra.mxu0 0.0
      %7992 = vmatprep.subr.mxu0 0.0
      %7993 = vmatpush2.msra.mxu0 0.0
      %7994 = vmatprep.subr.mxu0 0.0
      %7995 = vmatpush2.msra.mxu0 0.0
      %7996 = vmatprep.subr.mxu0 0.0
      %7997 = vmatpush2.msra.mxu0 0.0
      %7998 = vmatprep.subr.mxu0 0.0
      %7999 = vmatpush2.msra.mxu0 0.0
      %8000 = vmatprep.subr.mxu0 0.0
      %8001 = vmatpush2.msra.mxu0 0.0
      %8002 = vmatprep.subr.mxu0 0.0
      %8003 = vmatpush2.msra.mxu0 0.0
      %8004 = vmatprep.subr.mxu0 0.0
      %8005 = vmatpush2.msra.mxu0 0.0
      %8006 = vmatprep.subr.mxu0 0.0
      %8007 = vmatpush2.msra.mxu0 0.0
      %8008 = vmatprep.subr.mxu0 0.0
      %8009 = vmatpush2.msra.mxu0 0.0
      %8010 = vmatprep.subr.mxu0 0.0
      %8011 = vmatpush2.msra.mxu0 0.0
      %8012 = vmatprep.subr.mxu0 0.0
      %8013 = vmatpush2.msra.mxu0 0.0
      %8014 = vmatprep.subr.mxu0 0.0
      %8015 = vmatpush2.msra.mxu0 0.0
      %8016 = vmatprep.subr.mxu0 0.0
      %8017 = vmatpush2.msra.mxu0 0.0
      %8018 = vmatprep.subr.mxu0 0.0
      %8019 = vmatpush2.msra.mxu0 0.0
      %8020 = vmatprep.mubr.f32.mxu0 0.0
      %8021 = vmatmul.mubr.f32.gmra.mxu0 %v7954
      %v8022 = vpop.f32.mrf.mxu0
      %v8023 = vadd.f32 0.0, %v8022
      %v8024 = vpop.f32.mrf.mxu0
      %8025 = vdwg.mxu0
      %v8027 = vsel %vm833, %v7806, 0
      %8029 = vmatprep.subr.mxu0 0.0
      %8030 = vmatpush1.msra.mxu0 0.0
      %8031 = vmatprep.subr.mxu0 0.0
      %8032 = vmatpush1.msra.mxu0 0.0
      %8033 = vmatprep.subr.mxu0 0.0
      %8034 = vmatpush1.msra.mxu0 0.0
      %8035 = vmatprep.subr.mxu0 0.0
      %8036 = vmatpush1.msra.mxu0 0.0
      %8037 = vmatprep.subr.mxu0 0.0
      %8038 = vmatpush1.msra.mxu0 0.0
      %8039 = vmatprep.subr.mxu0 0.0
      %8040 = vmatpush1.msra.mxu0 0.0
      %8041 = vmatprep.subr.mxu0 0.0
      %8042 = vmatpush1.msra.mxu0 0.0
      %8043 = vmatprep.subr.mxu0 0.0
      %8044 = vmatpush1.msra.mxu0 0.0
      %8045 = vmatprep.subr.mxu0 0.0
      %8046 = vmatpush1.msra.mxu0 0.0
      %8047 = vmatprep.subr.mxu0 0.0
      %8048 = vmatpush1.msra.mxu0 0.0
      %8049 = vmatprep.subr.mxu0 0.0
      %8050 = vmatpush1.msra.mxu0 0.0
      %8051 = vmatprep.subr.mxu0 0.0
      %8052 = vmatpush1.msra.mxu0 0.0
      %8053 = vmatprep.subr.mxu0 0.0
      %8054 = vmatpush1.msra.mxu0 0.0
      %8055 = vmatprep.subr.mxu0 0.0
      %8056 = vmatpush1.msra.mxu0 0.0
      %8057 = vmatprep.subr.mxu0 0.0
      %8058 = vmatpush1.msra.mxu0 0.0
      %8059 = vmatprep.subr.mxu0 0.0
      %8060 = vmatpush1.msra.mxu0 %v7802
      %8061 = vmatprep.subr.mxu0 0.0
      %8062 = vmatpush2.msra.mxu0 0.0
      %8063 = vmatprep.subr.mxu0 0.0
      %8064 = vmatpush2.msra.mxu0 0.0
      %8065 = vmatprep.subr.mxu0 0.0
      %8066 = vmatpush2.msra.mxu0 0.0
      %8067 = vmatprep.subr.mxu0 0.0
      %8068 = vmatpush2.msra.mxu0 0.0
      %8069 = vmatprep.subr.mxu0 0.0
      %8070 = vmatpush2.msra.mxu0 0.0
      %8071 = vmatprep.subr.mxu0 0.0
      %8072 = vmatpush2.msra.mxu0 0.0
      %8073 = vmatprep.subr.mxu0 0.0
      %8074 = vmatpush2.msra.mxu0 0.0
      %8075 = vmatprep.subr.mxu0 0.0
      %8076 = vmatpush2.msra.mxu0 0.0
      %8077 = vmatprep.subr.mxu0 0.0
      %8078 = vmatpush2.msra.mxu0 0.0
      %8079 = vmatprep.subr.mxu0 0.0
      %8080 = vmatpush2.msra.mxu0 0.0
      %8081 = vmatprep.subr.mxu0 0.0
      %8082 = vmatpush2.msra.mxu0 0.0
      %8083 = vmatprep.subr.mxu0 0.0
      %8084 = vmatpush2.msra.mxu0 0.0
      %8085 = vmatprep.subr.mxu0 0.0
      %8086 = vmatpush2.msra.mxu0 0.0
      %8087 = vmatprep.subr.mxu0 0.0
      %8088 = vmatpush2.msra.mxu0 0.0
      %8089 = vmatprep.subr.mxu0 0.0
      %8090 = vmatpush2.msra.mxu0 0.0
      %8091 = vmatprep.subr.mxu0 0.0
      %8092 = vmatpush2.msra.mxu0 0.0
      %8093 = vmatprep.mubr.f32.mxu0 0.0
      %8094 = vmatmul.mubr.f32.gmra.mxu0 %v8027
      %v8095 = vpop.f32.mrf.mxu0
      %v8096 = vadd.f32 0.0, %v8095
      %v8097 = vpop.f32.mrf.mxu0
      %8098 = vdwg.mxu0
      %8099 = vmatprep.subr.mxu0 0.0
      %8100 = vmatpush1.msra.mxu0 0.0
      %8101 = vmatprep.subr.mxu0 0.0
      %8102 = vmatpush1.msra.mxu0 0.0
      %8103 = vmatprep.subr.mxu0 0.0
      %8104 = vmatpush1.msra.mxu0 0.0
      %8105 = vmatprep.subr.mxu0 0.0
      %8106 = vmatpush1.msra.mxu0 0.0
      %8107 = vmatprep.subr.mxu0 0.0
      %8108 = vmatpush1.msra.mxu0 0.0
      %8109 = vmatprep.subr.mxu0 0.0
      %8110 = vmatpush1.msra.mxu0 0.0
      %8111 = vmatprep.subr.mxu0 0.0
      %8112 = vmatpush1.msra.mxu0 0.0
      %8113 = vmatprep.subr.mxu0 0.0
      %8114 = vmatpush1.msra.mxu0 0.0
      %8115 = vmatprep.subr.mxu0 0.0
      %8116 = vmatpush1.msra.mxu0 0.0
      %8117 = vmatprep.subr.mxu0 0.0
      %8118 = vmatpush1.msra.mxu0 0.0
      %8119 = vmatprep.subr.mxu0 0.0
      %8120 = vmatpush1.msra.mxu0 0.0
      %8121 = vmatprep.subr.mxu0 0.0
      %8122 = vmatpush1.msra.mxu0 0.0
      %8123 = vmatprep.subr.mxu0 0.0
      %8124 = vmatpush1.msra.mxu0 0.0
      %8125 = vmatprep.subr.mxu0 0.0
      %8126 = vmatpush1.msra.mxu0 0.0
      %8127 = vmatprep.subr.mxu0 0.0
      %8128 = vmatpush1.msra.mxu0 0.0
      %8129 = vmatprep.subr.mxu0 0.0
      %8130 = vmatpush1.msra.mxu0 %v7877
      %8131 = vmatprep.subr.mxu0 0.0
      %8132 = vmatpush2.msra.mxu0 0.0
      %8133 = vmatprep.subr.mxu0 0.0
      %8134 = vmatpush2.msra.mxu0 0.0
      %8135 = vmatprep.subr.mxu0 0.0
      %8136 = vmatpush2.msra.mxu0 0.0
      %8137 = vmatprep.subr.mxu0 0.0
      %8138 = vmatpush2.msra.mxu0 0.0
      %8139 = vmatprep.subr.mxu0 0.0
      %8140 = vmatpush2.msra.mxu0 0.0
      %8141 = vmatprep.subr.mxu0 0.0
      %8142 = vmatpush2.msra.mxu0 0.0
      %8143 = vmatprep.subr.mxu0 0.0
      %8144 = vmatpush2.msra.mxu0 0.0
      %8145 = vmatprep.subr.mxu0 0.0
      %8146 = vmatpush2.msra.mxu0 0.0
      %8147 = vmatprep.subr.mxu0 0.0
      %8148 = vmatpush2.msra.mxu0 0.0
      %8149 = vmatprep.subr.mxu0 0.0
      %8150 = vmatpush2.msra.mxu0 0.0
      %8151 = vmatprep.subr.mxu0 0.0
      %8152 = vmatpush2.msra.mxu0 0.0
      %8153 = vmatprep.subr.mxu0 0.0
      %8154 = vmatpush2.msra.mxu0 0.0
      %8155 = vmatprep.subr.mxu0 0.0
      %8156 = vmatpush2.msra.mxu0 0.0
      %8157 = vmatprep.subr.mxu0 0.0
      %8158 = vmatpush2.msra.mxu0 0.0
      %8159 = vmatprep.subr.mxu0 0.0
      %8160 = vmatpush2.msra.mxu0 0.0
      %8161 = vmatprep.subr.mxu0 0.0
      %8162 = vmatpush2.msra.mxu0 0.0
      %8163 = vmatprep.mubr.f32.mxu0 0.0
      %8164 = vmatmul.mubr.f32.gmra.mxu0 %v2285
      %v8165 = vpop.f32.mrf.mxu0
      %v8166 = vadd.f32 0.0, %v8165
      %v8167 = vpop.f32.mrf.mxu0
      %8168 = vdwg.mxu0
      %8169 = vmatprep.subr.mxu0 0.0
      %8170 = vmatpush1.msra.mxu0 0.0
      %8171 = vmatprep.subr.mxu0 0.0
      %8172 = vmatpush1.msra.mxu0 0.0
      %8173 = vmatprep.subr.mxu0 0.0
      %8174 = vmatpush1.msra.mxu0 0.0
      %8175 = vmatprep.subr.mxu0 0.0
      %8176 = vmatpush1.msra.mxu0 0.0
      %8177 = vmatprep.subr.mxu0 0.0
      %8178 = vmatpush1.msra.mxu0 0.0
      %8179 = vmatprep.subr.mxu0 0.0
      %8180 = vmatpush1.msra.mxu0 0.0
      %8181 = vmatprep.subr.mxu0 0.0
      %8182 = vmatpush1.msra.mxu0 0.0
      %8183 = vmatprep.subr.mxu0 0.0
      %8184 = vmatpush1.msra.mxu0 0.0
      %8185 = vmatprep.subr.mxu0 0.0
      %8186 = vmatpush1.msra.mxu0 0.0
      %8187 = vmatprep.subr.mxu0 0.0
      %8188 = vmatpush1.msra.mxu0 0.0
      %8189 = vmatprep.subr.mxu0 0.0
      %8190 = vmatpush1.msra.mxu0 0.0
      %8191 = vmatprep.subr.mxu0 0.0
      %8192 = vmatpush1.msra.mxu0 0.0
      %8193 = vmatprep.subr.mxu0 0.0
      %8194 = vmatpush1.msra.mxu0 0.0
      %8195 = vmatprep.subr.mxu0 0.0
      %8196 = vmatpush1.msra.mxu0 0.0
      %8197 = vmatprep.subr.mxu0 0.0
      %8198 = vmatpush1.msra.mxu0 0.0
      %8199 = vmatprep.subr.mxu0 0.0
      %8200 = vmatpush1.msra.mxu0 %v7950
      %8201 = vmatprep.subr.mxu0 0.0
      %8202 = vmatpush2.msra.mxu0 0.0
      %8203 = vmatprep.subr.mxu0 0.0
      %8204 = vmatpush2.msra.mxu0 0.0
      %8205 = vmatprep.subr.mxu0 0.0
      %8206 = vmatpush2.msra.mxu0 0.0
      %8207 = vmatprep.subr.mxu0 0.0
      %8208 = vmatpush2.msra.mxu0 0.0
      %8209 = vmatprep.subr.mxu0 0.0
      %8210 = vmatpush2.msra.mxu0 0.0
      %8211 = vmatprep.subr.mxu0 0.0
      %8212 = vmatpush2.msra.mxu0 0.0
      %8213 = vmatprep.subr.mxu0 0.0
      %8214 = vmatpush2.msra.mxu0 0.0
      %8215 = vmatprep.subr.mxu0 0.0
      %8216 = vmatpush2.msra.mxu0 0.0
      %8217 = vmatprep.subr.mxu0 0.0
      %8218 = vmatpush2.msra.mxu0 0.0
      %8219 = vmatprep.subr.mxu0 0.0
      %8220 = vmatpush2.msra.mxu0 0.0
      %8221 = vmatprep.subr.mxu0 0.0
      %8222 = vmatpush2.msra.mxu0 0.0
      %8223 = vmatprep.subr.mxu0 0.0
      %8224 = vmatpush2.msra.mxu0 0.0
      %8225 = vmatprep.subr.mxu0 0.0
      %8226 = vmatpush2.msra.mxu0 0.0
      %8227 = vmatprep.subr.mxu0 0.0
      %8228 = vmatpush2.msra.mxu0 0.0
      %8229 = vmatprep.subr.mxu0 0.0
      %8230 = vmatpush2.msra.mxu0 0.0
      %8231 = vmatprep.subr.mxu0 0.0
      %8232 = vmatpush2.msra.mxu0 0.0
      %8233 = vmatprep.mubr.f32.mxu0 0.0
      %8234 = vmatmul.mubr.f32.gmra.mxu0 %v2358
      %v8235 = vpop.f32.mrf.mxu0
      %v8236 = vadd.f32 0.0, %v8235
      %v8237 = vpop.f32.mrf.mxu0
      %8238 = vdwg.mxu0
      %8239 = vmatprep.subr.mxu0 0.0
      %8240 = vmatpush1.msra.mxu0 0.0
      %8241 = vmatprep.subr.mxu0 0.0
      %8242 = vmatpush1.msra.mxu0 0.0
      %8243 = vmatprep.subr.mxu0 0.0
      %8244 = vmatpush1.msra.mxu0 0.0
      %8245 = vmatprep.subr.mxu0 0.0
      %8246 = vmatpush1.msra.mxu0 0.0
      %8247 = vmatprep.subr.mxu0 0.0
      %8248 = vmatpush1.msra.mxu0 0.0
      %8249 = vmatprep.subr.mxu0 0.0
      %8250 = vmatpush1.msra.mxu0 0.0
      %8251 = vmatprep.subr.mxu0 0.0
      %8252 = vmatpush1.msra.mxu0 0.0
      %8253 = vmatprep.subr.mxu0 0.0
      %8254 = vmatpush1.msra.mxu0 0.0
      %8255 = vmatprep.subr.mxu0 0.0
      %8256 = vmatpush1.msra.mxu0 0.0
      %8257 = vmatprep.subr.mxu0 0.0
      %8258 = vmatpush1.msra.mxu0 0.0
      %8259 = vmatprep.subr.mxu0 0.0
      %8260 = vmatpush1.msra.mxu0 0.0
      %8261 = vmatprep.subr.mxu0 0.0
      %8262 = vmatpush1.msra.mxu0 0.0
      %8263 = vmatprep.subr.mxu0 0.0
      %8264 = vmatpush1.msra.mxu0 0.0
      %8265 = vmatprep.subr.mxu0 0.0
      %8266 = vmatpush1.msra.mxu0 0.0
      %8267 = vmatprep.subr.mxu0 0.0
      %8268 = vmatpush1.msra.mxu0 0.0
      %8269 = vmatprep.subr.mxu0 0.0
      %8270 = vmatpush1.msra.mxu0 %v8023
      %8271 = vmatprep.subr.mxu0 0.0
      %8272 = vmatpush2.msra.mxu0 0.0
      %8273 = vmatprep.subr.mxu0 0.0
      %8274 = vmatpush2.msra.mxu0 0.0
      %8275 = vmatprep.subr.mxu0 0.0
      %8276 = vmatpush2.msra.mxu0 0.0
      %8277 = vmatprep.subr.mxu0 0.0
      %8278 = vmatpush2.msra.mxu0 0.0
      %8279 = vmatprep.subr.mxu0 0.0
      %8280 = vmatpush2.msra.mxu0 0.0
      %8281 = vmatprep.subr.mxu0 0.0
      %8282 = vmatpush2.msra.mxu0 0.0
      %8283 = vmatprep.subr.mxu0 0.0
      %8284 = vmatpush2.msra.mxu0 0.0
      %8285 = vmatprep.subr.mxu0 0.0
      %8286 = vmatpush2.msra.mxu0 0.0
      %8287 = vmatprep.subr.mxu0 0.0
      %8288 = vmatpush2.msra.mxu0 0.0
      %8289 = vmatprep.subr.mxu0 0.0
      %8290 = vmatpush2.msra.mxu0 0.0
      %8291 = vmatprep.subr.mxu0 0.0
      %8292 = vmatpush2.msra.mxu0 0.0
      %8293 = vmatprep.subr.mxu0 0.0
      %8294 = vmatpush2.msra.mxu0 0.0
      %8295 = vmatprep.subr.mxu0 0.0
      %8296 = vmatpush2.msra.mxu0 0.0
      %8297 = vmatprep.subr.mxu0 0.0
      %8298 = vmatpush2.msra.mxu0 0.0
      %8299 = vmatprep.subr.mxu0 0.0
      %8300 = vmatpush2.msra.mxu0 0.0
      %8301 = vmatprep.subr.mxu0 0.0
      %8302 = vmatpush2.msra.mxu0 0.0
      %8303 = vmatprep.mubr.f32.mxu0 0.0
      %8304 = vmatmul.mubr.f32.gmra.mxu0 %v2431
      %v8305 = vpop.f32.mrf.mxu0
      %v8306 = vadd.f32 0.0, %v8305
      %v8307 = vpop.f32.mrf.mxu0
      %8308 = vdwg.mxu0
      %8309 = vmatprep.subr.mxu0 0.0
      %8310 = vmatpush1.msra.mxu0 0.0
      %8311 = vmatprep.subr.mxu0 0.0
      %8312 = vmatpush1.msra.mxu0 0.0
      %8313 = vmatprep.subr.mxu0 0.0
      %8314 = vmatpush1.msra.mxu0 0.0
      %8315 = vmatprep.subr.mxu0 0.0
      %8316 = vmatpush1.msra.mxu0 0.0
      %8317 = vmatprep.subr.mxu0 0.0
      %8318 = vmatpush1.msra.mxu0 0.0
      %8319 = vmatprep.subr.mxu0 0.0
      %8320 = vmatpush1.msra.mxu0 0.0
      %8321 = vmatprep.subr.mxu0 0.0
      %8322 = vmatpush1.msra.mxu0 0.0
      %8323 = vmatprep.subr.mxu0 0.0
      %8324 = vmatpush1.msra.mxu0 0.0
      %8325 = vmatprep.subr.mxu0 0.0
      %8326 = vmatpush1.msra.mxu0 0.0
      %8327 = vmatprep.subr.mxu0 0.0
      %8328 = vmatpush1.msra.mxu0 0.0
      %8329 = vmatprep.subr.mxu0 0.0
      %8330 = vmatpush1.msra.mxu0 0.0
      %8331 = vmatprep.subr.mxu0 0.0
      %8332 = vmatpush1.msra.mxu0 0.0
      %8333 = vmatprep.subr.mxu0 0.0
      %8334 = vmatpush1.msra.mxu0 0.0
      %8335 = vmatprep.subr.mxu0 0.0
      %8336 = vmatpush1.msra.mxu0 0.0
      %8337 = vmatprep.subr.mxu0 0.0
      %8338 = vmatpush1.msra.mxu0 0.0
      %8339 = vmatprep.subr.mxu0 0.0
      %8340 = vmatpush1.msra.mxu0 %v8096
      %8341 = vmatprep.subr.mxu0 0.0
      %8342 = vmatpush2.msra.mxu0 0.0
      %8343 = vmatprep.subr.mxu0 0.0
      %8344 = vmatpush2.msra.mxu0 0.0
      %8345 = vmatprep.subr.mxu0 0.0
      %8346 = vmatpush2.msra.mxu0 0.0
      %8347 = vmatprep.subr.mxu0 0.0
      %8348 = vmatpush2.msra.mxu0 0.0
      %8349 = vmatprep.subr.mxu0 0.0
      %8350 = vmatpush2.msra.mxu0 0.0
      %8351 = vmatprep.subr.mxu0 0.0
      %8352 = vmatpush2.msra.mxu0 0.0
      %8353 = vmatprep.subr.mxu0 0.0
      %8354 = vmatpush2.msra.mxu0 0.0
      %8355 = vmatprep.subr.mxu0 0.0
      %8356 = vmatpush2.msra.mxu0 0.0
      %8357 = vmatprep.subr.mxu0 0.0
      %8358 = vmatpush2.msra.mxu0 0.0
      %8359 = vmatprep.subr.mxu0 0.0
      %8360 = vmatpush2.msra.mxu0 0.0
      %8361 = vmatprep.subr.mxu0 0.0
      %8362 = vmatpush2.msra.mxu0 0.0
      %8363 = vmatprep.subr.mxu0 0.0
      %8364 = vmatpush2.msra.mxu0 0.0
      %8365 = vmatprep.subr.mxu0 0.0
      %8366 = vmatpush2.msra.mxu0 0.0
      %8367 = vmatprep.subr.mxu0 0.0
      %8368 = vmatpush2.msra.mxu0 0.0
      %8369 = vmatprep.subr.mxu0 0.0
      %8370 = vmatpush2.msra.mxu0 0.0
      %8371 = vmatprep.subr.mxu0 0.0
      %8372 = vmatpush2.msra.mxu0 0.0
      %8373 = vmatprep.mubr.f32.mxu0 0.0
      %8374 = vmatmul.mubr.f32.gmra.mxu0 %v2504
      %v8375 = vpop.f32.mrf.mxu0
      %v8376 = vadd.f32 0.0, %v8375
      %v8377 = vpop.f32.mrf.mxu0
      %8378 = vdwg.mxu0
      %v8379 = vsub.f32 %v2576, %v8166
      %v8380 = vsub.f32 %v2576, %v8236
      %v8381 = vsub.f32 %v2576, %v8306
      %v8382 = vsub.f32 %v2576, %v8376
      %v8384 = vsel %vm833, %v8166, 0
      %8386 = vmatprep.subr.mxu0 0.0
      %8387 = vmatpush1.msra.mxu0 0.0
      %8388 = vmatprep.subr.mxu0 0.0
      %8389 = vmatpush1.msra.mxu0 0.0
      %8390 = vmatprep.subr.mxu0 0.0
      %8391 = vmatpush1.msra.mxu0 0.0
      %8392 = vmatprep.subr.mxu0 0.0
      %8393 = vmatpush1.msra.mxu0 0.0
      %8394 = vmatprep.subr.mxu0 0.0
      %8395 = vmatpush1.msra.mxu0 0.0
      %8396 = vmatprep.subr.mxu0 0.0
      %8397 = vmatpush1.msra.mxu0 0.0
      %8398 = vmatprep.subr.mxu0 0.0
      %8399 = vmatpush1.msra.mxu0 0.0
      %8400 = vmatprep.subr.mxu0 0.0
      %8401 = vmatpush1.msra.mxu0 0.0
      %8402 = vmatprep.subr.mxu0 0.0
      %8403 = vmatpush1.msra.mxu0 0.0
      %8404 = vmatprep.subr.mxu0 0.0
      %8405 = vmatpush1.msra.mxu0 0.0
      %8406 = vmatprep.subr.mxu0 0.0
      %8407 = vmatpush1.msra.mxu0 0.0
      %8408 = vmatprep.subr.mxu0 0.0
      %8409 = vmatpush1.msra.mxu0 0.0
      %8410 = vmatprep.subr.mxu0 0.0
      %8411 = vmatpush1.msra.mxu0 0.0
      %8412 = vmatprep.subr.mxu0 0.0
      %8413 = vmatpush1.msra.mxu0 0.0
      %8414 = vmatprep.subr.mxu0 0.0
      %8415 = vmatpush1.msra.mxu0 0.0
      %8416 = vmatprep.subr.mxu0 0.0
      %8417 = vmatpush1.msra.mxu0 %v8379
      %8418 = vmatprep.subr.mxu0 0.0
      %8419 = vmatpush2.msra.mxu0 0.0
      %8420 = vmatprep.subr.mxu0 0.0
      %8421 = vmatpush2.msra.mxu0 0.0
      %8422 = vmatprep.subr.mxu0 0.0
      %8423 = vmatpush2.msra.mxu0 0.0
      %8424 = vmatprep.subr.mxu0 0.0
      %8425 = vmatpush2.msra.mxu0 0.0
      %8426 = vmatprep.subr.mxu0 0.0
      %8427 = vmatpush2.msra.mxu0 0.0
      %8428 = vmatprep.subr.mxu0 0.0
      %8429 = vmatpush2.msra.mxu0 0.0
      %8430 = vmatprep.subr.mxu0 0.0
      %8431 = vmatpush2.msra.mxu0 0.0
      %8432 = vmatprep.subr.mxu0 0.0
      %8433 = vmatpush2.msra.mxu0 0.0
      %8434 = vmatprep.subr.mxu0 0.0
      %8435 = vmatpush2.msra.mxu0 0.0
      %8436 = vmatprep.subr.mxu0 0.0
      %8437 = vmatpush2.msra.mxu0 0.0
      %8438 = vmatprep.subr.mxu0 0.0
      %8439 = vmatpush2.msra.mxu0 0.0
      %8440 = vmatprep.subr.mxu0 0.0
      %8441 = vmatpush2.msra.mxu0 0.0
      %8442 = vmatprep.subr.mxu0 0.0
      %8443 = vmatpush2.msra.mxu0 0.0
      %8444 = vmatprep.subr.mxu0 0.0
      %8445 = vmatpush2.msra.mxu0 0.0
      %8446 = vmatprep.subr.mxu0 0.0
      %8447 = vmatpush2.msra.mxu0 0.0
      %8448 = vmatprep.subr.mxu0 0.0
      %8449 = vmatpush2.msra.mxu0 0.0
      %8450 = vmatprep.mubr.f32.mxu0 0.0
      %8451 = vmatmul.mubr.f32.gmra.mxu0 %v8384
      %v8452 = vpop.f32.mrf.mxu0
      %v8453 = vadd.f32 0.0, %v8452
      %v8454 = vpop.f32.mrf.mxu0
      %8455 = vdwg.mxu0
      %v8457 = vsel %vm833, %v8236, 0
      %8459 = vmatprep.subr.mxu0 0.0
      %8460 = vmatpush1.msra.mxu0 0.0
      %8461 = vmatprep.subr.mxu0 0.0
      %8462 = vmatpush1.msra.mxu0 0.0
      %8463 = vmatprep.subr.mxu0 0.0
      %8464 = vmatpush1.msra.mxu0 0.0
      %8465 = vmatprep.subr.mxu0 0.0
      %8466 = vmatpush1.msra.mxu0 0.0
      %8467 = vmatprep.subr.mxu0 0.0
      %8468 = vmatpush1.msra.mxu0 0.0
      %8469 = vmatprep.subr.mxu0 0.0
      %8470 = vmatpush1.msra.mxu0 0.0
      %8471 = vmatprep.subr.mxu0 0.0
      %8472 = vmatpush1.msra.mxu0 0.0
      %8473 = vmatprep.subr.mxu0 0.0
      %8474 = vmatpush1.msra.mxu0 0.0
      %8475 = vmatprep.subr.mxu0 0.0
      %8476 = vmatpush1.msra.mxu0 0.0
      %8477 = vmatprep.subr.mxu0 0.0
      %8478 = vmatpush1.msra.mxu0 0.0
      %8479 = vmatprep.subr.mxu0 0.0
      %8480 = vmatpush1.msra.mxu0 0.0
      %8481 = vmatprep.subr.mxu0 0.0
      %8482 = vmatpush1.msra.mxu0 0.0
      %8483 = vmatprep.subr.mxu0 0.0
      %8484 = vmatpush1.msra.mxu0 0.0
      %8485 = vmatprep.subr.mxu0 0.0
      %8486 = vmatpush1.msra.mxu0 0.0
      %8487 = vmatprep.subr.mxu0 0.0
      %8488 = vmatpush1.msra.mxu0 0.0
      %8489 = vmatprep.subr.mxu0 0.0
      %8490 = vmatpush1.msra.mxu0 %v8380
      %8491 = vmatprep.subr.mxu0 0.0
      %8492 = vmatpush2.msra.mxu0 0.0
      %8493 = vmatprep.subr.mxu0 0.0
      %8494 = vmatpush2.msra.mxu0 0.0
      %8495 = vmatprep.subr.mxu0 0.0
      %8496 = vmatpush2.msra.mxu0 0.0
      %8497 = vmatprep.subr.mxu0 0.0
      %8498 = vmatpush2.msra.mxu0 0.0
      %8499 = vmatprep.subr.mxu0 0.0
      %8500 = vmatpush2.msra.mxu0 0.0
      %8501 = vmatprep.subr.mxu0 0.0
      %8502 = vmatpush2.msra.mxu0 0.0
      %8503 = vmatprep.subr.mxu0 0.0
      %8504 = vmatpush2.msra.mxu0 0.0
      %8505 = vmatprep.subr.mxu0 0.0
      %8506 = vmatpush2.msra.mxu0 0.0
      %8507 = vmatprep.subr.mxu0 0.0
      %8508 = vmatpush2.msra.mxu0 0.0
      %8509 = vmatprep.subr.mxu0 0.0
      %8510 = vmatpush2.msra.mxu0 0.0
      %8511 = vmatprep.subr.mxu0 0.0
      %8512 = vmatpush2.msra.mxu0 0.0
      %8513 = vmatprep.subr.mxu0 0.0
      %8514 = vmatpush2.msra.mxu0 0.0
      %8515 = vmatprep.subr.mxu0 0.0
      %8516 = vmatpush2.msra.mxu0 0.0
      %8517 = vmatprep.subr.mxu0 0.0
      %8518 = vmatpush2.msra.mxu0 0.0
      %8519 = vmatprep.subr.mxu0 0.0
      %8520 = vmatpush2.msra.mxu0 0.0
      %8521 = vmatprep.subr.mxu0 0.0
      %8522 = vmatpush2.msra.mxu0 0.0
      %8523 = vmatprep.mubr.f32.mxu0 0.0
      %8524 = vmatmul.mubr.f32.gmra.mxu0 %v8457
      %v8525 = vpop.f32.mrf.mxu0
      %v8526 = vadd.f32 0.0, %v8525
      %v8527 = vpop.f32.mrf.mxu0
      %8528 = vdwg.mxu0
      %v8530 = vsel %vm833, %v8306, 0
      %8532 = vmatprep.subr.mxu0 0.0
      %8533 = vmatpush1.msra.mxu0 0.0
      %8534 = vmatprep.subr.mxu0 0.0
      %8535 = vmatpush1.msra.mxu0 0.0
      %8536 = vmatprep.subr.mxu0 0.0
      %8537 = vmatpush1.msra.mxu0 0.0
      %8538 = vmatprep.subr.mxu0 0.0
      %8539 = vmatpush1.msra.mxu0 0.0
      %8540 = vmatprep.subr.mxu0 0.0
      %8541 = vmatpush1.msra.mxu0 0.0
      %8542 = vmatprep.subr.mxu0 0.0
      %8543 = vmatpush1.msra.mxu0 0.0
      %8544 = vmatprep.subr.mxu0 0.0
      %8545 = vmatpush1.msra.mxu0 0.0
      %8546 = vmatprep.subr.mxu0 0.0
      %8547 = vmatpush1.msra.mxu0 0.0
      %8548 = vmatprep.subr.mxu0 0.0
      %8549 = vmatpush1.msra.mxu0 0.0
      %8550 = vmatprep.subr.mxu0 0.0
      %8551 = vmatpush1.msra.mxu0 0.0
      %8552 = vmatprep.subr.mxu0 0.0
      %8553 = vmatpush1.msra.mxu0 0.0
      %8554 = vmatprep.subr.mxu0 0.0
      %8555 = vmatpush1.msra.mxu0 0.0
      %8556 = vmatprep.subr.mxu0 0.0
      %8557 = vmatpush1.msra.mxu0 0.0
      %8558 = vmatprep.subr.mxu0 0.0
      %8559 = vmatpush1.msra.mxu0 0.0
      %8560 = vmatprep.subr.mxu0 0.0
      %8561 = vmatpush1.msra.mxu0 0.0
      %8562 = vmatprep.subr.mxu0 0.0
      %8563 = vmatpush1.msra.mxu0 %v8381
      %8564 = vmatprep.subr.mxu0 0.0
      %8565 = vmatpush2.msra.mxu0 0.0
      %8566 = vmatprep.subr.mxu0 0.0
      %8567 = vmatpush2.msra.mxu0 0.0
      %8568 = vmatprep.subr.mxu0 0.0
      %8569 = vmatpush2.msra.mxu0 0.0
      %8570 = vmatprep.subr.mxu0 0.0
      %8571 = vmatpush2.msra.mxu0 0.0
      %8572 = vmatprep.subr.mxu0 0.0
      %8573 = vmatpush2.msra.mxu0 0.0
      %8574 = vmatprep.subr.mxu0 0.0
      %8575 = vmatpush2.msra.mxu0 0.0
      %8576 = vmatprep.subr.mxu0 0.0
      %8577 = vmatpush2.msra.mxu0 0.0
      %8578 = vmatprep.subr.mxu0 0.0
      %8579 = vmatpush2.msra.mxu0 0.0
      %8580 = vmatprep.subr.mxu0 0.0
      %8581 = vmatpush2.msra.mxu0 0.0
      %8582 = vmatprep.subr.mxu0 0.0
      %8583 = vmatpush2.msra.mxu0 0.0
      %8584 = vmatprep.subr.mxu0 0.0
      %8585 = vmatpush2.msra.mxu0 0.0
      %8586 = vmatprep.subr.mxu0 0.0
      %8587 = vmatpush2.msra.mxu0 0.0
      %8588 = vmatprep.subr.mxu0 0.0
      %8589 = vmatpush2.msra.mxu0 0.0
      %8590 = vmatprep.subr.mxu0 0.0
      %8591 = vmatpush2.msra.mxu0 0.0
      %8592 = vmatprep.subr.mxu0 0.0
      %8593 = vmatpush2.msra.mxu0 0.0
      %8594 = vmatprep.subr.mxu0 0.0
      %8595 = vmatpush2.msra.mxu0 0.0
      %8596 = vmatprep.mubr.f32.mxu0 0.0
      %8597 = vmatmul.mubr.f32.gmra.mxu0 %v8530
      %v8598 = vpop.f32.mrf.mxu0
      %v8599 = vadd.f32 0.0, %v8598
      %v8600 = vpop.f32.mrf.mxu0
      %8601 = vdwg.mxu0
      %v8603 = vsel %vm833, %v8376, 0
      %8605 = vmatprep.subr.mxu0 0.0
      %8606 = vmatpush1.msra.mxu0 0.0
      %8607 = vmatprep.subr.mxu0 0.0
      %8608 = vmatpush1.msra.mxu0 0.0
      %8609 = vmatprep.subr.mxu0 0.0
      %8610 = vmatpush1.msra.mxu0 0.0
      %8611 = vmatprep.subr.mxu0 0.0
      %8612 = vmatpush1.msra.mxu0 0.0
      %8613 = vmatprep.subr.mxu0 0.0
      %8614 = vmatpush1.msra.mxu0 0.0
      %8615 = vmatprep.subr.mxu0 0.0
      %8616 = vmatpush1.msra.mxu0 0.0
      %8617 = vmatprep.subr.mxu0 0.0
      %8618 = vmatpush1.msra.mxu0 0.0
      %8619 = vmatprep.subr.mxu0 0.0
      %8620 = vmatpush1.msra.mxu0 0.0
      %8621 = vmatprep.subr.mxu0 0.0
      %8622 = vmatpush1.msra.mxu0 0.0
      %8623 = vmatprep.subr.mxu0 0.0
      %8624 = vmatpush1.msra.mxu0 0.0
      %8625 = vmatprep.subr.mxu0 0.0
      %8626 = vmatpush1.msra.mxu0 0.0
      %8627 = vmatprep.subr.mxu0 0.0
      %8628 = vmatpush1.msra.mxu0 0.0
      %8629 = vmatprep.subr.mxu0 0.0
      %8630 = vmatpush1.msra.mxu0 0.0
      %8631 = vmatprep.subr.mxu0 0.0
      %8632 = vmatpush1.msra.mxu0 0.0
      %8633 = vmatprep.subr.mxu0 0.0
      %8634 = vmatpush1.msra.mxu0 0.0
      %8635 = vmatprep.subr.mxu0 0.0
      %8636 = vmatpush1.msra.mxu0 %v8382
      %8637 = vmatprep.subr.mxu0 0.0
      %8638 = vmatpush2.msra.mxu0 0.0
      %8639 = vmatprep.subr.mxu0 0.0
      %8640 = vmatpush2.msra.mxu0 0.0
      %8641 = vmatprep.subr.mxu0 0.0
      %8642 = vmatpush2.msra.mxu0 0.0
      %8643 = vmatprep.subr.mxu0 0.0
      %8644 = vmatpush2.msra.mxu0 0.0
      %8645 = vmatprep.subr.mxu0 0.0
      %8646 = vmatpush2.msra.mxu0 0.0
      %8647 = vmatprep.subr.mxu0 0.0
      %8648 = vmatpush2.msra.mxu0 0.0
      %8649 = vmatprep.subr.mxu0 0.0
      %8650 = vmatpush2.msra.mxu0 0.0
      %8651 = vmatprep.subr.mxu0 0.0
      %8652 = vmatpush2.msra.mxu0 0.0
      %8653 = vmatprep.subr.mxu0 0.0
      %8654 = vmatpush2.msra.mxu0 0.0
      %8655 = vmatprep.subr.mxu0 0.0
      %8656 = vmatpush2.msra.mxu0 0.0
      %8657 = vmatprep.subr.mxu0 0.0
      %8658 = vmatpush2.msra.mxu0 0.0
      %8659 = vmatprep.subr.mxu0 0.0
      %8660 = vmatpush2.msra.mxu0 0.0
      %8661 = vmatprep.subr.mxu0 0.0
      %8662 = vmatpush2.msra.mxu0 0.0
      %8663 = vmatprep.subr.mxu0 0.0
      %8664 = vmatpush2.msra.mxu0 0.0
      %8665 = vmatprep.subr.mxu0 0.0
      %8666 = vmatpush2.msra.mxu0 0.0
      %8667 = vmatprep.subr.mxu0 0.0
      %8668 = vmatpush2.msra.mxu0 0.0
      %8669 = vmatprep.mubr.f32.mxu0 0.0
      %8670 = vmatmul.mubr.f32.gmra.mxu0 %v8603
      %v8671 = vpop.f32.mrf.mxu0
      %v8672 = vadd.f32 0.0, %v8671
      %v8673 = vpop.f32.mrf.mxu0
      %8674 = vdwg.mxu0
      %v8675 = vsub.f32 %v2581, %v8453
      %v8676 = vsub.f32 %v2581, %v8526
      %v8677 = vsub.f32 %v2581, %v8599
      %v8678 = vsub.f32 %v2581, %v8672
      %8679 = vmatprep.subr.mxu0 0.0
      %8680 = vmatpush1.msra.mxu0 0.0
      %8681 = vmatprep.subr.mxu0 0.0
      %8682 = vmatpush1.msra.mxu0 0.0
      %8683 = vmatprep.subr.mxu0 0.0
      %8684 = vmatpush1.msra.mxu0 0.0
      %8685 = vmatprep.subr.mxu0 0.0
      %8686 = vmatpush1.msra.mxu0 0.0
      %8687 = vmatprep.subr.mxu0 0.0
      %8688 = vmatpush1.msra.mxu0 0.0
      %8689 = vmatprep.subr.mxu0 0.0
      %8690 = vmatpush1.msra.mxu0 0.0
      %8691 = vmatprep.subr.mxu0 0.0
      %8692 = vmatpush1.msra.mxu0 0.0
      %8693 = vmatprep.subr.mxu0 0.0
      %8694 = vmatpush1.msra.mxu0 0.0
      %8695 = vmatprep.subr.mxu0 0.0
      %8696 = vmatpush1.msra.mxu0 0.0
      %8697 = vmatprep.subr.mxu0 0.0
      %8698 = vmatpush1.msra.mxu0 0.0
      %8699 = vmatprep.subr.mxu0 0.0
      %8700 = vmatpush1.msra.mxu0 0.0
      %8701 = vmatprep.subr.mxu0 0.0
      %8702 = vmatpush1.msra.mxu0 0.0
      %8703 = vmatprep.subr.mxu0 0.0
      %8704 = vmatpush1.msra.mxu0 0.0
      %8705 = vmatprep.subr.mxu0 0.0
      %8706 = vmatpush1.msra.mxu0 0.0
      %8707 = vmatprep.subr.mxu0 0.0
      %8708 = vmatpush1.msra.mxu0 0.0
      %8709 = vmatprep.subr.mxu0 0.0
      %8710 = vmatpush1.msra.mxu0 %v8675
      %8711 = vmatprep.subr.mxu0 0.0
      %8712 = vmatpush2.msra.mxu0 0.0
      %8713 = vmatprep.subr.mxu0 0.0
      %8714 = vmatpush2.msra.mxu0 0.0
      %8715 = vmatprep.subr.mxu0 0.0
      %8716 = vmatpush2.msra.mxu0 0.0
      %8717 = vmatprep.subr.mxu0 0.0
      %8718 = vmatpush2.msra.mxu0 0.0
      %8719 = vmatprep.subr.mxu0 0.0
      %8720 = vmatpush2.msra.mxu0 0.0
      %8721 = vmatprep.subr.mxu0 0.0
      %8722 = vmatpush2.msra.mxu0 0.0
      %8723 = vmatprep.subr.mxu0 0.0
      %8724 = vmatpush2.msra.mxu0 0.0
      %8725 = vmatprep.subr.mxu0 0.0
      %8726 = vmatpush2.msra.mxu0 0.0
      %8727 = vmatprep.subr.mxu0 0.0
      %8728 = vmatpush2.msra.mxu0 0.0
      %8729 = vmatprep.subr.mxu0 0.0
      %8730 = vmatpush2.msra.mxu0 0.0
      %8731 = vmatprep.subr.mxu0 0.0
      %8732 = vmatpush2.msra.mxu0 0.0
      %8733 = vmatprep.subr.mxu0 0.0
      %8734 = vmatpush2.msra.mxu0 0.0
      %8735 = vmatprep.subr.mxu0 0.0
      %8736 = vmatpush2.msra.mxu0 0.0
      %8737 = vmatprep.subr.mxu0 0.0
      %8738 = vmatpush2.msra.mxu0 0.0
      %8739 = vmatprep.subr.mxu0 0.0
      %8740 = vmatpush2.msra.mxu0 0.0
      %8741 = vmatprep.subr.mxu0 0.0
      %8742 = vmatpush2.msra.mxu0 0.0
      %8743 = vmatprep.mubr.f32.mxu0 0.0
      %8744 = vmatmul.mubr.f32.gmra.mxu0 %v8384
      %v8745 = vpop.f32.mrf.mxu0
      %v8746 = vadd.f32 0.0, %v8745
      %v8747 = vpop.f32.mrf.mxu0
      %8748 = vdwg.mxu0
      %8749 = vmatprep.subr.mxu0 0.0
      %8750 = vmatpush1.msra.mxu0 0.0
      %8751 = vmatprep.subr.mxu0 0.0
      %8752 = vmatpush1.msra.mxu0 0.0
      %8753 = vmatprep.subr.mxu0 0.0
      %8754 = vmatpush1.msra.mxu0 0.0
      %8755 = vmatprep.subr.mxu0 0.0
      %8756 = vmatpush1.msra.mxu0 0.0
      %8757 = vmatprep.subr.mxu0 0.0
      %8758 = vmatpush1.msra.mxu0 0.0
      %8759 = vmatprep.subr.mxu0 0.0
      %8760 = vmatpush1.msra.mxu0 0.0
      %8761 = vmatprep.subr.mxu0 0.0
      %8762 = vmatpush1.msra.mxu0 0.0
      %8763 = vmatprep.subr.mxu0 0.0
      %8764 = vmatpush1.msra.mxu0 0.0
      %8765 = vmatprep.subr.mxu0 0.0
      %8766 = vmatpush1.msra.mxu0 0.0
      %8767 = vmatprep.subr.mxu0 0.0
      %8768 = vmatpush1.msra.mxu0 0.0
      %8769 = vmatprep.subr.mxu0 0.0
      %8770 = vmatpush1.msra.mxu0 0.0
      %8771 = vmatprep.subr.mxu0 0.0
      %8772 = vmatpush1.msra.mxu0 0.0
      %8773 = vmatprep.subr.mxu0 0.0
      %8774 = vmatpush1.msra.mxu0 0.0
      %8775 = vmatprep.subr.mxu0 0.0
      %8776 = vmatpush1.msra.mxu0 0.0
      %8777 = vmatprep.subr.mxu0 0.0
      %8778 = vmatpush1.msra.mxu0 0.0
      %8779 = vmatprep.subr.mxu0 0.0
      %8780 = vmatpush1.msra.mxu0 %v8676
      %8781 = vmatprep.subr.mxu0 0.0
      %8782 = vmatpush2.msra.mxu0 0.0
      %8783 = vmatprep.subr.mxu0 0.0
      %8784 = vmatpush2.msra.mxu0 0.0
      %8785 = vmatprep.subr.mxu0 0.0
      %8786 = vmatpush2.msra.mxu0 0.0
      %8787 = vmatprep.subr.mxu0 0.0
      %8788 = vmatpush2.msra.mxu0 0.0
      %8789 = vmatprep.subr.mxu0 0.0
      %8790 = vmatpush2.msra.mxu0 0.0
      %8791 = vmatprep.subr.mxu0 0.0
      %8792 = vmatpush2.msra.mxu0 0.0
      %8793 = vmatprep.subr.mxu0 0.0
      %8794 = vmatpush2.msra.mxu0 0.0
      %8795 = vmatprep.subr.mxu0 0.0
      %8796 = vmatpush2.msra.mxu0 0.0
      %8797 = vmatprep.subr.mxu0 0.0
      %8798 = vmatpush2.msra.mxu0 0.0
      %8799 = vmatprep.subr.mxu0 0.0
      %8800 = vmatpush2.msra.mxu0 0.0
      %8801 = vmatprep.subr.mxu0 0.0
      %8802 = vmatpush2.msra.mxu0 0.0
      %8803 = vmatprep.subr.mxu0 0.0
      %8804 = vmatpush2.msra.mxu0 0.0
      %8805 = vmatprep.subr.mxu0 0.0
      %8806 = vmatpush2.msra.mxu0 0.0
      %8807 = vmatprep.subr.mxu0 0.0
      %8808 = vmatpush2.msra.mxu0 0.0
      %8809 = vmatprep.subr.mxu0 0.0
      %8810 = vmatpush2.msra.mxu0 0.0
      %8811 = vmatprep.subr.mxu0 0.0
      %8812 = vmatpush2.msra.mxu0 0.0
      %8813 = vmatprep.mubr.f32.mxu0 0.0
      %8814 = vmatmul.mubr.f32.gmra.mxu0 %v8457
      %v8815 = vpop.f32.mrf.mxu0
      %v8816 = vadd.f32 0.0, %v8815
      %v8817 = vpop.f32.mrf.mxu0
      %8818 = vdwg.mxu0
      %8819 = vmatprep.subr.mxu0 0.0
      %8820 = vmatpush1.msra.mxu0 0.0
      %8821 = vmatprep.subr.mxu0 0.0
      %8822 = vmatpush1.msra.mxu0 0.0
      %8823 = vmatprep.subr.mxu0 0.0
      %8824 = vmatpush1.msra.mxu0 0.0
      %8825 = vmatprep.subr.mxu0 0.0
      %8826 = vmatpush1.msra.mxu0 0.0
      %8827 = vmatprep.subr.mxu0 0.0
      %8828 = vmatpush1.msra.mxu0 0.0
      %8829 = vmatprep.subr.mxu0 0.0
      %8830 = vmatpush1.msra.mxu0 0.0
      %8831 = vmatprep.subr.mxu0 0.0
      %8832 = vmatpush1.msra.mxu0 0.0
      %8833 = vmatprep.subr.mxu0 0.0
      %8834 = vmatpush1.msra.mxu0 0.0
      %8835 = vmatprep.subr.mxu0 0.0
      %8836 = vmatpush1.msra.mxu0 0.0
      %8837 = vmatprep.subr.mxu0 0.0
      %8838 = vmatpush1.msra.mxu0 0.0
      %8839 = vmatprep.subr.mxu0 0.0
      %8840 = vmatpush1.msra.mxu0 0.0
      %8841 = vmatprep.subr.mxu0 0.0
      %8842 = vmatpush1.msra.mxu0 0.0
      %8843 = vmatprep.subr.mxu0 0.0
      %8844 = vmatpush1.msra.mxu0 0.0
      %8845 = vmatprep.subr.mxu0 0.0
      %8846 = vmatpush1.msra.mxu0 0.0
      %8847 = vmatprep.subr.mxu0 0.0
      %8848 = vmatpush1.msra.mxu0 0.0
      %8849 = vmatprep.subr.mxu0 0.0
      %8850 = vmatpush1.msra.mxu0 %v8677
      %8851 = vmatprep.subr.mxu0 0.0
      %8852 = vmatpush2.msra.mxu0 0.0
      %8853 = vmatprep.subr.mxu0 0.0
      %8854 = vmatpush2.msra.mxu0 0.0
      %8855 = vmatprep.subr.mxu0 0.0
      %8856 = vmatpush2.msra.mxu0 0.0
      %8857 = vmatprep.subr.mxu0 0.0
      %8858 = vmatpush2.msra.mxu0 0.0
      %8859 = vmatprep.subr.mxu0 0.0
      %8860 = vmatpush2.msra.mxu0 0.0
      %8861 = vmatprep.subr.mxu0 0.0
      %8862 = vmatpush2.msra.mxu0 0.0
      %8863 = vmatprep.subr.mxu0 0.0
      %8864 = vmatpush2.msra.mxu0 0.0
      %8865 = vmatprep.subr.mxu0 0.0
      %8866 = vmatpush2.msra.mxu0 0.0
      %8867 = vmatprep.subr.mxu0 0.0
      %8868 = vmatpush2.msra.mxu0 0.0
      %8869 = vmatprep.subr.mxu0 0.0
      %8870 = vmatpush2.msra.mxu0 0.0
      %8871 = vmatprep.subr.mxu0 0.0
      %8872 = vmatpush2.msra.mxu0 0.0
      %8873 = vmatprep.subr.mxu0 0.0
      %8874 = vmatpush2.msra.mxu0 0.0
      %8875 = vmatprep.subr.mxu0 0.0
      %8876 = vmatpush2.msra.mxu0 0.0
      %8877 = vmatprep.subr.mxu0 0.0
      %8878 = vmatpush2.msra.mxu0 0.0
      %8879 = vmatprep.subr.mxu0 0.0
      %8880 = vmatpush2.msra.mxu0 0.0
      %8881 = vmatprep.subr.mxu0 0.0
      %8882 = vmatpush2.msra.mxu0 0.0
      %8883 = vmatprep.mubr.f32.mxu0 0.0
      %8884 = vmatmul.mubr.f32.gmra.mxu0 %v8530
      %v8885 = vpop.f32.mrf.mxu0
      %v8886 = vadd.f32 0.0, %v8885
      %v8887 = vpop.f32.mrf.mxu0
      %8888 = vdwg.mxu0
      %8889 = vmatprep.subr.mxu0 0.0
      %8890 = vmatpush1.msra.mxu0 0.0
      %8891 = vmatprep.subr.mxu0 0.0
      %8892 = vmatpush1.msra.mxu0 0.0
      %8893 = vmatprep.subr.mxu0 0.0
      %8894 = vmatpush1.msra.mxu0 0.0
      %8895 = vmatprep.subr.mxu0 0.0
      %8896 = vmatpush1.msra.mxu0 0.0
      %8897 = vmatprep.subr.mxu0 0.0
      %8898 = vmatpush1.msra.mxu0 0.0
      %8899 = vmatprep.subr.mxu0 0.0
      %8900 = vmatpush1.msra.mxu0 0.0
      %8901 = vmatprep.subr.mxu0 0.0
      %8902 = vmatpush1.msra.mxu0 0.0
      %8903 = vmatprep.subr.mxu0 0.0
      %8904 = vmatpush1.msra.mxu0 0.0
      %8905 = vmatprep.subr.mxu0 0.0
      %8906 = vmatpush1.msra.mxu0 0.0
      %8907 = vmatprep.subr.mxu0 0.0
      %8908 = vmatpush1.msra.mxu0 0.0
      %8909 = vmatprep.subr.mxu0 0.0
      %8910 = vmatpush1.msra.mxu0 0.0
      %8911 = vmatprep.subr.mxu0 0.0
      %8912 = vmatpush1.msra.mxu0 0.0
      %8913 = vmatprep.subr.mxu0 0.0
      %8914 = vmatpush1.msra.mxu0 0.0
      %8915 = vmatprep.subr.mxu0 0.0
      %8916 = vmatpush1.msra.mxu0 0.0
      %8917 = vmatprep.subr.mxu0 0.0
      %8918 = vmatpush1.msra.mxu0 0.0
      %8919 = vmatprep.subr.mxu0 0.0
      %8920 = vmatpush1.msra.mxu0 %v8678
      %8921 = vmatprep.subr.mxu0 0.0
      %8922 = vmatpush2.msra.mxu0 0.0
      %8923 = vmatprep.subr.mxu0 0.0
      %8924 = vmatpush2.msra.mxu0 0.0
      %8925 = vmatprep.subr.mxu0 0.0
      %8926 = vmatpush2.msra.mxu0 0.0
      %8927 = vmatprep.subr.mxu0 0.0
      %8928 = vmatpush2.msra.mxu0 0.0
      %8929 = vmatprep.subr.mxu0 0.0
      %8930 = vmatpush2.msra.mxu0 0.0
      %8931 = vmatprep.subr.mxu0 0.0
      %8932 = vmatpush2.msra.mxu0 0.0
      %8933 = vmatprep.subr.mxu0 0.0
      %8934 = vmatpush2.msra.mxu0 0.0
      %8935 = vmatprep.subr.mxu0 0.0
      %8936 = vmatpush2.msra.mxu0 0.0
      %8937 = vmatprep.subr.mxu0 0.0
      %8938 = vmatpush2.msra.mxu0 0.0
      %8939 = vmatprep.subr.mxu0 0.0
      %8940 = vmatpush2.msra.mxu0 0.0
      %8941 = vmatprep.subr.mxu0 0.0
      %8942 = vmatpush2.msra.mxu0 0.0
      %8943 = vmatprep.subr.mxu0 0.0
      %8944 = vmatpush2.msra.mxu0 0.0
      %8945 = vmatprep.subr.mxu0 0.0
      %8946 = vmatpush2.msra.mxu0 0.0
      %8947 = vmatprep.subr.mxu0 0.0
      %8948 = vmatpush2.msra.mxu0 0.0
      %8949 = vmatprep.subr.mxu0 0.0
      %8950 = vmatpush2.msra.mxu0 0.0
      %8951 = vmatprep.subr.mxu0 0.0
      %8952 = vmatpush2.msra.mxu0 0.0
      %8953 = vmatprep.mubr.f32.mxu0 0.0
      %8954 = vmatmul.mubr.f32.gmra.mxu0 %v8603
      %v8955 = vpop.f32.mrf.mxu0
      %v8956 = vadd.f32 0.0, %v8955
      %v8957 = vpop.f32.mrf.mxu0
      %8958 = vdwg.mxu0
      %v8959 = vsub.f32 %v2878, %v8746
      %v8960 = vsub.f32 %v2878, %v8816
      %v8961 = vsub.f32 %v2878, %v8886
      %v8962 = vsub.f32 %v2878, %v8956
      %v8963 = vmul.f32 %v7877, 0.25
      %v8964 = vmul.f32 %v7950, 0.25
      %v8965 = vmul.f32 %v8023, 0.25
      %v8966 = vmul.f32 %v8096, 0.25
      %v8968 = vsel %vm833, %v8963, 0
      %8970 = vmatprep.subr.mxu0 0.0
      %8971 = vmatpush1.msra.mxu0 0.0
      %8972 = vmatprep.subr.mxu0 0.0
      %8973 = vmatpush1.msra.mxu0 0.0
      %8974 = vmatprep.subr.mxu0 0.0
      %8975 = vmatpush1.msra.mxu0 0.0
      %8976 = vmatprep.subr.mxu0 0.0
      %8977 = vmatpush1.msra.mxu0 0.0
      %8978 = vmatprep.subr.mxu0 0.0
      %8979 = vmatpush1.msra.mxu0 0.0
      %8980 = vmatprep.subr.mxu0 0.0
      %8981 = vmatpush1.msra.mxu0 0.0
      %8982 = vmatprep.subr.mxu0 0.0
      %8983 = vmatpush1.msra.mxu0 0.0
      %8984 = vmatprep.subr.mxu0 0.0
      %8985 = vmatpush1.msra.mxu0 0.0
      %8986 = vmatprep.subr.mxu0 0.0
      %8987 = vmatpush1.msra.mxu0 0.0
      %8988 = vmatprep.subr.mxu0 0.0
      %8989 = vmatpush1.msra.mxu0 0.0
      %8990 = vmatprep.subr.mxu0 0.0
      %8991 = vmatpush1.msra.mxu0 0.0
      %8992 = vmatprep.subr.mxu0 0.0
      %8993 = vmatpush1.msra.mxu0 0.0
      %8994 = vmatprep.subr.mxu0 0.0
      %8995 = vmatpush1.msra.mxu0 0.0
      %8996 = vmatprep.subr.mxu0 0.0
      %8997 = vmatpush1.msra.mxu0 0.0
      %8998 = vmatprep.subr.mxu0 0.0
      %8999 = vmatpush1.msra.mxu0 0.0
      %9000 = vmatprep.subr.mxu0 0.0
      %9001 = vmatpush1.msra.mxu0 %v8959
      %9002 = vmatprep.subr.mxu0 0.0
      %9003 = vmatpush2.msra.mxu0 0.0
      %9004 = vmatprep.subr.mxu0 0.0
      %9005 = vmatpush2.msra.mxu0 0.0
      %9006 = vmatprep.subr.mxu0 0.0
      %9007 = vmatpush2.msra.mxu0 0.0
      %9008 = vmatprep.subr.mxu0 0.0
      %9009 = vmatpush2.msra.mxu0 0.0
      %9010 = vmatprep.subr.mxu0 0.0
      %9011 = vmatpush2.msra.mxu0 0.0
      %9012 = vmatprep.subr.mxu0 0.0
      %9013 = vmatpush2.msra.mxu0 0.0
      %9014 = vmatprep.subr.mxu0 0.0
      %9015 = vmatpush2.msra.mxu0 0.0
      %9016 = vmatprep.subr.mxu0 0.0
      %9017 = vmatpush2.msra.mxu0 0.0
      %9018 = vmatprep.subr.mxu0 0.0
      %9019 = vmatpush2.msra.mxu0 0.0
      %9020 = vmatprep.subr.mxu0 0.0
      %9021 = vmatpush2.msra.mxu0 0.0
      %9022 = vmatprep.subr.mxu0 0.0
      %9023 = vmatpush2.msra.mxu0 0.0
      %9024 = vmatprep.subr.mxu0 0.0
      %9025 = vmatpush2.msra.mxu0 0.0
      %9026 = vmatprep.subr.mxu0 0.0
      %9027 = vmatpush2.msra.mxu0 0.0
      %9028 = vmatprep.subr.mxu0 0.0
      %9029 = vmatpush2.msra.mxu0 0.0
      %9030 = vmatprep.subr.mxu0 0.0
      %9031 = vmatpush2.msra.mxu0 0.0
      %9032 = vmatprep.subr.mxu0 0.0
      %9033 = vmatpush2.msra.mxu0 0.0
      %9034 = vmatprep.mubr.f32.mxu0 0.0
      %9035 = vmatmul.mubr.f32.gmra.mxu0 %v8968
      %v9036 = vpop.f32.mrf.mxu0
      %v9037 = vadd.f32 0.0, %v9036
      %v9038 = vpop.f32.mrf.mxu0
      %9039 = vdwg.mxu0
      %v9041 = vsel %vm833, %v8964, 0
      %9043 = vmatprep.subr.mxu0 0.0
      %9044 = vmatpush1.msra.mxu0 0.0
      %9045 = vmatprep.subr.mxu0 0.0
      %9046 = vmatpush1.msra.mxu0 0.0
      %9047 = vmatprep.subr.mxu0 0.0
      %9048 = vmatpush1.msra.mxu0 0.0
      %9049 = vmatprep.subr.mxu0 0.0
      %9050 = vmatpush1.msra.mxu0 0.0
      %9051 = vmatprep.subr.mxu0 0.0
      %9052 = vmatpush1.msra.mxu0 0.0
      %9053 = vmatprep.subr.mxu0 0.0
      %9054 = vmatpush1.msra.mxu0 0.0
      %9055 = vmatprep.subr.mxu0 0.0
      %9056 = vmatpush1.msra.mxu0 0.0
      %9057 = vmatprep.subr.mxu0 0.0
      %9058 = vmatpush1.msra.mxu0 0.0
      %9059 = vmatprep.subr.mxu0 0.0
      %9060 = vmatpush1.msra.mxu0 0.0
      %9061 = vmatprep.subr.mxu0 0.0
      %9062 = vmatpush1.msra.mxu0 0.0
      %9063 = vmatprep.subr.mxu0 0.0
      %9064 = vmatpush1.msra.mxu0 0.0
      %9065 = vmatprep.subr.mxu0 0.0
      %9066 = vmatpush1.msra.mxu0 0.0
      %9067 = vmatprep.subr.mxu0 0.0
      %9068 = vmatpush1.msra.mxu0 0.0
      %9069 = vmatprep.subr.mxu0 0.0
      %9070 = vmatpush1.msra.mxu0 0.0
      %9071 = vmatprep.subr.mxu0 0.0
      %9072 = vmatpush1.msra.mxu0 0.0
      %9073 = vmatprep.subr.mxu0 0.0
      %9074 = vmatpush1.msra.mxu0 %v8960
      %9075 = vmatprep.subr.mxu0 0.0
      %9076 = vmatpush2.msra.mxu0 0.0
      %9077 = vmatprep.subr.mxu0 0.0
      %9078 = vmatpush2.msra.mxu0 0.0
      %9079 = vmatprep.subr.mxu0 0.0
      %9080 = vmatpush2.msra.mxu0 0.0
      %9081 = vmatprep.subr.mxu0 0.0
      %9082 = vmatpush2.msra.mxu0 0.0
      %9083 = vmatprep.subr.mxu0 0.0
      %9084 = vmatpush2.msra.mxu0 0.0
      %9085 = vmatprep.subr.mxu0 0.0
      %9086 = vmatpush2.msra.mxu0 0.0
      %9087 = vmatprep.subr.mxu0 0.0
      %9088 = vmatpush2.msra.mxu0 0.0
      %9089 = vmatprep.subr.mxu0 0.0
      %9090 = vmatpush2.msra.mxu0 0.0
      %9091 = vmatprep.subr.mxu0 0.0
      %9092 = vmatpush2.msra.mxu0 0.0
      %9093 = vmatprep.subr.mxu0 0.0
      %9094 = vmatpush2.msra.mxu0 0.0
      %9095 = vmatprep.subr.mxu0 0.0
      %9096 = vmatpush2.msra.mxu0 0.0
      %9097 = vmatprep.subr.mxu0 0.0
      %9098 = vmatpush2.msra.mxu0 0.0
      %9099 = vmatprep.subr.mxu0 0.0
      %9100 = vmatpush2.msra.mxu0 0.0
      %9101 = vmatprep.subr.mxu0 0.0
      %9102 = vmatpush2.msra.mxu0 0.0
      %9103 = vmatprep.subr.mxu0 0.0
      %9104 = vmatpush2.msra.mxu0 0.0
      %9105 = vmatprep.subr.mxu0 0.0
      %9106 = vmatpush2.msra.mxu0 0.0
      %9107 = vmatprep.mubr.f32.mxu0 0.0
      %9108 = vmatmul.mubr.f32.gmra.mxu0 %v9041
      %v9109 = vpop.f32.mrf.mxu0
      %v9110 = vadd.f32 0.0, %v9109
      %v9111 = vpop.f32.mrf.mxu0
      %9112 = vdwg.mxu0
      %v9114 = vsel %vm833, %v8965, 0
      %9116 = vmatprep.subr.mxu0 0.0
      %9117 = vmatpush1.msra.mxu0 0.0
      %9118 = vmatprep.subr.mxu0 0.0
      %9119 = vmatpush1.msra.mxu0 0.0
      %9120 = vmatprep.subr.mxu0 0.0
      %9121 = vmatpush1.msra.mxu0 0.0
      %9122 = vmatprep.subr.mxu0 0.0
      %9123 = vmatpush1.msra.mxu0 0.0
      %9124 = vmatprep.subr.mxu0 0.0
      %9125 = vmatpush1.msra.mxu0 0.0
      %9126 = vmatprep.subr.mxu0 0.0
      %9127 = vmatpush1.msra.mxu0 0.0
      %9128 = vmatprep.subr.mxu0 0.0
      %9129 = vmatpush1.msra.mxu0 0.0
      %9130 = vmatprep.subr.mxu0 0.0
      %9131 = vmatpush1.msra.mxu0 0.0
      %9132 = vmatprep.subr.mxu0 0.0
      %9133 = vmatpush1.msra.mxu0 0.0
      %9134 = vmatprep.subr.mxu0 0.0
      %9135 = vmatpush1.msra.mxu0 0.0
      %9136 = vmatprep.subr.mxu0 0.0
      %9137 = vmatpush1.msra.mxu0 0.0
      %9138 = vmatprep.subr.mxu0 0.0
      %9139 = vmatpush1.msra.mxu0 0.0
      %9140 = vmatprep.subr.mxu0 0.0
      %9141 = vmatpush1.msra.mxu0 0.0
      %9142 = vmatprep.subr.mxu0 0.0
      %9143 = vmatpush1.msra.mxu0 0.0
      %9144 = vmatprep.subr.mxu0 0.0
      %9145 = vmatpush1.msra.mxu0 0.0
      %9146 = vmatprep.subr.mxu0 0.0
      %9147 = vmatpush1.msra.mxu0 %v8961
      %9148 = vmatprep.subr.mxu0 0.0
      %9149 = vmatpush2.msra.mxu0 0.0
      %9150 = vmatprep.subr.mxu0 0.0
      %9151 = vmatpush2.msra.mxu0 0.0
      %9152 = vmatprep.subr.mxu0 0.0
      %9153 = vmatpush2.msra.mxu0 0.0
      %9154 = vmatprep.subr.mxu0 0.0
      %9155 = vmatpush2.msra.mxu0 0.0
      %9156 = vmatprep.subr.mxu0 0.0
      %9157 = vmatpush2.msra.mxu0 0.0
      %9158 = vmatprep.subr.mxu0 0.0
      %9159 = vmatpush2.msra.mxu0 0.0
      %9160 = vmatprep.subr.mxu0 0.0
      %9161 = vmatpush2.msra.mxu0 0.0
      %9162 = vmatprep.subr.mxu0 0.0
      %9163 = vmatpush2.msra.mxu0 0.0
      %9164 = vmatprep.subr.mxu0 0.0
      %9165 = vmatpush2.msra.mxu0 0.0
      %9166 = vmatprep.subr.mxu0 0.0
      %9167 = vmatpush2.msra.mxu0 0.0
      %9168 = vmatprep.subr.mxu0 0.0
      %9169 = vmatpush2.msra.mxu0 0.0
      %9170 = vmatprep.subr.mxu0 0.0
      %9171 = vmatpush2.msra.mxu0 0.0
      %9172 = vmatprep.subr.mxu0 0.0
      %9173 = vmatpush2.msra.mxu0 0.0
      %9174 = vmatprep.subr.mxu0 0.0
      %9175 = vmatpush2.msra.mxu0 0.0
      %9176 = vmatprep.subr.mxu0 0.0
      %9177 = vmatpush2.msra.mxu0 0.0
      %9178 = vmatprep.subr.mxu0 0.0
      %9179 = vmatpush2.msra.mxu0 0.0
      %9180 = vmatprep.mubr.f32.mxu0 0.0
      %9181 = vmatmul.mubr.f32.gmra.mxu0 %v9114
      %v9182 = vpop.f32.mrf.mxu0
      %v9183 = vadd.f32 0.0, %v9182
      %v9184 = vpop.f32.mrf.mxu0
      %9185 = vdwg.mxu0
      %v9187 = vsel %vm833, %v8966, 0
      %9189 = vmatprep.subr.mxu0 0.0
      %9190 = vmatpush1.msra.mxu0 0.0
      %9191 = vmatprep.subr.mxu0 0.0
      %9192 = vmatpush1.msra.mxu0 0.0
      %9193 = vmatprep.subr.mxu0 0.0
      %9194 = vmatpush1.msra.mxu0 0.0
      %9195 = vmatprep.subr.mxu0 0.0
      %9196 = vmatpush1.msra.mxu0 0.0
      %9197 = vmatprep.subr.mxu0 0.0
      %9198 = vmatpush1.msra.mxu0 0.0
      %9199 = vmatprep.subr.mxu0 0.0
      %9200 = vmatpush1.msra.mxu0 0.0
      %9201 = vmatprep.subr.mxu0 0.0
      %9202 = vmatpush1.msra.mxu0 0.0
      %9203 = vmatprep.subr.mxu0 0.0
      %9204 = vmatpush1.msra.mxu0 0.0
      %9205 = vmatprep.subr.mxu0 0.0
      %9206 = vmatpush1.msra.mxu0 0.0
      %9207 = vmatprep.subr.mxu0 0.0
      %9208 = vmatpush1.msra.mxu0 0.0
      %9209 = vmatprep.subr.mxu0 0.0
      %9210 = vmatpush1.msra.mxu0 0.0
      %9211 = vmatprep.subr.mxu0 0.0
      %9212 = vmatpush1.msra.mxu0 0.0
      %9213 = vmatprep.subr.mxu0 0.0
      %9214 = vmatpush1.msra.mxu0 0.0
      %9215 = vmatprep.subr.mxu0 0.0
      %9216 = vmatpush1.msra.mxu0 0.0
      %9217 = vmatprep.subr.mxu0 0.0
      %9218 = vmatpush1.msra.mxu0 0.0
      %9219 = vmatprep.subr.mxu0 0.0
      %9220 = vmatpush1.msra.mxu0 %v8962
      %9221 = vmatprep.subr.mxu0 0.0
      %9222 = vmatpush2.msra.mxu0 0.0
      %9223 = vmatprep.subr.mxu0 0.0
      %9224 = vmatpush2.msra.mxu0 0.0
      %9225 = vmatprep.subr.mxu0 0.0
      %9226 = vmatpush2.msra.mxu0 0.0
      %9227 = vmatprep.subr.mxu0 0.0
      %9228 = vmatpush2.msra.mxu0 0.0
      %9229 = vmatprep.subr.mxu0 0.0
      %9230 = vmatpush2.msra.mxu0 0.0
      %9231 = vmatprep.subr.mxu0 0.0
      %9232 = vmatpush2.msra.mxu0 0.0
      %9233 = vmatprep.subr.mxu0 0.0
      %9234 = vmatpush2.msra.mxu0 0.0
      %9235 = vmatprep.subr.mxu0 0.0
      %9236 = vmatpush2.msra.mxu0 0.0
      %9237 = vmatprep.subr.mxu0 0.0
      %9238 = vmatpush2.msra.mxu0 0.0
      %9239 = vmatprep.subr.mxu0 0.0
      %9240 = vmatpush2.msra.mxu0 0.0
      %9241 = vmatprep.subr.mxu0 0.0
      %9242 = vmatpush2.msra.mxu0 0.0
      %9243 = vmatprep.subr.mxu0 0.0
      %9244 = vmatpush2.msra.mxu0 0.0
      %9245 = vmatprep.subr.mxu0 0.0
      %9246 = vmatpush2.msra.mxu0 0.0
      %9247 = vmatprep.subr.mxu0 0.0
      %9248 = vmatpush2.msra.mxu0 0.0
      %9249 = vmatprep.subr.mxu0 0.0
      %9250 = vmatpush2.msra.mxu0 0.0
      %9251 = vmatprep.subr.mxu0 0.0
      %9252 = vmatpush2.msra.mxu0 0.0
      %9253 = vmatprep.mubr.f32.mxu0 0.0
      %9254 = vmatmul.mubr.f32.gmra.mxu0 %v9187
      %v9255 = vpop.f32.mrf.mxu0
      %v9256 = vadd.f32 0.0, %v9255
      %v9257 = vpop.f32.mrf.mxu0
      %9258 = vdwg.mxu0
      %v9259 = vpack.c.bf16 %v432, %v432
      %v9260 = vpack.c.bf16 %v433, %v433
      %v9261 = vpack.c.bf16 %v434, %v434
      %v9262 = vpack.c.bf16 %v435, %v435
      %v9263 = vpack.c.bf16 %v436, %v436
      %v9264 = vpack.c.bf16 %v437, %v437
      %v9265 = vpack.c.bf16 %v438, %v438
      %v9266 = vpack.c.bf16 %v439, %v439
      %v9267 = vpack.c.bf16 %v594, %v594
      %v9268 = vpack.c.bf16 %v596, %v596
      %v9269 = vpack.c.bf16 %v598, %v598
      %v9270 = vpack.c.bf16 %v600, %v600
      %v9271 = vpack.c.bf16 %v602, %v602
      %v9272 = vpack.c.bf16 %v604, %v604
      %v9273 = vpack.c.bf16 %v606, %v606
      %v9274 = vpack.c.bf16 %v608, %v608
      %v9275 = vpack.c.bf16 %v618, %v618
      %v9276 = vpack.c.bf16 %v620, %v620
      %v9277 = vpack.c.bf16 %v622, %v622
      %v9278 = vpack.c.bf16 %v624, %v624
      %v9279 = vpack.c.bf16 %v626, %v626
      %v9280 = vpack.c.bf16 %v628, %v628
      %v9281 = vpack.c.bf16 %v630, %v630
      %v9282 = vpack.c.bf16 %v632, %v632
      %v9283 = vpack.c.bf16 %v642, %v642
      %v9284 = vpack.c.bf16 %v644, %v644
      %v9285 = vpack.c.bf16 %v646, %v646
      %v9286 = vpack.c.bf16 %v648, %v648
      %v9287 = vpack.c.bf16 %v650, %v650
      %v9288 = vpack.c.bf16 %v652, %v652
      %v9289 = vpack.c.bf16 %v654, %v654
      %v9290 = vpack.c.bf16 %v656, %v656
      %v9299 = vunpack.c.l.b16 %v9259
      %v9300 = vunpack.c.l.b16 %v9260
      %v9301 = vunpack.c.l.b16 %v9261
      %v9302 = vunpack.c.l.b16 %v9262
      %v9303 = vunpack.c.l.b16 %v9263
      %v9304 = vunpack.c.l.b16 %v9264
      %v9305 = vunpack.c.l.b16 %v9265
      %v9306 = vunpack.c.l.b16 %v9266
      %v9307 = vrot.slane %v9300, 7
      %v9308 = vsel %vm810, %v9307, %v9299
      %v9309 = vrot.slane %v9301, 6
      %v9310 = vsel %vm813, %v9309, %v9308
      %v9311 = vrot.slane %v9302, 5
      %v9312 = vsel %vm816, %v9311, %v9310
      %v9313 = vrot.slane %v9303, 4
      %v9314 = vsel %vm819, %v9313, %v9312
      %v9315 = vrot.slane %v9304, 3
      %v9316 = vsel %vm822, %v9315, %v9314
      %v9317 = vrot.slane %v9305, 2
      %v9318 = vsel %vm825, %v9317, %v9316
      %v9319 = vrot.slane %v9306, 1
      %v9320 = vsel %vm828, %v9319, %v9318
      %v9321 = vpack.c.b16 %v9320, %v9320
      %9326 = vrot.lane.b32.xlu0 %v745, 96
      %v9327 = vpop.permute.xlu0 %9326
      %9328 = vrot.lane.b32.xlu0 %v746, 96
      %v9329 = vpop.permute.xlu0 %9328
      %9330 = vrot.lane.b32.xlu0 %v747, 96
      %v9331 = vpop.permute.xlu0 %9330
      %9332 = vrot.lane.b32.xlu0 %v748, 96
      %v9333 = vpop.permute.xlu0 %9332
      %v9335 = vsel %vm833, %v9321, 0
      %v9338 = vsel %vm833, %v9327, 0
      %v9341 = vsel %vm833, %v9329, 0
      %v9344 = vsel %vm833, %v9331, 0
      %v9347 = vsel %vm833, %v9333, 0
      %9349 = vmatprep.subr.bf16.mxu0 0
      %9350 = vmatpush1.bf16.xpose.msra.mxu0 0
      %9351 = vmatprep.subr.bf16.mxu0 0
      %9352 = vmatpush1.bf16.xpose.msra.mxu0 0
      %9353 = vmatprep.subr.bf16.mxu0 0
      %9354 = vmatpush1.bf16.xpose.msra.mxu0 0
      %9355 = vmatprep.subr.bf16.mxu0 0
      %9356 = vmatpush1.bf16.xpose.msra.mxu0 0
      %9357 = vmatprep.subr.bf16.mxu0 0
      %9358 = vmatpush1.bf16.xpose.msra.mxu0 %v9347
      %9359 = vmatprep.subr.bf16.mxu0 0
      %9360 = vmatpush1.bf16.xpose.msra.mxu0 %v9344
      %9361 = vmatprep.subr.bf16.mxu0 0
      %9362 = vmatpush1.bf16.xpose.msra.mxu0 %v9341
      %9363 = vmatprep.subr.bf16.mxu0 0
      %9364 = vmatpush1.bf16.xpose.msra.mxu0 %v9338
      %9365 = vmatprep.subr.bf16.mxu0 0
      %9366 = vmatpush2.bf16.xpose.msra.mxu0 0
      %9367 = vmatprep.subr.bf16.mxu0 0
      %9368 = vmatpush2.bf16.xpose.msra.mxu0 0
      %9369 = vmatprep.subr.bf16.mxu0 0
      %9370 = vmatpush2.bf16.xpose.msra.mxu0 0
      %9371 = vmatprep.subr.bf16.mxu0 0
      %9372 = vmatpush2.bf16.xpose.msra.mxu0 0
      %9373 = vmatprep.subr.bf16.mxu0 0
      %9374 = vmatpush2.bf16.xpose.msra.mxu0 0
      %9375 = vmatprep.subr.bf16.mxu0 0
      %9376 = vmatpush2.bf16.xpose.msra.mxu0 0
      %9377 = vmatprep.subr.bf16.mxu0 0
      %9378 = vmatpush2.bf16.xpose.msra.mxu0 0
      %9379 = vmatprep.subr.bf16.mxu0 0
      %9380 = vmatpush2.bf16.xpose.msra.mxu0 0
      %9381 = vmatprep.mubr.bf16.mxu0 0
      %9382 = vmatmul.mubr.bf16.gmra.mxu0 %v9335
      %v9383 = vpop.f32.mrf.mxu0
      %v9384 = vadd.f32 0.0, %v9383
      %v9385 = vpop.f32.mrf.mxu0
      %v9386 = vpop.f32.mrf.mxu0
      %v9387 = vpop.f32.mrf.mxu0
      %9388 = vdwg.mxu0
      %v9397 = vunpack.c.l.b16 %v9267
      %v9398 = vunpack.c.l.b16 %v9268
      %v9399 = vunpack.c.l.b16 %v9269
      %v9400 = vunpack.c.l.b16 %v9270
      %v9401 = vunpack.c.l.b16 %v9271
      %v9402 = vunpack.c.l.b16 %v9272
      %v9403 = vunpack.c.l.b16 %v9273
      %v9404 = vunpack.c.l.b16 %v9274
      %v9405 = vrot.slane %v9398, 7
      %v9406 = vsel %vm810, %v9405, %v9397
      %v9407 = vrot.slane %v9399, 6
      %v9408 = vsel %vm813, %v9407, %v9406
      %v9409 = vrot.slane %v9400, 5
      %v9410 = vsel %vm816, %v9409, %v9408
      %v9411 = vrot.slane %v9401, 4
      %v9412 = vsel %vm819, %v9411, %v9410
      %v9413 = vrot.slane %v9402, 3
      %v9414 = vsel %vm822, %v9413, %v9412
      %v9415 = vrot.slane %v9403, 2
      %v9416 = vsel %vm825, %v9415, %v9414
      %v9417 = vrot.slane %v9404, 1
      %v9418 = vsel %vm828, %v9417, %v9416
      %v9419 = vpack.c.b16 %v9418, %v9418
      %9424 = vrot.lane.b32.xlu0 %v749, 96
      %v9425 = vpop.permute.xlu0 %9424
      %9426 = vrot.lane.b32.xlu0 %v750, 96
      %v9427 = vpop.permute.xlu0 %9426
      %9428 = vrot.lane.b32.xlu0 %v751, 96
      %v9429 = vpop.permute.xlu0 %9428
      %9430 = vrot.lane.b32.xlu0 %v752, 96
      %v9431 = vpop.permute.xlu0 %9430
      %v9433 = vsel %vm833, %v9419, 0
      %v9436 = vsel %vm833, %v9425, 0
      %v9439 = vsel %vm833, %v9427, 0
      %v9442 = vsel %vm833, %v9429, 0
      %v9445 = vsel %vm833, %v9431, 0
      %9447 = vmatprep.subr.bf16.mxu0 0
      %9448 = vmatpush1.bf16.xpose.msra.mxu0 0
      %9449 = vmatprep.subr.bf16.mxu0 0
      %9450 = vmatpush1.bf16.xpose.msra.mxu0 0
      %9451 = vmatprep.subr.bf16.mxu0 0
      %9452 = vmatpush1.bf16.xpose.msra.mxu0 0
      %9453 = vmatprep.subr.bf16.mxu0 0
      %9454 = vmatpush1.bf16.xpose.msra.mxu0 0
      %9455 = vmatprep.subr.bf16.mxu0 0
      %9456 = vmatpush1.bf16.xpose.msra.mxu0 %v9445
      %9457 = vmatprep.subr.bf16.mxu0 0
      %9458 = vmatpush1.bf16.xpose.msra.mxu0 %v9442
      %9459 = vmatprep.subr.bf16.mxu0 0
      %9460 = vmatpush1.bf16.xpose.msra.mxu0 %v9439
      %9461 = vmatprep.subr.bf16.mxu0 0
      %9462 = vmatpush1.bf16.xpose.msra.mxu0 %v9436
      %9463 = vmatprep.subr.bf16.mxu0 0
      %9464 = vmatpush2.bf16.xpose.msra.mxu0 0
      %9465 = vmatprep.subr.bf16.mxu0 0
      %9466 = vmatpush2.bf16.xpose.msra.mxu0 0
      %9467 = vmatprep.subr.bf16.mxu0 0
      %9468 = vmatpush2.bf16.xpose.msra.mxu0 0
      %9469 = vmatprep.subr.bf16.mxu0 0
      %9470 = vmatpush2.bf16.xpose.msra.mxu0 0
      %9471 = vmatprep.subr.bf16.mxu0 0
      %9472 = vmatpush2.bf16.xpose.msra.mxu0 0
      %9473 = vmatprep.subr.bf16.mxu0 0
      %9474 = vmatpush2.bf16.xpose.msra.mxu0 0
      %9475 = vmatprep.subr.bf16.mxu0 0
      %9476 = vmatpush2.bf16.xpose.msra.mxu0 0
      %9477 = vmatprep.subr.bf16.mxu0 0
      %9478 = vmatpush2.bf16.xpose.msra.mxu0 0
      %9479 = vmatprep.mubr.bf16.mxu0 0
      %9480 = vmatmul.mubr.bf16.gmra.mxu0 %v9433
      %v9481 = vpop.f32.mrf.mxu0
      %v9482 = vadd.f32 0.0, %v9481
      %v9483 = vpop.f32.mrf.mxu0
      %v9484 = vpop.f32.mrf.mxu0
      %v9485 = vpop.f32.mrf.mxu0
      %9486 = vdwg.mxu0
      %v9495 = vunpack.c.l.b16 %v9275
      %v9496 = vunpack.c.l.b16 %v9276
      %v9497 = vunpack.c.l.b16 %v9277
      %v9498 = vunpack.c.l.b16 %v9278
      %v9499 = vunpack.c.l.b16 %v9279
      %v9500 = vunpack.c.l.b16 %v9280
      %v9501 = vunpack.c.l.b16 %v9281
      %v9502 = vunpack.c.l.b16 %v9282
      %v9503 = vrot.slane %v9496, 7
      %v9504 = vsel %vm810, %v9503, %v9495
      %v9505 = vrot.slane %v9497, 6
      %v9506 = vsel %vm813, %v9505, %v9504
      %v9507 = vrot.slane %v9498, 5
      %v9508 = vsel %vm816, %v9507, %v9506
      %v9509 = vrot.slane %v9499, 4
      %v9510 = vsel %vm819, %v9509, %v9508
      %v9511 = vrot.slane %v9500, 3
      %v9512 = vsel %vm822, %v9511, %v9510
      %v9513 = vrot.slane %v9501, 2
      %v9514 = vsel %vm825, %v9513, %v9512
      %v9515 = vrot.slane %v9502, 1
      %v9516 = vsel %vm828, %v9515, %v9514
      %v9517 = vpack.c.b16 %v9516, %v9516
      %9522 = vrot.lane.b32.xlu0 %v753, 96
      %v9523 = vpop.permute.xlu0 %9522
      %9524 = vrot.lane.b32.xlu0 %v754, 96
      %v9525 = vpop.permute.xlu0 %9524
      %9526 = vrot.lane.b32.xlu0 %v755, 96
      %v9527 = vpop.permute.xlu0 %9526
      %9528 = vrot.lane.b32.xlu0 %v756, 96
      %v9529 = vpop.permute.xlu0 %9528
      %v9531 = vsel %vm833, %v9517, 0
      %v9534 = vsel %vm833, %v9523, 0
      %v9537 = vsel %vm833, %v9525, 0
      %v9540 = vsel %vm833, %v9527, 0
      %v9543 = vsel %vm833, %v9529, 0
      %9545 = vmatprep.subr.bf16.mxu0 0
      %9546 = vmatpush1.bf16.xpose.msra.mxu0 0
      %9547 = vmatprep.subr.bf16.mxu0 0
      %9548 = vmatpush1.bf16.xpose.msra.mxu0 0
      %9549 = vmatprep.subr.bf16.mxu0 0
      %9550 = vmatpush1.bf16.xpose.msra.mxu0 0
      %9551 = vmatprep.subr.bf16.mxu0 0
      %9552 = vmatpush1.bf16.xpose.msra.mxu0 0
      %9553 = vmatprep.subr.bf16.mxu0 0
      %9554 = vmatpush1.bf16.xpose.msra.mxu0 %v9543
      %9555 = vmatprep.subr.bf16.mxu0 0
      %9556 = vmatpush1.bf16.xpose.msra.mxu0 %v9540
      %9557 = vmatprep.subr.bf16.mxu0 0
      %9558 = vmatpush1.bf16.xpose.msra.mxu0 %v9537
      %9559 = vmatprep.subr.bf16.mxu0 0
      %9560 = vmatpush1.bf16.xpose.msra.mxu0 %v9534
      %9561 = vmatprep.subr.bf16.mxu0 0
      %9562 = vmatpush2.bf16.xpose.msra.mxu0 0
      %9563 = vmatprep.subr.bf16.mxu0 0
      %9564 = vmatpush2.bf16.xpose.msra.mxu0 0
      %9565 = vmatprep.subr.bf16.mxu0 0
      %9566 = vmatpush2.bf16.xpose.msra.mxu0 0
      %9567 = vmatprep.subr.bf16.mxu0 0
      %9568 = vmatpush2.bf16.xpose.msra.mxu0 0
      %9569 = vmatprep.subr.bf16.mxu0 0
      %9570 = vmatpush2.bf16.xpose.msra.mxu0 0
      %9571 = vmatprep.subr.bf16.mxu0 0
      %9572 = vmatpush2.bf16.xpose.msra.mxu0 0
      %9573 = vmatprep.subr.bf16.mxu0 0
      %9574 = vmatpush2.bf16.xpose.msra.mxu0 0
      %9575 = vmatprep.subr.bf16.mxu0 0
      %9576 = vmatpush2.bf16.xpose.msra.mxu0 0
      %9577 = vmatprep.mubr.bf16.mxu0 0
      %9578 = vmatmul.mubr.bf16.gmra.mxu0 %v9531
      %v9579 = vpop.f32.mrf.mxu0
      %v9580 = vadd.f32 0.0, %v9579
      %v9581 = vpop.f32.mrf.mxu0
      %v9582 = vpop.f32.mrf.mxu0
      %v9583 = vpop.f32.mrf.mxu0
      %9584 = vdwg.mxu0
      %v9593 = vunpack.c.l.b16 %v9283
      %v9594 = vunpack.c.l.b16 %v9284
      %v9595 = vunpack.c.l.b16 %v9285
      %v9596 = vunpack.c.l.b16 %v9286
      %v9597 = vunpack.c.l.b16 %v9287
      %v9598 = vunpack.c.l.b16 %v9288
      %v9599 = vunpack.c.l.b16 %v9289
      %v9600 = vunpack.c.l.b16 %v9290
      %v9601 = vrot.slane %v9594, 7
      %v9602 = vsel %vm810, %v9601, %v9593
      %v9603 = vrot.slane %v9595, 6
      %v9604 = vsel %vm813, %v9603, %v9602
      %v9605 = vrot.slane %v9596, 5
      %v9606 = vsel %vm816, %v9605, %v9604
      %v9607 = vrot.slane %v9597, 4
      %v9608 = vsel %vm819, %v9607, %v9606
      %v9609 = vrot.slane %v9598, 3
      %v9610 = vsel %vm822, %v9609, %v9608
      %v9611 = vrot.slane %v9599, 2
      %v9612 = vsel %vm825, %v9611, %v9610
      %v9613 = vrot.slane %v9600, 1
      %v9614 = vsel %vm828, %v9613, %v9612
      %v9615 = vpack.c.b16 %v9614, %v9614
      %9620 = vrot.lane.b32.xlu0 %v757, 96
      %v9621 = vpop.permute.xlu0 %9620
      %9622 = vrot.lane.b32.xlu0 %v758, 96
      %v9623 = vpop.permute.xlu0 %9622
      %9624 = vrot.lane.b32.xlu0 %v759, 96
      %v9625 = vpop.permute.xlu0 %9624
      %9626 = vrot.lane.b32.xlu0 %v760, 96
      %v9627 = vpop.permute.xlu0 %9626
      %v9629 = vsel %vm833, %v9615, 0
      %v9632 = vsel %vm833, %v9621, 0
      %v9635 = vsel %vm833, %v9623, 0
      %v9638 = vsel %vm833, %v9625, 0
      %v9641 = vsel %vm833, %v9627, 0
      %9643 = vmatprep.subr.bf16.mxu0 0
      %9644 = vmatpush1.bf16.xpose.msra.mxu0 0
      %9645 = vmatprep.subr.bf16.mxu0 0
      %9646 = vmatpush1.bf16.xpose.msra.mxu0 0
      %9647 = vmatprep.subr.bf16.mxu0 0
      %9648 = vmatpush1.bf16.xpose.msra.mxu0 0
      %9649 = vmatprep.subr.bf16.mxu0 0
      %9650 = vmatpush1.bf16.xpose.msra.mxu0 0
      %9651 = vmatprep.subr.bf16.mxu0 0
      %9652 = vmatpush1.bf16.xpose.msra.mxu0 %v9641
      %9653 = vmatprep.subr.bf16.mxu0 0
      %9654 = vmatpush1.bf16.xpose.msra.mxu0 %v9638
      %9655 = vmatprep.subr.bf16.mxu0 0
      %9656 = vmatpush1.bf16.xpose.msra.mxu0 %v9635
      %9657 = vmatprep.subr.bf16.mxu0 0
      %9658 = vmatpush1.bf16.xpose.msra.mxu0 %v9632
      %9659 = vmatprep.subr.bf16.mxu0 0
      %9660 = vmatpush2.bf16.xpose.msra.mxu0 0
      %9661 = vmatprep.subr.bf16.mxu0 0
      %9662 = vmatpush2.bf16.xpose.msra.mxu0 0
      %9663 = vmatprep.subr.bf16.mxu0 0
      %9664 = vmatpush2.bf16.xpose.msra.mxu0 0
      %9665 = vmatprep.subr.bf16.mxu0 0
      %9666 = vmatpush2.bf16.xpose.msra.mxu0 0
      %9667 = vmatprep.subr.bf16.mxu0 0
      %9668 = vmatpush2.bf16.xpose.msra.mxu0 0
      %9669 = vmatprep.subr.bf16.mxu0 0
      %9670 = vmatpush2.bf16.xpose.msra.mxu0 0
      %9671 = vmatprep.subr.bf16.mxu0 0
      %9672 = vmatpush2.bf16.xpose.msra.mxu0 0
      %9673 = vmatprep.subr.bf16.mxu0 0
      %9674 = vmatpush2.bf16.xpose.msra.mxu0 0
      %9675 = vmatprep.mubr.bf16.mxu0 0
      %9676 = vmatmul.mubr.bf16.gmra.mxu0 %v9629
      %v9677 = vpop.f32.mrf.mxu0
      %v9678 = vadd.f32 0.0, %v9677
      %v9679 = vpop.f32.mrf.mxu0
      %v9680 = vpop.f32.mrf.mxu0
      %v9681 = vpop.f32.mrf.mxu0
      %9682 = vdwg.mxu0
      %vm9683 = vcmp.gt.s32.totalorder %v2104, %v2102
      %v9684 = vsel %vm9683, 1, 0
      %vm9685 = vcmp.eq.s32.totalorder %v9684, 1
      %v9686 = vsel %vm9685, -1e+30, %v9384
      %v9687 = vsel %vm9685, -1e+30, %v9482
      %v9688 = vsel %vm9685, -1e+30, %v9580
      %v9689 = vsel %vm9685, -1e+30, %v9678
      %v9690 = vmul.f32 %v9686, 0.35355338
      %v9691 = vmul.f32 %v9687, 0.35355338
      %v9692 = vmul.f32 %v9688, 0.35355338
      %v9693 = vmul.f32 %v9689, 0.35355338
      %vm9694 = vcmask 523264
      %v9695 = vsel %vm9694, %v9690, -inf
      %9696 = vmax.xlane.f32.xlu0 %v9695
      %v9697 = vpop.xlane.xlu0 %9696
      %v9698 = vsel %vm9694, %v9691, -inf
      %9699 = vmax.xlane.f32.xlu0 %v9698
      %v9700 = vpop.xlane.xlu0 %9699
      %v9701 = vsel %vm9694, %v9692, -inf
      %9702 = vmax.xlane.f32.xlu0 %v9701
      %v9703 = vpop.xlane.xlu0 %9702
      %v9704 = vsel %vm9694, %v9693, -inf
      %9705 = vmax.xlane.f32.xlu0 %v9704
      %v9706 = vpop.xlane.xlu0 %9705
      %v9707 = vsub.f32 %v9690, %v9697
      %v9708 = vsub.f32 %v9691, %v9700
      %v9709 = vsub.f32 %v9692, %v9703
      %v9710 = vsub.f32 %v9693, %v9706
      %v9711 = vmul.f32 %v9707, 1.442695
      %v9712 = vpow.pop %v9711
      %v9713 = vmul.f32 %v9708, 1.442695
      %v9714 = vpow.pop %v9713
      %v9715 = vmul.f32 %v9709, 1.442695
      %v9716 = vpow.pop %v9715
      %v9717 = vmul.f32 %v9710, 1.442695
      %v9718 = vpow.pop %v9717
      %v9719 = vsel %vm9694, %v9712, 0.0
      %9720 = vadd.xlane.f32.xlu0 %v9719
      %v9721 = vpop.xlane.xlu0 %9720
      %v9722 = vsel %vm9694, %v9714, 0.0
      %9723 = vadd.xlane.f32.xlu0 %v9722
      %v9724 = vpop.xlane.xlu0 %9723
      %v9725 = vsel %vm9694, %v9716, 0.0
      %9726 = vadd.xlane.f32.xlu0 %v9725
      %v9727 = vpop.xlane.xlu0 %9726
      %v9728 = vsel %vm9694, %v9718, 0.0
      %9729 = vadd.xlane.f32.xlu0 %v9728
      %v9730 = vpop.xlane.xlu0 %9729
      %v9731 = vrcp.pop %v9721
      %v9732 = vrcp.pop %v9724
      %v9733 = vrcp.pop %v9727
      %v9734 = vrcp.pop %v9730
      %v9735 = vmul.f32 %v9712, %v9731
      %v9736 = vmul.f32 %v9714, %v9732
      %v9737 = vmul.f32 %v9716, %v9733
      %v9738 = vmul.f32 %v9718, %v9734
      %v9740 = vsel %vm833, %v1605, 0
      %v9743 = vsel %vm833, %v1606, 0
      %v9746 = vsel %vm833, %v1607, 0
      %v9749 = vsel %vm833, %v1608, 0
      %v9752 = vsel %vm833, %v1609, 0
      %v9755 = vsel %vm833, %v1610, 0
      %v9758 = vsel %vm833, %v1611, 0
      %v9761 = vsel %vm833, %v1612, 0
      %9763 = vmatprep.subr.mxu0 0.0
      %9764 = vmatpush1.msra.mxu0 0.0
      %9765 = vmatprep.subr.mxu0 0.0
      %9766 = vmatpush1.msra.mxu0 0.0
      %9767 = vmatprep.subr.mxu0 0.0
      %9768 = vmatpush1.msra.mxu0 0.0
      %9769 = vmatprep.subr.mxu0 0.0
      %9770 = vmatpush1.msra.mxu0 0.0
      %9771 = vmatprep.subr.mxu0 0.0
      %9772 = vmatpush1.msra.mxu0 0.0
      %9773 = vmatprep.subr.mxu0 0.0
      %9774 = vmatpush1.msra.mxu0 0.0
      %9775 = vmatprep.subr.mxu0 0.0
      %9776 = vmatpush1.msra.mxu0 0.0
      %9777 = vmatprep.subr.mxu0 0.0
      %9778 = vmatpush1.msra.mxu0 0.0
      %9779 = vmatprep.subr.mxu0 0.0
      %9780 = vmatpush1.msra.mxu0 0.0
      %9781 = vmatprep.subr.mxu0 0.0
      %9782 = vmatpush1.msra.mxu0 0.0
      %9783 = vmatprep.subr.mxu0 0.0
      %9784 = vmatpush1.msra.mxu0 0.0
      %9785 = vmatprep.subr.mxu0 0.0
      %9786 = vmatpush1.msra.mxu0 0.0
      %9787 = vmatprep.subr.mxu0 0.0
      %9788 = vmatpush1.msra.mxu0 0.0
      %9789 = vmatprep.subr.mxu0 0.0
      %9790 = vmatpush1.msra.mxu0 0.0
      %9791 = vmatprep.subr.mxu0 0.0
      %9792 = vmatpush1.msra.mxu0 0.0
      %9793 = vmatprep.subr.mxu0 0.0
      %9794 = vmatpush1.msra.mxu0 %v9037
      %9795 = vmatprep.subr.mxu0 0.0
      %9796 = vmatpush2.msra.mxu0 0.0
      %9797 = vmatprep.subr.mxu0 0.0
      %9798 = vmatpush2.msra.mxu0 0.0
      %9799 = vmatprep.subr.mxu0 0.0
      %9800 = vmatpush2.msra.mxu0 0.0
      %9801 = vmatprep.subr.mxu0 0.0
      %9802 = vmatpush2.msra.mxu0 0.0
      %9803 = vmatprep.subr.mxu0 0.0
      %9804 = vmatpush2.msra.mxu0 0.0
      %9805 = vmatprep.subr.mxu0 0.0
      %9806 = vmatpush2.msra.mxu0 0.0
      %9807 = vmatprep.subr.mxu0 0.0
      %9808 = vmatpush2.msra.mxu0 0.0
      %9809 = vmatprep.subr.mxu0 0.0
      %9810 = vmatpush2.msra.mxu0 0.0
      %9811 = vmatprep.subr.mxu0 0.0
      %9812 = vmatpush2.msra.mxu0 0.0
      %9813 = vmatprep.subr.mxu0 0.0
      %9814 = vmatpush2.msra.mxu0 0.0
      %9815 = vmatprep.subr.mxu0 0.0
      %9816 = vmatpush2.msra.mxu0 0.0
      %9817 = vmatprep.subr.mxu0 0.0
      %9818 = vmatpush2.msra.mxu0 0.0
      %9819 = vmatprep.subr.mxu0 0.0
      %9820 = vmatpush2.msra.mxu0 0.0
      %9821 = vmatprep.subr.mxu0 0.0
      %9822 = vmatpush2.msra.mxu0 0.0
      %9823 = vmatprep.subr.mxu0 0.0
      %9824 = vmatpush2.msra.mxu0 0.0
      %9825 = vmatprep.subr.mxu0 0.0
      %9826 = vmatpush2.msra.mxu0 0.0
      %9827 = vmatprep.mubr.f32.mxu0 0.0
      %9828 = vmatmul.mubr.f32.gmra.mxu0 %v9740
      %v9829 = vpop.f32.mrf.mxu0
      %v9830 = vadd.f32 0.0, %v9829
      %v9831 = vpop.f32.mrf.mxu0
      %9832 = vmatprep.mubr.f32.mxu0 0.0
      %9833 = vmatmul.mubr.f32.gmra.mxu0 %v9743
      %v9834 = vpop.f32.mrf.mxu0
      %v9835 = vadd.f32 0.0, %v9834
      %v9836 = vpop.f32.mrf.mxu0
      %9837 = vmatprep.mubr.f32.mxu0 0.0
      %9838 = vmatmul.mubr.f32.gmra.mxu0 %v9746
      %v9839 = vpop.f32.mrf.mxu0
      %v9840 = vadd.f32 0.0, %v9839
      %v9841 = vpop.f32.mrf.mxu0
      %9842 = vmatprep.mubr.f32.mxu0 0.0
      %9843 = vmatmul.mubr.f32.gmra.mxu0 %v9749
      %v9844 = vpop.f32.mrf.mxu0
      %v9845 = vadd.f32 0.0, %v9844
      %v9846 = vpop.f32.mrf.mxu0
      %9847 = vmatprep.mubr.f32.mxu0 0.0
      %9848 = vmatmul.mubr.f32.gmra.mxu0 %v9752
      %v9849 = vpop.f32.mrf.mxu0
      %v9850 = vadd.f32 0.0, %v9849
      %v9851 = vpop.f32.mrf.mxu0
      %9852 = vmatprep.mubr.f32.mxu0 0.0
      %9853 = vmatmul.mubr.f32.gmra.mxu0 %v9755
      %v9854 = vpop.f32.mrf.mxu0
      %v9855 = vadd.f32 0.0, %v9854
      %v9856 = vpop.f32.mrf.mxu0
      %9857 = vmatprep.mubr.f32.mxu0 0.0
      %9858 = vmatmul.mubr.f32.gmra.mxu0 %v9758
      %v9859 = vpop.f32.mrf.mxu0
      %v9860 = vadd.f32 0.0, %v9859
      %v9861 = vpop.f32.mrf.mxu0
      %9862 = vmatprep.mubr.f32.mxu0 0.0
      %9863 = vmatmul.mubr.f32.gmra.mxu0 %v9761
      %v9864 = vpop.f32.mrf.mxu0
      %v9865 = vadd.f32 0.0, %v9864
      %v9866 = vpop.f32.mrf.mxu0
      %9867 = vdwg.mxu0
      %v9869 = vsel %vm833, %v1613, 0
      %v9872 = vsel %vm833, %v1614, 0
      %v9875 = vsel %vm833, %v1615, 0
      %v9878 = vsel %vm833, %v1616, 0
      %v9881 = vsel %vm833, %v1617, 0
      %v9884 = vsel %vm833, %v1618, 0
      %v9887 = vsel %vm833, %v1619, 0
      %v9890 = vsel %vm833, %v1620, 0
      %9892 = vmatprep.subr.mxu0 0.0
      %9893 = vmatpush1.msra.mxu0 0.0
      %9894 = vmatprep.subr.mxu0 0.0
      %9895 = vmatpush1.msra.mxu0 0.0
      %9896 = vmatprep.subr.mxu0 0.0
      %9897 = vmatpush1.msra.mxu0 0.0
      %9898 = vmatprep.subr.mxu0 0.0
      %9899 = vmatpush1.msra.mxu0 0.0
      %9900 = vmatprep.subr.mxu0 0.0
      %9901 = vmatpush1.msra.mxu0 0.0
      %9902 = vmatprep.subr.mxu0 0.0
      %9903 = vmatpush1.msra.mxu0 0.0
      %9904 = vmatprep.subr.mxu0 0.0
      %9905 = vmatpush1.msra.mxu0 0.0
      %9906 = vmatprep.subr.mxu0 0.0
      %9907 = vmatpush1.msra.mxu0 0.0
      %9908 = vmatprep.subr.mxu0 0.0
      %9909 = vmatpush1.msra.mxu0 0.0
      %9910 = vmatprep.subr.mxu0 0.0
      %9911 = vmatpush1.msra.mxu0 0.0
      %9912 = vmatprep.subr.mxu0 0.0
      %9913 = vmatpush1.msra.mxu0 0.0
      %9914 = vmatprep.subr.mxu0 0.0
      %9915 = vmatpush1.msra.mxu0 0.0
      %9916 = vmatprep.subr.mxu0 0.0
      %9917 = vmatpush1.msra.mxu0 0.0
      %9918 = vmatprep.subr.mxu0 0.0
      %9919 = vmatpush1.msra.mxu0 0.0
      %9920 = vmatprep.subr.mxu0 0.0
      %9921 = vmatpush1.msra.mxu0 0.0
      %9922 = vmatprep.subr.mxu0 0.0
      %9923 = vmatpush1.msra.mxu0 %v9110
      %9924 = vmatprep.subr.mxu0 0.0
      %9925 = vmatpush2.msra.mxu0 0.0
      %9926 = vmatprep.subr.mxu0 0.0
      %9927 = vmatpush2.msra.mxu0 0.0
      %9928 = vmatprep.subr.mxu0 0.0
      %9929 = vmatpush2.msra.mxu0 0.0
      %9930 = vmatprep.subr.mxu0 0.0
      %9931 = vmatpush2.msra.mxu0 0.0
      %9932 = vmatprep.subr.mxu0 0.0
      %9933 = vmatpush2.msra.mxu0 0.0
      %9934 = vmatprep.subr.mxu0 0.0
      %9935 = vmatpush2.msra.mxu0 0.0
      %9936 = vmatprep.subr.mxu0 0.0
      %9937 = vmatpush2.msra.mxu0 0.0
      %9938 = vmatprep.subr.mxu0 0.0
      %9939 = vmatpush2.msra.mxu0 0.0
      %9940 = vmatprep.subr.mxu0 0.0
      %9941 = vmatpush2.msra.mxu0 0.0
      %9942 = vmatprep.subr.mxu0 0.0
      %9943 = vmatpush2.msra.mxu0 0.0
      %9944 = vmatprep.subr.mxu0 0.0
      %9945 = vmatpush2.msra.mxu0 0.0
      %9946 = vmatprep.subr.mxu0 0.0
      %9947 = vmatpush2.msra.mxu0 0.0
      %9948 = vmatprep.subr.mxu0 0.0
      %9949 = vmatpush2.msra.mxu0 0.0
      %9950 = vmatprep.subr.mxu0 0.0
      %9951 = vmatpush2.msra.mxu0 0.0
      %9952 = vmatprep.subr.mxu0 0.0
      %9953 = vmatpush2.msra.mxu0 0.0
      %9954 = vmatprep.subr.mxu0 0.0
      %9955 = vmatpush2.msra.mxu0 0.0
      %9956 = vmatprep.mubr.f32.mxu0 0.0
      %9957 = vmatmul.mubr.f32.gmra.mxu0 %v9869
      %v9958 = vpop.f32.mrf.mxu0
      %v9959 = vadd.f32 0.0, %v9958
      %v9960 = vpop.f32.mrf.mxu0
      %9961 = vmatprep.mubr.f32.mxu0 0.0
      %9962 = vmatmul.mubr.f32.gmra.mxu0 %v9872
      %v9963 = vpop.f32.mrf.mxu0
      %v9964 = vadd.f32 0.0, %v9963
      %v9965 = vpop.f32.mrf.mxu0
      %9966 = vmatprep.mubr.f32.mxu0 0.0
      %9967 = vmatmul.mubr.f32.gmra.mxu0 %v9875
      %v9968 = vpop.f32.mrf.mxu0
      %v9969 = vadd.f32 0.0, %v9968
      %v9970 = vpop.f32.mrf.mxu0
      %9971 = vmatprep.mubr.f32.mxu0 0.0
      %9972 = vmatmul.mubr.f32.gmra.mxu0 %v9878
      %v9973 = vpop.f32.mrf.mxu0
      %v9974 = vadd.f32 0.0, %v9973
      %v9975 = vpop.f32.mrf.mxu0
      %9976 = vmatprep.mubr.f32.mxu0 0.0
      %9977 = vmatmul.mubr.f32.gmra.mxu0 %v9881
      %v9978 = vpop.f32.mrf.mxu0
      %v9979 = vadd.f32 0.0, %v9978
      %v9980 = vpop.f32.mrf.mxu0
      %9981 = vmatprep.mubr.f32.mxu0 0.0
      %9982 = vmatmul.mubr.f32.gmra.mxu0 %v9884
      %v9983 = vpop.f32.mrf.mxu0
      %v9984 = vadd.f32 0.0, %v9983
      %v9985 = vpop.f32.mrf.mxu0
      %9986 = vmatprep.mubr.f32.mxu0 0.0
      %9987 = vmatmul.mubr.f32.gmra.mxu0 %v9887
      %v9988 = vpop.f32.mrf.mxu0
      %v9989 = vadd.f32 0.0, %v9988
      %v9990 = vpop.f32.mrf.mxu0
      %9991 = vmatprep.mubr.f32.mxu0 0.0
      %9992 = vmatmul.mubr.f32.gmra.mxu0 %v9890
      %v9993 = vpop.f32.mrf.mxu0
      %v9994 = vadd.f32 0.0, %v9993
      %v9995 = vpop.f32.mrf.mxu0
      %9996 = vdwg.mxu0
      %v9998 = vsel %vm833, %v1621, 0
      %v10001 = vsel %vm833, %v1622, 0
      %v10004 = vsel %vm833, %v1623, 0
      %v10007 = vsel %vm833, %v1624, 0
      %v10010 = vsel %vm833, %v1625, 0
      %v10013 = vsel %vm833, %v1626, 0
      %v10016 = vsel %vm833, %v1627, 0
      %v10019 = vsel %vm833, %v1628, 0
      %10021 = vmatprep.subr.mxu0 0.0
      %10022 = vmatpush1.msra.mxu0 0.0
      %10023 = vmatprep.subr.mxu0 0.0
      %10024 = vmatpush1.msra.mxu0 0.0
      %10025 = vmatprep.subr.mxu0 0.0
      %10026 = vmatpush1.msra.mxu0 0.0
      %10027 = vmatprep.subr.mxu0 0.0
      %10028 = vmatpush1.msra.mxu0 0.0
      %10029 = vmatprep.subr.mxu0 0.0
      %10030 = vmatpush1.msra.mxu0 0.0
      %10031 = vmatprep.subr.mxu0 0.0
      %10032 = vmatpush1.msra.mxu0 0.0
      %10033 = vmatprep.subr.mxu0 0.0
      %10034 = vmatpush1.msra.mxu0 0.0
      %10035 = vmatprep.subr.mxu0 0.0
      %10036 = vmatpush1.msra.mxu0 0.0
      %10037 = vmatprep.subr.mxu0 0.0
      %10038 = vmatpush1.msra.mxu0 0.0
      %10039 = vmatprep.subr.mxu0 0.0
      %10040 = vmatpush1.msra.mxu0 0.0
      %10041 = vmatprep.subr.mxu0 0.0
      %10042 = vmatpush1.msra.mxu0 0.0
      %10043 = vmatprep.subr.mxu0 0.0
      %10044 = vmatpush1.msra.mxu0 0.0
      %10045 = vmatprep.subr.mxu0 0.0
      %10046 = vmatpush1.msra.mxu0 0.0
      %10047 = vmatprep.subr.mxu0 0.0
      %10048 = vmatpush1.msra.mxu0 0.0
      %10049 = vmatprep.subr.mxu0 0.0
      %10050 = vmatpush1.msra.mxu0 0.0
      %10051 = vmatprep.subr.mxu0 0.0
      %10052 = vmatpush1.msra.mxu0 %v9183
      %10053 = vmatprep.subr.mxu0 0.0
      %10054 = vmatpush2.msra.mxu0 0.0
      %10055 = vmatprep.subr.mxu0 0.0
      %10056 = vmatpush2.msra.mxu0 0.0
      %10057 = vmatprep.subr.mxu0 0.0
      %10058 = vmatpush2.msra.mxu0 0.0
      %10059 = vmatprep.subr.mxu0 0.0
      %10060 = vmatpush2.msra.mxu0 0.0
      %10061 = vmatprep.subr.mxu0 0.0
      %10062 = vmatpush2.msra.mxu0 0.0
      %10063 = vmatprep.subr.mxu0 0.0
      %10064 = vmatpush2.msra.mxu0 0.0
      %10065 = vmatprep.subr.mxu0 0.0
      %10066 = vmatpush2.msra.mxu0 0.0
      %10067 = vmatprep.subr.mxu0 0.0
      %10068 = vmatpush2.msra.mxu0 0.0
      %10069 = vmatprep.subr.mxu0 0.0
      %10070 = vmatpush2.msra.mxu0 0.0
      %10071 = vmatprep.subr.mxu0 0.0
      %10072 = vmatpush2.msra.mxu0 0.0
      %10073 = vmatprep.subr.mxu0 0.0
      %10074 = vmatpush2.msra.mxu0 0.0
      %10075 = vmatprep.subr.mxu0 0.0
      %10076 = vmatpush2.msra.mxu0 0.0
      %10077 = vmatprep.subr.mxu0 0.0
      %10078 = vmatpush2.msra.mxu0 0.0
      %10079 = vmatprep.subr.mxu0 0.0
      %10080 = vmatpush2.msra.mxu0 0.0
      %10081 = vmatprep.subr.mxu0 0.0
      %10082 = vmatpush2.msra.mxu0 0.0
      %10083 = vmatprep.subr.mxu0 0.0
      %10084 = vmatpush2.msra.mxu0 0.0
      %10085 = vmatprep.mubr.f32.mxu0 0.0
      %10086 = vmatmul.mubr.f32.gmra.mxu0 %v9998
      %v10087 = vpop.f32.mrf.mxu0
      %v10088 = vadd.f32 0.0, %v10087
      %v10089 = vpop.f32.mrf.mxu0
      %10090 = vmatprep.mubr.f32.mxu0 0.0
      %10091 = vmatmul.mubr.f32.gmra.mxu0 %v10001
      %v10092 = vpop.f32.mrf.mxu0
      %v10093 = vadd.f32 0.0, %v10092
      %v10094 = vpop.f32.mrf.mxu0
      %10095 = vmatprep.mubr.f32.mxu0 0.0
      %10096 = vmatmul.mubr.f32.gmra.mxu0 %v10004
      %v10097 = vpop.f32.mrf.mxu0
      %v10098 = vadd.f32 0.0, %v10097
      %v10099 = vpop.f32.mrf.mxu0
      %10100 = vmatprep.mubr.f32.mxu0 0.0
      %10101 = vmatmul.mubr.f32.gmra.mxu0 %v10007
      %v10102 = vpop.f32.mrf.mxu0
      %v10103 = vadd.f32 0.0, %v10102
      %v10104 = vpop.f32.mrf.mxu0
      %10105 = vmatprep.mubr.f32.mxu0 0.0
      %10106 = vmatmul.mubr.f32.gmra.mxu0 %v10010
      %v10107 = vpop.f32.mrf.mxu0
      %v10108 = vadd.f32 0.0, %v10107
      %v10109 = vpop.f32.mrf.mxu0
      %10110 = vmatprep.mubr.f32.mxu0 0.0
      %10111 = vmatmul.mubr.f32.gmra.mxu0 %v10013
      %v10112 = vpop.f32.mrf.mxu0
      %v10113 = vadd.f32 0.0, %v10112
      %v10114 = vpop.f32.mrf.mxu0
      %10115 = vmatprep.mubr.f32.mxu0 0.0
      %10116 = vmatmul.mubr.f32.gmra.mxu0 %v10016
      %v10117 = vpop.f32.mrf.mxu0
      %v10118 = vadd.f32 0.0, %v10117
      %v10119 = vpop.f32.mrf.mxu0
      %10120 = vmatprep.mubr.f32.mxu0 0.0
      %10121 = vmatmul.mubr.f32.gmra.mxu0 %v10019
      %v10122 = vpop.f32.mrf.mxu0
      %v10123 = vadd.f32 0.0, %v10122
      %v10124 = vpop.f32.mrf.mxu0
      %10125 = vdwg.mxu0
      %v10127 = vsel %vm833, %v1629, 0
      %v10130 = vsel %vm833, %v1630, 0
      %v10133 = vsel %vm833, %v1631, 0
      %v10136 = vsel %vm833, %v1632, 0
      %v10139 = vsel %vm833, %v1633, 0
      %v10142 = vsel %vm833, %v1634, 0
      %v10145 = vsel %vm833, %v1635, 0
      %v10148 = vsel %vm833, %v1636, 0
      %10150 = vmatprep.subr.mxu0 0.0
      %10151 = vmatpush1.msra.mxu0 0.0
      %10152 = vmatprep.subr.mxu0 0.0
      %10153 = vmatpush1.msra.mxu0 0.0
      %10154 = vmatprep.subr.mxu0 0.0
      %10155 = vmatpush1.msra.mxu0 0.0
      %10156 = vmatprep.subr.mxu0 0.0
      %10157 = vmatpush1.msra.mxu0 0.0
      %10158 = vmatprep.subr.mxu0 0.0
      %10159 = vmatpush1.msra.mxu0 0.0
      %10160 = vmatprep.subr.mxu0 0.0
      %10161 = vmatpush1.msra.mxu0 0.0
      %10162 = vmatprep.subr.mxu0 0.0
      %10163 = vmatpush1.msra.mxu0 0.0
      %10164 = vmatprep.subr.mxu0 0.0
      %10165 = vmatpush1.msra.mxu0 0.0
      %10166 = vmatprep.subr.mxu0 0.0
      %10167 = vmatpush1.msra.mxu0 0.0
      %10168 = vmatprep.subr.mxu0 0.0
      %10169 = vmatpush1.msra.mxu0 0.0
      %10170 = vmatprep.subr.mxu0 0.0
      %10171 = vmatpush1.msra.mxu0 0.0
      %10172 = vmatprep.subr.mxu0 0.0
      %10173 = vmatpush1.msra.mxu0 0.0
      %10174 = vmatprep.subr.mxu0 0.0
      %10175 = vmatpush1.msra.mxu0 0.0
      %10176 = vmatprep.subr.mxu0 0.0
      %10177 = vmatpush1.msra.mxu0 0.0
      %10178 = vmatprep.subr.mxu0 0.0
      %10179 = vmatpush1.msra.mxu0 0.0
      %10180 = vmatprep.subr.mxu0 0.0
      %10181 = vmatpush1.msra.mxu0 %v9256
      %10182 = vmatprep.subr.mxu0 0.0
      %10183 = vmatpush2.msra.mxu0 0.0
      %10184 = vmatprep.subr.mxu0 0.0
      %10185 = vmatpush2.msra.mxu0 0.0
      %10186 = vmatprep.subr.mxu0 0.0
      %10187 = vmatpush2.msra.mxu0 0.0
      %10188 = vmatprep.subr.mxu0 0.0
      %10189 = vmatpush2.msra.mxu0 0.0
      %10190 = vmatprep.subr.mxu0 0.0
      %10191 = vmatpush2.msra.mxu0 0.0
      %10192 = vmatprep.subr.mxu0 0.0
      %10193 = vmatpush2.msra.mxu0 0.0
      %10194 = vmatprep.subr.mxu0 0.0
      %10195 = vmatpush2.msra.mxu0 0.0
      %10196 = vmatprep.subr.mxu0 0.0
      %10197 = vmatpush2.msra.mxu0 0.0
      %10198 = vmatprep.subr.mxu0 0.0
      %10199 = vmatpush2.msra.mxu0 0.0
      %10200 = vmatprep.subr.mxu0 0.0
      %10201 = vmatpush2.msra.mxu0 0.0
      %10202 = vmatprep.subr.mxu0 0.0
      %10203 = vmatpush2.msra.mxu0 0.0
      %10204 = vmatprep.subr.mxu0 0.0
      %10205 = vmatpush2.msra.mxu0 0.0
      %10206 = vmatprep.subr.mxu0 0.0
      %10207 = vmatpush2.msra.mxu0 0.0
      %10208 = vmatprep.subr.mxu0 0.0
      %10209 = vmatpush2.msra.mxu0 0.0
      %10210 = vmatprep.subr.mxu0 0.0
      %10211 = vmatpush2.msra.mxu0 0.0
      %10212 = vmatprep.subr.mxu0 0.0
      %10213 = vmatpush2.msra.mxu0 0.0
      %10214 = vmatprep.mubr.f32.mxu0 0.0
      %10215 = vmatmul.mubr.f32.gmra.mxu0 %v10127
      %v10216 = vpop.f32.mrf.mxu0
      %v10217 = vadd.f32 0.0, %v10216
      %v10218 = vpop.f32.mrf.mxu0
      %10219 = vmatprep.mubr.f32.mxu0 0.0
      %10220 = vmatmul.mubr.f32.gmra.mxu0 %v10130
      %v10221 = vpop.f32.mrf.mxu0
      %v10222 = vadd.f32 0.0, %v10221
      %v10223 = vpop.f32.mrf.mxu0
      %10224 = vmatprep.mubr.f32.mxu0 0.0
      %10225 = vmatmul.mubr.f32.gmra.mxu0 %v10133
      %v10226 = vpop.f32.mrf.mxu0
      %v10227 = vadd.f32 0.0, %v10226
      %v10228 = vpop.f32.mrf.mxu0
      %10229 = vmatprep.mubr.f32.mxu0 0.0
      %10230 = vmatmul.mubr.f32.gmra.mxu0 %v10136
      %v10231 = vpop.f32.mrf.mxu0
      %v10232 = vadd.f32 0.0, %v10231
      %v10233 = vpop.f32.mrf.mxu0
      %10234 = vmatprep.mubr.f32.mxu0 0.0
      %10235 = vmatmul.mubr.f32.gmra.mxu0 %v10139
      %v10236 = vpop.f32.mrf.mxu0
      %v10237 = vadd.f32 0.0, %v10236
      %v10238 = vpop.f32.mrf.mxu0
      %10239 = vmatprep.mubr.f32.mxu0 0.0
      %10240 = vmatmul.mubr.f32.gmra.mxu0 %v10142
      %v10241 = vpop.f32.mrf.mxu0
      %v10242 = vadd.f32 0.0, %v10241
      %v10243 = vpop.f32.mrf.mxu0
      %10244 = vmatprep.mubr.f32.mxu0 0.0
      %10245 = vmatmul.mubr.f32.gmra.mxu0 %v10145
      %v10246 = vpop.f32.mrf.mxu0
      %v10247 = vadd.f32 0.0, %v10246
      %v10248 = vpop.f32.mrf.mxu0
      %10249 = vmatprep.mubr.f32.mxu0 0.0
      %10250 = vmatmul.mubr.f32.gmra.mxu0 %v10148
      %v10251 = vpop.f32.mrf.mxu0
      %v10252 = vadd.f32 0.0, %v10251
      %v10253 = vpop.f32.mrf.mxu0
      %10254 = vdwg.mxu0
      %v10255 = vpack.c.bf16 %v9835, %v9830
      %v10256 = vpack.c.bf16 %v9845, %v9840
      %v10257 = vpack.c.bf16 %v9855, %v9850
      %v10258 = vpack.c.bf16 %v9865, %v9860
      %v10259 = vpack.c.bf16 %v9964, %v9959
      %v10260 = vpack.c.bf16 %v9974, %v9969
      %v10261 = vpack.c.bf16 %v9984, %v9979
      %v10262 = vpack.c.bf16 %v9994, %v9989
      %v10263 = vpack.c.bf16 %v10093, %v10088
      %v10264 = vpack.c.bf16 %v10103, %v10098
      %v10265 = vpack.c.bf16 %v10113, %v10108
      %v10266 = vpack.c.bf16 %v10123, %v10118
      %v10267 = vpack.c.bf16 %v10222, %v10217
      %v10268 = vpack.c.bf16 %v10232, %v10227
      %v10269 = vpack.c.bf16 %v10242, %v10237
      %v10270 = vpack.c.bf16 %v10252, %v10247
      %v10271 = vpack.c.bf16 %v9735, %v9735
      %v10272 = vpack.c.bf16 %v9736, %v9736
      %v10273 = vpack.c.bf16 %v9737, %v9737
      %v10274 = vpack.c.bf16 %v9738, %v9738
      %v10276 = vsel %vm833, %v10255, 0
      %v10279 = vsel %vm833, %v10256, 0
      %v10282 = vsel %vm833, %v10257, 0
      %v10285 = vsel %vm833, %v10258, 0
      %vm10287 = vcmask 1043456
      %v10289 = vsel %vm10287, %v10271, 0
      %10291 = vmatprep.subr.bf16.mxu0 0
      %10292 = vmatpush1.bf16.msra.mxu0 0
      %10293 = vmatprep.subr.bf16.mxu0 0
      %10294 = vmatpush1.bf16.msra.mxu0 0
      %10295 = vmatprep.subr.bf16.mxu0 0
      %10296 = vmatpush1.bf16.msra.mxu0 0
      %10297 = vmatprep.subr.bf16.mxu0 0
      %10298 = vmatpush1.bf16.msra.mxu0 0
      %10299 = vmatprep.subr.bf16.mxu0 0
      %10300 = vmatpush1.bf16.msra.mxu0 0
      %10301 = vmatprep.subr.bf16.mxu0 0
      %10302 = vmatpush1.bf16.msra.mxu0 0
      %10303 = vmatprep.subr.bf16.mxu0 0
      %10304 = vmatpush1.bf16.msra.mxu0 0
      %10305 = vmatprep.subr.bf16.mxu0 0
      %10306 = vmatpush1.bf16.msra.mxu0 %v10289
      %10307 = vmatprep.subr.bf16.mxu0 0
      %10308 = vmatpush2.bf16.msra.mxu0 0
      %10309 = vmatprep.subr.bf16.mxu0 0
      %10310 = vmatpush2.bf16.msra.mxu0 0
      %10311 = vmatprep.subr.bf16.mxu0 0
      %10312 = vmatpush2.bf16.msra.mxu0 0
      %10313 = vmatprep.subr.bf16.mxu0 0
      %10314 = vmatpush2.bf16.msra.mxu0 0
      %10315 = vmatprep.subr.bf16.mxu0 0
      %10316 = vmatpush2.bf16.msra.mxu0 0
      %10317 = vmatprep.subr.bf16.mxu0 0
      %10318 = vmatpush2.bf16.msra.mxu0 0
      %10319 = vmatprep.subr.bf16.mxu0 0
      %10320 = vmatpush2.bf16.msra.mxu0 0
      %10321 = vmatprep.subr.bf16.mxu0 0
      %10322 = vmatpush2.bf16.msra.mxu0 0
      %10323 = vmatprep.mubr.bf16.mxu0 0
      %10324 = vmatmul.mubr.bf16.gmra.mxu0 %v10276
      %v10325 = vpop.f32.mrf.mxu0
      %v10326 = vadd.f32 0.0, %v10325
      %v10327 = vpop.f32.mrf.mxu0
      %v10328 = vpop.f32.mrf.mxu0
      %v10329 = vadd.f32 0.0, %v10328
      %v10330 = vpop.f32.mrf.mxu0
      %10331 = vmatprep.mubr.bf16.mxu0 0
      %10332 = vmatmul.mubr.bf16.gmra.mxu0 %v10279
      %v10333 = vpop.f32.mrf.mxu0
      %v10334 = vadd.f32 0.0, %v10333
      %v10335 = vpop.f32.mrf.mxu0
      %v10336 = vpop.f32.mrf.mxu0
      %v10337 = vadd.f32 0.0, %v10336
      %v10338 = vpop.f32.mrf.mxu0
      %10339 = vmatprep.mubr.bf16.mxu0 0
      %10340 = vmatmul.mubr.bf16.gmra.mxu0 %v10282
      %v10341 = vpop.f32.mrf.mxu0
      %v10342 = vadd.f32 0.0, %v10341
      %v10343 = vpop.f32.mrf.mxu0
      %v10344 = vpop.f32.mrf.mxu0
      %v10345 = vadd.f32 0.0, %v10344
      %v10346 = vpop.f32.mrf.mxu0
      %10347 = vmatprep.mubr.bf16.mxu0 0
      %10348 = vmatmul.mubr.bf16.gmra.mxu0 %v10285
      %v10349 = vpop.f32.mrf.mxu0
      %v10350 = vadd.f32 0.0, %v10349
      %v10351 = vpop.f32.mrf.mxu0
      %v10352 = vpop.f32.mrf.mxu0
      %v10353 = vadd.f32 0.0, %v10352
      %v10354 = vpop.f32.mrf.mxu0
      %10355 = vdwg.mxu0
      %v10357 = vsel %vm833, %v10259, 0
      %v10360 = vsel %vm833, %v10260, 0
      %v10363 = vsel %vm833, %v10261, 0
      %v10366 = vsel %vm833, %v10262, 0
      %v10369 = vsel %vm10287, %v10272, 0
      %10371 = vmatprep.subr.bf16.mxu0 0
      %10372 = vmatpush1.bf16.msra.mxu0 0
      %10373 = vmatprep.subr.bf16.mxu0 0
      %10374 = vmatpush1.bf16.msra.mxu0 0
      %10375 = vmatprep.subr.bf16.mxu0 0
      %10376 = vmatpush1.bf16.msra.mxu0 0
      %10377 = vmatprep.subr.bf16.mxu0 0
      %10378 = vmatpush1.bf16.msra.mxu0 0
      %10379 = vmatprep.subr.bf16.mxu0 0
      %10380 = vmatpush1.bf16.msra.mxu0 0
      %10381 = vmatprep.subr.bf16.mxu0 0
      %10382 = vmatpush1.bf16.msra.mxu0 0
      %10383 = vmatprep.subr.bf16.mxu0 0
      %10384 = vmatpush1.bf16.msra.mxu0 0
      %10385 = vmatprep.subr.bf16.mxu0 0
      %10386 = vmatpush1.bf16.msra.mxu0 %v10369
      %10387 = vmatprep.subr.bf16.mxu0 0
      %10388 = vmatpush2.bf16.msra.mxu0 0
      %10389 = vmatprep.subr.bf16.mxu0 0
      %10390 = vmatpush2.bf16.msra.mxu0 0
      %10391 = vmatprep.subr.bf16.mxu0 0
      %10392 = vmatpush2.bf16.msra.mxu0 0
      %10393 = vmatprep.subr.bf16.mxu0 0
      %10394 = vmatpush2.bf16.msra.mxu0 0
      %10395 = vmatprep.subr.bf16.mxu0 0
      %10396 = vmatpush2.bf16.msra.mxu0 0
      %10397 = vmatprep.subr.bf16.mxu0 0
      %10398 = vmatpush2.bf16.msra.mxu0 0
      %10399 = vmatprep.subr.bf16.mxu0 0
      %10400 = vmatpush2.bf16.msra.mxu0 0
      %10401 = vmatprep.subr.bf16.mxu0 0
      %10402 = vmatpush2.bf16.msra.mxu0 0
      %10403 = vmatprep.mubr.bf16.mxu0 0
      %10404 = vmatmul.mubr.bf16.gmra.mxu0 %v10357
      %v10405 = vpop.f32.mrf.mxu0
      %v10406 = vadd.f32 0.0, %v10405
      %v10407 = vpop.f32.mrf.mxu0
      %v10408 = vpop.f32.mrf.mxu0
      %v10409 = vadd.f32 0.0, %v10408
      %v10410 = vpop.f32.mrf.mxu0
      %10411 = vmatprep.mubr.bf16.mxu0 0
      %10412 = vmatmul.mubr.bf16.gmra.mxu0 %v10360
      %v10413 = vpop.f32.mrf.mxu0
      %v10414 = vadd.f32 0.0, %v10413
      %v10415 = vpop.f32.mrf.mxu0
      %v10416 = vpop.f32.mrf.mxu0
      %v10417 = vadd.f32 0.0, %v10416
      %v10418 = vpop.f32.mrf.mxu0
      %10419 = vmatprep.mubr.bf16.mxu0 0
      %10420 = vmatmul.mubr.bf16.gmra.mxu0 %v10363
      %v10421 = vpop.f32.mrf.mxu0
      %v10422 = vadd.f32 0.0, %v10421
      %v10423 = vpop.f32.mrf.mxu0
      %v10424 = vpop.f32.mrf.mxu0
      %v10425 = vadd.f32 0.0, %v10424
      %v10426 = vpop.f32.mrf.mxu0
      %10427 = vmatprep.mubr.bf16.mxu0 0
      %10428 = vmatmul.mubr.bf16.gmra.mxu0 %v10366
      %v10429 = vpop.f32.mrf.mxu0
      %v10430 = vadd.f32 0.0, %v10429
      %v10431 = vpop.f32.mrf.mxu0
      %v10432 = vpop.f32.mrf.mxu0
      %v10433 = vadd.f32 0.0, %v10432
      %v10434 = vpop.f32.mrf.mxu0
      %10435 = vdwg.mxu0
      %v10437 = vsel %vm833, %v10263, 0
      %v10440 = vsel %vm833, %v10264, 0
      %v10443 = vsel %vm833, %v10265, 0
      %v10446 = vsel %vm833, %v10266, 0
      %v10449 = vsel %vm10287, %v10273, 0
      %10451 = vmatprep.subr.bf16.mxu0 0
      %10452 = vmatpush1.bf16.msra.mxu0 0
      %10453 = vmatprep.subr.bf16.mxu0 0
      %10454 = vmatpush1.bf16.msra.mxu0 0
      %10455 = vmatprep.subr.bf16.mxu0 0
      %10456 = vmatpush1.bf16.msra.mxu0 0
      %10457 = vmatprep.subr.bf16.mxu0 0
      %10458 = vmatpush1.bf16.msra.mxu0 0
      %10459 = vmatprep.subr.bf16.mxu0 0
      %10460 = vmatpush1.bf16.msra.mxu0 0
      %10461 = vmatprep.subr.bf16.mxu0 0
      %10462 = vmatpush1.bf16.msra.mxu0 0
      %10463 = vmatprep.subr.bf16.mxu0 0
      %10464 = vmatpush1.bf16.msra.mxu0 0
      %10465 = vmatprep.subr.bf16.mxu0 0
      %10466 = vmatpush1.bf16.msra.mxu0 %v10449
      %10467 = vmatprep.subr.bf16.mxu0 0
      %10468 = vmatpush2.bf16.msra.mxu0 0
      %10469 = vmatprep.subr.bf16.mxu0 0
      %10470 = vmatpush2.bf16.msra.mxu0 0
      %10471 = vmatprep.subr.bf16.mxu0 0
      %10472 = vmatpush2.bf16.msra.mxu0 0
      %10473 = vmatprep.subr.bf16.mxu0 0
      %10474 = vmatpush2.bf16.msra.mxu0 0
      %10475 = vmatprep.subr.bf16.mxu0 0
      %10476 = vmatpush2.bf16.msra.mxu0 0
      %10477 = vmatprep.subr.bf16.mxu0 0
      %10478 = vmatpush2.bf16.msra.mxu0 0
      %10479 = vmatprep.subr.bf16.mxu0 0
      %10480 = vmatpush2.bf16.msra.mxu0 0
      %10481 = vmatprep.subr.bf16.mxu0 0
      %10482 = vmatpush2.bf16.msra.mxu0 0
      %10483 = vmatprep.mubr.bf16.mxu0 0
      %10484 = vmatmul.mubr.bf16.gmra.mxu0 %v10437
      %v10485 = vpop.f32.mrf.mxu0
      %v10486 = vadd.f32 0.0, %v10485
      %v10487 = vpop.f32.mrf.mxu0
      %v10488 = vpop.f32.mrf.mxu0
      %v10489 = vadd.f32 0.0, %v10488
      %v10490 = vpop.f32.mrf.mxu0
      %10491 = vmatprep.mubr.bf16.mxu0 0
      %10492 = vmatmul.mubr.bf16.gmra.mxu0 %v10440
      %v10493 = vpop.f32.mrf.mxu0
      %v10494 = vadd.f32 0.0, %v10493
      %v10495 = vpop.f32.mrf.mxu0
      %v10496 = vpop.f32.mrf.mxu0
      %v10497 = vadd.f32 0.0, %v10496
      %v10498 = vpop.f32.mrf.mxu0
      %10499 = vmatprep.mubr.bf16.mxu0 0
      %10500 = vmatmul.mubr.bf16.gmra.mxu0 %v10443
      %v10501 = vpop.f32.mrf.mxu0
      %v10502 = vadd.f32 0.0, %v10501
      %v10503 = vpop.f32.mrf.mxu0
      %v10504 = vpop.f32.mrf.mxu0
      %v10505 = vadd.f32 0.0, %v10504
      %v10506 = vpop.f32.mrf.mxu0
      %10507 = vmatprep.mubr.bf16.mxu0 0
      %10508 = vmatmul.mubr.bf16.gmra.mxu0 %v10446
      %v10509 = vpop.f32.mrf.mxu0
      %v10510 = vadd.f32 0.0, %v10509
      %v10511 = vpop.f32.mrf.mxu0
      %v10512 = vpop.f32.mrf.mxu0
      %v10513 = vadd.f32 0.0, %v10512
      %v10514 = vpop.f32.mrf.mxu0
      %10515 = vdwg.mxu0
      %v10517 = vsel %vm833, %v10267, 0
      %v10520 = vsel %vm833, %v10268, 0
      %v10523 = vsel %vm833, %v10269, 0
      %v10526 = vsel %vm833, %v10270, 0
      %v10529 = vsel %vm10287, %v10274, 0
      %10531 = vmatprep.subr.bf16.mxu0 0
      %10532 = vmatpush1.bf16.msra.mxu0 0
      %10533 = vmatprep.subr.bf16.mxu0 0
      %10534 = vmatpush1.bf16.msra.mxu0 0
      %10535 = vmatprep.subr.bf16.mxu0 0
      %10536 = vmatpush1.bf16.msra.mxu0 0
      %10537 = vmatprep.subr.bf16.mxu0 0
      %10538 = vmatpush1.bf16.msra.mxu0 0
      %10539 = vmatprep.subr.bf16.mxu0 0
      %10540 = vmatpush1.bf16.msra.mxu0 0
      %10541 = vmatprep.subr.bf16.mxu0 0
      %10542 = vmatpush1.bf16.msra.mxu0 0
      %10543 = vmatprep.subr.bf16.mxu0 0
      %10544 = vmatpush1.bf16.msra.mxu0 0
      %10545 = vmatprep.subr.bf16.mxu0 0
      %10546 = vmatpush1.bf16.msra.mxu0 %v10529
      %10547 = vmatprep.subr.bf16.mxu0 0
      %10548 = vmatpush2.bf16.msra.mxu0 0
      %10549 = vmatprep.subr.bf16.mxu0 0
      %10550 = vmatpush2.bf16.msra.mxu0 0
      %10551 = vmatprep.subr.bf16.mxu0 0
      %10552 = vmatpush2.bf16.msra.mxu0 0
      %10553 = vmatprep.subr.bf16.mxu0 0
      %10554 = vmatpush2.bf16.msra.mxu0 0
      %10555 = vmatprep.subr.bf16.mxu0 0
      %10556 = vmatpush2.bf16.msra.mxu0 0
      %10557 = vmatprep.subr.bf16.mxu0 0
      %10558 = vmatpush2.bf16.msra.mxu0 0
      %10559 = vmatprep.subr.bf16.mxu0 0
      %10560 = vmatpush2.bf16.msra.mxu0 0
      %10561 = vmatprep.subr.bf16.mxu0 0
      %10562 = vmatpush2.bf16.msra.mxu0 0
      %10563 = vmatprep.mubr.bf16.mxu0 0
      %10564 = vmatmul.mubr.bf16.gmra.mxu0 %v10517
      %v10565 = vpop.f32.mrf.mxu0
      %v10566 = vadd.f32 0.0, %v10565
      %v10567 = vpop.f32.mrf.mxu0
      %v10568 = vpop.f32.mrf.mxu0
      %v10569 = vadd.f32 0.0, %v10568
      %v10570 = vpop.f32.mrf.mxu0
      %10571 = vmatprep.mubr.bf16.mxu0 0
      %10572 = vmatmul.mubr.bf16.gmra.mxu0 %v10520
      %v10573 = vpop.f32.mrf.mxu0
      %v10574 = vadd.f32 0.0, %v10573
      %v10575 = vpop.f32.mrf.mxu0
      %v10576 = vpop.f32.mrf.mxu0
      %v10577 = vadd.f32 0.0, %v10576
      %v10578 = vpop.f32.mrf.mxu0
      %10579 = vmatprep.mubr.bf16.mxu0 0
      %10580 = vmatmul.mubr.bf16.gmra.mxu0 %v10523
      %v10581 = vpop.f32.mrf.mxu0
      %v10582 = vadd.f32 0.0, %v10581
      %v10583 = vpop.f32.mrf.mxu0
      %v10584 = vpop.f32.mrf.mxu0
      %v10585 = vadd.f32 0.0, %v10584
      %v10586 = vpop.f32.mrf.mxu0
      %10587 = vmatprep.mubr.bf16.mxu0 0
      %10588 = vmatmul.mubr.bf16.gmra.mxu0 %v10526
      %v10589 = vpop.f32.mrf.mxu0
      %v10590 = vadd.f32 0.0, %v10589
      %v10591 = vpop.f32.mrf.mxu0
      %v10592 = vpop.f32.mrf.mxu0
      %v10593 = vadd.f32 0.0, %v10592
      %v10594 = vpop.f32.mrf.mxu0
      %10595 = vdwg.mxu0
      %v10596 = vpack.c.bf16 %v10329, %v10326
      %v10597 = vpack.c.bf16 %v10337, %v10334
      %v10598 = vpack.c.bf16 %v10345, %v10342
      %v10599 = vpack.c.bf16 %v10353, %v10350
      %v10600 = vpack.c.bf16 %v10409, %v10406
      %v10601 = vpack.c.bf16 %v10417, %v10414
      %v10602 = vpack.c.bf16 %v10425, %v10422
      %v10603 = vpack.c.bf16 %v10433, %v10430
      %v10604 = vpack.c.bf16 %v10489, %v10486
      %v10605 = vpack.c.bf16 %v10497, %v10494
      %v10606 = vpack.c.bf16 %v10505, %v10502
      %v10607 = vpack.c.bf16 %v10513, %v10510
      %v10608 = vpack.c.bf16 %v10569, %v10566
      %v10609 = vpack.c.bf16 %v10577, %v10574
      %v10610 = vpack.c.bf16 %v10585, %v10582
      %v10611 = vpack.c.bf16 %v10593, %v10590
      %10612 = vrot.lane.b32.xlu0 %v745, 64
      %v10613 = vpop.permute.xlu0 %10612
      %10614 = vrot.lane.b32.xlu0 %v746, 64
      %v10615 = vpop.permute.xlu0 %10614
      %10616 = vrot.lane.b32.xlu0 %v747, 64
      %v10617 = vpop.permute.xlu0 %10616
      %10618 = vrot.lane.b32.xlu0 %v748, 64
      %v10619 = vpop.permute.xlu0 %10618
      %v10625 = vsel %vm9694, %v10596, 0
      %v10628 = vsel %vm9694, %v10597, 0
      %v10631 = vsel %vm9694, %v10598, 0
      %v10634 = vsel %vm9694, %v10599, 0
      %10636 = vmatprep.subr.bf16.mxu0 0
      %10637 = vmatpush1.bf16.msra.mxu0 0
      %10638 = vmatprep.subr.bf16.mxu0 0
      %10639 = vmatpush1.bf16.msra.mxu0 0
      %10640 = vmatprep.subr.bf16.mxu0 0
      %10641 = vmatpush1.bf16.msra.mxu0 0
      %10642 = vmatprep.subr.bf16.mxu0 0
      %10643 = vmatpush1.bf16.msra.mxu0 0
      %10644 = vmatprep.subr.bf16.mxu0 0
      %10645 = vmatpush1.bf16.msra.mxu0 %v10619
      %10646 = vmatprep.subr.bf16.mxu0 0
      %10647 = vmatpush1.bf16.msra.mxu0 %v10617
      %10648 = vmatprep.subr.bf16.mxu0 0
      %10649 = vmatpush1.bf16.msra.mxu0 %v10615
      %10650 = vmatprep.subr.bf16.mxu0 0
      %10651 = vmatpush1.bf16.msra.mxu0 %v10613
      %10652 = vmatprep.subr.bf16.mxu0 0
      %10653 = vmatpush2.bf16.msra.mxu0 0
      %10654 = vmatprep.subr.bf16.mxu0 0
      %10655 = vmatpush2.bf16.msra.mxu0 0
      %10656 = vmatprep.subr.bf16.mxu0 0
      %10657 = vmatpush2.bf16.msra.mxu0 0
      %10658 = vmatprep.subr.bf16.mxu0 0
      %10659 = vmatpush2.bf16.msra.mxu0 0
      %10660 = vmatprep.subr.bf16.mxu0 0
      %10661 = vmatpush2.bf16.msra.mxu0 0
      %10662 = vmatprep.subr.bf16.mxu0 0
      %10663 = vmatpush2.bf16.msra.mxu0 0
      %10664 = vmatprep.subr.bf16.mxu0 0
      %10665 = vmatpush2.bf16.msra.mxu0 0
      %10666 = vmatprep.subr.bf16.mxu0 0
      %10667 = vmatpush2.bf16.msra.mxu0 0
      %10668 = vmatprep.mubr.bf16.mxu0 0
      %10669 = vmatmul.mubr.bf16.gmra.mxu0 %v10625
      %v10670 = vpop.f32.mrf.mxu0
      %v10671 = vadd.f32 0.0, %v10670
      %v10672 = vpop.f32.mrf.mxu0
      %v10673 = vpop.f32.mrf.mxu0
      %v10674 = vadd.f32 0.0, %v10673
      %v10675 = vpop.f32.mrf.mxu0
      %10676 = vmatprep.mubr.bf16.mxu0 0
      %10677 = vmatmul.mubr.bf16.gmra.mxu0 %v10628
      %v10678 = vpop.f32.mrf.mxu0
      %v10679 = vadd.f32 0.0, %v10678
      %v10680 = vpop.f32.mrf.mxu0
      %v10681 = vpop.f32.mrf.mxu0
      %v10682 = vadd.f32 0.0, %v10681
      %v10683 = vpop.f32.mrf.mxu0
      %10684 = vmatprep.mubr.bf16.mxu0 0
      %10685 = vmatmul.mubr.bf16.gmra.mxu0 %v10631
      %v10686 = vpop.f32.mrf.mxu0
      %v10687 = vadd.f32 0.0, %v10686
      %v10688 = vpop.f32.mrf.mxu0
      %v10689 = vpop.f32.mrf.mxu0
      %v10690 = vadd.f32 0.0, %v10689
      %v10691 = vpop.f32.mrf.mxu0
      %10692 = vmatprep.mubr.bf16.mxu0 0
      %10693 = vmatmul.mubr.bf16.gmra.mxu0 %v10634
      %v10694 = vpop.f32.mrf.mxu0
      %v10695 = vadd.f32 0.0, %v10694
      %v10696 = vpop.f32.mrf.mxu0
      %v10697 = vpop.f32.mrf.mxu0
      %v10698 = vadd.f32 0.0, %v10697
      %v10699 = vpop.f32.mrf.mxu0
      %10700 = vdwg.mxu0
      %10701 = vrot.lane.b32.xlu0 %v749, 64
      %v10702 = vpop.permute.xlu0 %10701
      %10703 = vrot.lane.b32.xlu0 %v750, 64
      %v10704 = vpop.permute.xlu0 %10703
      %10705 = vrot.lane.b32.xlu0 %v751, 64
      %v10706 = vpop.permute.xlu0 %10705
      %10707 = vrot.lane.b32.xlu0 %v752, 64
      %v10708 = vpop.permute.xlu0 %10707
      %v10714 = vsel %vm9694, %v10600, 0
      %v10717 = vsel %vm9694, %v10601, 0
      %v10720 = vsel %vm9694, %v10602, 0
      %v10723 = vsel %vm9694, %v10603, 0
      %10725 = vmatprep.subr.bf16.mxu0 0
      %10726 = vmatpush1.bf16.msra.mxu0 0
      %10727 = vmatprep.subr.bf16.mxu0 0
      %10728 = vmatpush1.bf16.msra.mxu0 0
      %10729 = vmatprep.subr.bf16.mxu0 0
      %10730 = vmatpush1.bf16.msra.mxu0 0
      %10731 = vmatprep.subr.bf16.mxu0 0
      %10732 = vmatpush1.bf16.msra.mxu0 0
      %10733 = vmatprep.subr.bf16.mxu0 0
      %10734 = vmatpush1.bf16.msra.mxu0 %v10708
      %10735 = vmatprep.subr.bf16.mxu0 0
      %10736 = vmatpush1.bf16.msra.mxu0 %v10706
      %10737 = vmatprep.subr.bf16.mxu0 0
      %10738 = vmatpush1.bf16.msra.mxu0 %v10704
      %10739 = vmatprep.subr.bf16.mxu0 0
      %10740 = vmatpush1.bf16.msra.mxu0 %v10702
      %10741 = vmatprep.subr.bf16.mxu0 0
      %10742 = vmatpush2.bf16.msra.mxu0 0
      %10743 = vmatprep.subr.bf16.mxu0 0
      %10744 = vmatpush2.bf16.msra.mxu0 0
      %10745 = vmatprep.subr.bf16.mxu0 0
      %10746 = vmatpush2.bf16.msra.mxu0 0
      %10747 = vmatprep.subr.bf16.mxu0 0
      %10748 = vmatpush2.bf16.msra.mxu0 0
      %10749 = vmatprep.subr.bf16.mxu0 0
      %10750 = vmatpush2.bf16.msra.mxu0 0
      %10751 = vmatprep.subr.bf16.mxu0 0
      %10752 = vmatpush2.bf16.msra.mxu0 0
      %10753 = vmatprep.subr.bf16.mxu0 0
      %10754 = vmatpush2.bf16.msra.mxu0 0
      %10755 = vmatprep.subr.bf16.mxu0 0
      %10756 = vmatpush2.bf16.msra.mxu0 0
      %10757 = vmatprep.mubr.bf16.mxu0 0
      %10758 = vmatmul.mubr.bf16.gmra.mxu0 %v10714
      %v10759 = vpop.f32.mrf.mxu0
      %v10760 = vadd.f32 0.0, %v10759
      %v10761 = vpop.f32.mrf.mxu0
      %v10762 = vpop.f32.mrf.mxu0
      %v10763 = vadd.f32 0.0, %v10762
      %v10764 = vpop.f32.mrf.mxu0
      %10765 = vmatprep.mubr.bf16.mxu0 0
      %10766 = vmatmul.mubr.bf16.gmra.mxu0 %v10717
      %v10767 = vpop.f32.mrf.mxu0
      %v10768 = vadd.f32 0.0, %v10767
      %v10769 = vpop.f32.mrf.mxu0
      %v10770 = vpop.f32.mrf.mxu0
      %v10771 = vadd.f32 0.0, %v10770
      %v10772 = vpop.f32.mrf.mxu0
      %10773 = vmatprep.mubr.bf16.mxu0 0
      %10774 = vmatmul.mubr.bf16.gmra.mxu0 %v10720
      %v10775 = vpop.f32.mrf.mxu0
      %v10776 = vadd.f32 0.0, %v10775
      %v10777 = vpop.f32.mrf.mxu0
      %v10778 = vpop.f32.mrf.mxu0
      %v10779 = vadd.f32 0.0, %v10778
      %v10780 = vpop.f32.mrf.mxu0
      %10781 = vmatprep.mubr.bf16.mxu0 0
      %10782 = vmatmul.mubr.bf16.gmra.mxu0 %v10723
      %v10783 = vpop.f32.mrf.mxu0
      %v10784 = vadd.f32 0.0, %v10783
      %v10785 = vpop.f32.mrf.mxu0
      %v10786 = vpop.f32.mrf.mxu0
      %v10787 = vadd.f32 0.0, %v10786
      %v10788 = vpop.f32.mrf.mxu0
      %10789 = vdwg.mxu0
      %10790 = vrot.lane.b32.xlu0 %v753, 64
      %v10791 = vpop.permute.xlu0 %10790
      %10792 = vrot.lane.b32.xlu0 %v754, 64
      %v10793 = vpop.permute.xlu0 %10792
      %10794 = vrot.lane.b32.xlu0 %v755, 64
      %v10795 = vpop.permute.xlu0 %10794
      %10796 = vrot.lane.b32.xlu0 %v756, 64
      %v10797 = vpop.permute.xlu0 %10796
      %v10803 = vsel %vm9694, %v10604, 0
      %v10806 = vsel %vm9694, %v10605, 0
      %v10809 = vsel %vm9694, %v10606, 0
      %v10812 = vsel %vm9694, %v10607, 0
      %10814 = vmatprep.subr.bf16.mxu0 0
      %10815 = vmatpush1.bf16.msra.mxu0 0
      %10816 = vmatprep.subr.bf16.mxu0 0
      %10817 = vmatpush1.bf16.msra.mxu0 0
      %10818 = vmatprep.subr.bf16.mxu0 0
      %10819 = vmatpush1.bf16.msra.mxu0 0
      %10820 = vmatprep.subr.bf16.mxu0 0
      %10821 = vmatpush1.bf16.msra.mxu0 0
      %10822 = vmatprep.subr.bf16.mxu0 0
      %10823 = vmatpush1.bf16.msra.mxu0 %v10797
      %10824 = vmatprep.subr.bf16.mxu0 0
      %10825 = vmatpush1.bf16.msra.mxu0 %v10795
      %10826 = vmatprep.subr.bf16.mxu0 0
      %10827 = vmatpush1.bf16.msra.mxu0 %v10793
      %10828 = vmatprep.subr.bf16.mxu0 0
      %10829 = vmatpush1.bf16.msra.mxu0 %v10791
      %10830 = vmatprep.subr.bf16.mxu0 0
      %10831 = vmatpush2.bf16.msra.mxu0 0
      %10832 = vmatprep.subr.bf16.mxu0 0
      %10833 = vmatpush2.bf16.msra.mxu0 0
      %10834 = vmatprep.subr.bf16.mxu0 0
      %10835 = vmatpush2.bf16.msra.mxu0 0
      %10836 = vmatprep.subr.bf16.mxu0 0
      %10837 = vmatpush2.bf16.msra.mxu0 0
      %10838 = vmatprep.subr.bf16.mxu0 0
      %10839 = vmatpush2.bf16.msra.mxu0 0
      %10840 = vmatprep.subr.bf16.mxu0 0
      %10841 = vmatpush2.bf16.msra.mxu0 0
      %10842 = vmatprep.subr.bf16.mxu0 0
      %10843 = vmatpush2.bf16.msra.mxu0 0
      %10844 = vmatprep.subr.bf16.mxu0 0
      %10845 = vmatpush2.bf16.msra.mxu0 0
      %10846 = vmatprep.mubr.bf16.mxu0 0
      %10847 = vmatmul.mubr.bf16.gmra.mxu0 %v10803
      %v10848 = vpop.f32.mrf.mxu0
      %v10849 = vadd.f32 0.0, %v10848
      %v10850 = vpop.f32.mrf.mxu0
      %v10851 = vpop.f32.mrf.mxu0
      %v10852 = vadd.f32 0.0, %v10851
      %v10853 = vpop.f32.mrf.mxu0
      %10854 = vmatprep.mubr.bf16.mxu0 0
      %10855 = vmatmul.mubr.bf16.gmra.mxu0 %v10806
      %v10856 = vpop.f32.mrf.mxu0
      %v10857 = vadd.f32 0.0, %v10856
      %v10858 = vpop.f32.mrf.mxu0
      %v10859 = vpop.f32.mrf.mxu0
      %v10860 = vadd.f32 0.0, %v10859
      %v10861 = vpop.f32.mrf.mxu0
      %10862 = vmatprep.mubr.bf16.mxu0 0
      %10863 = vmatmul.mubr.bf16.gmra.mxu0 %v10809
      %v10864 = vpop.f32.mrf.mxu0
      %v10865 = vadd.f32 0.0, %v10864
      %v10866 = vpop.f32.mrf.mxu0
      %v10867 = vpop.f32.mrf.mxu0
      %v10868 = vadd.f32 0.0, %v10867
      %v10869 = vpop.f32.mrf.mxu0
      %10870 = vmatprep.mubr.bf16.mxu0 0
      %10871 = vmatmul.mubr.bf16.gmra.mxu0 %v10812
      %v10872 = vpop.f32.mrf.mxu0
      %v10873 = vadd.f32 0.0, %v10872
      %v10874 = vpop.f32.mrf.mxu0
      %v10875 = vpop.f32.mrf.mxu0
      %v10876 = vadd.f32 0.0, %v10875
      %v10877 = vpop.f32.mrf.mxu0
      %10878 = vdwg.mxu0
      %10879 = vrot.lane.b32.xlu0 %v757, 64
      %v10880 = vpop.permute.xlu0 %10879
      %10881 = vrot.lane.b32.xlu0 %v758, 64
      %v10882 = vpop.permute.xlu0 %10881
      %10883 = vrot.lane.b32.xlu0 %v759, 64
      %v10884 = vpop.permute.xlu0 %10883
      %10885 = vrot.lane.b32.xlu0 %v760, 64
      %v10886 = vpop.permute.xlu0 %10885
      %v10892 = vsel %vm9694, %v10608, 0
      %v10895 = vsel %vm9694, %v10609, 0
      %v10898 = vsel %vm9694, %v10610, 0
      %v10901 = vsel %vm9694, %v10611, 0
      %10903 = vmatprep.subr.bf16.mxu0 0
      %10904 = vmatpush1.bf16.msra.mxu0 0
      %10905 = vmatprep.subr.bf16.mxu0 0
      %10906 = vmatpush1.bf16.msra.mxu0 0
      %10907 = vmatprep.subr.bf16.mxu0 0
      %10908 = vmatpush1.bf16.msra.mxu0 0
      %10909 = vmatprep.subr.bf16.mxu0 0
      %10910 = vmatpush1.bf16.msra.mxu0 0
      %10911 = vmatprep.subr.bf16.mxu0 0
      %10912 = vmatpush1.bf16.msra.mxu0 %v10886
      %10913 = vmatprep.subr.bf16.mxu0 0
      %10914 = vmatpush1.bf16.msra.mxu0 %v10884
      %10915 = vmatprep.subr.bf16.mxu0 0
      %10916 = vmatpush1.bf16.msra.mxu0 %v10882
      %10917 = vmatprep.subr.bf16.mxu0 0
      %10918 = vmatpush1.bf16.msra.mxu0 %v10880
      %10919 = vmatprep.subr.bf16.mxu0 0
      %10920 = vmatpush2.bf16.msra.mxu0 0
      %10921 = vmatprep.subr.bf16.mxu0 0
      %10922 = vmatpush2.bf16.msra.mxu0 0
      %10923 = vmatprep.subr.bf16.mxu0 0
      %10924 = vmatpush2.bf16.msra.mxu0 0
      %10925 = vmatprep.subr.bf16.mxu0 0
      %10926 = vmatpush2.bf16.msra.mxu0 0
      %10927 = vmatprep.subr.bf16.mxu0 0
      %10928 = vmatpush2.bf16.msra.mxu0 0
      %10929 = vmatprep.subr.bf16.mxu0 0
      %10930 = vmatpush2.bf16.msra.mxu0 0
      %10931 = vmatprep.subr.bf16.mxu0 0
      %10932 = vmatpush2.bf16.msra.mxu0 0
      %10933 = vmatprep.subr.bf16.mxu0 0
      %10934 = vmatpush2.bf16.msra.mxu0 0
      %10935 = vmatprep.mubr.bf16.mxu0 0
      %10936 = vmatmul.mubr.bf16.gmra.mxu0 %v10892
      %v10937 = vpop.f32.mrf.mxu0
      %v10938 = vadd.f32 0.0, %v10937
      %v10939 = vpop.f32.mrf.mxu0
      %v10940 = vpop.f32.mrf.mxu0
      %v10941 = vadd.f32 0.0, %v10940
      %v10942 = vpop.f32.mrf.mxu0
      %10943 = vmatprep.mubr.bf16.mxu0 0
      %10944 = vmatmul.mubr.bf16.gmra.mxu0 %v10895
      %v10945 = vpop.f32.mrf.mxu0
      %v10946 = vadd.f32 0.0, %v10945
      %v10947 = vpop.f32.mrf.mxu0
      %v10948 = vpop.f32.mrf.mxu0
      %v10949 = vadd.f32 0.0, %v10948
      %v10950 = vpop.f32.mrf.mxu0
      %10951 = vmatprep.mubr.bf16.mxu0 0
      %10952 = vmatmul.mubr.bf16.gmra.mxu0 %v10898
      %v10953 = vpop.f32.mrf.mxu0
      %v10954 = vadd.f32 0.0, %v10953
      %v10955 = vpop.f32.mrf.mxu0
      %v10956 = vpop.f32.mrf.mxu0
      %v10957 = vadd.f32 0.0, %v10956
      %v10958 = vpop.f32.mrf.mxu0
      %10959 = vmatprep.mubr.bf16.mxu0 0
      %10960 = vmatmul.mubr.bf16.gmra.mxu0 %v10901
      %v10961 = vpop.f32.mrf.mxu0
      %v10962 = vadd.f32 0.0, %v10961
      %v10963 = vpop.f32.mrf.mxu0
      %v10964 = vpop.f32.mrf.mxu0
      %v10965 = vadd.f32 0.0, %v10964
      %v10966 = vpop.f32.mrf.mxu0
      %10967 = vdwg.mxu0
      %10976 = vrot.lane.b32.xlu0 %v10760, 8
      %v10977 = vpop.permute.xlu0 %10976
      %10978 = vrot.lane.b32.xlu0 %v10763, 8
      %v10979 = vpop.permute.xlu0 %10978
      %10980 = vrot.lane.b32.xlu0 %v10768, 8
      %v10981 = vpop.permute.xlu0 %10980
      %10982 = vrot.lane.b32.xlu0 %v10771, 8
      %v10983 = vpop.permute.xlu0 %10982
      %10984 = vrot.lane.b32.xlu0 %v10776, 8
      %v10985 = vpop.permute.xlu0 %10984
      %10986 = vrot.lane.b32.xlu0 %v10779, 8
      %v10987 = vpop.permute.xlu0 %10986
      %10988 = vrot.lane.b32.xlu0 %v10784, 8
      %v10989 = vpop.permute.xlu0 %10988
      %10990 = vrot.lane.b32.xlu0 %v10787, 8
      %v10991 = vpop.permute.xlu0 %10990
      %11008 = vrot.lane.b32.xlu0 %v10849, 16
      %v11009 = vpop.permute.xlu0 %11008
      %11010 = vrot.lane.b32.xlu0 %v10852, 16
      %v11011 = vpop.permute.xlu0 %11010
      %11012 = vrot.lane.b32.xlu0 %v10857, 16
      %v11013 = vpop.permute.xlu0 %11012
      %11014 = vrot.lane.b32.xlu0 %v10860, 16
      %v11015 = vpop.permute.xlu0 %11014
      %11016 = vrot.lane.b32.xlu0 %v10865, 16
      %v11017 = vpop.permute.xlu0 %11016
      %11018 = vrot.lane.b32.xlu0 %v10868, 16
      %v11019 = vpop.permute.xlu0 %11018
      %11020 = vrot.lane.b32.xlu0 %v10873, 16
      %v11021 = vpop.permute.xlu0 %11020
      %11022 = vrot.lane.b32.xlu0 %v10876, 16
      %v11023 = vpop.permute.xlu0 %11022
      %11040 = vrot.lane.b32.xlu0 %v10938, 24
      %v11041 = vpop.permute.xlu0 %11040
      %11042 = vrot.lane.b32.xlu0 %v10941, 24
      %v11043 = vpop.permute.xlu0 %11042
      %11044 = vrot.lane.b32.xlu0 %v10946, 24
      %v11045 = vpop.permute.xlu0 %11044
      %11046 = vrot.lane.b32.xlu0 %v10949, 24
      %v11047 = vpop.permute.xlu0 %11046
      %11048 = vrot.lane.b32.xlu0 %v10954, 24
      %v11049 = vpop.permute.xlu0 %11048
      %11050 = vrot.lane.b32.xlu0 %v10957, 24
      %v11051 = vpop.permute.xlu0 %11050
      %11052 = vrot.lane.b32.xlu0 %v10962, 24
      %v11053 = vpop.permute.xlu0 %11052
      %11054 = vrot.lane.b32.xlu0 %v10965, 24
      %v11055 = vpop.permute.xlu0 %11054
      %v11064 = vsel %vm833, %v10671, %v10977
      %v11065 = vsel %vm833, %v10674, %v10979
      %v11066 = vsel %vm833, %v10679, %v10981
      %v11067 = vsel %vm833, %v10682, %v10983
      %v11068 = vsel %vm833, %v10687, %v10985
      %v11069 = vsel %vm833, %v10690, %v10987
      %v11070 = vsel %vm833, %v10695, %v10989
      %v11071 = vsel %vm833, %v10698, %v10991
      %vm11072 = vcmask 130048
      %v11073 = vsel %vm11072, %v11064, %v11009
      %v11074 = vsel %vm11072, %v11065, %v11011
      %v11075 = vsel %vm11072, %v11066, %v11013
      %v11076 = vsel %vm11072, %v11067, %v11015
      %v11077 = vsel %vm11072, %v11068, %v11017
      %v11078 = vsel %vm11072, %v11069, %v11019
      %v11079 = vsel %vm11072, %v11070, %v11021
      %v11080 = vsel %vm11072, %v11071, %v11023
      %vm11081 = vcmask 195584
      %v11082 = vsel %vm11081, %v11073, %v11041
      %v11083 = vsel %vm11081, %v11074, %v11043
      %v11084 = vsel %vm11081, %v11075, %v11045
      %v11085 = vsel %vm11081, %v11076, %v11047
      %v11086 = vsel %vm11081, %v11077, %v11049
      %v11087 = vsel %vm11081, %v11078, %v11051
      %v11088 = vsel %vm11081, %v11079, %v11053
      %v11089 = vsel %vm11081, %v11080, %v11055
      %v11090 = vpack.c.bf16 %v11083, %v11082
      %v11091 = vpack.c.bf16 %v11085, %v11084
      %v11092 = vpack.c.bf16 %v11087, %v11086
      %v11093 = vpack.c.bf16 %v11089, %v11088
      %v11094 = vld [vmem:[%s3] sm:$0xff]
      %v11095 = vld [vmem:[%s3 + $0x8] sm:$0xff]
      %v11096 = vld [vmem:[%s3 + $0x10] sm:$0xff]
      %v11097 = vld [vmem:[%s3 + $0x18] sm:$0xff]
      %v11098 = vpack.c.bf16 %v11095, %v11094
      %v11099 = vpack.c.bf16 %v11097, %v11096
      %v11100 = vld [vmem:[%s4] sm:$0x1]
      %v11102 = vlaneseq
      %v11103 = vshrl.u32 %v11102, 7
      %v11104 = vsub.s32 0, %v11103
      %v11105 = vrot.slane %v11100, %v11104
      %v11108 = vsel %vm245, %v11090, 0
      %v11111 = vsel %vm245, %v11091, 0
      %v11114 = vsel %vm245, %v11092, 0
      %v11117 = vsel %vm245, %v11093, 0
      %11119 = vmatprep.subr.bf16.mxu0 0
      %11120 = vmatpush1.bf16.msra.mxu0 0
      %11121 = vmatprep.subr.bf16.mxu0 0
      %11122 = vmatpush1.bf16.msra.mxu0 0
      %11123 = vmatprep.subr.bf16.mxu0 0
      %11124 = vmatpush1.bf16.msra.mxu0 0
      %11125 = vmatprep.subr.bf16.mxu0 0
      %11126 = vmatpush1.bf16.msra.mxu0 0
      %11127 = vmatprep.subr.bf16.mxu0 0
      %11128 = vmatpush1.bf16.msra.mxu0 0
      %11129 = vmatprep.subr.bf16.mxu0 0
      %11130 = vmatpush1.bf16.msra.mxu0 0
      %11131 = vmatprep.subr.bf16.mxu0 0
      %11132 = vmatpush1.bf16.msra.mxu0 %v11099
      %11133 = vmatprep.subr.bf16.mxu0 0
      %11134 = vmatpush1.bf16.msra.mxu0 %v11098
      %11135 = vmatprep.subr.bf16.mxu0 0
      %11136 = vmatpush2.bf16.msra.mxu0 0
      %11137 = vmatprep.subr.bf16.mxu0 0
      %11138 = vmatpush2.bf16.msra.mxu0 0
      %11139 = vmatprep.subr.bf16.mxu0 0
      %11140 = vmatpush2.bf16.msra.mxu0 0
      %11141 = vmatprep.subr.bf16.mxu0 0
      %11142 = vmatpush2.bf16.msra.mxu0 0
      %11143 = vmatprep.subr.bf16.mxu0 0
      %11144 = vmatpush2.bf16.msra.mxu0 0
      %11145 = vmatprep.subr.bf16.mxu0 0
      %11146 = vmatpush2.bf16.msra.mxu0 0
      %11147 = vmatprep.subr.bf16.mxu0 0
      %11148 = vmatpush2.bf16.msra.mxu0 0
      %11149 = vmatprep.subr.bf16.mxu0 0
      %11150 = vmatpush2.bf16.msra.mxu0 0
      %11151 = vmatprep.mubr.bf16.mxu0 0
      %11152 = vmatmul.mubr.bf16.gmra.mxu0 %v11108
      %v11153 = vpop.f32.mrf.mxu0
      %v11154 = vadd.f32 %v11105, %v11153
      %v11155 = vpop.f32.mrf.mxu0
      %v11156 = vpop.f32.mrf.mxu0
      %v11157 = vadd.f32 %v11105, %v11156
      %v11158 = vpop.f32.mrf.mxu0
      %11159 = vmatprep.mubr.bf16.mxu0 0
      %11160 = vmatmul.mubr.bf16.gmra.mxu0 %v11111
      %v11161 = vpop.f32.mrf.mxu0
      %v11162 = vadd.f32 %v11105, %v11161
      %v11163 = vpop.f32.mrf.mxu0
      %v11164 = vpop.f32.mrf.mxu0
      %v11165 = vadd.f32 %v11105, %v11164
      %v11166 = vpop.f32.mrf.mxu0
      %11167 = vmatprep.mubr.bf16.mxu0 0
      %11168 = vmatmul.mubr.bf16.gmra.mxu0 %v11114
      %v11169 = vpop.f32.mrf.mxu0
      %v11170 = vadd.f32 %v11105, %v11169
      %v11171 = vpop.f32.mrf.mxu0
      %v11172 = vpop.f32.mrf.mxu0
      %v11173 = vadd.f32 %v11105, %v11172
      %v11174 = vpop.f32.mrf.mxu0
      %11175 = vmatprep.mubr.bf16.mxu0 0
      %11176 = vmatmul.mubr.bf16.gmra.mxu0 %v11117
      %v11177 = vpop.f32.mrf.mxu0
      %v11178 = vadd.f32 %v11105, %v11177
      %v11179 = vpop.f32.mrf.mxu0
      %v11180 = vpop.f32.mrf.mxu0
      %v11181 = vadd.f32 %v11105, %v11180
      %v11182 = vpop.f32.mrf.mxu0
      %11183 = vdwg.mxu0
      %11184 = vst.msk [vmem:[%s224] sm:$0xff] %vm245, %v11154
      %11185 = vst.msk [vmem:[%s224 + $0x8] sm:$0xff] %vm245, %v11157
      %11186 = vst.msk [vmem:[%s224 + $0x10] sm:$0xff] %vm245, %v11162
      %11187 = vst.msk [vmem:[%s224 + $0x18] sm:$0xff] %vm245, %v11165
      %11188 = vst.msk [vmem:[%s224 + $0x20] sm:$0xff] %vm245, %v11170
      %11189 = vst.msk [vmem:[%s224 + $0x28] sm:$0xff] %vm245, %v11173
      %11190 = vst.msk [vmem:[%s224 + $0x30] sm:$0xff] %vm245, %v11178
      %11191 = vst.msk [vmem:[%s224 + $0x38] sm:$0xff] %vm245, %v11181
      %p11192 = scmp.lt.s32.totalorder %s16, 1
      %s11193 = scalar_select %p11192, %s16, 1
      %s11194 = smul.addr %s11193, 8
      %s11195 = smul.addr %s11194, 8
      %s11196 = scalar_lea.vmem %s5, %s11195
      // Predicated region
      $region41: #{tpu_custom_call.1} parent=39 // pred_check
        %p11197 = pneg %p144
      $region42: #{tpu_custom_call.1} parent=39 // pred_check_branch
        %11199 = sbr.rel (%p11197) target = $region44
      $region43: #{tpu_custom_call.1} parent=39 // pred_region
        _
      $region44: #{tpu_custom_call.1} parent=39 // pred_fallthru
        _
    $region40: #{tpu_custom_call.1} parent=5 // pred_fallthru
      _
    %p11200 = scmp.le.s32.totalorder 2, %s11
    // Predicated region
    $region45: #{tpu_custom_call.1} parent=5 // pred_check
      %p11201 = pneg %p11200
    $region46: #{tpu_custom_call.1} parent=5 // pred_check_branch
      %11203 = sbr.rel (%p11201) target = $region48
    $region47: #{tpu_custom_call.1} parent=5 // pred_region
      %s11204 = ssub.s32 %s11, 2
      // Predicated region
      $region49: #{tpu_custom_call.1} parent=47 // pred_check
        %p11205 = pneg %p150
      $region50: #{tpu_custom_call.1} parent=47 // pred_check_branch
        %11207 = sbr.rel (%p11205) target = $region52
      $region51: #{tpu_custom_call.1} parent=47 // pred_region
        %p11208 = scmp.lt.s32.totalorder %s17, 1
        %s11209 = scalar_select %p11208, %s17, 1
        %s11210 = smul.addr %s11209, 8
        %s11211 = smul.addr %s11210, 8
        %s11212 = scalar_lea.vmem %s5, %s11211
      $region52: #{tpu_custom_call.1} parent=47 // pred_fallthru
        _
    $region48: #{tpu_custom_call.1} parent=5 // pred_fallthru
      _
  $region6: #{tpu_custom_call.1} parent=0 // loop_footer
    %s15 = sadd.s32 1, %s11
  $region7: #{tpu_custom_call.1} parent=0 // loop_footer_branch
    %10 = sbr.rel target = $region3
  $region8: #{tpu_custom_call.1} parent=0 // loop_exit
    _

</llo_original>
